<compile_context>
chip_gen: v7x
topology: tpu7x:2x2x1
jax: 0.10.0
libtpu: 0.0.40
codegen_flags: <defaults>
</compile_context>

<pallas_src>
import jax
import jax.numpy as jnp
from jax import lax
from jax.experimental import pallas as pl
from jax.experimental.pallas import tpu as pltpu

_LANE = 128
_PHASES = ((0, 0), (0, 1), (1, 0), (1, 1))   # parity phase p = 2*py + px


def _round_up(x, m):
    return ((x + m - 1) // m) * m


def _largest_divisor_leq(n, target):
    t = max(1, min(n, target))
    while n % t:
        t -= 1
    return t


def _mosaic_params(*sem):
    # 32 MiB scoped VMEM: safe on v5e/v6e (128 MiB) and v7x (64 MiB / TensorCore).
    return pltpu.CompilerParams(dimension_semantics=sem,
                                vmem_limit_bytes=32 * 1024 * 1024)


def _pad_cols(a, to):
    return jnp.pad(a, ((0, 0), (0, to - a.shape[1])))


# ----------------------------------------------------------------------------
# Kernel 1: (rows, K)bf16 @ (K, Co)bf16 -> f32, * scale + shift, ReLU, store bf16
# Stage 1 (1x1 conv + folded BN + ReLU). K and Co are lane-dense (padded).
# ----------------------------------------------------------------------------
def _matmul_bn_relu_kernel(x_ref, w_ref, s_ref, t_ref, o_ref):
    acc = jnp.dot(x_ref[...], w_ref[...], preferred_element_type=jnp.float32)
    o_ref[...] = jnp.maximum(acc * s_ref[...] + t_ref[...], 0.0).astype(o_ref.dtype)


def matmul_bn_relu(x, w, scale, shift, *, out_dtype=jnp.bfloat16):
    M, K = x.shape
    Co = w.shape[1]
    tm = _largest_divisor_leq(M, max(8, min(1024, (2 << 20) // max(1, 2 * K))))
    return pl.pallas_call(
        _matmul_bn_relu_kernel,
        out_shape=jax.ShapeDtypeStruct((M, Co), out_dtype),
        grid=(M // tm,),
        in_specs=[
            pl.BlockSpec((tm, K), lambda i: (i, 0)),
            pl.BlockSpec((K, Co), lambda i: (0, 0)),
            pl.BlockSpec((1, Co), lambda i: (0, 0)),
            pl.BlockSpec((1, Co), lambda i: (0, 0)),
        ],
        out_specs=pl.BlockSpec((tm, Co), lambda i: (i, 0)),
        compiler_params=_mosaic_params("parallel"),
    )(x, w, scale, shift)


# ----------------------------------------------------------------------------
# Kernel 2: fused (ConvTranspose2d k=4,s=2,p=1 + BN + ReLU) -> (1x1 conv + BN + ReLU)
#   - grid (N, H-row-tiles); one haloed row block of the stage-1 output per step
#   - the 4 parity phases' 2x2-tap im2col is built IN VMEM (no HBM im2col)
#   - output written bf16 in a phase-separated layout (N*4, H, W, Cop)
#   - per-tile channel sums emitted as a second output (fused global-avg-pool)
# ----------------------------------------------------------------------------
def _make_deconv_conv_kernel(tm_h, W, Cmp, Cop):
    def kernel(hb_ref, w2_ref, s2_ref, t2_ref, w3_ref, s3_ref, t3_ref,
               o_ref, ps_ref):
        ps = jnp.zeros((1, Cop), jnp.float32)
        for p, (py, px) in enumerate(_PHASES):
            # 4-tap concat for this parity phase, built from the haloed VMEM block.
            taps = jnp.concatenate(
                [hb_ref[0, a + py:a + py + tm_h, b + px:b + px + W, :]
                 for a in (0, 1) for b in (0, 1)],
                axis=-1)                                   # (tm_h, W, 4*Cmp)
            taps = taps.reshape(tm_h * W, 4 * Cmp)
            h2 = jnp.dot(taps, w2_ref[p], preferred_element_type=jnp.float32)
            h2 = jnp.maximum(h2 * s2_ref[...] + t2_ref[...], 0.0)      # deconv BN+ReLU
            h3 = jnp.dot(h2.astype(jnp.bfloat16), w3_ref[...],
                         preferred_element_type=jnp.float32)
            h3 = jnp.maximum(h3 * s3_ref[...] + t3_ref[...], 0.0)      # 1x1 BN+ReLU
            h3 = h3.astype(jnp.bfloat16)
            o_ref[p] = h3.reshape(tm_h, W, Cop)
            ps = ps + jnp.sum(h3.astype(jnp.float32), axis=0, keepdims=True)
        ps_ref[0] = ps
    return kernel


def fused_deconv_conv_bn_relu(hb, w2, s2, t2, w3, s3, t3, *, N, Ht, H, W, tm_h):
    Wp2, Cmp = hb.shape[-2], hb.shape[-1]
    Cop = w3.shape[1]
    kernel = _make_deconv_conv_kernel(tm_h, W, Cmp, Cop)
    return pl.pallas_call(
        kernel,
        out_shape=(jax.ShapeDtypeStruct((N * 4, H, W, Cop), jnp.bfloat16),
                   jax.ShapeDtypeStruct((N * Ht, 1, Cop), jnp.float32)),
        grid=(N, Ht),
        in_specs=[
            pl.BlockSpec((1, tm_h + 2, Wp2, Cmp),
                         lambda n, t: (n * Ht + t, 0, 0, 0)),
            pl.BlockSpec((4, 4 * Cmp, Cmp), lambda n, t: (0, 0, 0)),
            pl.BlockSpec((1, Cmp), lambda n, t: (0, 0)),
            pl.BlockSpec((1, Cmp), lambda n, t: (0, 0)),
            pl.BlockSpec((Cmp, Cop), lambda n, t: (0, 0)),
            pl.BlockSpec((1, Cop), lambda n, t: (0, 0)),
            pl.BlockSpec((1, Cop), lambda n, t: (0, 0)),
        ],
        out_specs=(
            pl.BlockSpec((4, tm_h, W, Cop), lambda n, t: (n, t, 0, 0)),
            pl.BlockSpec((1, 1, Cop), lambda n, t: (n * Ht + t, 0, 0)),
        ),
        compiler_params=_mosaic_params("parallel", "parallel"),
    )(hb, w2, s2, t2, w3, s3, t3)


# ----------------------------------------------------------------------------
# Kernel 3: SCSE spatial gate + blend, row-tiled, optional fused skip-add,
#           fused partial channel sums (for the next channel gate's pooling).
#   out = z * (cse + sigmoid(z @ ws + bs)),  z = x (+ skip)
# ----------------------------------------------------------------------------
def _make_scse_kernel(th, W, Cp, with_skip):
    def compute(z, cse_ref, ws_ref, bs_ref, o_ref, ps_ref):
        z2 = z.reshape(4 * th * W, Cp)
        logits = jnp.dot(z2.astype(jnp.bfloat16), ws_ref[...],
                         preferred_element_type=jnp.float32) + bs_ref[...]
        sse = pl.reciprocal(1.0 + jnp.exp(-logits), approx=True)   # sigmoid via EUP
        out = (z2 * (cse_ref[0] + sse)).astype(o_ref.dtype)
        o_ref[...] = out.reshape(4, th, W, Cp)
        ps_ref[0] = jnp.sum(out.astype(jnp.float32), axis=0, keepdims=True)

    if with_skip:
        def kernel(x_ref, skip_ref, cse_ref, ws_ref, bs_ref, o_ref, ps_ref):
            z = x_ref[...].astype(jnp.float32) + skip_ref[...].astype(jnp.float32)
            compute(z, cse_ref, ws_ref, bs_ref, o_ref, ps_ref)
    else:
        def kernel(x_ref, cse_ref, ws_ref, bs_ref, o_ref, ps_ref):
            compute(x_ref[...].astype(jnp.float32), cse_ref, ws_ref, bs_ref,
                    o_ref, ps_ref)
    return kernel


def scse_spatial_blend(x, cse, ws, bs, skip=None, *, out_dtype=jnp.float32):
    NP4, H, W, Cp = x.shape
    N = NP4 // 4
    th = _largest_divisor_leq(H, max(8, (1 << 20) // max(1, 4 * W * Cp * 4)))
    Ht = H // th
    kernel = _make_scse_kernel(th, W, Cp, skip is not None)
    row_spec = pl.BlockSpec((4, th, W, Cp), lambda n, t: (n, t, 0, 0))
    in_specs = [row_spec]
    args = [x]
    if skip is not None:
        in_specs.append(row_spec)
        args.append(skip)
    in_specs += [
        pl.BlockSpec((1, 1, Cp), lambda n, t: (n, 0, 0)),
        pl.BlockSpec((Cp, Cp), lambda n, t: (0, 0)),
        pl.BlockSpec((1, Cp), lambda n, t: (0, 0)),
    ]
    args += [cse, ws, bs]
    return pl.pallas_call(
        kernel,
        out_shape=(jax.ShapeDtypeStruct((NP4, H, W, Cp), out_dtype),
                   jax.ShapeDtypeStruct((N * Ht, 1, Cp), jnp.float32)),
        grid=(N, Ht),
        in_specs=in_specs,
        out_specs=(row_spec,
                   pl.BlockSpec((1, 1, Cp), lambda n, t: (n * Ht + t, 0, 0))),
        compiler_params=_mosaic_params("parallel", "parallel"),
    )(*args)


# ----------------------------------------------------------------------------
# Parameter init (deterministic, PyTorch-like) + BN (eval) folding
# ----------------------------------------------------------------------------
def _fold_bn(gamma, beta, mean, var, conv_bias=None, eps=1e-5):
    scale = gamma / jnp.sqrt(var + eps)
    bias = conv_bias if conv_bias is not None else jnp.zeros_like(mean)
    shift = beta + scale * (bias - mean)
    return scale.reshape(1, -1), shift.reshape(1, -1)


def init_params(key, cin, cout, re=16):
    cm = cin // 4
    cr = max(cout // re, 1)
    ks = list(jax.random.split(key, 24))

    def u(k, shape, lo=-0.2, hi=0.2):
        return jax.random.uniform(k, shape, jnp.float32, lo, hi)

    p = {}
    # stage 1: Conv2d(cin, cm, 1, bias=False) + BN(cm)
    p["w1"] = u(ks[0], (cin, cm))
    p["s1"], p["t1"] = _fold_bn(u(ks[1], (cm,), 0.8, 1.2), u(ks[2], (cm,)),
                                u(ks[3], (cm,)), u(ks[4], (cm,), 0.5, 1.5))
    # stage 2: ConvTranspose2d(cm, cm, 4, stride=2, padding=1, bias=True) + BN(cm)
    p["wT"] = u(ks[5], (cm, cm, 4, 4))      # PyTorch layout: (C_in, C_out, kH, kW)
    bT = u(ks[6], (cm,))
    p["s2"], p["t2"] = _fold_bn(u(ks[7], (cm,), 0.8, 1.2), u(ks[8], (cm,)),
                                u(ks[9], (cm,)), u(ks[10], (cm,), 0.5, 1.5), bT)
    # stage 3: Conv2d(cm, cout, 1, bias=False) + BN(cout)
    p["w3"] = u(ks[11], (cm, cout))
    p["s3"], p["t3"] = _fold_bn(u(ks[12], (cout,), 0.8, 1.2), u(ks[13], (cout,)),
                                u(ks[14], (cout,)), u(ks[15], (cout,), 0.5, 1.5))
    # SCSE(cout)
    p["wc1"] = u(ks[16], (cout, cr))
    p["bc1"] = u(ks[17], (1, cr))
    p["wc2"] = u(ks[18], (cr, cout))
    p["bc2"] = u(ks[19], (1, cout))
    p["ws"] = u(ks[20], (cout, cout))
    p["bs"] = u(ks[21], (1, cout))
    return p


def _channel_gate(pooled, wc1, bc1, wc2, bc2):
    # cSE: pooled (N, C) -> ReLU MLP -> sigmoid. Tiny; runs as JAX glue.
    h = jnp.maximum(pooled @ wc1 + bc1, 0.0)
    return jax.nn.sigmoid(h @ wc2 + bc2)


def _make_phase_weights(wT, cmp_):
    # ConvTranspose2d(k=4, s=2, p=1) splits into 4 output-parity phases; each is a
    # 2x2-tap correlation: phase (py,px), tap (a,b) uses kernel (3-py-2a, 3-px-2b)
    # applied to hp[i + a + py, j + b + px] (hp = stage-1 output, 1-pixel zero halo).
    Ci, Co = wT.shape[0], wT.shape[1]
    phases = []
    for py, px in _PHASES:
        taps = []
        for a in (0, 1):
            for b in (0, 1):
                ky = 3 - py - 2 * a
                kx = 3 - px - 2 * b
                taps.append(jnp.pad(wT[:, :, ky, kx],
                                    ((0, cmp_ - Ci), (0, cmp_ - Co))))
        phases.append(jnp.concatenate(taps, axis=0))        # (4*cmp_, cmp_)
    return jnp.stack(phases, axis=0)                        # (4, 4*cmp_, cmp_)


# ----------------------------------------------------------------------------
# DecoderBlock forward
# ----------------------------------------------------------------------------
def decoder_block_forward(x_nchw, skip_nchw, p):
    N, Cin, H, W = x_nchw.shape
    Cm = p["w1"].shape[1]
    Cout = p["w3"].shape[1]
    Ho, Wo = 2 * H, 2 * W
    Cinp = _round_up(Cin, _LANE)     # lane-dense padded channel widths
    Cmp = _round_up(Cm, _LANE)
    Cop = _round_up(Cout, _LANE)
    bf = jnp.bfloat16

    # --- pack / pad / cast parameters (tiny, once per call) ---
    w1k = jnp.pad(p["w1"], ((0, Cinp - Cin), (0, Cmp - Cm))).astype(bf)
    s1k, t1k = _pad_cols(p["s1"], Cmp), _pad_cols(p["t1"], Cmp)
    w2k = _make_phase_weights(p["wT"], Cmp).astype(bf)              # (4, 4*Cmp, Cmp)
    s2k, t2k = _pad_cols(p["s2"], Cmp), _pad_cols(p["t2"], Cmp)
    w3k = jnp.pad(p["w3"], ((0, Cmp - Cm), (0, Cop - Cout))).astype(bf)
    s3k, t3k = _pad_cols(p["s3"], Cop), _pad_cols(p["t3"], Cop)
    wsk = jnp.pad(p["ws"], ((0, Cop - Cout), (0, Cop - Cout))).astype(bf)
    bsk = _pad_cols(p["bs"], Cop)

    # --- stage 1: 1x1 conv + BN + ReLU (lane-dense K and output, bf16 store) ---
    M1 = N * H * W
    x = jnp.transpose(x_nchw, (0, 2, 3, 1)).reshape(M1, Cin)
    x = jnp.pad(x, ((0, 0), (0, Cinp - Cin))).astype(bf)
    h = matmul_bn_relu(x, w1k, s1k, t1k).reshape(N, H, W, Cmp)       # bf16

    # --- stages 2+3: haloed row blocks -> fused deconv + 1x1 conv (all in VMEM) ---
    tm_h = _largest_divisor_leq(H, max(8, (1 << 21) // max(1, 4 * W * Cop * 2)))
    Ht = H // tm_h
    hp = jnp.pad(h, ((0, 0), (1, 1), (1, 1), (0, 0)))                # 1-pixel halo
    hb = jnp.stack([hp[:, t * tm_h:t * tm_h + tm_h + 2] for t in range(Ht)], axis=1)
    hb = hb.reshape(N * Ht, tm_h + 2, W + 2, Cmp)
    h3, ps3 = fused_deconv_conv_bn_relu(hb, w2k, s2k, t2k, w3k, s3k, t3k,
                                        N=N, Ht=Ht, H=H, W=W, tm_h=tm_h)
    # h3: (N*4, H, W, Cop) bf16 -- parity-phase-separated layout of (N, Ho, Wo, *)

    # --- SCSE #1 (channel gate from fused pooling; spatial gate + blend in Pallas) ---
    pooled = ps3.reshape(N, Ht, Cop).sum(axis=1)[:, :Cout] / float(Ho * Wo)
    cse = _pad_cols(_channel_gate(pooled, p["wc1"], p["bc1"], p["wc2"], p["bc2"]),
                    Cop)[:, None, :]
    dt1 = bf if skip_nchw is not None else jnp.float32
    a, psa = scse_spatial_blend(h3, cse, wsk, bsk, out_dtype=dt1)

    # --- skip add + SCSE #2 (pad + depth-to-space folded into the skip transpose) ---
    if skip_nchw is not None:
        s = skip_nchw.reshape(N, Cout, H, 2, W, 2).transpose(0, 3, 5, 2, 4, 1)
        s = jnp.pad(s.reshape(N, 4, H, W, Cout),
                    ((0, 0), (0, 0), (0, 0), (0, 0), (0, Cop - Cout)))
        s = s.reshape(N * 4, H, W, Cop).astype(bf)
        pooled2 = (psa.reshape(N, -1, Cop).sum(axis=1)[:, :Cout] / float(Ho * Wo)
                   + jnp.mean(skip_nchw, axis=(2, 3)))
        cse2 = _pad_cols(_channel_gate(pooled2, p["wc1"], p["bc1"],
                                       p["wc2"], p["bc2"]), Cop)[:, None, :]
        a, _ = scse_spatial_blend(a, cse2, wsk, bsk, skip=s, out_dtype=jnp.float32)

    # --- depth-to-space folded into the final NCHW conversion ---
    out = a[..., :Cout].reshape(N, 2, 2, H, W, Cout)
    out = out.transpose(0, 5, 3, 1, 4, 2).reshape(N, Cout, Ho, Wo)
    return out.astype(jnp.float32)


# ----------------------------------------------------------------------------
# Pure-JAX reference (lax conv) matching the kernel's bf16 quantization points
# ----------------------------------------------------------------------------
def decoder_block_reference(x_nchw, skip_nchw, p):
    f32 = jnp.float32

    def q(t):  # bf16 rounding at the same points as the kernels
        return t.astype(jnp.bfloat16).astype(f32)

    def bnrelu(y, s, t):
        return jnp.maximum(y * s.reshape(1, 1, 1, -1) + t.reshape(1, 1, 1, -1), 0.0)

    x = jnp.transpose(x_nchw, (0, 2, 3, 1)).astype(f32)
    h = bnrelu(jnp.einsum("nhwc,cd->nhwd", q(x), q(p["w1"])), p["s1"], p["t1"])
    h = q(h)                                                # stage-1 stored bf16
    k = q(p["wT"][:, :, ::-1, ::-1].transpose(2, 3, 0, 1))  # (kh, kw, ci, co)
    y = lax.conv_general_dilated(
        h, k, window_strides=(1, 1), padding=((2, 2), (2, 2)),
        lhs_dilation=(2, 2), dimension_numbers=("NHWC", "HWIO", "NHWC"))
    h2 = bnrelu(y, p["s2"], p["t2"])
    h3 = q(bnrelu(jnp.einsum("nhwc,cd->nhwd", q(h2), q(p["w3"])),
                  p["s3"], p["t3"]))                        # stage-3 stored bf16

    def att(z, pooled):
        cse = _channel_gate(pooled, p["wc1"], p["bc1"], p["wc2"],
                            p["bc2"])[:, None, None, :]
        sse = jax.nn.sigmoid(jnp.einsum("nhwc,cd->nhwd", q(z), q(p["ws"])) + p["bs"])
        return z * (cse + sse)

    a = att(h3, jnp.mean(h3, axis=(1, 2)))
    if skip_nchw is None:
        return jnp.transpose(a, (0, 3, 1, 2))
    a = q(a)                                                # SCSE#1 stored bf16
    skip = jnp.transpose(skip_nchw, (0, 2, 3, 1)).astype(f32)
    pooled2 = jnp.mean(a, axis=(1, 2)) + jnp.mean(skip, axis=(1, 2))
    out = att(a + q(skip), pooled2)
    return jnp.transpose(out, (0, 3, 1, 2))


if __name__ == "__main__":
    N, Cin, Cout, H, W = 2, 16, 16, 8, 8
    key = jax.random.PRNGKey(0)
    kx, kskip, kparam = jax.random.split(key, 3)

    x = jax.random.normal(kx, (N, Cin, H, W), jnp.float32)
    skip = jax.random.normal(kskip, (N, Cout, 2 * H, 2 * W), jnp.float32)
    params = init_params(kparam, Cin, Cout)

    fwd = jax.jit(decoder_block_forward)
    out = jax.block_until_ready(fwd(x, skip, params))

    ref = jax.block_until_ready(jax.jit(decoder_block_reference)(x, skip, params))
    assert out.shape == (N, Cout, 2 * H, 2 * W), out.shape
    err = float(jnp.max(jnp.abs(out - ref)))
    assert jnp.allclose(out, ref, rtol=2e-2, atol=2e-2), err

    print("KERNEL_OK")
</pallas_src>

<mosaic_0001>
module attributes {stable_mosaic.version = 11 : i64} {
  func.func @_matmul_bn_relu_kernel(%arg0: i32, %arg1: memref<128x128xbf16, #tpu.memory_space<vmem>>, %arg2: memref<128x128xbf16, #tpu.memory_space<vmem>>, %arg3: memref<1x128xf32, #tpu.memory_space<vmem>>, %arg4: memref<1x128xf32, #tpu.memory_space<vmem>>, %arg5: memref<128x128xbf16, #tpu.memory_space<vmem>>) attributes {dimension_semantics = [#tpu.dimension_semantics<parallel>], iteration_bounds = array<i64: 1>, scalar_prefetch = 0 : i64, scratch_operands = 0 : i64, tpu.core_type = #tpu.core_type<tc>, window_params = [{transform_indices = @transform_0, window_bounds = array<i64: 128, 128>}, {pipeline_mode = #tpu.pipeline_mode<synchronous>, transform_indices = @transform_1, window_bounds = array<i64: 128, 128>}, {pipeline_mode = #tpu.pipeline_mode<synchronous>, transform_indices = @transform_2, window_bounds = array<i64: 1, 128>}, {pipeline_mode = #tpu.pipeline_mode<synchronous>, transform_indices = @transform_3, window_bounds = array<i64: 1, 128>}, {transform_indices = @transform_4, window_bounds = array<i64: 128, 128>}]} {
    %c0 = arith.constant 0 : index
    %c0_0 = arith.constant 0 : index
    %0 = vector.load %arg1[%c0, %c0_0] : memref<128x128xbf16, #tpu.memory_space<vmem>>, vector<128x128xbf16>
    %c0_1 = arith.constant 0 : index
    %c0_2 = arith.constant 0 : index
    %1 = vector.load %arg2[%c0_1, %c0_2] : memref<128x128xbf16, #tpu.memory_space<vmem>>, vector<128x128xbf16>
    %cst = arith.constant dense<0.000000e+00> : vector<128x128xf32>
    %2 = tpu.matmul %0, %1, %cst {dimension_numbers = #tpu.dot_dimension_numbers<[1], [0], [0], [1], [0, 0, 1, 1], [], []>} : vector<128x128xbf16>, vector<128x128xbf16>, vector<128x128xf32> -> vector<128x128xf32>
    %c0_3 = arith.constant 0 : index
    %c0_4 = arith.constant 0 : index
    %3 = vector.load %arg3[%c0_3, %c0_4] : memref<1x128xf32, #tpu.memory_space<vmem>>, vector<1x128xf32>
    %4 = vector.broadcast %3 : vector<1x128xf32> to vector<128x128xf32>
    %5 = arith.mulf %2, %4 : vector<128x128xf32>
    %c0_5 = arith.constant 0 : index
    %c0_6 = arith.constant 0 : index
    %6 = vector.load %arg4[%c0_5, %c0_6] : memref<1x128xf32, #tpu.memory_space<vmem>>, vector<1x128xf32>
    %7 = vector.broadcast %6 : vector<1x128xf32> to vector<128x128xf32>
    %8 = arith.addf %5, %7 : vector<128x128xf32>
    %cst_7 = arith.constant 0.000000e+00 : f32
    %9 = vector.broadcast %cst_7 : f32 to vector<128x128xf32>
    %10 = arith.maximumf %8, %9 : vector<128x128xf32>
    %11 = arith.truncf %10 : vector<128x128xf32> to vector<128x128xbf16>
    %c0_8 = arith.constant 0 : index
    %c0_9 = arith.constant 0 : index
    %12 = vector.load %arg5[%c0_8, %c0_9] : memref<128x128xbf16, #tpu.memory_space<vmem>>, vector<128x128xbf16>
    tpu.vector_store %arg5[%c0_8, %c0_9], %11 {strides = array<i32>} : memref<128x128xbf16, #tpu.memory_space<vmem>>, vector<128x128xbf16>,
    return
  }
  func.func @transform_0(%arg0: i32) -> (i32, i32) {
    %c0_i32 = arith.constant 0 : i32
    %c0_i32_0 = arith.constant 0 : i32
    return %arg0, %c0_i32 : i32, i32
  }
  func.func @transform_1(%arg0: i32) -> (i32, i32) {
    %c0_i32 = arith.constant 0 : i32
    %c0_i32_0 = arith.constant 0 : i32
    %c0_i32_1 = arith.constant 0 : i32
    return %c0_i32, %c0_i32_0 : i32, i32
  }
  func.func @transform_2(%arg0: i32) -> (i32, i32) {
    %c0_i32 = arith.constant 0 : i32
    %c0_i32_0 = arith.constant 0 : i32
    %c0_i32_1 = arith.constant 0 : i32
    return %c0_i32, %c0_i32_0 : i32, i32
  }
  func.func @transform_3(%arg0: i32) -> (i32, i32) {
    %c0_i32 = arith.constant 0 : i32
    %c0_i32_0 = arith.constant 0 : i32
    %c0_i32_1 = arith.constant 0 : i32
    return %c0_i32, %c0_i32_0 : i32, i32
  }
  func.func @transform_4(%arg0: i32) -> (i32, i32) {
    %c0_i32 = arith.constant 0 : i32
    %c0_i32_0 = arith.constant 0 : i32
    return %arg0, %c0_i32 : i32, i32
  }
}

module attributes {stable_mosaic.version = 11 : i64} {
  func.func @kernel(%arg0: i32, %arg1: i32, %arg2: memref<4x8x8x128xbf16, #tpu.memory_space<vmem>>, %arg3: memref<1x1x128xf32, #tpu.memory_space<vmem>>, %arg4: memref<128x128xbf16, #tpu.memory_space<vmem>>, %arg5: memref<1x128xf32, #tpu.memory_space<vmem>>, %arg6: memref<4x8x8x128xbf16, #tpu.memory_space<vmem>>, %arg7: memref<1x1x128xf32, #tpu.memory_space<vmem>>) attributes {dimension_semantics = [#tpu.dimension_semantics<parallel>, #tpu.dimension_semantics<parallel>], iteration_bounds = array<i64: 2, 1>, scalar_prefetch = 0 : i64, scratch_operands = 0 : i64, tpu.core_type = #tpu.core_type<tc>, window_params = [{transform_indices = @transform_0, window_bounds = array<i64: 4, 8, 8, 128>}, {transform_indices = @transform_1, window_bounds = array<i64: 1, 1, 128>}, {pipeline_mode = #tpu.pipeline_mode<synchronous>, transform_indices = @transform_2, window_bounds = array<i64: 128, 128>}, {pipeline_mode = #tpu.pipeline_mode<synchronous>, transform_indices = @transform_3, window_bounds = array<i64: 1, 128>}, {transform_indices = @transform_4, window_bounds = array<i64: 4, 8, 8, 128>}, {transform_indices = @transform_5, window_bounds = array<i64: 1, 1, 128>}]} {
    %c0 = arith.constant 0 : index
    %c0_0 = arith.constant 0 : index
    %c0_1 = arith.constant 0 : index
    %c0_2 = arith.constant 0 : index
    %0 = vector.load %arg2[%c0, %c0_0, %c0_1, %c0_2] : memref<4x8x8x128xbf16, #tpu.memory_space<vmem>>, vector<4x8x8x128xbf16>
    %1 = arith.extf %0 : vector<4x8x8x128xbf16> to vector<4x8x8x128xf32>
    %2 = vector.shape_cast %1 : vector<4x8x8x128xf32> to vector<256x128xf32>
    %3 = arith.truncf %2 : vector<256x128xf32> to vector<256x128xbf16>
    %c0_3 = arith.constant 0 : index
    %c0_4 = arith.constant 0 : index
    %4 = vector.load %arg4[%c0_3, %c0_4] : memref<128x128xbf16, #tpu.memory_space<vmem>>, vector<128x128xbf16>
    %cst = arith.constant dense<0.000000e+00> : vector<256x128xf32>
    %5 = tpu.matmul %3, %4, %cst {dimension_numbers = #tpu.dot_dimension_numbers<[1], [0], [0], [1], [0, 0, 1, 1], [], []>} : vector<256x128xbf16>, vector<128x128xbf16>, vector<256x128xf32> -> vector<256x128xf32>
    %c0_5 = arith.constant 0 : index
    %c0_6 = arith.constant 0 : index
    %6 = vector.load %arg5[%c0_5, %c0_6] : memref<1x128xf32, #tpu.memory_space<vmem>>, vector<1x128xf32>
    %7 = vector.broadcast %6 : vector<1x128xf32> to vector<256x128xf32>
    %8 = arith.addf %5, %7 : vector<256x128xf32>
    %cst_7 = arith.constant 0.000000e+00 : f32
    %9 = vector.broadcast %cst_7 : f32 to vector<256x128xf32>
    %10 = arith.subf %9, %8 : vector<256x128xf32>
    %11 = math.exp %10 : vector<256x128xf32>
    %cst_8 = arith.constant 1.000000e+00 : f32
    %12 = vector.broadcast %cst_8 : f32 to vector<256x128xf32>
    %13 = arith.addf %12, %11 : vector<256x128xf32>
    %14 = tpu.reciprocal %13 {approx = true} : vector<256x128xf32> -> vector<256x128xf32>
    %c0_9 = arith.constant 0 : index
    %c0_10 = arith.constant 0 : index
    %c0_11 = arith.constant 0 : index
    %15 = vector.load %arg3[%c0_9, %c0_10, %c0_11] : memref<1x1x128xf32, #tpu.memory_space<vmem>>, vector<1x1x128xf32>
    %16 = vector.shape_cast %15 : vector<1x1x128xf32> to vector<1x128xf32>
    %17 = vector.broadcast %16 : vector<1x128xf32> to vector<256x128xf32>
    %18 = arith.addf %17, %14 : vector<256x128xf32>
    %19 = arith.mulf %2, %18 : vector<256x128xf32>
    %20 = arith.truncf %19 : vector<256x128xf32> to vector<256x128xbf16>
    %21 = vector.shape_cast %20 : vector<256x128xbf16> to vector<4x8x8x128xbf16>
    %c0_12 = arith.constant 0 : index
    %c0_13 = arith.constant 0 : index
    %c0_14 = arith.constant 0 : index
    %c0_15 = arith.constant 0 : index
    %22 = vector.load %arg6[%c0_12, %c0_13, %c0_14, %c0_15] : memref<4x8x8x128xbf16, #tpu.memory_space<vmem>>, vector<4x8x8x128xbf16>
    tpu.vector_store %arg6[%c0_12, %c0_13, %c0_14, %c0_15], %21 {strides = array<i32>} : memref<4x8x8x128xbf16, #tpu.memory_space<vmem>>, vector<4x8x8x128xbf16>,
    %23 = arith.extf %20 : vector<256x128xbf16> to vector<256x128xf32>
    %cst_16 = arith.constant dense<0.000000e+00> : vector<128xf32>
    %24 = vector.multi_reduction <add>, %23, %cst_16 [0] : vector<256x128xf32> to vector<128xf32>
    %25 = vector.shape_cast %24 : vector<128xf32> to vector<1x128xf32>
    %c0_17 = arith.constant 0 : index
    %c0_18 = arith.constant 0 : index
    %c0_19 = arith.constant 0 : index
    %26 = vector.load %arg7[%c0_17, %c0_18, %c0_19] : memref<1x1x128xf32, #tpu.memory_space<vmem>>, vector<1x1x128xf32>
    %27 = vector.shape_cast %26 : vector<1x1x128xf32> to vector<1x128xf32>
    %28 = vector.shape_cast %25 : vector<1x128xf32> to vector<1x1x128xf32>
    tpu.vector_store %arg7[%c0_17, %c0_18, %c0_19], %28 {strides = array<i32>} : memref<1x1x128xf32, #tpu.memory_space<vmem>>, vector<1x1x128xf32>,
    return
  }
  func.func @transform_0(%arg0: i32, %arg1: i32) -> (i32, i32, i32, i32) {
    %c0_i32 = arith.constant 0 : i32
    %c0_i32_0 = arith.constant 0 : i32
    %c0_i32_1 = arith.constant 0 : i32
    return %arg0, %arg1, %c0_i32, %c0_i32_0 : i32, i32, i32, i32
  }
  func.func @transform_1(%arg0: i32, %arg1: i32) -> (i32, i32, i32) {
    %c0_i32 = arith.constant 0 : i32
    %c0_i32_0 = arith.constant 0 : i32
    %c0_i32_1 = arith.constant 0 : i32
    return %arg0, %c0_i32, %c0_i32_0 : i32, i32, i32
  }
  func.func @transform_2(%arg0: i32, %arg1: i32) -> (i32, i32) {
    %c0_i32 = arith.constant 0 : i32
    %c0_i32_0 = arith.constant 0 : i32
    %c0_i32_1 = arith.constant 0 : i32
    return %c0_i32, %c0_i32_0 : i32, i32
  }
  func.func @transform_3(%arg0: i32, %arg1: i32) -> (i32, i32) {
    %c0_i32 = arith.constant 0 : i32
    %c0_i32_0 = arith.constant 0 : i32
    %c0_i32_1 = arith.constant 0 : i32
    return %c0_i32, %c0_i32_0 : i32, i32
  }
  func.func @transform_4(%arg0: i32, %arg1: i32) -> (i32, i32, i32, i32) {
    %c0_i32 = arith.constant 0 : i32
    %c0_i32_0 = arith.constant 0 : i32
    %c0_i32_1 = arith.constant 0 : i32
    return %arg0, %arg1, %c0_i32, %c0_i32_0 : i32, i32, i32, i32
  }
  func.func @transform_5(%arg0: i32, %arg1: i32) -> (i32, i32, i32) {
    %c1_i32 = arith.constant 1 : i32
    %0 = arith.muli %arg0, %c1_i32 : i32
    %1 = arith.addi %0, %arg1 : i32
    %c0_i32 = arith.constant 0 : i32
    %c0_i32_0 = arith.constant 0 : i32
    %c0_i32_1 = arith.constant 0 : i32
    return %1, %c0_i32, %c0_i32_0 : i32, i32, i32
  }
}

module attributes {stable_mosaic.version = 11 : i64} {
  func.func @kernel(%arg0: i32, %arg1: i32, %arg2: memref<1x10x10x128xbf16, #tpu.memory_space<vmem>>, %arg3: memref<4x512x128xbf16, #tpu.memory_space<vmem>>, %arg4: memref<1x128xf32, #tpu.memory_space<vmem>>, %arg5: memref<1x128xf32, #tpu.memory_space<vmem>>, %arg6: memref<128x128xbf16, #tpu.memory_space<vmem>>, %arg7: memref<1x128xf32, #tpu.memory_space<vmem>>, %arg8: memref<1x128xf32, #tpu.memory_space<vmem>>, %arg9: memref<4x8x8x128xbf16, #tpu.memory_space<vmem>>, %arg10: memref<1x1x128xf32, #tpu.memory_space<vmem>>) attributes {dimension_semantics = [#tpu.dimension_semantics<parallel>, #tpu.dimension_semantics<parallel>], iteration_bounds = array<i64: 2, 1>, scalar_prefetch = 0 : i64, scratch_operands = 0 : i64, tpu.core_type = #tpu.core_type<tc>, window_params = [{transform_indices = @transform_0, window_bounds = array<i64: 1, 10, 10, 128>}, {pipeline_mode = #tpu.pipeline_mode<synchronous>, transform_indices = @transform_1, window_bounds = array<i64: 4, 512, 128>}, {pipeline_mode = #tpu.pipeline_mode<synchronous>, transform_indices = @transform_2, window_bounds = array<i64: 1, 128>}, {pipeline_mode = #tpu.pipeline_mode<synchronous>, transform_indices = @transform_3, window_bounds = array<i64: 1, 128>}, {pipeline_mode = #tpu.pipeline_mode<synchronous>, transform_indices = @transform_4, window_bounds = array<i64: 128, 128>}, {pipeline_mode = #tpu.pipeline_mode<synchronous>, transform_indices = @transform_5, window_bounds = array<i64: 1, 128>}, {pipeline_mode = #tpu.pipeline_mode<synchronous>, transform_indices = @transform_6, window_bounds = array<i64: 1, 128>}, {transform_indices = @transform_7, window_bounds = array<i64: 4, 8, 8, 128>}, {transform_indices = @transform_8, window_bounds = array<i64: 1, 1, 128>}]} {
    %cst = arith.constant 0.000000e+00 : f32
    %0 = vector.broadcast %cst : f32 to vector<1x128xf32>
    %c0 = arith.constant 0 : index
    %c0_0 = arith.constant 0 : index
    %c0_1 = arith.constant 0 : index
    %c0_2 = arith.constant 0 : index
    %1 = vector.load %arg2[%c0, %c0_0, %c0_1, %c0_2] : memref<1x10x10x128xbf16, #tpu.memory_space<vmem>>, vector<1x8x8x128xbf16>
    %2 = vector.shape_cast %1 : vector<1x8x8x128xbf16> to vector<8x8x128xbf16>
    %c0_3 = arith.constant 0 : index
    %c0_4 = arith.constant 0 : index
    %c1 = arith.constant 1 : index
    %c0_5 = arith.constant 0 : index
    %3 = vector.load %arg2[%c0_3, %c0_4, %c1, %c0_5] : memref<1x10x10x128xbf16, #tpu.memory_space<vmem>>, vector<1x8x8x128xbf16>
    %4 = vector.shape_cast %3 : vector<1x8x8x128xbf16> to vector<8x8x128xbf16>
    %c0_6 = arith.constant 0 : index
    %c1_7 = arith.constant 1 : index
    %c0_8 = arith.constant 0 : index
    %c0_9 = arith.constant 0 : index
    %5 = vector.load %arg2[%c0_6, %c1_7, %c0_8, %c0_9] : memref<1x10x10x128xbf16, #tpu.memory_space<vmem>>, vector<1x8x8x128xbf16>
    %6 = vector.shape_cast %5 : vector<1x8x8x128xbf16> to vector<8x8x128xbf16>
    %c0_10 = arith.constant 0 : index
    %c1_11 = arith.constant 1 : index
    %c1_12 = arith.constant 1 : index
    %c0_13 = arith.constant 0 : index
    %7 = vector.load %arg2[%c0_10, %c1_11, %c1_12, %c0_13] : memref<1x10x10x128xbf16, #tpu.memory_space<vmem>>, vector<1x8x8x128xbf16>
    %8 = vector.shape_cast %7 : vector<1x8x8x128xbf16> to vector<8x8x128xbf16>
    %9 = tpu.concatenate %2, %4, %6, %8 in 2 : vector<8x8x128xbf16>, vector<8x8x128xbf16>, vector<8x8x128xbf16>, vector<8x8x128xbf16> -> vector<8x8x512xbf16>
    %10 = vector.shape_cast %9 : vector<8x8x512xbf16> to vector<64x512xbf16>
    %c0_14 = arith.constant 0 : index
    %c0_15 = arith.constant 0 : index
    %c0_16 = arith.constant 0 : index
    %11 = vector.load %arg3[%c0_14, %c0_15, %c0_16] : memref<4x512x128xbf16, #tpu.memory_space<vmem>>, vector<1x512x128xbf16>
    %12 = vector.shape_cast %11 : vector<1x512x128xbf16> to vector<512x128xbf16>
    %cst_17 = arith.constant dense<0.000000e+00> : vector<64x128xf32>
    %13 = tpu.matmul %10, %12, %cst_17 {dimension_numbers = #tpu.dot_dimension_numbers<[1], [0], [0], [1], [0, 0, 1, 1], [], []>} : vector<64x512xbf16>, vector<512x128xbf16>, vector<64x128xf32> -> vector<64x128xf32>
    %c0_18 = arith.constant 0 : index
    %c0_19 = arith.constant 0 : index
    %14 = vector.load %arg4[%c0_18, %c0_19] : memref<1x128xf32, #tpu.memory_space<vmem>>, vector<1x128xf32>
    %15 = vector.broadcast %14 : vector<1x128xf32> to vector<64x128xf32>
    %16 = arith.mulf %13, %15 : vector<64x128xf32>
    %c0_20 = arith.constant 0 : index
    %c0_21 = arith.constant 0 : index
    %17 = vector.load %arg5[%c0_20, %c0_21] : memref<1x128xf32, #tpu.memory_space<vmem>>, vector<1x128xf32>
    %18 = vector.broadcast %17 : vector<1x128xf32> to vector<64x128xf32>
    %19 = arith.addf %16, %18 : vector<64x128xf32>
    %cst_22 = arith.constant 0.000000e+00 : f32
    %20 = vector.broadcast %cst_22 : f32 to vector<64x128xf32>
    %21 = arith.maximumf %19, %20 : vector<64x128xf32>
    %22 = arith.truncf %21 : vector<64x128xf32> to vector<64x128xbf16>
    %c0_23 = arith.constant 0 : index
    %c0_24 = arith.constant 0 : index
    %23 = vector.load %arg6[%c0_23, %c0_24] : memref<128x128xbf16, #tpu.memory_space<vmem>>, vector<128x128xbf16>
    %cst_25 = arith.constant dense<0.000000e+00> : vector<64x128xf32>
    %24 = tpu.matmul %22, %23, %cst_25 {dimension_numbers = #tpu.dot_dimension_numbers<[1], [0], [0], [1], [0, 0, 1, 1], [], []>} : vector<64x128xbf16>, vector<128x128xbf16>, vector<64x128xf32> -> vector<64x128xf32>
    %c0_26 = arith.constant 0 : index
    %c0_27 = arith.constant 0 : index
    %25 = vector.load %arg7[%c0_26, %c0_27] : memref<1x128xf32, #tpu.memory_space<vmem>>, vector<1x128xf32>
    %26 = vector.broadcast %25 : vector<1x128xf32> to vector<64x128xf32>
    %27 = arith.mulf %24, %26 : vector<64x128xf32>
    %c0_28 = arith.constant 0 : index
    %c0_29 = arith.constant 0 : index
    %28 = vector.load %arg8[%c0_28, %c0_29] : memref<1x128xf32, #tpu.memory_space<vmem>>, vector<1x128xf32>
    %29 = vector.broadcast %28 : vector<1x128xf32> to vector<64x128xf32>
    %30 = arith.addf %27, %29 : vector<64x128xf32>
    %cst_30 = arith.constant 0.000000e+00 : f32
    %31 = vector.broadcast %cst_30 : f32 to vector<64x128xf32>
    %32 = arith.maximumf %30, %31 : vector<64x128xf32>
    %33 = arith.truncf %32 : vector<64x128xf32> to vector<64x128xbf16>
    %34 = vector.shape_cast %33 : vector<64x128xbf16> to vector<8x8x128xbf16>
    %c0_31 = arith.constant 0 : index
    %c0_32 = arith.constant 0 : index
    %c0_33 = arith.constant 0 : index
    %c0_34 = arith.constant 0 : index
    %35 = vector.load %arg9[%c0_31, %c0_32, %c0_33, %c0_34] : memref<4x8x8x128xbf16, #tpu.memory_space<vmem>>, vector<1x8x8x128xbf16>
    %36 = vector.shape_cast %35 : vector<1x8x8x128xbf16> to vector<8x8x128xbf16>
    %37 = vector.shape_cast %34 : vector<8x8x128xbf16> to vector<1x8x8x128xbf16>
    tpu.vector_store %arg9[%c0_31, %c0_32, %c0_33, %c0_34], %37 {strides = array<i32>} : memref<4x8x8x128xbf16, #tpu.memory_space<vmem>>, vector<1x8x8x128xbf16>,
    %38 = arith.extf %33 : vector<64x128xbf16> to vector<64x128xf32>
    %cst_35 = arith.constant dense<0.000000e+00> : vector<128xf32>
    %39 = vector.multi_reduction <add>, %38, %cst_35 [0] : vector<64x128xf32> to vector<128xf32>
    %40 = vector.shape_cast %39 : vector<128xf32> to vector<1x128xf32>
    %41 = arith.addf %0, %40 : vector<1x128xf32>
    %c0_36 = arith.constant 0 : index
    %c0_37 = arith.constant 0 : index
    %c1_38 = arith.constant 1 : index
    %c0_39 = arith.constant 0 : index
    %42 = vector.load %arg2[%c0_36, %c0_37, %c1_38, %c0_39] : memref<1x10x10x128xbf16, #tpu.memory_space<vmem>>, vector<1x8x8x128xbf16>
    %43 = vector.shape_cast %42 : vector<1x8x8x128xbf16> to vector<8x8x128xbf16>
    %c0_40 = arith.constant 0 : index
    %c0_41 = arith.constant 0 : index
    %c2 = arith.constant 2 : index
    %c0_42 = arith.constant 0 : index
    %44 = vector.load %arg2[%c0_40, %c0_41, %c2, %c0_42] : memref<1x10x10x128xbf16, #tpu.memory_space<vmem>>, vector<1x8x8x128xbf16>
    %45 = vector.shape_cast %44 : vector<1x8x8x128xbf16> to vector<8x8x128xbf16>
    %c0_43 = arith.constant 0 : index
    %c1_44 = arith.constant 1 : index
    %c1_45 = arith.constant 1 : index
    %c0_46 = arith.constant 0 : index
    %46 = vector.load %arg2[%c0_43, %c1_44, %c1_45, %c0_46] : memref<1x10x10x128xbf16, #tpu.memory_space<vmem>>, vector<1x8x8x128xbf16>
    %47 = vector.shape_cast %46 : vector<1x8x8x128xbf16> to vector<8x8x128xbf16>
    %c0_47 = arith.constant 0 : index
    %c1_48 = arith.constant 1 : index
    %c2_49 = arith.constant 2 : index
    %c0_50 = arith.constant 0 : index
    %48 = vector.load %arg2[%c0_47, %c1_48, %c2_49, %c0_50] : memref<1x10x10x128xbf16, #tpu.memory_space<vmem>>, vector<1x8x8x128xbf16>
    %49 = vector.shape_cast %48 : vector<1x8x8x128xbf16> to vector<8x8x128xbf16>
    %50 = tpu.concatenate %43, %45, %47, %49 in 2 : vector<8x8x128xbf16>, vector<8x8x128xbf16>, vector<8x8x128xbf16>, vector<8x8x128xbf16> -> vector<8x8x512xbf16>
    %51 = vector.shape_cast %50 : vector<8x8x512xbf16> to vector<64x512xbf16>
    %c1_51 = arith.constant 1 : index
    %c0_52 = arith.constant 0 : index
    %c0_53 = arith.constant 0 : index
    %52 = vector.load %arg3[%c1_51, %c0_52, %c0_53] : memref<4x512x128xbf16, #tpu.memory_space<vmem>>, vector<1x512x128xbf16>
    %53 = vector.shape_cast %52 : vector<1x512x128xbf16> to vector<512x128xbf16>
    %cst_54 = arith.constant dense<0.000000e+00> : vector<64x128xf32>
    %54 = tpu.matmul %51, %53, %cst_54 {dimension_numbers = #tpu.dot_dimension_numbers<[1], [0], [0], [1], [0, 0, 1, 1], [], []>} : vector<64x512xbf16>, vector<512x128xbf16>, vector<64x128xf32> -> vector<64x128xf32>
    %c0_55 = arith.constant 0 : index
    %c0_56 = arith.constant 0 : index
    %55 = vector.load %arg4[%c0_55, %c0_56] : memref<1x128xf32, #tpu.memory_space<vmem>>, vector<1x128xf32>
    %56 = vector.broadcast %55 : vector<1x128xf32> to vector<64x128xf32>
    %57 = arith.mulf %54, %56 : vector<64x128xf32>
    %c0_57 = arith.constant 0 : index
    %c0_58 = arith.constant 0 : index
    %58 = vector.load %arg5[%c0_57, %c0_58] : memref<1x128xf32, #tpu.memory_space<vmem>>, vector<1x128xf32>
    %59 = vector.broadcast %58 : vector<1x128xf32> to vector<64x128xf32>
    %60 = arith.addf %57, %59 : vector<64x128xf32>
    %cst_59 = arith.constant 0.000000e+00 : f32
    %61 = vector.broadcast %cst_59 : f32 to vector<64x128xf32>
    %62 = arith.maximumf %60, %61 : vector<64x128xf32>
    %63 = arith.truncf %62 : vector<64x128xf32> to vector<64x128xbf16>
    %c0_60 = arith.constant 0 : index
    %c0_61 = arith.constant 0 : index
    %64 = vector.load %arg6[%c0_60, %c0_61] : memref<128x128xbf16, #tpu.memory_space<vmem>>, vector<128x128xbf16>
    %cst_62 = arith.constant dense<0.000000e+00> : vector<64x128xf32>
    %65 = tpu.matmul %63, %64, %cst_62 {dimension_numbers = #tpu.dot_dimension_numbers<[1], [0], [0], [1], [0, 0, 1, 1], [], []>} : vector<64x128xbf16>, vector<128x128xbf16>, vector<64x128xf32> -> vector<64x128xf32>
    %c0_63 = arith.constant 0 : index
    %c0_64 = arith.constant 0 : index
    %66 = vector.load %arg7[%c0_63, %c0_64] : memref<1x128xf32, #tpu.memory_space<vmem>>, vector<1x128xf32>
    %67 = vector.broadcast %66 : vector<1x128xf32> to vector<64x128xf32>
    %68 = arith.mulf %65, %67 : vector<64x128xf32>
    %c0_65 = arith.constant 0 : index
    %c0_66 = arith.constant 0 : index
    %69 = vector.load %arg8[%c0_65, %c0_66] : memref<1x128xf32, #tpu.memory_space<vmem>>, vector<1x128xf32>
    %70 = vector.broadcast %69 : vector<1x128xf32> to vector<64x128xf32>
    %71 = arith.addf %68, %70 : vector<64x128xf32>
    %cst_67 = arith.constant 0.000000e+00 : f32
    %72 = vector.broadcast %cst_67 : f32 to vector<64x128xf32>
    %73 = arith.maximumf %71, %72 : vector<64x128xf32>
    %74 = arith.truncf %73 : vector<64x128xf32> to vector<64x128xbf16>
    %75 = vector.shape_cast %74 : vector<64x128xbf16> to vector<8x8x128xbf16>
    %c1_68 = arith.constant 1 : index
    %c0_69 = arith.constant 0 : index
    %c0_70 = arith.constant 0 : index
    %c0_71 = arith.constant 0 : index
    %76 = vector.load %arg9[%c1_68, %c0_69, %c0_70, %c0_71] : memref<4x8x8x128xbf16, #tpu.memory_space<vmem>>, vector<1x8x8x128xbf16>
    %77 = vector.shape_cast %76 : vector<1x8x8x128xbf16> to vector<8x8x128xbf16>
    %78 = vector.shape_cast %75 : vector<8x8x128xbf16> to vector<1x8x8x128xbf16>
    tpu.vector_store %arg9[%c1_68, %c0_69, %c0_70, %c0_71], %78 {strides = array<i32>} : memref<4x8x8x128xbf16, #tpu.memory_space<vmem>>, vector<1x8x8x128xbf16>,
    %79 = arith.extf %74 : vector<64x128xbf16> to vector<64x128xf32>
    %cst_72 = arith.constant dense<0.000000e+00> : vector<128xf32>
    %80 = vector.multi_reduction <add>, %79, %cst_72 [0] : vector<64x128xf32> to vector<128xf32>
    %81 = vector.shape_cast %80 : vector<128xf32> to vector<1x128xf32>
    %82 = arith.addf %41, %81 : vector<1x128xf32>
    %c0_73 = arith.constant 0 : index
    %c1_74 = arith.constant 1 : index
    %c0_75 = arith.constant 0 : index
    %c0_76 = arith.constant 0 : index
    %83 = vector.load %arg2[%c0_73, %c1_74, %c0_75, %c0_76] : memref<1x10x10x128xbf16, #tpu.memory_space<vmem>>, vector<1x8x8x128xbf16>
    %84 = vector.shape_cast %83 : vector<1x8x8x128xbf16> to vector<8x8x128xbf16>
    %c0_77 = arith.constant 0 : index
    %c1_78 = arith.constant 1 : index
    %c1_79 = arith.constant 1 : index
    %c0_80 = arith.constant 0 : index
    %85 = vector.load %arg2[%c0_77, %c1_78, %c1_79, %c0_80] : memref<1x10x10x128xbf16, #tpu.memory_space<vmem>>, vector<1x8x8x128xbf16>
    %86 = vector.shape_cast %85 : vector<1x8x8x128xbf16> to vector<8x8x128xbf16>
    %c0_81 = arith.constant 0 : index
    %c2_82 = arith.constant 2 : index
    %c0_83 = arith.constant 0 : index
    %c0_84 = arith.constant 0 : index
    %87 = vector.load %arg2[%c0_81, %c2_82, %c0_83, %c0_84] : memref<1x10x10x128xbf16, #tpu.memory_space<vmem>>, vector<1x8x8x128xbf16>
    %88 = vector.shape_cast %87 : vector<1x8x8x128xbf16> to vector<8x8x128xbf16>
    %c0_85 = arith.constant 0 : index
    %c2_86 = arith.constant 2 : index
    %c1_87 = arith.constant 1 : index
    %c0_88 = arith.constant 0 : index
    %89 = vector.load %arg2[%c0_85, %c2_86, %c1_87, %c0_88] : memref<1x10x10x128xbf16, #tpu.memory_space<vmem>>, vector<1x8x8x128xbf16>
    %90 = vector.shape_cast %89 : vector<1x8x8x128xbf16> to vector<8x8x128xbf16>
    %91 = tpu.concatenate %84, %86, %88, %90 in 2 : vector<8x8x128xbf16>, vector<8x8x128xbf16>, vector<8x8x128xbf16>, vector<8x8x128xbf16> -> vector<8x8x512xbf16>
    %92 = vector.shape_cast %91 : vector<8x8x512xbf16> to vector<64x512xbf16>
    %c2_89 = arith.constant 2 : index
    %c0_90 = arith.constant 0 : index
    %c0_91 = arith.constant 0 : index
    %93 = vector.load %arg3[%c2_89, %c0_90, %c0_91] : memref<4x512x128xbf16, #tpu.memory_space<vmem>>, vector<1x512x128xbf16>
    %94 = vector.shape_cast %93 : vector<1x512x128xbf16> to vector<512x128xbf16>
    %cst_92 = arith.constant dense<0.000000e+00> : vector<64x128xf32>
    %95 = tpu.matmul %92, %94, %cst_92 {dimension_numbers = #tpu.dot_dimension_numbers<[1], [0], [0], [1], [0, 0, 1, 1], [], []>} : vector<64x512xbf16>, vector<512x128xbf16>, vector<64x128xf32> -> vector<64x128xf32>
    %c0_93 = arith.constant 0 : index
    %c0_94 = arith.constant 0 : index
    %96 = vector.load %arg4[%c0_93, %c0_94] : memref<1x128xf32, #tpu.memory_space<vmem>>, vector<1x128xf32>
    %97 = vector.broadcast %96 : vector<1x128xf32> to vector<64x128xf32>
    %98 = arith.mulf %95, %97 : vector<64x128xf32>
    %c0_95 = arith.constant 0 : index
    %c0_96 = arith.constant 0 : index
    %99 = vector.load %arg5[%c0_95, %c0_96] : memref<1x128xf32, #tpu.memory_space<vmem>>, vector<1x128xf32>
    %100 = vector.broadcast %99 : vector<1x128xf32> to vector<64x128xf32>
    %101 = arith.addf %98, %100 : vector<64x128xf32>
    %cst_97 = arith.constant 0.000000e+00 : f32
    %102 = vector.broadcast %cst_97 : f32 to vector<64x128xf32>
    %103 = arith.maximumf %101, %102 : vector<64x128xf32>
    %104 = arith.truncf %103 : vector<64x128xf32> to vector<64x128xbf16>
    %c0_98 = arith.constant 0 : index
    %c0_99 = arith.constant 0 : index
    %105 = vector.load %arg6[%c0_98, %c0_99] : memref<128x128xbf16, #tpu.memory_space<vmem>>, vector<128x128xbf16>
    %cst_100 = arith.constant dense<0.000000e+00> : vector<64x128xf32>
    %106 = tpu.matmul %104, %105, %cst_100 {dimension_numbers = #tpu.dot_dimension_numbers<[1], [0], [0], [1], [0, 0, 1, 1], [], []>} : vector<64x128xbf16>, vector<128x128xbf16>, vector<64x128xf32> -> vector<64x128xf32>
    %c0_101 = arith.constant 0 : index
    %c0_102 = arith.constant 0 : index
    %107 = vector.load %arg7[%c0_101, %c0_102] : memref<1x128xf32, #tpu.memory_space<vmem>>, vector<1x128xf32>
    %108 = vector.broadcast %107 : vector<1x128xf32> to vector<64x128xf32>
    %109 = arith.mulf %106, %108 : vector<64x128xf32>
    %c0_103 = arith.constant 0 : index
    %c0_104 = arith.constant 0 : index
    %110 = vector.load %arg8[%c0_103, %c0_104] : memref<1x128xf32, #tpu.memory_space<vmem>>, vector<1x128xf32>
    %111 = vector.broadcast %110 : vector<1x128xf32> to vector<64x128xf32>
    %112 = arith.addf %109, %111 : vector<64x128xf32>
    %cst_105 = arith.constant 0.000000e+00 : f32
    %113 = vector.broadcast %cst_105 : f32 to vector<64x128xf32>
    %114 = arith.maximumf %112, %113 : vector<64x128xf32>
    %115 = arith.truncf %114 : vector<64x128xf32> to vector<64x128xbf16>
    %116 = vector.shape_cast %115 : vector<64x128xbf16> to vector<8x8x128xbf16>
    %c2_106 = arith.constant 2 : index
    %c0_107 = arith.constant 0 : index
    %c0_108 = arith.constant 0 : index
    %c0_109 = arith.constant 0 : index
    %117 = vector.load %arg9[%c2_106, %c0_107, %c0_108, %c0_109] : memref<4x8x8x128xbf16, #tpu.memory_space<vmem>>, vector<1x8x8x128xbf16>
    %118 = vector.shape_cast %117 : vector<1x8x8x128xbf16> to vector<8x8x128xbf16>
    %119 = vector.shape_cast %116 : vector<8x8x128xbf16> to vector<1x8x8x128xbf16>
    tpu.vector_store %arg9[%c2_106, %c0_107, %c0_108, %c0_109], %119 {strides = array<i32>} : memref<4x8x8x128xbf16, #tpu.memory_space<vmem>>, vector<1x8x8x128xbf16>,
    %120 = arith.extf %115 : vector<64x128xbf16> to vector<64x128xf32>
    %cst_110 = arith.constant dense<0.000000e+00> : vector<128xf32>
    %121 = vector.multi_reduction <add>, %120, %cst_110 [0] : vector<64x128xf32> to vector<128xf32>
    %122 = vector.shape_cast %121 : vector<128xf32> to vector<1x128xf32>
    %123 = arith.addf %82, %122 : vector<1x128xf32>
    %c0_111 = arith.constant 0 : index
    %c1_112 = arith.constant 1 : index
    %c1_113 = arith.constant 1 : index
    %c0_114 = arith.constant 0 : index
    %124 = vector.load %arg2[%c0_111, %c1_112, %c1_113, %c0_114] : memref<1x10x10x128xbf16, #tpu.memory_space<vmem>>, vector<1x8x8x128xbf16>
    %125 = vector.shape_cast %124 : vector<1x8x8x128xbf16> to vector<8x8x128xbf16>
    %c0_115 = arith.constant 0 : index
    %c1_116 = arith.constant 1 : index
    %c2_117 = arith.constant 2 : index
    %c0_118 = arith.constant 0 : index
    %126 = vector.load %arg2[%c0_115, %c1_116, %c2_117, %c0_118] : memref<1x10x10x128xbf16, #tpu.memory_space<vmem>>, vector<1x8x8x128xbf16>
    %127 = vector.shape_cast %126 : vector<1x8x8x128xbf16> to vector<8x8x128xbf16>
    %c0_119 = arith.constant 0 : index
    %c2_120 = arith.constant 2 : index
    %c1_121 = arith.constant 1 : index
    %c0_122 = arith.constant 0 : index
    %128 = vector.load %arg2[%c0_119, %c2_120, %c1_121, %c0_122] : memref<1x10x10x128xbf16, #tpu.memory_space<vmem>>, vector<1x8x8x128xbf16>
    %129 = vector.shape_cast %128 : vector<1x8x8x128xbf16> to vector<8x8x128xbf16>
    %c0_123 = arith.constant 0 : index
    %c2_124 = arith.constant 2 : index
    %c2_125 = arith.constant 2 : index
    %c0_126 = arith.constant 0 : index
    %130 = vector.load %arg2[%c0_123, %c2_124, %c2_125, %c0_126] : memref<1x10x10x128xbf16, #tpu.memory_space<vmem>>, vector<1x8x8x128xbf16>
    %131 = vector.shape_cast %130 : vector<1x8x8x128xbf16> to vector<8x8x128xbf16>
    %132 = tpu.concatenate %125, %127, %129, %131 in 2 : vector<8x8x128xbf16>, vector<8x8x128xbf16>, vector<8x8x128xbf16>, vector<8x8x128xbf16> -> vector<8x8x512xbf16>
    %133 = vector.shape_cast %132 : vector<8x8x512xbf16> to vector<64x512xbf16>
    %c3 = arith.constant 3 : index
    %c0_127 = arith.constant 0 : index
    %c0_128 = arith.constant 0 : index
    %134 = vector.load %arg3[%c3, %c0_127, %c0_128] : memref<4x512x128xbf16, #tpu.memory_space<vmem>>, vector<1x512x128xbf16>
    %135 = vector.shape_cast %134 : vector<1x512x128xbf16> to vector<512x128xbf16>
    %cst_129 = arith.constant dense<0.000000e+00> : vector<64x128xf32>
    %136 = tpu.matmul %133, %135, %cst_129 {dimension_numbers = #tpu.dot_dimension_numbers<[1], [0], [0], [1], [0, 0, 1, 1], [], []>} : vector<64x512xbf16>, vector<512x128xbf16>, vector<64x128xf32> -> vector<64x128xf32>
    %c0_130 = arith.constant 0 : index
    %c0_131 = arith.constant 0 : index
    %137 = vector.load %arg4[%c0_130, %c0_131] : memref<1x128xf32, #tpu.memory_space<vmem>>, vector<1x128xf32>
    %138 = vector.broadcast %137 : vector<1x128xf32> to vector<64x128xf32>
    %139 = arith.mulf %136, %138 : vector<64x128xf32>
    %c0_132 = arith.constant 0 : index
    %c0_133 = arith.constant 0 : index
    %140 = vector.load %arg5[%c0_132, %c0_133] : memref<1x128xf32, #tpu.memory_space<vmem>>, vector<1x128xf32>
    %141 = vector.broadcast %140 : vector<1x128xf32> to vector<64x128xf32>
    %142 = arith.addf %139, %141 : vector<64x128xf32>
    %cst_134 = arith.constant 0.000000e+00 : f32
    %143 = vector.broadcast %cst_134 : f32 to vector<64x128xf32>
    %144 = arith.maximumf %142, %143 : vector<64x128xf32>
    %145 = arith.truncf %144 : vector<64x128xf32> to vector<64x128xbf16>
    %c0_135 = arith.constant 0 : index
    %c0_136 = arith.constant 0 : index
    %146 = vector.load %arg6[%c0_135, %c0_136] : memref<128x128xbf16, #tpu.memory_space<vmem>>, vector<128x128xbf16>
    %cst_137 = arith.constant dense<0.000000e+00> : vector<64x128xf32>
    %147 = tpu.matmul %145, %146, %cst_137 {dimension_numbers = #tpu.dot_dimension_numbers<[1], [0], [0], [1], [0, 0, 1, 1], [], []>} : vector<64x128xbf16>, vector<128x128xbf16>, vector<64x128xf32> -> vector<64x128xf32>
    %c0_138 = arith.constant 0 : index
    %c0_139 = arith.constant 0 : index
    %148 = vector.load %arg7[%c0_138, %c0_139] : memref<1x128xf32, #tpu.memory_space<vmem>>, vector<1x128xf32>
    %149 = vector.broadcast %148 : vector<1x128xf32> to vector<64x128xf32>
    %150 = arith.mulf %147, %149 : vector<64x128xf32>
    %c0_140 = arith.constant 0 : index
    %c0_141 = arith.constant 0 : index
    %151 = vector.load %arg8[%c0_140, %c0_141] : memref<1x128xf32, #tpu.memory_space<vmem>>, vector<1x128xf32>
    %152 = vector.broadcast %151 : vector<1x128xf32> to vector<64x128xf32>
    %153 = arith.addf %150, %152 : vector<64x128xf32>
    %cst_142 = arith.constant 0.000000e+00 : f32
    %154 = vector.broadcast %cst_142 : f32 to vector<64x128xf32>
    %155 = arith.maximumf %153, %154 : vector<64x128xf32>
    %156 = arith.truncf %155 : vector<64x128xf32> to vector<64x128xbf16>
    %157 = vector.shape_cast %156 : vector<64x128xbf16> to vector<8x8x128xbf16>
    %c3_143 = arith.constant 3 : index
    %c0_144 = arith.constant 0 : index
    %c0_145 = arith.constant 0 : index
    %c0_146 = arith.constant 0 : index
    %158 = vector.load %arg9[%c3_143, %c0_144, %c0_145, %c0_146] : memref<4x8x8x128xbf16, #tpu.memory_space<vmem>>, vector<1x8x8x128xbf16>
    %159 = vector.shape_cast %158 : vector<1x8x8x128xbf16> to vector<8x8x128xbf16>
    %160 = vector.shape_cast %157 : vector<8x8x128xbf16> to vector<1x8x8x128xbf16>
    tpu.vector_store %arg9[%c3_143, %c0_144, %c0_145, %c0_146], %160 {strides = array<i32>} : memref<4x8x8x128xbf16, #tpu.memory_space<vmem>>, vector<1x8x8x128xbf16>,
    %161 = arith.extf %156 : vector<64x128xbf16> to vector<64x128xf32>
    %cst_147 = arith.constant dense<0.000000e+00> : vector<128xf32>
    %162 = vector.multi_reduction <add>, %161, %cst_147 [0] : vector<64x128xf32> to vector<128xf32>
    %163 = vector.shape_cast %162 : vector<128xf32> to vector<1x128xf32>
    %164 = arith.addf %123, %163 : vector<1x128xf32>
    %c0_148 = arith.constant 0 : index
    %c0_149 = arith.constant 0 : index
    %c0_150 = arith.constant 0 : index
    %165 = vector.load %arg10[%c0_148, %c0_149, %c0_150] : memref<1x1x128xf32, #tpu.memory_space<vmem>>, vector<1x1x128xf32>
    %166 = vector.shape_cast %165 : vector<1x1x128xf32> to vector<1x128xf32>
    %167 = vector.shape_cast %164 : vector<1x128xf32> to vector<1x1x128xf32>
    tpu.vector_store %arg10[%c0_148, %c0_149, %c0_150], %167 {strides = array<i32>} : memref<1x1x128xf32, #tpu.memory_space<vmem>>, vector<1x1x128xf32>,
    return
  }
  func.func @transform_0(%arg0: i32, %arg1: i32) -> (i32, i32, i32, i32) {
    %c1_i32 = arith.constant 1 : i32
    %0 = arith.muli %arg0, %c1_i32 : i32
    %1 = arith.addi %0, %arg1 : i32
    %c0_i32 = arith.constant 0 : i32
    %c0_i32_0 = arith.constant 0 : i32
    %c0_i32_1 = arith.constant 0 : i32
    %c0_i32_2 = arith.constant 0 : i32
    return %1, %c0_i32, %c0_i32_0, %c0_i32_1 : i32, i32, i32, i32
  }
  func.func @transform_1(%arg0: i32, %arg1: i32) -> (i32, i32, i32) {
    %c0_i32 = arith.constant 0 : i32
    %c0_i32_0 = arith.constant 0 : i32
    %c0_i32_1 = arith.constant 0 : i32
    %c0_i32_2 = arith.constant 0 : i32
    return %c0_i32, %c0_i32_0, %c0_i32_1 : i32, i32, i32
  }
  func.func @transform_2(%arg0: i32, %arg1: i32) -> (i32, i32) {
    %c0_i32 = arith.constant 0 : i32
    %c0_i32_0 = arith.constant 0 : i32
    %c0_i32_1 = arith.constant 0 : i32
    return %c0_i32, %c0_i32_0 : i32, i32
  }
  func.func @transform_3(%arg0: i32, %arg1: i32) -> (i32, i32) {
    %c0_i32 = arith.constant 0 : i32
    %c0_i32_0 = arith.constant 0 : i32
    %c0_i32_1 = arith.constant 0 : i32
    return %c0_i32, %c0_i32_0 : i32, i32
  }
  func.func @transform_4(%arg0: i32, %arg1: i32) -> (i32, i32) {
    %c0_i32 = arith.constant 0 : i32
    %c0_i32_0 = arith.constant 0 : i32
    %c0_i32_1 = arith.constant 0 : i32
    return %c0_i32, %c0_i32_0 : i32, i32
  }
  func.func @transform_5(%arg0: i32, %arg1: i32) -> (i32, i32) {
    %c0_i32 = arith.constant 0 : i32
    %c0_i32_0 = arith.constant 0 : i32
    %c0_i32_1 = arith.constant 0 : i32
    return %c0_i32, %c0_i32_0 : i32, i32
  }
  func.func @transform_6(%arg0: i32, %arg1: i32) -> (i32, i32) {
    %c0_i32 = arith.constant 0 : i32
    %c0_i32_0 = arith.constant 0 : i32
    %c0_i32_1 = arith.constant 0 : i32
    return %c0_i32, %c0_i32_0 : i32, i32
  }
  func.func @transform_7(%arg0: i32, %arg1: i32) -> (i32, i32, i32, i32) {
    %c0_i32 = arith.constant 0 : i32
    %c0_i32_0 = arith.constant 0 : i32
    %c0_i32_1 = arith.constant 0 : i32
    return %arg0, %arg1, %c0_i32, %c0_i32_0 : i32, i32, i32, i32
  }
  func.func @transform_8(%arg0: i32, %arg1: i32) -> (i32, i32, i32) {
    %c1_i32 = arith.constant 1 : i32
    %0 = arith.muli %arg0, %c1_i32 : i32
    %1 = arith.addi %0, %arg1 : i32
    %c0_i32 = arith.constant 0 : i32
    %c0_i32_0 = arith.constant 0 : i32
    %c0_i32_1 = arith.constant 0 : i32
    return %1, %c0_i32, %c0_i32_0 : i32, i32, i32
  }
}

module attributes {stable_mosaic.version = 11 : i64} {
  func.func @kernel(%arg0: i32, %arg1: i32, %arg2: memref<4x8x8x128xbf16, #tpu.memory_space<vmem>>, %arg3: memref<4x8x8x128xbf16, #tpu.memory_space<vmem>>, %arg4: memref<1x1x128xf32, #tpu.memory_space<vmem>>, %arg5: memref<128x128xbf16, #tpu.memory_space<vmem>>, %arg6: memref<1x128xf32, #tpu.memory_space<vmem>>, %arg7: memref<4x8x8x128xf32, #tpu.memory_space<vmem>>, %arg8: memref<1x1x128xf32, #tpu.memory_space<vmem>>) attributes {dimension_semantics = [#tpu.dimension_semantics<parallel>, #tpu.dimension_semantics<parallel>], iteration_bounds = array<i64: 2, 1>, scalar_prefetch = 0 : i64, scratch_operands = 0 : i64, tpu.core_type = #tpu.core_type<tc>, window_params = [{transform_indices = @transform_0, window_bounds = array<i64: 4, 8, 8, 128>}, {transform_indices = @transform_1, window_bounds = array<i64: 4, 8, 8, 128>}, {transform_indices = @transform_2, window_bounds = array<i64: 1, 1, 128>}, {pipeline_mode = #tpu.pipeline_mode<synchronous>, transform_indices = @transform_3, window_bounds = array<i64: 128, 128>}, {pipeline_mode = #tpu.pipeline_mode<synchronous>, transform_indices = @transform_4, window_bounds = array<i64: 1, 128>}, {transform_indices = @transform_5, window_bounds = array<i64: 4, 8, 8, 128>}, {transform_indices = @transform_6, window_bounds = array<i64: 1, 1, 128>}]} {
    %c0 = arith.constant 0 : index
    %c0_0 = arith.constant 0 : index
    %c0_1 = arith.constant 0 : index
    %c0_2 = arith.constant 0 : index
    %0 = vector.load %arg2[%c0, %c0_0, %c0_1, %c0_2] : memref<4x8x8x128xbf16, #tpu.memory_space<vmem>>, vector<4x8x8x128xbf16>
    %1 = arith.extf %0 : vector<4x8x8x128xbf16> to vector<4x8x8x128xf32>
    %c0_3 = arith.constant 0 : index
    %c0_4 = arith.constant 0 : index
    %c0_5 = arith.constant 0 : index
    %c0_6 = arith.constant 0 : index
    %2 = vector.load %arg3[%c0_3, %c0_4, %c0_5, %c0_6] : memref<4x8x8x128xbf16, #tpu.memory_space<vmem>>, vector<4x8x8x128xbf16>
    %3 = arith.extf %2 : vector<4x8x8x128xbf16> to vector<4x8x8x128xf32>
    %4 = arith.addf %1, %3 : vector<4x8x8x128xf32>
    %5 = vector.shape_cast %4 : vector<4x8x8x128xf32> to vector<256x128xf32>
    %6 = arith.truncf %5 : vector<256x128xf32> to vector<256x128xbf16>
    %c0_7 = arith.constant 0 : index
    %c0_8 = arith.constant 0 : index
    %7 = vector.load %arg5[%c0_7, %c0_8] : memref<128x128xbf16, #tpu.memory_space<vmem>>, vector<128x128xbf16>
    %cst = arith.constant dense<0.000000e+00> : vector<256x128xf32>
    %8 = tpu.matmul %6, %7, %cst {dimension_numbers = #tpu.dot_dimension_numbers<[1], [0], [0], [1], [0, 0, 1, 1], [], []>} : vector<256x128xbf16>, vector<128x128xbf16>, vector<256x128xf32> -> vector<256x128xf32>
    %c0_9 = arith.constant 0 : index
    %c0_10 = arith.constant 0 : index
    %9 = vector.load %arg6[%c0_9, %c0_10] : memref<1x128xf32, #tpu.memory_space<vmem>>, vector<1x128xf32>
    %10 = vector.broadcast %9 : vector<1x128xf32> to vector<256x128xf32>
    %11 = arith.addf %8, %10 : vector<256x128xf32>
    %cst_11 = arith.constant 0.000000e+00 : f32
    %12 = vector.broadcast %cst_11 : f32 to vector<256x128xf32>
    %13 = arith.subf %12, %11 : vector<256x128xf32>
    %14 = math.exp %13 : vector<256x128xf32>
    %cst_12 = arith.constant 1.000000e+00 : f32
    %15 = vector.broadcast %cst_12 : f32 to vector<256x128xf32>
    %16 = arith.addf %15, %14 : vector<256x128xf32>
    %17 = tpu.reciprocal %16 {approx = true} : vector<256x128xf32> -> vector<256x128xf32>
    %c0_13 = arith.constant 0 : index
    %c0_14 = arith.constant 0 : index
    %c0_15 = arith.constant 0 : index
    %18 = vector.load %arg4[%c0_13, %c0_14, %c0_15] : memref<1x1x128xf32, #tpu.memory_space<vmem>>, vector<1x1x128xf32>
    %19 = vector.shape_cast %18 : vector<1x1x128xf32> to vector<1x128xf32>
    %20 = vector.broadcast %19 : vector<1x128xf32> to vector<256x128xf32>
    %21 = arith.addf %20, %17 : vector<256x128xf32>
    %22 = arith.mulf %5, %21 : vector<256x128xf32>
    %23 = vector.shape_cast %22 : vector<256x128xf32> to vector<4x8x8x128xf32>
    %c0_16 = arith.constant 0 : index
    %c0_17 = arith.constant 0 : index
    %c0_18 = arith.constant 0 : index
    %c0_19 = arith.constant 0 : index
    %24 = vector.load %arg7[%c0_16, %c0_17, %c0_18, %c0_19] : memref<4x8x8x128xf32, #tpu.memory_space<vmem>>, vector<4x8x8x128xf32>
    tpu.vector_store %arg7[%c0_16, %c0_17, %c0_18, %c0_19], %23 {strides = array<i32>} : memref<4x8x8x128xf32, #tpu.memory_space<vmem>>, vector<4x8x8x128xf32>,
    %cst_20 = arith.constant dense<0.000000e+00> : vector<128xf32>
    %25 = vector.multi_reduction <add>, %22, %cst_20 [0] : vector<256x128xf32> to vector<128xf32>
    %26 = vector.shape_cast %25 : vector<128xf32> to vector<1x128xf32>
    %c0_21 = arith.constant 0 : index
    %c0_22 = arith.constant 0 : index
    %c0_23 = arith.constant 0 : index
    %27 = vector.load %arg8[%c0_21, %c0_22, %c0_23] : memref<1x1x128xf32, #tpu.memory_space<vmem>>, vector<1x1x128xf32>
    %28 = vector.shape_cast %27 : vector<1x1x128xf32> to vector<1x128xf32>
    %29 = vector.shape_cast %26 : vector<1x128xf32> to vector<1x1x128xf32>
    tpu.vector_store %arg8[%c0_21, %c0_22, %c0_23], %29 {strides = array<i32>} : memref<1x1x128xf32, #tpu.memory_space<vmem>>, vector<1x1x128xf32>,
    return
  }
  func.func @transform_0(%arg0: i32, %arg1: i32) -> (i32, i32, i32, i32) {
    %c0_i32 = arith.constant 0 : i32
    %c0_i32_0 = arith.constant 0 : i32
    %c0_i32_1 = arith.constant 0 : i32
    return %arg0, %arg1, %c0_i32, %c0_i32_0 : i32, i32, i32, i32
  }
  func.func @transform_1(%arg0: i32, %arg1: i32) -> (i32, i32, i32, i32) {
    %c0_i32 = arith.constant 0 : i32
    %c0_i32_0 = arith.constant 0 : i32
    %c0_i32_1 = arith.constant 0 : i32
    return %arg0, %arg1, %c0_i32, %c0_i32_0 : i32, i32, i32, i32
  }
  func.func @transform_2(%arg0: i32, %arg1: i32) -> (i32, i32, i32) {
    %c0_i32 = arith.constant 0 : i32
    %c0_i32_0 = arith.constant 0 : i32
    %c0_i32_1 = arith.constant 0 : i32
    return %arg0, %c0_i32, %c0_i32_0 : i32, i32, i32
  }
  func.func @transform_3(%arg0: i32, %arg1: i32) -> (i32, i32) {
    %c0_i32 = arith.constant 0 : i32
    %c0_i32_0 = arith.constant 0 : i32
    %c0_i32_1 = arith.constant 0 : i32
    return %c0_i32, %c0_i32_0 : i32, i32
  }
  func.func @transform_4(%arg0: i32, %arg1: i32) -> (i32, i32) {
    %c0_i32 = arith.constant 0 : i32
    %c0_i32_0 = arith.constant 0 : i32
    %c0_i32_1 = arith.constant 0 : i32
    return %c0_i32, %c0_i32_0 : i32, i32
  }
  func.func @transform_5(%arg0: i32, %arg1: i32) -> (i32, i32, i32, i32) {
    %c0_i32 = arith.constant 0 : i32
    %c0_i32_0 = arith.constant 0 : i32
    %c0_i32_1 = arith.constant 0 : i32
    return %arg0, %arg1, %c0_i32, %c0_i32_0 : i32, i32, i32, i32
  }
  func.func @transform_6(%arg0: i32, %arg1: i32) -> (i32, i32, i32) {
    %c1_i32 = arith.constant 1 : i32
    %0 = arith.muli %arg0, %c1_i32 : i32
    %1 = arith.addi %0, %arg1 : i32
    %c0_i32 = arith.constant 0 : i32
    %c0_i32_0 = arith.constant 0 : i32
    %c0_i32_1 = arith.constant 0 : i32
    return %1, %c0_i32, %c0_i32_0 : i32, i32, i32
  }
}

</mosaic_0001>

<llo_original>
// kernel: decoder_block_forward.4
$region0: #{decoder_block_forward.4}
  #allocation0 [shape = 'u32[]', space=smem, size = 0x4, offset = 0x4, fixed_abs, tag = 'smem constant byte address 0x4 - core index']
  #allocation1 [shape = 'u32[144,128]{1,0:T(1,128)}', space=vmem, size = 0x12000, scoped, tag = 'internal scratch']
  %s0 = inlined_call_operand.vmem [shape: bf16[128,128], index: 0, kind: input, shape index: {}]
  %s1 = inlined_call_operand.vmem [shape: bf16[128,128], index: 1, kind: input, shape index: {}]
  %s2 = inlined_call_operand.vmem [shape: f32[1,128], index: 2, kind: input, shape index: {}]
  %s3 = inlined_call_operand.vmem [shape: f32[1,128], index: 3, kind: input, shape index: {}]
  %s4 = inlined_call_operand.vmem [shape: bf16[128,128], index: 4, kind: output, shape index: {}]
  %s5 = sld [smem:[#allocation0]]
  $region26: #{decoder_block_forward.4} parent=0
    _
  %s7 = ssub.s32 1, %s5
  %s8 = scalar_select 0, %s7, %s5
  // Predicated region
  $region2: #{decoder_block_forward.4} parent=0 // pred_check
    _
  $region3: #{decoder_block_forward.4} parent=0 // pred_check_branch
    %10 = sbr.rel (0) target = $region5
  $region4: #{decoder_block_forward.4} parent=0 // pred_region
    _
  $region5: #{decoder_block_forward.4} parent=0 // pred_fallthru
    _
  // Predicated region
  $region6: #{decoder_block_forward.4} parent=0 // pred_check
    _
  $region7: #{decoder_block_forward.4} parent=0 // pred_check_branch
    %12 = sbr.rel (0) target = $region9
  $region8: #{decoder_block_forward.4} parent=0 // pred_region
    _
  $region9: #{decoder_block_forward.4} parent=0 // pred_fallthru
    _
  // Predicated region
  $region10: #{decoder_block_forward.4} parent=0 // pred_check
    _
  $region11: #{decoder_block_forward.4} parent=0 // pred_check_branch
    %14 = sbr.rel (0) target = $region13
  $region12: #{decoder_block_forward.4} parent=0 // pred_region
    _
  $region13: #{decoder_block_forward.4} parent=0 // pred_fallthru
    _
  // Predicated region
  $region14: #{decoder_block_forward.4} parent=0 // pred_check
    _
  $region15: #{decoder_block_forward.4} parent=0 // pred_check_branch
    %16 = sbr.rel (0) target = $region17
  $region16: #{decoder_block_forward.4} parent=0 // pred_region
    _
  $region17: #{decoder_block_forward.4} parent=0 // pred_fallthru
    _
  %v18 = vld [vmem:[%s0] sm:$0xf]
  %v19 = vld [vmem:[%s0 + $0x4] sm:$0xf]
  %v20 = vld [vmem:[%s0 + $0x8] sm:$0xf]
  %v21 = vld [vmem:[%s0 + $0xc] sm:$0xf]
  %v22 = vld [vmem:[%s0 + $0x10] sm:$0xf]
  %v23 = vld [vmem:[%s0 + $0x14] sm:$0xf]
  %v24 = vld [vmem:[%s0 + $0x18] sm:$0xf]
  %v25 = vld [vmem:[%s0 + $0x1c] sm:$0xf]
  %v26 = vld [vmem:[%s0 + $0x20] sm:$0xf]
  %v27 = vld [vmem:[%s0 + $0x24] sm:$0xf]
  %v28 = vld [vmem:[%s0 + $0x28] sm:$0xf]
  %v29 = vld [vmem:[%s0 + $0x2c] sm:$0xf]
  %v30 = vld [vmem:[%s0 + $0x30] sm:$0xf]
  %v31 = vld [vmem:[%s0 + $0x34] sm:$0xf]
  %v32 = vld [vmem:[%s0 + $0x38] sm:$0xf]
  %v33 = vld [vmem:[%s0 + $0x3c] sm:$0xf]
  %v34 = vld [vmem:[%s1] sm:$0xf]
  %v35 = vld [vmem:[%s1 + $0x4] sm:$0xf]
  %v36 = vld [vmem:[%s1 + $0x8] sm:$0xf]
  %v37 = vld [vmem:[%s1 + $0xc] sm:$0xf]
  %v38 = vld [vmem:[%s1 + $0x10] sm:$0xf]
  %v39 = vld [vmem:[%s1 + $0x14] sm:$0xf]
  %v40 = vld [vmem:[%s1 + $0x18] sm:$0xf]
  %v41 = vld [vmem:[%s1 + $0x1c] sm:$0xf]
  %v42 = vld [vmem:[%s1 + $0x20] sm:$0xf]
  %v43 = vld [vmem:[%s1 + $0x24] sm:$0xf]
  %v44 = vld [vmem:[%s1 + $0x28] sm:$0xf]
  %v45 = vld [vmem:[%s1 + $0x2c] sm:$0xf]
  %v46 = vld [vmem:[%s1 + $0x30] sm:$0xf]
  %v47 = vld [vmem:[%s1 + $0x34] sm:$0xf]
  %v48 = vld [vmem:[%s1 + $0x38] sm:$0xf]
  %v49 = vld [vmem:[%s1 + $0x3c] sm:$0xf]
  %v66 = vunpack.c.l.b16 %v18
  %v67 = vunpack.c.l.b16 %v19
  %v68 = vunpack.c.l.b16 %v20
  %v69 = vunpack.c.l.b16 %v21
  %v70 = vunpack.c.l.b16 %v22
  %v71 = vunpack.c.l.b16 %v23
  %v72 = vunpack.c.l.b16 %v24
  %v73 = vunpack.c.l.b16 %v25
  %v74 = vunpack.c.l.b16 %v26
  %v75 = vunpack.c.l.b16 %v27
  %v76 = vunpack.c.l.b16 %v28
  %v77 = vunpack.c.l.b16 %v29
  %v78 = vunpack.c.l.b16 %v30
  %v79 = vunpack.c.l.b16 %v31
  %v80 = vunpack.c.l.b16 %v32
  %v81 = vunpack.c.l.b16 %v33
  %v82 = vpack.c.b16 %v67, %v66
  %v83 = vpack.c.b16 %v69, %v68
  %v84 = vpack.c.b16 %v71, %v70
  %v85 = vpack.c.b16 %v73, %v72
  %v86 = vpack.c.b16 %v75, %v74
  %v87 = vpack.c.b16 %v77, %v76
  %v88 = vpack.c.b16 %v79, %v78
  %v89 = vpack.c.b16 %v81, %v80
  %v114 = vunpack.c.l.b16 %v34
  %v115 = vunpack.c.l.b16 %v35
  %v116 = vunpack.c.l.b16 %v36
  %v117 = vunpack.c.l.b16 %v37
  %v118 = vunpack.c.l.b16 %v38
  %v119 = vunpack.c.l.b16 %v39
  %v120 = vunpack.c.l.b16 %v40
  %v121 = vunpack.c.l.b16 %v41
  %v122 = vunpack.c.l.b16 %v42
  %v123 = vunpack.c.l.b16 %v43
  %v124 = vunpack.c.l.b16 %v44
  %v125 = vunpack.c.l.b16 %v45
  %v126 = vunpack.c.l.b16 %v46
  %v127 = vunpack.c.l.b16 %v47
  %v128 = vunpack.c.l.b16 %v48
  %v129 = vunpack.c.l.b16 %v49
  %v130 = vpack.c.b16 %v115, %v114
  %v131 = vpack.c.b16 %v117, %v116
  %v132 = vpack.c.b16 %v119, %v118
  %v133 = vpack.c.b16 %v121, %v120
  %v134 = vpack.c.b16 %v123, %v122
  %v135 = vpack.c.b16 %v125, %v124
  %v136 = vpack.c.b16 %v127, %v126
  %v137 = vpack.c.b16 %v129, %v128
  %146 = vmatprep.subr.bf16.mxu0 0
  %147 = vmatpush1.bf16.msra.mxu0 %v130
  %148 = vmatprep.subr.bf16.mxu0 0
  %149 = vmatpush1.bf16.msra.mxu0 %v131
  %150 = vmatprep.subr.bf16.mxu0 0
  %151 = vmatpush1.bf16.msra.mxu0 %v132
  %152 = vmatprep.subr.bf16.mxu0 0
  %153 = vmatpush1.bf16.msra.mxu0 %v133
  %154 = vmatprep.subr.bf16.mxu0 0
  %155 = vmatpush1.bf16.msra.mxu0 %v134
  %156 = vmatprep.subr.bf16.mxu0 0
  %157 = vmatpush1.bf16.msra.mxu0 %v135
  %158 = vmatprep.subr.bf16.mxu0 0
  %159 = vmatpush1.bf16.msra.mxu0 %v136
  %160 = vmatprep.subr.bf16.mxu0 0
  %161 = vmatpush1.bf16.msra.mxu0 %v137
  %162 = vmatprep.subr.bf16.mxu0 0
  %163 = vmatpush1.bf16.msra.mxu0 0
  %164 = vmatprep.subr.bf16.mxu0 0
  %165 = vmatpush1.bf16.msra.mxu0 0
  %166 = vmatprep.subr.bf16.mxu0 0
  %167 = vmatpush1.bf16.msra.mxu0 0
  %168 = vmatprep.subr.bf16.mxu0 0
  %169 = vmatpush1.bf16.msra.mxu0 0
  %170 = vmatprep.subr.bf16.mxu0 0
  %171 = vmatpush1.bf16.msra.mxu0 0
  %172 = vmatprep.subr.bf16.mxu0 0
  %173 = vmatpush1.bf16.msra.mxu0 0
  %174 = vmatprep.subr.bf16.mxu0 0
  %175 = vmatpush1.bf16.msra.mxu0 0
  %176 = vmatprep.subr.bf16.mxu0 0
  %177 = vmatpush1.bf16.msra.mxu0 0
  %178 = vmatprep.mubr.bf16.mxu0 0
  %179 = vmatmul.mubr.bf16.gmra.mrb[0].mxu0 %v82
  %v180 = vpop.f32.mrb[0].mxu0
  %v181 = vadd.f32 0.0, %v180
  %v182 = vpop.f32.mrb[0].mxu0
  %v183 = vpop.f32.mrb[0].mxu0
  %v184 = vadd.f32 0.0, %v183
  %v185 = vpop.f32.mrb[0].mxu0
  %186 = vmatprep.mubr.bf16.mxu0 0
  %187 = vmatmul.mubr.bf16.gmra.mrb[0].mxu0 %v83
  %v188 = vpop.f32.mrb[0].mxu0
  %v189 = vadd.f32 0.0, %v188
  %v190 = vpop.f32.mrb[0].mxu0
  %v191 = vpop.f32.mrb[0].mxu0
  %v192 = vadd.f32 0.0, %v191
  %v193 = vpop.f32.mrb[0].mxu0
  %194 = vmatprep.mubr.bf16.mxu0 0
  %195 = vmatmul.mubr.bf16.gmra.mrb[0].mxu0 %v84
  %v196 = vpop.f32.mrb[0].mxu0
  %v197 = vadd.f32 0.0, %v196
  %v198 = vpop.f32.mrb[0].mxu0
  %v199 = vpop.f32.mrb[0].mxu0
  %v200 = vadd.f32 0.0, %v199
  %v201 = vpop.f32.mrb[0].mxu0
  %202 = vmatprep.mubr.bf16.mxu0 0
  %203 = vmatmul.mubr.bf16.gmra.mrb[0].mxu0 %v85
  %v204 = vpop.f32.mrb[0].mxu0
  %v205 = vadd.f32 0.0, %v204
  %v206 = vpop.f32.mrb[0].mxu0
  %v207 = vpop.f32.mrb[0].mxu0
  %v208 = vadd.f32 0.0, %v207
  %v209 = vpop.f32.mrb[0].mxu0
  %210 = vmatprep.mubr.bf16.mxu0 0
  %211 = vmatmul.mubr.bf16.gmra.mrb[0].mxu0 %v86
  %v212 = vpop.f32.mrb[0].mxu0
  %v213 = vadd.f32 0.0, %v212
  %v214 = vpop.f32.mrb[0].mxu0
  %v215 = vpop.f32.mrb[0].mxu0
  %v216 = vadd.f32 0.0, %v215
  %v217 = vpop.f32.mrb[0].mxu0
  %218 = vmatprep.mubr.bf16.mxu0 0
  %219 = vmatmul.mubr.bf16.gmra.mrb[0].mxu0 %v87
  %v220 = vpop.f32.mrb[0].mxu0
  %v221 = vadd.f32 0.0, %v220
  %v222 = vpop.f32.mrb[0].mxu0
  %v223 = vpop.f32.mrb[0].mxu0
  %v224 = vadd.f32 0.0, %v223
  %v225 = vpop.f32.mrb[0].mxu0
  %226 = vmatprep.mubr.bf16.mxu0 0
  %227 = vmatmul.mubr.bf16.gmra.mrb[0].mxu0 %v88
  %v228 = vpop.f32.mrb[0].mxu0
  %v229 = vadd.f32 0.0, %v228
  %v230 = vpop.f32.mrb[0].mxu0
  %v231 = vpop.f32.mrb[0].mxu0
  %v232 = vadd.f32 0.0, %v231
  %v233 = vpop.f32.mrb[0].mxu0
  %234 = vmatprep.mubr.bf16.mxu0 0
  %235 = vmatmul.mubr.bf16.gmra.mrb[0].mxu0 %v89
  %v236 = vpop.f32.mrb[0].mxu0
  %v237 = vadd.f32 0.0, %v236
  %v238 = vpop.f32.mrb[0].mxu0
  %v239 = vpop.f32.mrb[0].mxu0
  %v240 = vadd.f32 0.0, %v239
  %v241 = vpop.f32.mrb[0].mxu0
  %242 = vdwg.mxu0
  %v243 = vld [vmem:[%s2] sm:$0x1]
  %v245 = vlaneseq
  %v246 = vshrl.u32 %v245, 7
  %v247 = vsub.s32 0, %v246
  %v248 = vrot.slane %v243, %v247
  %v250 = vmul.f32 %v181, %v248
  %v251 = vmul.f32 %v184, %v248
  %v252 = vmul.f32 %v189, %v248
  %v253 = vmul.f32 %v192, %v248
  %v254 = vmul.f32 %v197, %v248
  %v255 = vmul.f32 %v200, %v248
  %v256 = vmul.f32 %v205, %v248
  %v257 = vmul.f32 %v208, %v248
  %v258 = vmul.f32 %v213, %v248
  %v259 = vmul.f32 %v216, %v248
  %v260 = vmul.f32 %v221, %v248
  %v261 = vmul.f32 %v224, %v248
  %v262 = vmul.f32 %v229, %v248
  %v263 = vmul.f32 %v232, %v248
  %v264 = vmul.f32 %v237, %v248
  %v265 = vmul.f32 %v240, %v248
  %v266 = vld [vmem:[%s3] sm:$0x1]
  %v268 = vlaneseq
  %v269 = vshrl.u32 %v268, 7
  %v270 = vsub.s32 0, %v269
  %v271 = vrot.slane %v266, %v270
  %v273 = vadd.f32 %v250, %v271
  %v274 = vadd.f32 %v251, %v271
  %v275 = vadd.f32 %v252, %v271
  %v276 = vadd.f32 %v253, %v271
  %v277 = vadd.f32 %v254, %v271
  %v278 = vadd.f32 %v255, %v271
  %v279 = vadd.f32 %v256, %v271
  %v280 = vadd.f32 %v257, %v271
  %v281 = vadd.f32 %v258, %v271
  %v282 = vadd.f32 %v259, %v271
  %v283 = vadd.f32 %v260, %v271
  %v284 = vadd.f32 %v261, %v271
  %v285 = vadd.f32 %v262, %v271
  %v286 = vadd.f32 %v263, %v271
  %v287 = vadd.f32 %v264, %v271
  %v288 = vadd.f32 %v265, %v271
  %v289 = vmax.f32 %v273, 0.0
  %v290 = vmax.f32 %v274, 0.0
  %v291 = vmax.f32 %v275, 0.0
  %v292 = vmax.f32 %v276, 0.0
  %v293 = vmax.f32 %v277, 0.0
  %v294 = vmax.f32 %v278, 0.0
  %v295 = vmax.f32 %v279, 0.0
  %v296 = vmax.f32 %v280, 0.0
  %v297 = vmax.f32 %v281, 0.0
  %v298 = vmax.f32 %v282, 0.0
  %v299 = vmax.f32 %v283, 0.0
  %v300 = vmax.f32 %v284, 0.0
  %v301 = vmax.f32 %v285, 0.0
  %v302 = vmax.f32 %v286, 0.0
  %v303 = vmax.f32 %v287, 0.0
  %v304 = vmax.f32 %v288, 0.0
  %v305 = vpack.c.bf16 %v290, %v289
  %v306 = vpack.c.bf16 %v292, %v291
  %v307 = vpack.c.bf16 %v294, %v293
  %v308 = vpack.c.bf16 %v296, %v295
  %v309 = vpack.c.bf16 %v298, %v297
  %v310 = vpack.c.bf16 %v300, %v299
  %v311 = vpack.c.bf16 %v302, %v301
  %v312 = vpack.c.bf16 %v304, %v303
  %v321 = vunpack.c.l.b16 %v305
  %v322 = vunpack.c.h.b16 %v305
  %v323 = vunpack.c.l.b16 %v306
  %v324 = vunpack.c.h.b16 %v306
  %v325 = vunpack.c.l.b16 %v307
  %v326 = vunpack.c.h.b16 %v307
  %v327 = vunpack.c.l.b16 %v308
  %v328 = vunpack.c.h.b16 %v308
  %v329 = vunpack.c.l.b16 %v309
  %v330 = vunpack.c.h.b16 %v309
  %v331 = vunpack.c.l.b16 %v310
  %v332 = vunpack.c.h.b16 %v310
  %v333 = vunpack.c.l.b16 %v311
  %v334 = vunpack.c.h.b16 %v311
  %v335 = vunpack.c.l.b16 %v312
  %v336 = vunpack.c.h.b16 %v312
  %v337 = vpack.c.b16 %v321, %v321
  %v338 = vpack.c.b16 %v322, %v322
  %v339 = vpack.c.b16 %v323, %v323
  %v340 = vpack.c.b16 %v324, %v324
  %v341 = vpack.c.b16 %v325, %v325
  %v342 = vpack.c.b16 %v326, %v326
  %v343 = vpack.c.b16 %v327, %v327
  %v344 = vpack.c.b16 %v328, %v328
  %v345 = vpack.c.b16 %v329, %v329
  %v346 = vpack.c.b16 %v330, %v330
  %v347 = vpack.c.b16 %v331, %v331
  %v348 = vpack.c.b16 %v332, %v332
  %v349 = vpack.c.b16 %v333, %v333
  %v350 = vpack.c.b16 %v334, %v334
  %v351 = vpack.c.b16 %v335, %v335
  %v352 = vpack.c.b16 %v336, %v336
  %369 = vst [vmem:[%s4] sm:$0xf] %v337
  %370 = vst [vmem:[%s4 + $0x4] sm:$0xf] %v338
  %371 = vst [vmem:[%s4 + $0x8] sm:$0xf] %v339
  %372 = vst [vmem:[%s4 + $0xc] sm:$0xf] %v340
  %373 = vst [vmem:[%s4 + $0x10] sm:$0xf] %v341
  %374 = vst [vmem:[%s4 + $0x14] sm:$0xf] %v342
  %375 = vst [vmem:[%s4 + $0x18] sm:$0xf] %v343
  %376 = vst [vmem:[%s4 + $0x1c] sm:$0xf] %v344
  %377 = vst [vmem:[%s4 + $0x20] sm:$0xf] %v345
  %378 = vst [vmem:[%s4 + $0x24] sm:$0xf] %v346
  %379 = vst [vmem:[%s4 + $0x28] sm:$0xf] %v347
  %380 = vst [vmem:[%s4 + $0x2c] sm:$0xf] %v348
  %381 = vst [vmem:[%s4 + $0x30] sm:$0xf] %v349
  %382 = vst [vmem:[%s4 + $0x34] sm:$0xf] %v350
  %383 = vst [vmem:[%s4 + $0x38] sm:$0xf] %v351
  %384 = vst [vmem:[%s4 + $0x3c] sm:$0xf] %v352
  // Predicated region
  $region18: #{decoder_block_forward.4} parent=0 // pred_check
    _
  $region19: #{decoder_block_forward.4} parent=0 // pred_check_branch
    %386 = sbr.rel (0) target = $region21
  $region20: #{decoder_block_forward.4} parent=0 // pred_region
    _
  $region21: #{decoder_block_forward.4} parent=0 // pred_fallthru
    _
  // Predicated region
  $region22: #{decoder_block_forward.4} parent=0 // pred_check
    _
  $region23: #{decoder_block_forward.4} parent=0 // pred_check_branch
    %388 = sbr.rel (0) target = $region25
  $region24: #{decoder_block_forward.4} parent=0 // pred_region
    _
  $region25: #{decoder_block_forward.4} parent=0 // pred_fallthru
    _

// kernel: decoder_block_forward.6
$region0: #{decoder_block_forward.6}
  #allocation0 [shape = 'u32[]', space=smem, size = 0x4, offset = 0x4, fixed_abs, tag = 'smem constant byte address 0x4 - core index']
  #allocation1 [shape = 'u32[144,128]{1,0:T(1,128)}', space=vmem, size = 0x12000, scoped, tag = 'internal scratch']
  %s0 = inlined_call_operand.vmem [shape: bf16[8,8,8,128], index: 0, kind: input, shape index: {}]
  %s1 = inlined_call_operand.vmem [shape: f32[2,1,128], index: 1, kind: input, shape index: {}]
  %s2 = inlined_call_operand.vmem [shape: bf16[128,128], index: 2, kind: input, shape index: {}]
  %s3 = inlined_call_operand.vmem [shape: f32[1,128], index: 3, kind: input, shape index: {}]
  %s4 = inlined_call_operand.vmem [shape: bf16[8,8,8,128], index: 4, kind: output, shape index: {0}]
  %s5 = inlined_call_operand.vmem [shape: f32[2,1,128], index: 5, kind: output, shape index: {1}]
  %6 = xla_tuple %s4, %s5
  %s7 = sld [smem:[#allocation0]]
  $region57: #{decoder_block_forward.6} parent=0
    _
  %s9 = ssub.s32 1, %s7
  %s10 = scalar_select 0, %s9, %s7
  loop: start=0, step=1, limit=4
  $region2: #{decoder_block_forward.6} parent=0 // loop_pre_header
    _
  $region3: #{decoder_block_forward.6} parent=0 // loop_header
    %s12 = sphi 0, %s16
    %p13 = scmp.ge.s32.totalorder %s12, 4
    %s19 = sphi 0, %s31
    %s20 = sphi 0, %s27
    %s21 = sphi 0, %s19
    %s22 = sphi 0, %s20
    %s23 = sphi 0, %s21
    %s24 = sphi 0, %s22
    %s36 = sphi 0, %s38
    %s39 = sphi 0, %s36
    %s40 = sphi 0, %s39
    %s56 = sphi 0, %s40
    %s62 = sphi 0, %s64
    %s65 = sphi 0, %s62
    %s66 = sphi 0, %s65
    %s82 = sphi 0, %s66
    %s86 = sphi 0, %s86
    %s88 = sphi 0, %s86
    %s89 = sphi 0, %s88
    %s103 = sphi 0, %s89
    %s107 = sphi 0, %s107
    %s109 = sphi 0, %s107
    %s110 = sphi 0, %s109
    %s124 = sphi 0, %s110
    %s132 = sphi 0, %s134
    %s135 = sphi 0, %s132
    %s136 = sphi 0, %s135
    %s152 = sphi 0, %s136
    %s160 = sphi 0, %s162
    %s163 = sphi 0, %s160
    %s164 = sphi 0, %s163
    %s180 = sphi 0, %s164
  $region4: #{decoder_block_forward.6} parent=0 // loop_header_branch
    %15 = sbr.rel (%p13) target = $region8
  $region5: #{decoder_block_forward.6} parent=0 // loop_body
    %s17 = ssub.s32 %s12, 1
    %s18 = ssub.s32 %s12, 2
    %s25 = sadd.s32 1, %s20
    %p26 = scmp.ge.s32.totalorder %s25, 1
    %s27 = scalar_select %p26, 0, %s25
    %s28 = sadd.s32 1, %s19
    %s29 = scalar_select %p26, %s28, %s19
    %p30 = scmp.ge.s32.totalorder %s29, 2
    %s31 = scalar_select %p30, 0, %s29
    %s32 = ssub.s32 %s19, %s31
    %s33 = ssub.s32 %s20, %s27
    %s34 = sor.u32 %s32, %s33
    %p35 = scmp.eq.s32.totalorder %s34, 0
    %s37 = sadd.s32 %s36, 1
    %s38 = scalar_select %p35, %s36, %s37
    %p41 = pneg %p35
    %p42 = scmp.eq.s32.totalorder %s12, 1
    %p43 = por %p41, %p42
    %p44 = scmp.ne.s32.totalorder %s36, %s39
    %p45 = scmp.eq.s32.totalorder %s12, 0
    %p46 = por %p44, %p45
    %p47 = scmp.ne.s32.totalorder %s36, %s39
    %p48 = scmp.eq.s32.totalorder %s17, 1
    %p49 = por %p47, %p48
    %p50 = scmp.ne.s32.totalorder %s39, %s40
    %p51 = scmp.eq.s32.totalorder %s17, 0
    %p52 = por %p50, %p51
    %p53 = scmp.ne.s32.totalorder %s39, %s40
    %p54 = scmp.eq.s32.totalorder %s18, 1
    %p55 = por %p53, %p54
    %p57 = scmp.ne.s32.totalorder %s40, %s56
    %p58 = scmp.eq.s32.totalorder %s18, 0
    %p59 = por %p57, %p58
    %s60 = ssub.s32 %s19, %s31
    %p61 = scmp.eq.s32.totalorder %s60, 0
    %s63 = sadd.s32 %s62, 1
    %s64 = scalar_select %p61, %s62, %s63
    %p67 = pneg %p61
    %p68 = scmp.eq.s32.totalorder %s12, 1
    %p69 = por %p67, %p68
    %p70 = scmp.ne.s32.totalorder %s62, %s65
    %p71 = scmp.eq.s32.totalorder %s12, 0
    %p72 = por %p70, %p71
    %p73 = scmp.ne.s32.totalorder %s62, %s65
    %p74 = scmp.eq.s32.totalorder %s17, 1
    %p75 = por %p73, %p74
    %p76 = scmp.ne.s32.totalorder %s65, %s66
    %p77 = scmp.eq.s32.totalorder %s17, 0
    %p78 = por %p76, %p77
    %p79 = scmp.ne.s32.totalorder %s65, %s66
    %p80 = scmp.eq.s32.totalorder %s18, 1
    %p81 = por %p79, %p80
    %p83 = scmp.ne.s32.totalorder %s66, %s82
    %p84 = scmp.eq.s32.totalorder %s18, 0
    %p85 = por %p83, %p84
    %s87 = sadd.s32 %s86, 1
    %p90 = scmp.eq.s32.totalorder %s12, 1
    %p91 = scmp.ne.s32.totalorder %s86, %s88
    %p92 = scmp.eq.s32.totalorder %s12, 0
    %p93 = por %p91, %p92
    %p94 = scmp.ne.s32.totalorder %s86, %s88
    %p95 = scmp.eq.s32.totalorder %s17, 1
    %p96 = por %p94, %p95
    %p97 = scmp.ne.s32.totalorder %s88, %s89
    %p98 = scmp.eq.s32.totalorder %s17, 0
    %p99 = por %p97, %p98
    %p100 = scmp.ne.s32.totalorder %s88, %s89
    %p101 = scmp.eq.s32.totalorder %s18, 1
    %p102 = por %p100, %p101
    %p104 = scmp.ne.s32.totalorder %s89, %s103
    %p105 = scmp.eq.s32.totalorder %s18, 0
    %p106 = por %p104, %p105
    %s108 = sadd.s32 %s107, 1
    %p111 = scmp.eq.s32.totalorder %s12, 1
    %p112 = scmp.ne.s32.totalorder %s107, %s109
    %p113 = scmp.eq.s32.totalorder %s12, 0
    %p114 = por %p112, %p113
    %p115 = scmp.ne.s32.totalorder %s107, %s109
    %p116 = scmp.eq.s32.totalorder %s17, 1
    %p117 = por %p115, %p116
    %p118 = scmp.ne.s32.totalorder %s109, %s110
    %p119 = scmp.eq.s32.totalorder %s17, 0
    %p120 = por %p118, %p119
    %p121 = scmp.ne.s32.totalorder %s109, %s110
    %p122 = scmp.eq.s32.totalorder %s18, 1
    %p123 = por %p121, %p122
    %p125 = scmp.ne.s32.totalorder %s110, %s124
    %p126 = scmp.eq.s32.totalorder %s18, 0
    %p127 = por %p125, %p126
    %s128 = ssub.s32 %s19, %s31
    %s129 = ssub.s32 %s20, %s27
    %s130 = sor.u32 %s128, %s129
    %p131 = scmp.eq.s32.totalorder %s130, 0
    %s133 = sadd.s32 %s132, 1
    %s134 = scalar_select %p131, %s132, %s133
    %p137 = pneg %p131
    %p138 = scmp.eq.s32.totalorder %s12, 1
    %p139 = por %p137, %p138
    %p140 = scmp.ne.s32.totalorder %s132, %s135
    %p141 = scmp.eq.s32.totalorder %s12, 0
    %p142 = por %p140, %p141
    %p143 = scmp.ne.s32.totalorder %s132, %s135
    %p144 = scmp.eq.s32.totalorder %s17, 1
    %p145 = por %p143, %p144
    %p146 = scmp.ne.s32.totalorder %s135, %s136
    %p147 = scmp.eq.s32.totalorder %s17, 0
    %p148 = por %p146, %p147
    %p149 = scmp.ne.s32.totalorder %s135, %s136
    %p150 = scmp.eq.s32.totalorder %s18, 1
    %p151 = por %p149, %p150
    %p153 = scmp.ne.s32.totalorder %s136, %s152
    %p154 = scmp.eq.s32.totalorder %s18, 0
    %p155 = por %p153, %p154
    %s156 = sadd.s32 %s19, %s20
    %s157 = sadd.s32 %s31, %s27
    %s158 = ssub.s32 %s156, %s157
    %p159 = scmp.eq.s32.totalorder %s158, 0
    %s161 = sadd.s32 %s160, 1
    %s162 = scalar_select %p159, %s160, %s161
    %p165 = pneg %p159
    %p166 = scmp.eq.s32.totalorder %s12, 1
    %p167 = por %p165, %p166
    %p168 = scmp.ne.s32.totalorder %s160, %s163
    %p169 = scmp.eq.s32.totalorder %s12, 0
    %p170 = por %p168, %p169
    %p171 = scmp.ne.s32.totalorder %s160, %s163
    %p172 = scmp.eq.s32.totalorder %s17, 1
    %p173 = por %p171, %p172
    %p174 = scmp.ne.s32.totalorder %s163, %s164
    %p175 = scmp.eq.s32.totalorder %s17, 0
    %p176 = por %p174, %p175
    %p177 = scmp.ne.s32.totalorder %s163, %s164
    %p178 = scmp.eq.s32.totalorder %s18, 1
    %p179 = por %p177, %p178
    %p181 = scmp.ne.s32.totalorder %s164, %s180
    %p182 = scmp.eq.s32.totalorder %s18, 0
    %p183 = por %p181, %p182
    %p184 = scmp.le.s32.totalorder 1, %s12
    %p185 = scmp.lt.s32.totalorder %s12, 3
    %p186 = pnand %p184, %p185
    %p187 = pneg %p186
    // Predicated region
    $region9: #{decoder_block_forward.6} parent=5 // pred_check
      _
    $region10: #{decoder_block_forward.6} parent=5 // pred_check_branch
      %189 = sbr.rel (%p186) target = $region12
    $region11: #{decoder_block_forward.6} parent=5 // pred_region
      %s190 = ssub.s32 %s12, 1
      // Predicated region
      $region13: #{decoder_block_forward.6} parent=11 // pred_check
        %p191 = pneg %p99
      $region14: #{decoder_block_forward.6} parent=11 // pred_check_branch
        %193 = sbr.rel (%p191) target = $region16
      $region15: #{decoder_block_forward.6} parent=11 // pred_region
        _
      $region16: #{decoder_block_forward.6} parent=11 // pred_fallthru
        _
      // Predicated region
      $region17: #{decoder_block_forward.6} parent=11 // pred_check
        %p194 = pneg %p120
      $region18: #{decoder_block_forward.6} parent=11 // pred_check_branch
        %196 = sbr.rel (%p194) target = $region20
      $region19: #{decoder_block_forward.6} parent=11 // pred_region
        _
      $region20: #{decoder_block_forward.6} parent=11 // pred_fallthru
        _
    $region12: #{decoder_block_forward.6} parent=5 // pred_fallthru
      _
    %p197 = scmp.lt.s32.totalorder %s12, 2
    // Predicated region
    $region21: #{decoder_block_forward.6} parent=5 // pred_check
      %p198 = pneg %p197
    $region22: #{decoder_block_forward.6} parent=5 // pred_check_branch
      %200 = sbr.rel (%p198) target = $region24
    $region23: #{decoder_block_forward.6} parent=5 // pred_region
      // Predicated region
      $region25: #{decoder_block_forward.6} parent=23 // pred_check
        %p201 = pneg %p46
      $region26: #{decoder_block_forward.6} parent=23 // pred_check_branch
        %203 = sbr.rel (%p201) target = $region28
      $region27: #{decoder_block_forward.6} parent=23 // pred_region
        %s204 = smul.u32 4, %s19
        %s205 = smul.u32 8, %s20
        %p206 = scmp.lt.s32.totalorder %s204, 7
        %s207 = scalar_select %p206, %s204, 7
        %p208 = scmp.lt.s32.totalorder %s205, 7
        %s209 = scalar_select %p208, %s205, 7
        %s210 = smul.addr %s207, 8
        %s211 = sadd.s32 %s209, %s210
        %s212 = smul.addr %s211, 4
        %s213 = scalar_lea.vmem %s0, %s212
        %s214 = smul.u32 4, %s19
        %s215 = smul.u32 8, %s20
      $region28: #{decoder_block_forward.6} parent=23 // pred_fallthru
        _
      // Predicated region
      $region29: #{decoder_block_forward.6} parent=23 // pred_check
        %p216 = pneg %p72
      $region30: #{decoder_block_forward.6} parent=23 // pred_check_branch
        %218 = sbr.rel (%p216) target = $region32
      $region31: #{decoder_block_forward.6} parent=23 // pred_region
        %p219 = scmp.lt.s32.totalorder %s19, 1
        %s220 = scalar_select %p219, %s19, 1
        %s221 = scalar_lea.vmem %s1, %s220
      $region32: #{decoder_block_forward.6} parent=23 // pred_fallthru
        _
    $region24: #{decoder_block_forward.6} parent=5 // pred_fallthru
      _
    %p222 = scmp.le.s32.totalorder 1, %s12
    %p223 = scmp.lt.s32.totalorder %s12, 3
    %p224 = pnand %p222, %p223
    %p225 = pneg %p224
    // Predicated region
    $region33: #{decoder_block_forward.6} parent=5 // pred_check
      _
    $region34: #{decoder_block_forward.6} parent=5 // pred_check_branch
      %227 = sbr.rel (%p224) target = $region36
    $region35: #{decoder_block_forward.6} parent=5 // pred_region
      %s228 = ssub.s32 %s12, 1
      %s229 = smul.u32 4, %s21
      %s230 = smul.u32 8, %s22
      %p231 = scmp.lt.s32.totalorder %s229, 7
      %s232 = scalar_select %p231, %s229, 7
      %p233 = scmp.lt.s32.totalorder %s230, 7
      %s234 = scalar_select %p233, %s230, 7
      %s235 = smul.addr %s232, 8
      %s236 = sadd.s32 %s234, %s235
      %s237 = smul.addr %s236, 4
      %s238 = scalar_lea.vmem %s0, %s237
      %p239 = pneg %p52
      %p240 = pneg %p49
      %p241 = scmp.lt.s32.totalorder %s21, 1
      %s242 = scalar_select %p241, %s21, 1
      %s243 = scalar_lea.vmem %s1, %s242
      %p244 = pneg %p78
      %p245 = pneg %p75
      %p246 = pneg %p99
      %p247 = pneg %p96
      %p248 = pneg %p120
      %p249 = pneg %p117
      %p250 = pneg %p148
      %p251 = pneg %p145
      %s252 = smul.u32 4, %s21
      %s253 = smul.u32 8, %s22
      %p254 = scmp.lt.s32.totalorder %s252, 7
      %s255 = scalar_select %p254, %s252, 7
      %p256 = scmp.lt.s32.totalorder %s253, 7
      %s257 = scalar_select %p256, %s253, 7
      %s258 = smul.addr %s255, 8
      %s259 = sadd.s32 %s257, %s258
      %s260 = smul.addr %s259, 4
      %s261 = scalar_lea.vmem %s4, %s260
      %p262 = pneg %p176
      %p263 = pneg %p173
      %s264 = sadd.s32 %s21, %s22
      %p265 = scmp.lt.s32.totalorder %s264, 1
      %s266 = scalar_select %p265, %s264, 1
      %s267 = scalar_lea.vmem %s5, %s266
      %s268 = smul.u32 4, %s21
      %s269 = smul.u32 8, %s22
      %p270 = scmp.lt.s32.totalorder %s268, 7
      %s271 = scalar_select %p270, %s268, 7
      %p272 = scmp.lt.s32.totalorder %s269, 7
      %s273 = scalar_select %p272, %s269, 7
      %s274 = smul.addr %s271, 8
      %s275 = sadd.s32 %s273, %s274
      %s276 = smul.addr %s275, 4
      %s277 = scalar_lea.vmem %s0, %s276
      %s278 = smul.u32 4, %s21
      %s279 = smul.u32 8, %s22
      %p280 = scmp.lt.s32.totalorder %s21, 1
      %s281 = scalar_select %p280, %s21, 1
      %s282 = scalar_lea.vmem %s1, %s281
      %s283 = smul.u32 4, %s21
      %s284 = smul.u32 8, %s22
      %p285 = scmp.lt.s32.totalorder %s283, 7
      %s286 = scalar_select %p285, %s283, 7
      %p287 = scmp.lt.s32.totalorder %s284, 7
      %s288 = scalar_select %p287, %s284, 7
      %s289 = smul.addr %s286, 8
      %s290 = sadd.s32 %s288, %s289
      %s291 = smul.addr %s290, 4
      %s292 = scalar_lea.vmem %s4, %s291
      %s293 = smul.u32 4, %s21
      %s294 = smul.u32 8, %s22
      %s295 = sadd.s32 %s21, %s22
      %p296 = scmp.lt.s32.totalorder %s295, 1
      %s297 = scalar_select %p296, %s295, 1
      %s298 = scalar_lea.vmem %s5, %s297
      %s299 = sadd.s32 %s21, %s22
      %v301 = vld [vmem:[%s277] sm:$0xf]
      %v302 = vld [vmem:[%s277 + $0x4] sm:$0xf]
      %v303 = vld [vmem:[%s277 + $0x8] sm:$0xf]
      %v304 = vld [vmem:[%s277 + $0xc] sm:$0xf]
      %v305 = vld [vmem:[%s277 + $0x10] sm:$0xf]
      %v306 = vld [vmem:[%s277 + $0x14] sm:$0xf]
      %v307 = vld [vmem:[%s277 + $0x18] sm:$0xf]
      %v308 = vld [vmem:[%s277 + $0x1c] sm:$0xf]
      %v309 = vld [vmem:[%s277 + $0x20] sm:$0xf]
      %v310 = vld [vmem:[%s277 + $0x24] sm:$0xf]
      %v311 = vld [vmem:[%s277 + $0x28] sm:$0xf]
      %v312 = vld [vmem:[%s277 + $0x2c] sm:$0xf]
      %v313 = vld [vmem:[%s277 + $0x30] sm:$0xf]
      %v314 = vld [vmem:[%s277 + $0x34] sm:$0xf]
      %v315 = vld [vmem:[%s277 + $0x38] sm:$0xf]
      %v316 = vld [vmem:[%s277 + $0x3c] sm:$0xf]
      %v317 = vld [vmem:[%s277 + $0x40] sm:$0xf]
      %v318 = vld [vmem:[%s277 + $0x44] sm:$0xf]
      %v319 = vld [vmem:[%s277 + $0x48] sm:$0xf]
      %v320 = vld [vmem:[%s277 + $0x4c] sm:$0xf]
      %v321 = vld [vmem:[%s277 + $0x50] sm:$0xf]
      %v322 = vld [vmem:[%s277 + $0x54] sm:$0xf]
      %v323 = vld [vmem:[%s277 + $0x58] sm:$0xf]
      %v324 = vld [vmem:[%s277 + $0x5c] sm:$0xf]
      %v325 = vld [vmem:[%s277 + $0x60] sm:$0xf]
      %v326 = vld [vmem:[%s277 + $0x64] sm:$0xf]
      %v327 = vld [vmem:[%s277 + $0x68] sm:$0xf]
      %v328 = vld [vmem:[%s277 + $0x6c] sm:$0xf]
      %v329 = vld [vmem:[%s277 + $0x70] sm:$0xf]
      %v330 = vld [vmem:[%s277 + $0x74] sm:$0xf]
      %v331 = vld [vmem:[%s277 + $0x78] sm:$0xf]
      %v332 = vld [vmem:[%s277 + $0x7c] sm:$0xf]
      %v333 = vunpack.c.l.bf16 %v301
      %v334 = vunpack.c.l.bf16 %v302
      %v335 = vunpack.c.l.bf16 %v303
      %v336 = vunpack.c.l.bf16 %v304
      %v337 = vunpack.c.l.bf16 %v305
      %v338 = vunpack.c.l.bf16 %v306
      %v339 = vunpack.c.l.bf16 %v307
      %v340 = vunpack.c.l.bf16 %v308
      %v341 = vunpack.c.l.bf16 %v309
      %v342 = vunpack.c.l.bf16 %v310
      %v343 = vunpack.c.l.bf16 %v311
      %v344 = vunpack.c.l.bf16 %v312
      %v345 = vunpack.c.l.bf16 %v313
      %v346 = vunpack.c.l.bf16 %v314
      %v347 = vunpack.c.l.bf16 %v315
      %v348 = vunpack.c.l.bf16 %v316
      %v349 = vunpack.c.l.bf16 %v317
      %v350 = vunpack.c.l.bf16 %v318
      %v351 = vunpack.c.l.bf16 %v319
      %v352 = vunpack.c.l.bf16 %v320
      %v353 = vunpack.c.l.bf16 %v321
      %v354 = vunpack.c.l.bf16 %v322
      %v355 = vunpack.c.l.bf16 %v323
      %v356 = vunpack.c.l.bf16 %v324
      %v357 = vunpack.c.l.bf16 %v325
      %v358 = vunpack.c.l.bf16 %v326
      %v359 = vunpack.c.l.bf16 %v327
      %v360 = vunpack.c.l.bf16 %v328
      %v361 = vunpack.c.l.bf16 %v329
      %v362 = vunpack.c.l.bf16 %v330
      %v363 = vunpack.c.l.bf16 %v331
      %v364 = vunpack.c.l.bf16 %v332
      %v365 = vpack.c.bf16 %v334, %v333
      %v366 = vpack.c.bf16 %v336, %v335
      %v367 = vpack.c.bf16 %v338, %v337
      %v368 = vpack.c.bf16 %v340, %v339
      %v369 = vpack.c.bf16 %v342, %v341
      %v370 = vpack.c.bf16 %v344, %v343
      %v371 = vpack.c.bf16 %v346, %v345
      %v372 = vpack.c.bf16 %v348, %v347
      %v373 = vpack.c.bf16 %v350, %v349
      %v374 = vpack.c.bf16 %v352, %v351
      %v375 = vpack.c.bf16 %v354, %v353
      %v376 = vpack.c.bf16 %v356, %v355
      %v377 = vpack.c.bf16 %v358, %v357
      %v378 = vpack.c.bf16 %v360, %v359
      %v379 = vpack.c.bf16 %v362, %v361
      %v380 = vpack.c.bf16 %v364, %v363
      %v381 = vld [vmem:[%s2] sm:$0xf]
      %v382 = vld [vmem:[%s2 + $0x4] sm:$0xf]
      %v383 = vld [vmem:[%s2 + $0x8] sm:$0xf]
      %v384 = vld [vmem:[%s2 + $0xc] sm:$0xf]
      %v385 = vld [vmem:[%s2 + $0x10] sm:$0xf]
      %v386 = vld [vmem:[%s2 + $0x14] sm:$0xf]
      %v387 = vld [vmem:[%s2 + $0x18] sm:$0xf]
      %v388 = vld [vmem:[%s2 + $0x1c] sm:$0xf]
      %v389 = vld [vmem:[%s2 + $0x20] sm:$0xf]
      %v390 = vld [vmem:[%s2 + $0x24] sm:$0xf]
      %v391 = vld [vmem:[%s2 + $0x28] sm:$0xf]
      %v392 = vld [vmem:[%s2 + $0x2c] sm:$0xf]
      %v393 = vld [vmem:[%s2 + $0x30] sm:$0xf]
      %v394 = vld [vmem:[%s2 + $0x34] sm:$0xf]
      %v395 = vld [vmem:[%s2 + $0x38] sm:$0xf]
      %v396 = vld [vmem:[%s2 + $0x3c] sm:$0xf]
      %v397 = vld [vmem:[%s3] sm:$0x1]
      %v399 = vlaneseq
      %v400 = vshrl.u32 %v399, 7
      %v401 = vsub.s32 0, %v400
      %v402 = vrot.slane %v397, %v401
      %v420 = vunpack.c.l.b16 %v381
      %v421 = vunpack.c.l.b16 %v382
      %v422 = vunpack.c.l.b16 %v383
      %v423 = vunpack.c.l.b16 %v384
      %v424 = vunpack.c.l.b16 %v385
      %v425 = vunpack.c.l.b16 %v386
      %v426 = vunpack.c.l.b16 %v387
      %v427 = vunpack.c.l.b16 %v388
      %v428 = vunpack.c.l.b16 %v389
      %v429 = vunpack.c.l.b16 %v390
      %v430 = vunpack.c.l.b16 %v391
      %v431 = vunpack.c.l.b16 %v392
      %v432 = vunpack.c.l.b16 %v393
      %v433 = vunpack.c.l.b16 %v394
      %v434 = vunpack.c.l.b16 %v395
      %v435 = vunpack.c.l.b16 %v396
      %v436 = vpack.c.b16 %v421, %v420
      %v437 = vpack.c.b16 %v423, %v422
      %v438 = vpack.c.b16 %v425, %v424
      %v439 = vpack.c.b16 %v427, %v426
      %v440 = vpack.c.b16 %v429, %v428
      %v441 = vpack.c.b16 %v431, %v430
      %v442 = vpack.c.b16 %v433, %v432
      %v443 = vpack.c.b16 %v435, %v434
      %452 = vmatprep.subr.bf16.mxu0 0
      %453 = vmatpush1.bf16.msra.mxu0 %v436
      %454 = vmatprep.subr.bf16.mxu0 0
      %455 = vmatpush1.bf16.msra.mxu0 %v437
      %456 = vmatprep.subr.bf16.mxu0 0
      %457 = vmatpush1.bf16.msra.mxu0 %v438
      %458 = vmatprep.subr.bf16.mxu0 0
      %459 = vmatpush1.bf16.msra.mxu0 %v439
      %460 = vmatprep.subr.bf16.mxu0 0
      %461 = vmatpush1.bf16.msra.mxu0 %v440
      %462 = vmatprep.subr.bf16.mxu0 0
      %463 = vmatpush1.bf16.msra.mxu0 %v441
      %464 = vmatprep.subr.bf16.mxu0 0
      %465 = vmatpush1.bf16.msra.mxu0 %v442
      %466 = vmatprep.subr.bf16.mxu0 0
      %467 = vmatpush1.bf16.msra.mxu0 %v443
      %468 = vmatprep.subr.bf16.mxu0 0
      %469 = vmatpush1.bf16.msra.mxu0 0
      %470 = vmatprep.subr.bf16.mxu0 0
      %471 = vmatpush1.bf16.msra.mxu0 0
      %472 = vmatprep.subr.bf16.mxu0 0
      %473 = vmatpush1.bf16.msra.mxu0 0
      %474 = vmatprep.subr.bf16.mxu0 0
      %475 = vmatpush1.bf16.msra.mxu0 0
      %476 = vmatprep.subr.bf16.mxu0 0
      %477 = vmatpush1.bf16.msra.mxu0 0
      %478 = vmatprep.subr.bf16.mxu0 0
      %479 = vmatpush1.bf16.msra.mxu0 0
      %480 = vmatprep.subr.bf16.mxu0 0
      %481 = vmatpush1.bf16.msra.mxu0 0
      %482 = vmatprep.subr.bf16.mxu0 0
      %483 = vmatpush1.bf16.msra.mxu0 0
      %484 = vmatprep.mubr.bf16.mxu0 0
      %485 = vmatmul.mubr.bf16.gmra.mrb[0].mxu0 %v365
      %v486 = vpop.f32.mrb[0].mxu0
      %v487 = vadd.f32 %v402, %v486
      %v488 = vpop.f32.mrb[0].mxu0
      %v489 = vpop.f32.mrb[0].mxu0
      %v490 = vadd.f32 %v402, %v489
      %v491 = vpop.f32.mrb[0].mxu0
      %492 = vmatprep.mubr.bf16.mxu0 0
      %493 = vmatmul.mubr.bf16.gmra.mrb[0].mxu0 %v366
      %v494 = vpop.f32.mrb[0].mxu0
      %v495 = vadd.f32 %v402, %v494
      %v496 = vpop.f32.mrb[0].mxu0
      %v497 = vpop.f32.mrb[0].mxu0
      %v498 = vadd.f32 %v402, %v497
      %v499 = vpop.f32.mrb[0].mxu0
      %500 = vmatprep.mubr.bf16.mxu0 0
      %501 = vmatmul.mubr.bf16.gmra.mrb[0].mxu0 %v367
      %v502 = vpop.f32.mrb[0].mxu0
      %v503 = vadd.f32 %v402, %v502
      %v504 = vpop.f32.mrb[0].mxu0
      %v505 = vpop.f32.mrb[0].mxu0
      %v506 = vadd.f32 %v402, %v505
      %v507 = vpop.f32.mrb[0].mxu0
      %508 = vmatprep.mubr.bf16.mxu0 0
      %509 = vmatmul.mubr.bf16.gmra.mrb[0].mxu0 %v368
      %v510 = vpop.f32.mrb[0].mxu0
      %v511 = vadd.f32 %v402, %v510
      %v512 = vpop.f32.mrb[0].mxu0
      %v513 = vpop.f32.mrb[0].mxu0
      %v514 = vadd.f32 %v402, %v513
      %v515 = vpop.f32.mrb[0].mxu0
      %516 = vmatprep.mubr.bf16.mxu0 0
      %517 = vmatmul.mubr.bf16.gmra.mrb[0].mxu0 %v369
      %v518 = vpop.f32.mrb[0].mxu0
      %v519 = vadd.f32 %v402, %v518
      %v520 = vpop.f32.mrb[0].mxu0
      %v521 = vpop.f32.mrb[0].mxu0
      %v522 = vadd.f32 %v402, %v521
      %v523 = vpop.f32.mrb[0].mxu0
      %524 = vmatprep.mubr.bf16.mxu0 0
      %525 = vmatmul.mubr.bf16.gmra.mrb[0].mxu0 %v370
      %v526 = vpop.f32.mrb[0].mxu0
      %v527 = vadd.f32 %v402, %v526
      %v528 = vpop.f32.mrb[0].mxu0
      %v529 = vpop.f32.mrb[0].mxu0
      %v530 = vadd.f32 %v402, %v529
      %v531 = vpop.f32.mrb[0].mxu0
      %532 = vmatprep.mubr.bf16.mxu0 0
      %533 = vmatmul.mubr.bf16.gmra.mrb[0].mxu0 %v371
      %v534 = vpop.f32.mrb[0].mxu0
      %v535 = vadd.f32 %v402, %v534
      %v536 = vpop.f32.mrb[0].mxu0
      %v537 = vpop.f32.mrb[0].mxu0
      %v538 = vadd.f32 %v402, %v537
      %v539 = vpop.f32.mrb[0].mxu0
      %540 = vmatprep.mubr.bf16.mxu0 0
      %541 = vmatmul.mubr.bf16.gmra.mrb[0].mxu0 %v372
      %v542 = vpop.f32.mrb[0].mxu0
      %v543 = vadd.f32 %v402, %v542
      %v544 = vpop.f32.mrb[0].mxu0
      %v545 = vpop.f32.mrb[0].mxu0
      %v546 = vadd.f32 %v402, %v545
      %v547 = vpop.f32.mrb[0].mxu0
      %548 = vmatprep.mubr.bf16.mxu0 0
      %549 = vmatmul.mubr.bf16.gmra.mrb[0].mxu0 %v373
      %v550 = vpop.f32.mrb[0].mxu0
      %v551 = vadd.f32 %v402, %v550
      %v552 = vpop.f32.mrb[0].mxu0
      %v553 = vpop.f32.mrb[0].mxu0
      %v554 = vadd.f32 %v402, %v553
      %v555 = vpop.f32.mrb[0].mxu0
      %556 = vmatprep.mubr.bf16.mxu0 0
      %557 = vmatmul.mubr.bf16.gmra.mrb[0].mxu0 %v374
      %v558 = vpop.f32.mrb[0].mxu0
      %v559 = vadd.f32 %v402, %v558
      %v560 = vpop.f32.mrb[0].mxu0
      %v561 = vpop.f32.mrb[0].mxu0
      %v562 = vadd.f32 %v402, %v561
      %v563 = vpop.f32.mrb[0].mxu0
      %564 = vmatprep.mubr.bf16.mxu0 0
      %565 = vmatmul.mubr.bf16.gmra.mrb[0].mxu0 %v375
      %v566 = vpop.f32.mrb[0].mxu0
      %v567 = vadd.f32 %v402, %v566
      %v568 = vpop.f32.mrb[0].mxu0
      %v569 = vpop.f32.mrb[0].mxu0
      %v570 = vadd.f32 %v402, %v569
      %v571 = vpop.f32.mrb[0].mxu0
      %572 = vmatprep.mubr.bf16.mxu0 0
      %573 = vmatmul.mubr.bf16.gmra.mrb[0].mxu0 %v376
      %v574 = vpop.f32.mrb[0].mxu0
      %v575 = vadd.f32 %v402, %v574
      %v576 = vpop.f32.mrb[0].mxu0
      %v577 = vpop.f32.mrb[0].mxu0
      %v578 = vadd.f32 %v402, %v577
      %v579 = vpop.f32.mrb[0].mxu0
      %580 = vmatprep.mubr.bf16.mxu0 0
      %581 = vmatmul.mubr.bf16.gmra.mrb[0].mxu0 %v377
      %v582 = vpop.f32.mrb[0].mxu0
      %v583 = vadd.f32 %v402, %v582
      %v584 = vpop.f32.mrb[0].mxu0
      %v585 = vpop.f32.mrb[0].mxu0
      %v586 = vadd.f32 %v402, %v585
      %v587 = vpop.f32.mrb[0].mxu0
      %588 = vmatprep.mubr.bf16.mxu0 0
      %589 = vmatmul.mubr.bf16.gmra.mrb[0].mxu0 %v378
      %v590 = vpop.f32.mrb[0].mxu0
      %v591 = vadd.f32 %v402, %v590
      %v592 = vpop.f32.mrb[0].mxu0
      %v593 = vpop.f32.mrb[0].mxu0
      %v594 = vadd.f32 %v402, %v593
      %v595 = vpop.f32.mrb[0].mxu0
      %596 = vmatprep.mubr.bf16.mxu0 0
      %597 = vmatmul.mubr.bf16.gmra.mrb[0].mxu0 %v379
      %v598 = vpop.f32.mrb[0].mxu0
      %v599 = vadd.f32 %v402, %v598
      %v600 = vpop.f32.mrb[0].mxu0
      %v601 = vpop.f32.mrb[0].mxu0
      %v602 = vadd.f32 %v402, %v601
      %v603 = vpop.f32.mrb[0].mxu0
      %604 = vmatprep.mubr.bf16.mxu0 0
      %605 = vmatmul.mubr.bf16.gmra.mrb[0].mxu0 %v380
      %v606 = vpop.f32.mrb[0].mxu0
      %v607 = vadd.f32 %v402, %v606
      %v608 = vpop.f32.mrb[0].mxu0
      %v609 = vpop.f32.mrb[0].mxu0
      %v610 = vadd.f32 %v402, %v609
      %v611 = vpop.f32.mrb[0].mxu0
      %612 = vdwg.mxu0
      %v613 = vsub.f32 0.0, %v487
      %v614 = vsub.f32 0.0, %v490
      %v615 = vsub.f32 0.0, %v495
      %v616 = vsub.f32 0.0, %v498
      %v617 = vsub.f32 0.0, %v503
      %v618 = vsub.f32 0.0, %v506
      %v619 = vsub.f32 0.0, %v511
      %v620 = vsub.f32 0.0, %v514
      %v621 = vsub.f32 0.0, %v519
      %v622 = vsub.f32 0.0, %v522
      %v623 = vsub.f32 0.0, %v527
      %v624 = vsub.f32 0.0, %v530
      %v625 = vsub.f32 0.0, %v535
      %v626 = vsub.f32 0.0, %v538
      %v627 = vsub.f32 0.0, %v543
      %v628 = vsub.f32 0.0, %v546
      %v629 = vsub.f32 0.0, %v551
      %v630 = vsub.f32 0.0, %v554
      %v631 = vsub.f32 0.0, %v559
      %v632 = vsub.f32 0.0, %v562
      %v633 = vsub.f32 0.0, %v567
      %v634 = vsub.f32 0.0, %v570
      %v635 = vsub.f32 0.0, %v575
      %v636 = vsub.f32 0.0, %v578
      %v637 = vsub.f32 0.0, %v583
      %v638 = vsub.f32 0.0, %v586
      %v639 = vsub.f32 0.0, %v591
      %v640 = vsub.f32 0.0, %v594
      %v641 = vsub.f32 0.0, %v599
      %v642 = vsub.f32 0.0, %v602
      %v643 = vsub.f32 0.0, %v607
      %v644 = vsub.f32 0.0, %v610
      %v645 = vmul.f32 %v613, 1.442695
      %v646 = vpow.pop %v645
      %v647 = vmul.f32 %v614, 1.442695
      %v648 = vpow.pop %v647
      %v649 = vmul.f32 %v615, 1.442695
      %v650 = vpow.pop %v649
      %v651 = vmul.f32 %v616, 1.442695
      %v652 = vpow.pop %v651
      %v653 = vmul.f32 %v617, 1.442695
      %v654 = vpow.pop %v653
      %v655 = vmul.f32 %v618, 1.442695
      %v656 = vpow.pop %v655
      %v657 = vmul.f32 %v619, 1.442695
      %v658 = vpow.pop %v657
      %v659 = vmul.f32 %v620, 1.442695
      %v660 = vpow.pop %v659
      %v661 = vmul.f32 %v621, 1.442695
      %v662 = vpow.pop %v661
      %v663 = vmul.f32 %v622, 1.442695
      %v664 = vpow.pop %v663
      %v665 = vmul.f32 %v623, 1.442695
      %v666 = vpow.pop %v665
      %v667 = vmul.f32 %v624, 1.442695
      %v668 = vpow.pop %v667
      %v669 = vmul.f32 %v625, 1.442695
      %v670 = vpow.pop %v669
      %v671 = vmul.f32 %v626, 1.442695
      %v672 = vpow.pop %v671
      %v673 = vmul.f32 %v627, 1.442695
      %v674 = vpow.pop %v673
      %v675 = vmul.f32 %v628, 1.442695
      %v676 = vpow.pop %v675
      %v677 = vmul.f32 %v629, 1.442695
      %v678 = vpow.pop %v677
      %v679 = vmul.f32 %v630, 1.442695
      %v680 = vpow.pop %v679
      %v681 = vmul.f32 %v631, 1.442695
      %v682 = vpow.pop %v681
      %v683 = vmul.f32 %v632, 1.442695
      %v684 = vpow.pop %v683
      %v685 = vmul.f32 %v633, 1.442695
      %v686 = vpow.pop %v685
      %v687 = vmul.f32 %v634, 1.442695
      %v688 = vpow.pop %v687
      %v689 = vmul.f32 %v635, 1.442695
      %v690 = vpow.pop %v689
      %v691 = vmul.f32 %v636, 1.442695
      %v692 = vpow.pop %v691
      %v693 = vmul.f32 %v637, 1.442695
      %v694 = vpow.pop %v693
      %v695 = vmul.f32 %v638, 1.442695
      %v696 = vpow.pop %v695
      %v697 = vmul.f32 %v639, 1.442695
      %v698 = vpow.pop %v697
      %v699 = vmul.f32 %v640, 1.442695
      %v700 = vpow.pop %v699
      %v701 = vmul.f32 %v641, 1.442695
      %v702 = vpow.pop %v701
      %v703 = vmul.f32 %v642, 1.442695
      %v704 = vpow.pop %v703
      %v705 = vmul.f32 %v643, 1.442695
      %v706 = vpow.pop %v705
      %v707 = vmul.f32 %v644, 1.442695
      %v708 = vpow.pop %v707
      %v709 = vadd.f32 %v646, 1.0
      %v710 = vadd.f32 %v648, 1.0
      %v711 = vadd.f32 %v650, 1.0
      %v712 = vadd.f32 %v652, 1.0
      %v713 = vadd.f32 %v654, 1.0
      %v714 = vadd.f32 %v656, 1.0
      %v715 = vadd.f32 %v658, 1.0
      %v716 = vadd.f32 %v660, 1.0
      %v717 = vadd.f32 %v662, 1.0
      %v718 = vadd.f32 %v664, 1.0
      %v719 = vadd.f32 %v666, 1.0
      %v720 = vadd.f32 %v668, 1.0
      %v721 = vadd.f32 %v670, 1.0
      %v722 = vadd.f32 %v672, 1.0
      %v723 = vadd.f32 %v674, 1.0
      %v724 = vadd.f32 %v676, 1.0
      %v725 = vadd.f32 %v678, 1.0
      %v726 = vadd.f32 %v680, 1.0
      %v727 = vadd.f32 %v682, 1.0
      %v728 = vadd.f32 %v684, 1.0
      %v729 = vadd.f32 %v686, 1.0
      %v730 = vadd.f32 %v688, 1.0
      %v731 = vadd.f32 %v690, 1.0
      %v732 = vadd.f32 %v692, 1.0
      %v733 = vadd.f32 %v694, 1.0
      %v734 = vadd.f32 %v696, 1.0
      %v735 = vadd.f32 %v698, 1.0
      %v736 = vadd.f32 %v700, 1.0
      %v737 = vadd.f32 %v702, 1.0
      %v738 = vadd.f32 %v704, 1.0
      %v739 = vadd.f32 %v706, 1.0
      %v740 = vadd.f32 %v708, 1.0
      %v741 = vrcp.pop %v709
      %v742 = vrcp.pop %v710
      %v743 = vrcp.pop %v711
      %v744 = vrcp.pop %v712
      %v745 = vrcp.pop %v713
      %v746 = vrcp.pop %v714
      %v747 = vrcp.pop %v715
      %v748 = vrcp.pop %v716
      %v749 = vrcp.pop %v717
      %v750 = vrcp.pop %v718
      %v751 = vrcp.pop %v719
      %v752 = vrcp.pop %v720
      %v753 = vrcp.pop %v721
      %v754 = vrcp.pop %v722
      %v755 = vrcp.pop %v723
      %v756 = vrcp.pop %v724
      %v757 = vrcp.pop %v725
      %v758 = vrcp.pop %v726
      %v759 = vrcp.pop %v727
      %v760 = vrcp.pop %v728
      %v761 = vrcp.pop %v729
      %v762 = vrcp.pop %v730
      %v763 = vrcp.pop %v731
      %v764 = vrcp.pop %v732
      %v765 = vrcp.pop %v733
      %v766 = vrcp.pop %v734
      %v767 = vrcp.pop %v735
      %v768 = vrcp.pop %v736
      %v769 = vrcp.pop %v737
      %v770 = vrcp.pop %v738
      %v771 = vrcp.pop %v739
      %v772 = vrcp.pop %v740
      %v773 = vld [vmem:[%s282] sm:$0x1]
      %v775 = vlaneseq
      %v776 = vshrl.u32 %v775, 7
      %v777 = vsub.s32 0, %v776
      %v778 = vrot.slane %v773, %v777
      %v780 = vadd.f32 %v778, %v741
      %v781 = vadd.f32 %v778, %v742
      %v782 = vadd.f32 %v778, %v743
      %v783 = vadd.f32 %v778, %v744
      %v784 = vadd.f32 %v778, %v745
      %v785 = vadd.f32 %v778, %v746
      %v786 = vadd.f32 %v778, %v747
      %v787 = vadd.f32 %v778, %v748
      %v788 = vadd.f32 %v778, %v749
      %v789 = vadd.f32 %v778, %v750
      %v790 = vadd.f32 %v778, %v751
      %v791 = vadd.f32 %v778, %v752
      %v792 = vadd.f32 %v778, %v753
      %v793 = vadd.f32 %v778, %v754
      %v794 = vadd.f32 %v778, %v755
      %v795 = vadd.f32 %v778, %v756
      %v796 = vadd.f32 %v778, %v757
      %v797 = vadd.f32 %v778, %v758
      %v798 = vadd.f32 %v778, %v759
      %v799 = vadd.f32 %v778, %v760
      %v800 = vadd.f32 %v778, %v761
      %v801 = vadd.f32 %v778, %v762
      %v802 = vadd.f32 %v778, %v763
      %v803 = vadd.f32 %v778, %v764
      %v804 = vadd.f32 %v778, %v765
      %v805 = vadd.f32 %v778, %v766
      %v806 = vadd.f32 %v778, %v767
      %v807 = vadd.f32 %v778, %v768
      %v808 = vadd.f32 %v778, %v769
      %v809 = vadd.f32 %v778, %v770
      %v810 = vadd.f32 %v778, %v771
      %v811 = vadd.f32 %v778, %v772
      %v812 = vmul.f32 %v333, %v780
      %v813 = vmul.f32 %v334, %v781
      %v814 = vmul.f32 %v335, %v782
      %v815 = vmul.f32 %v336, %v783
      %v816 = vmul.f32 %v337, %v784
      %v817 = vmul.f32 %v338, %v785
      %v818 = vmul.f32 %v339, %v786
      %v819 = vmul.f32 %v340, %v787
      %v820 = vmul.f32 %v341, %v788
      %v821 = vmul.f32 %v342, %v789
      %v822 = vmul.f32 %v343, %v790
      %v823 = vmul.f32 %v344, %v791
      %v824 = vmul.f32 %v345, %v792
      %v825 = vmul.f32 %v346, %v793
      %v826 = vmul.f32 %v347, %v794
      %v827 = vmul.f32 %v348, %v795
      %v828 = vmul.f32 %v349, %v796
      %v829 = vmul.f32 %v350, %v797
      %v830 = vmul.f32 %v351, %v798
      %v831 = vmul.f32 %v352, %v799
      %v832 = vmul.f32 %v353, %v800
      %v833 = vmul.f32 %v354, %v801
      %v834 = vmul.f32 %v355, %v802
      %v835 = vmul.f32 %v356, %v803
      %v836 = vmul.f32 %v357, %v804
      %v837 = vmul.f32 %v358, %v805
      %v838 = vmul.f32 %v359, %v806
      %v839 = vmul.f32 %v360, %v807
      %v840 = vmul.f32 %v361, %v808
      %v841 = vmul.f32 %v362, %v809
      %v842 = vmul.f32 %v363, %v810
      %v843 = vmul.f32 %v364, %v811
      %v844 = vpack.c.bf16 %v813, %v812
      %v845 = vpack.c.bf16 %v815, %v814
      %v846 = vpack.c.bf16 %v817, %v816
      %v847 = vpack.c.bf16 %v819, %v818
      %v848 = vpack.c.bf16 %v821, %v820
      %v849 = vpack.c.bf16 %v823, %v822
      %v850 = vpack.c.bf16 %v825, %v824
      %v851 = vpack.c.bf16 %v827, %v826
      %v852 = vpack.c.bf16 %v829, %v828
      %v853 = vpack.c.bf16 %v831, %v830
      %v854 = vpack.c.bf16 %v833, %v832
      %v855 = vpack.c.bf16 %v835, %v834
      %v856 = vpack.c.bf16 %v837, %v836
      %v857 = vpack.c.bf16 %v839, %v838
      %v858 = vpack.c.bf16 %v841, %v840
      %v859 = vpack.c.bf16 %v843, %v842
      %v876 = vunpack.c.l.b16 %v844
      %v877 = vunpack.c.h.b16 %v844
      %v878 = vunpack.c.l.b16 %v845
      %v879 = vunpack.c.h.b16 %v845
      %v880 = vunpack.c.l.b16 %v846
      %v881 = vunpack.c.h.b16 %v846
      %v882 = vunpack.c.l.b16 %v847
      %v883 = vunpack.c.h.b16 %v847
      %v884 = vunpack.c.l.b16 %v848
      %v885 = vunpack.c.h.b16 %v848
      %v886 = vunpack.c.l.b16 %v849
      %v887 = vunpack.c.h.b16 %v849
      %v888 = vunpack.c.l.b16 %v850
      %v889 = vunpack.c.h.b16 %v850
      %v890 = vunpack.c.l.b16 %v851
      %v891 = vunpack.c.h.b16 %v851
      %v892 = vunpack.c.l.b16 %v852
      %v893 = vunpack.c.h.b16 %v852
      %v894 = vunpack.c.l.b16 %v853
      %v895 = vunpack.c.h.b16 %v853
      %v896 = vunpack.c.l.b16 %v854
      %v897 = vunpack.c.h.b16 %v854
      %v898 = vunpack.c.l.b16 %v855
      %v899 = vunpack.c.h.b16 %v855
      %v900 = vunpack.c.l.b16 %v856
      %v901 = vunpack.c.h.b16 %v856
      %v902 = vunpack.c.l.b16 %v857
      %v903 = vunpack.c.h.b16 %v857
      %v904 = vunpack.c.l.b16 %v858
      %v905 = vunpack.c.h.b16 %v858
      %v906 = vunpack.c.l.b16 %v859
      %v907 = vunpack.c.h.b16 %v859
      %v908 = vpack.c.b16 %v876, %v876
      %v909 = vpack.c.b16 %v877, %v877
      %v910 = vpack.c.b16 %v878, %v878
      %v911 = vpack.c.b16 %v879, %v879
      %v912 = vpack.c.b16 %v880, %v880
      %v913 = vpack.c.b16 %v881, %v881
      %v914 = vpack.c.b16 %v882, %v882
      %v915 = vpack.c.b16 %v883, %v883
      %v916 = vpack.c.b16 %v884, %v884
      %v917 = vpack.c.b16 %v885, %v885
      %v918 = vpack.c.b16 %v886, %v886
      %v919 = vpack.c.b16 %v887, %v887
      %v920 = vpack.c.b16 %v888, %v888
      %v921 = vpack.c.b16 %v889, %v889
      %v922 = vpack.c.b16 %v890, %v890
      %v923 = vpack.c.b16 %v891, %v891
      %v924 = vpack.c.b16 %v892, %v892
      %v925 = vpack.c.b16 %v893, %v893
      %v926 = vpack.c.b16 %v894, %v894
      %v927 = vpack.c.b16 %v895, %v895
      %v928 = vpack.c.b16 %v896, %v896
      %v929 = vpack.c.b16 %v897, %v897
      %v930 = vpack.c.b16 %v898, %v898
      %v931 = vpack.c.b16 %v899, %v899
      %v932 = vpack.c.b16 %v900, %v900
      %v933 = vpack.c.b16 %v901, %v901
      %v934 = vpack.c.b16 %v902, %v902
      %v935 = vpack.c.b16 %v903, %v903
      %v936 = vpack.c.b16 %v904, %v904
      %v937 = vpack.c.b16 %v905, %v905
      %v938 = vpack.c.b16 %v906, %v906
      %v939 = vpack.c.b16 %v907, %v907
      %972 = vst [vmem:[%s292] sm:$0xf] %v908
      %973 = vst [vmem:[%s292 + $0x4] sm:$0xf] %v909
      %974 = vst [vmem:[%s292 + $0x8] sm:$0xf] %v910
      %975 = vst [vmem:[%s292 + $0xc] sm:$0xf] %v911
      %976 = vst [vmem:[%s292 + $0x10] sm:$0xf] %v912
      %977 = vst [vmem:[%s292 + $0x14] sm:$0xf] %v913
      %978 = vst [vmem:[%s292 + $0x18] sm:$0xf] %v914
      %979 = vst [vmem:[%s292 + $0x1c] sm:$0xf] %v915
      %980 = vst [vmem:[%s292 + $0x20] sm:$0xf] %v916
      %981 = vst [vmem:[%s292 + $0x24] sm:$0xf] %v917
      %982 = vst [vmem:[%s292 + $0x28] sm:$0xf] %v918
      %983 = vst [vmem:[%s292 + $0x2c] sm:$0xf] %v919
      %984 = vst [vmem:[%s292 + $0x30] sm:$0xf] %v920
      %985 = vst [vmem:[%s292 + $0x34] sm:$0xf] %v921
      %986 = vst [vmem:[%s292 + $0x38] sm:$0xf] %v922
      %987 = vst [vmem:[%s292 + $0x3c] sm:$0xf] %v923
      %988 = vst [vmem:[%s292 + $0x40] sm:$0xf] %v924
      %989 = vst [vmem:[%s292 + $0x44] sm:$0xf] %v925
      %990 = vst [vmem:[%s292 + $0x48] sm:$0xf] %v926
      %991 = vst [vmem:[%s292 + $0x4c] sm:$0xf] %v927
      %992 = vst [vmem:[%s292 + $0x50] sm:$0xf] %v928
      %993 = vst [vmem:[%s292 + $0x54] sm:$0xf] %v929
      %994 = vst [vmem:[%s292 + $0x58] sm:$0xf] %v930
      %995 = vst [vmem:[%s292 + $0x5c] sm:$0xf] %v931
      %996 = vst [vmem:[%s292 + $0x60] sm:$0xf] %v932
      %997 = vst [vmem:[%s292 + $0x64] sm:$0xf] %v933
      %998 = vst [vmem:[%s292 + $0x68] sm:$0xf] %v934
      %999 = vst [vmem:[%s292 + $0x6c] sm:$0xf] %v935
      %1000 = vst [vmem:[%s292 + $0x70] sm:$0xf] %v936
      %1001 = vst [vmem:[%s292 + $0x74] sm:$0xf] %v937
      %1002 = vst [vmem:[%s292 + $0x78] sm:$0xf] %v938
      %1003 = vst [vmem:[%s292 + $0x7c] sm:$0xf] %v939
      %v1004 = vunpack.c.l.bf16 %v844
      %v1005 = vunpack.c.h.bf16 %v844
      %v1006 = vunpack.c.l.bf16 %v845
      %v1007 = vunpack.c.h.bf16 %v845
      %v1008 = vunpack.c.l.bf16 %v846
      %v1009 = vunpack.c.h.bf16 %v846
      %v1010 = vunpack.c.l.bf16 %v847
      %v1011 = vunpack.c.h.bf16 %v847
      %v1012 = vunpack.c.l.bf16 %v848
      %v1013 = vunpack.c.h.bf16 %v848
      %v1014 = vunpack.c.l.bf16 %v849
      %v1015 = vunpack.c.h.bf16 %v849
      %v1016 = vunpack.c.l.bf16 %v850
      %v1017 = vunpack.c.h.bf16 %v850
      %v1018 = vunpack.c.l.bf16 %v851
      %v1019 = vunpack.c.h.bf16 %v851
      %v1020 = vunpack.c.l.bf16 %v852
      %v1021 = vunpack.c.h.bf16 %v852
      %v1022 = vunpack.c.l.bf16 %v853
      %v1023 = vunpack.c.h.bf16 %v853
      %v1024 = vunpack.c.l.bf16 %v854
      %v1025 = vunpack.c.h.bf16 %v854
      %v1026 = vunpack.c.l.bf16 %v855
      %v1027 = vunpack.c.h.bf16 %v855
      %v1028 = vunpack.c.l.bf16 %v856
      %v1029 = vunpack.c.h.bf16 %v856
      %v1030 = vunpack.c.l.bf16 %v857
      %v1031 = vunpack.c.h.bf16 %v857
      %v1032 = vunpack.c.l.bf16 %v858
      %v1033 = vunpack.c.h.bf16 %v858
      %v1034 = vunpack.c.l.bf16 %v859
      %v1035 = vunpack.c.h.bf16 %v859
      %v1036 = vadd.f32 %v1004, %v1005
      %v1037 = vadd.f32 %v1036, %v1006
      %v1038 = vadd.f32 %v1037, %v1007
      %v1039 = vadd.f32 %v1038, %v1008
      %v1040 = vadd.f32 %v1039, %v1009
      %v1041 = vadd.f32 %v1040, %v1010
      %v1042 = vadd.f32 %v1041, %v1011
      %v1043 = vadd.f32 %v1042, %v1012
      %v1044 = vadd.f32 %v1043, %v1013
      %v1045 = vadd.f32 %v1044, %v1014
      %v1046 = vadd.f32 %v1045, %v1015
      %v1047 = vadd.f32 %v1046, %v1016
      %v1048 = vadd.f32 %v1047, %v1017
      %v1049 = vadd.f32 %v1048, %v1018
      %v1050 = vadd.f32 %v1049, %v1019
      %v1051 = vadd.f32 %v1050, %v1020
      %v1052 = vadd.f32 %v1051, %v1021
      %v1053 = vadd.f32 %v1052, %v1022
      %v1054 = vadd.f32 %v1053, %v1023
      %v1055 = vadd.f32 %v1054, %v1024
      %v1056 = vadd.f32 %v1055, %v1025
      %v1057 = vadd.f32 %v1056, %v1026
      %v1058 = vadd.f32 %v1057, %v1027
      %v1059 = vadd.f32 %v1058, %v1028
      %v1060 = vadd.f32 %v1059, %v1029
      %v1061 = vadd.f32 %v1060, %v1030
      %v1062 = vadd.f32 %v1061, %v1031
      %v1063 = vadd.f32 %v1062, %v1032
      %v1064 = vadd.f32 %v1063, %v1033
      %v1065 = vadd.f32 %v1064, %v1034
      %v1066 = vadd.f32 %v1065, %v1035
      %v1067 = vrot.slane %v1066, 4
      %v1068 = vadd.f32 %v1066, %v1067
      %v1069 = vrot.slane %v1068, 2
      %v1070 = vadd.f32 %v1068, %v1069
      %v1071 = vrot.slane %v1070, 1
      %v1072 = vadd.f32 %v1070, %v1071
      %1073 = vst [vmem:[%s298] sm:$0x1] %v1072
      %s1074 = smul.u32 4, %s21
      %s1075 = smul.u32 8, %s22
      %p1076 = scmp.lt.s32.totalorder %s1074, 7
      %s1077 = scalar_select %p1076, %s1074, 7
      %p1078 = scmp.lt.s32.totalorder %s1075, 7
      %s1079 = scalar_select %p1078, %s1075, 7
      %s1080 = smul.addr %s1077, 8
      %s1081 = sadd.s32 %s1079, %s1080
      %s1082 = smul.addr %s1081, 4
      %s1083 = scalar_lea.vmem %s4, %s1082
      %s1084 = sadd.s32 %s21, %s22
      %p1085 = scmp.lt.s32.totalorder %s1084, 1
      %s1086 = scalar_select %p1085, %s1084, 1
      %s1087 = scalar_lea.vmem %s5, %s1086
      // Predicated region
      $region37: #{decoder_block_forward.6} parent=35 // pred_check
        %p1088 = pneg %p145
      $region38: #{decoder_block_forward.6} parent=35 // pred_check_branch
        %1090 = sbr.rel (%p1088) target = $region40
      $region39: #{decoder_block_forward.6} parent=35 // pred_region
        %s1091 = smul.u32 4, %s21
        %s1092 = smul.u32 8, %s22
      $region40: #{decoder_block_forward.6} parent=35 // pred_fallthru
        _
      // Predicated region
      $region41: #{decoder_block_forward.6} parent=35 // pred_check
        %p1093 = pneg %p173
      $region42: #{decoder_block_forward.6} parent=35 // pred_check_branch
        %1095 = sbr.rel (%p1093) target = $region44
      $region43: #{decoder_block_forward.6} parent=35 // pred_region
        %s1096 = sadd.s32 %s21, %s22
      $region44: #{decoder_block_forward.6} parent=35 // pred_fallthru
        _
    $region36: #{decoder_block_forward.6} parent=5 // pred_fallthru
      _
    %p1097 = scmp.le.s32.totalorder 2, %s12
    // Predicated region
    $region45: #{decoder_block_forward.6} parent=5 // pred_check
      %p1098 = pneg %p1097
    $region46: #{decoder_block_forward.6} parent=5 // pred_check_branch
      %1100 = sbr.rel (%p1098) target = $region48
    $region47: #{decoder_block_forward.6} parent=5 // pred_region
      %s1101 = ssub.s32 %s12, 2
      // Predicated region
      $region49: #{decoder_block_forward.6} parent=47 // pred_check
        %p1102 = pneg %p151
      $region50: #{decoder_block_forward.6} parent=47 // pred_check_branch
        %1104 = sbr.rel (%p1102) target = $region52
      $region51: #{decoder_block_forward.6} parent=47 // pred_region
        %s1105 = smul.u32 4, %s23
        %s1106 = smul.u32 8, %s24
        %p1107 = scmp.lt.s32.totalorder %s1105, 7
        %s1108 = scalar_select %p1107, %s1105, 7
        %p1109 = scmp.lt.s32.totalorder %s1106, 7
        %s1110 = scalar_select %p1109, %s1106, 7
        %s1111 = smul.addr %s1108, 8
        %s1112 = sadd.s32 %s1110, %s1111
        %s1113 = smul.addr %s1112, 4
        %s1114 = scalar_lea.vmem %s4, %s1113
      $region52: #{decoder_block_forward.6} parent=47 // pred_fallthru
        _
      // Predicated region
      $region53: #{decoder_block_forward.6} parent=47 // pred_check
        %p1115 = pneg %p179
      $region54: #{decoder_block_forward.6} parent=47 // pred_check_branch
        %1117 = sbr.rel (%p1115) target = $region56
      $region55: #{decoder_block_forward.6} parent=47 // pred_region
        %s1118 = sadd.s32 %s23, %s24
        %p1119 = scmp.lt.s32.totalorder %s1118, 1
        %s1120 = scalar_select %p1119, %s1118, 1
        %s1121 = scalar_lea.vmem %s5, %s1120
      $region56: #{decoder_block_forward.6} parent=47 // pred_fallthru
        _
    $region48: #{decoder_block_forward.6} parent=5 // pred_fallthru
      _
  $region6: #{decoder_block_forward.6} parent=0 // loop_footer
    %s16 = sadd.s32 1, %s12
  $region7: #{decoder_block_forward.6} parent=0 // loop_footer_branch
    %11 = sbr.rel target = $region3
  $region8: #{decoder_block_forward.6} parent=0 // loop_exit
    _

// kernel: decoder_block_forward.7
$region0: #{decoder_block_forward.7}
  #allocation0 [shape = 'u32[]', space=smem, size = 0x4, offset = 0x4, fixed_abs, tag = 'smem constant byte address 0x4 - core index']
  #allocation1 [shape = 'u32[144,128]{1,0:T(1,128)}', space=vmem, size = 0x12000, scoped, tag = 'internal scratch']
  %s0 = inlined_call_operand.vmem [shape: bf16[8,8,8,128], index: 0, kind: input, shape index: {}]
  %s1 = inlined_call_operand.vmem [shape: bf16[8,8,8,128], index: 1, kind: input, shape index: {}]
  %s2 = inlined_call_operand.vmem [shape: f32[2,1,128], index: 2, kind: input, shape index: {}]
  %s3 = inlined_call_operand.vmem [shape: bf16[128,128], index: 3, kind: input, shape index: {}]
  %s4 = inlined_call_operand.vmem [shape: f32[1,128], index: 4, kind: input, shape index: {}]
  %s5 = inlined_call_operand.vmem [shape: f32[8,8,8,128], index: 5, kind: output, shape index: {0}]
  %s6 = inlined_call_operand.hbm [shape: f32[2,1,128], index: 6, kind: output, shape index: {1}]
  %7 = xla_tuple %s5, %s6
  %s8 = sld [smem:[#allocation0]]
  $region61: #{decoder_block_forward.7} parent=0
    _
  %s10 = ssub.s32 1, %s8
  %s11 = scalar_select 0, %s10, %s8
  $region1: #{decoder_block_forward.7} parent=0
    #allocation2 [shape = 'u8[1024]{0}', space=vmem, size = 0x400, scoped, tag = 'output window, operand 1']
    #allocation3 [shape = 's32[2]{0}', space=sflag, size = 0x8, scoped, tag = 'scoped memory for decoder_block_forward.7']
    %12 = vsyncpa [#allocation3], 0
    %s13 = scalar_lea.sflag [#allocation3], 1
    %14 = vsyncpa %s13, 0
    loop: start=0, step=1, limit=4
    $region2: #{decoder_block_forward.7} parent=1 // loop_pre_header
      _
    $region3: #{decoder_block_forward.7} parent=1 // loop_header
      %s16 = sphi 0, %s20
      %p17 = scmp.ge.s32.totalorder %s16, 4
      %s23 = sphi 0, %s35
      %s24 = sphi 0, %s31
      %s25 = sphi 0, %s23
      %s26 = sphi 0, %s24
      %s27 = sphi 0, %s25
      %s28 = sphi 0, %s26
      %s40 = sphi 0, %s42
      %s43 = sphi 0, %s40
      %s44 = sphi 0, %s43
      %s60 = sphi 0, %s44
      %s68 = sphi 0, %s70
      %s71 = sphi 0, %s68
      %s72 = sphi 0, %s71
      %s88 = sphi 0, %s72
      %s94 = sphi 0, %s96
      %s97 = sphi 0, %s94
      %s98 = sphi 0, %s97
      %s114 = sphi 0, %s98
      %s118 = sphi 0, %s118
      %s120 = sphi 0, %s118
      %s121 = sphi 0, %s120
      %s135 = sphi 0, %s121
      %s139 = sphi 0, %s139
      %s141 = sphi 0, %s139
      %s142 = sphi 0, %s141
      %s156 = sphi 0, %s142
      %s164 = sphi 0, %s166
      %s167 = sphi 0, %s164
      %s168 = sphi 0, %s167
      %s184 = sphi 0, %s168
      %s192 = sphi 0, %s194
      %s195 = sphi 0, %s192
      %s196 = sphi 0, %s195
      %s212 = sphi 0, %s196
    $region4: #{decoder_block_forward.7} parent=1 // loop_header_branch
      %19 = sbr.rel (%p17) target = $region8
    $region5: #{decoder_block_forward.7} parent=1 // loop_body
      %s21 = ssub.s32 %s16, 1
      %s22 = ssub.s32 %s16, 2
      %s29 = sadd.s32 1, %s24
      %p30 = scmp.ge.s32.totalorder %s29, 1
      %s31 = scalar_select %p30, 0, %s29
      %s32 = sadd.s32 1, %s23
      %s33 = scalar_select %p30, %s32, %s23
      %p34 = scmp.ge.s32.totalorder %s33, 2
      %s35 = scalar_select %p34, 0, %s33
      %s36 = ssub.s32 %s23, %s35
      %s37 = ssub.s32 %s24, %s31
      %s38 = sor.u32 %s36, %s37
      %p39 = scmp.eq.s32.totalorder %s38, 0
      %s41 = sadd.s32 %s40, 1
      %s42 = scalar_select %p39, %s40, %s41
      %p45 = pneg %p39
      %p46 = scmp.eq.s32.totalorder %s16, 1
      %p47 = por %p45, %p46
      %p48 = scmp.ne.s32.totalorder %s40, %s43
      %p49 = scmp.eq.s32.totalorder %s16, 0
      %p50 = por %p48, %p49
      %p51 = scmp.ne.s32.totalorder %s40, %s43
      %p52 = scmp.eq.s32.totalorder %s21, 1
      %p53 = por %p51, %p52
      %p54 = scmp.ne.s32.totalorder %s43, %s44
      %p55 = scmp.eq.s32.totalorder %s21, 0
      %p56 = por %p54, %p55
      %p57 = scmp.ne.s32.totalorder %s43, %s44
      %p58 = scmp.eq.s32.totalorder %s22, 1
      %p59 = por %p57, %p58
      %p61 = scmp.ne.s32.totalorder %s44, %s60
      %p62 = scmp.eq.s32.totalorder %s22, 0
      %p63 = por %p61, %p62
      %s64 = ssub.s32 %s23, %s35
      %s65 = ssub.s32 %s24, %s31
      %s66 = sor.u32 %s64, %s65
      %p67 = scmp.eq.s32.totalorder %s66, 0
      %s69 = sadd.s32 %s68, 1
      %s70 = scalar_select %p67, %s68, %s69
      %p73 = pneg %p67
      %p74 = scmp.eq.s32.totalorder %s16, 1
      %p75 = por %p73, %p74
      %p76 = scmp.ne.s32.totalorder %s68, %s71
      %p77 = scmp.eq.s32.totalorder %s16, 0
      %p78 = por %p76, %p77
      %p79 = scmp.ne.s32.totalorder %s68, %s71
      %p80 = scmp.eq.s32.totalorder %s21, 1
      %p81 = por %p79, %p80
      %p82 = scmp.ne.s32.totalorder %s71, %s72
      %p83 = scmp.eq.s32.totalorder %s21, 0
      %p84 = por %p82, %p83
      %p85 = scmp.ne.s32.totalorder %s71, %s72
      %p86 = scmp.eq.s32.totalorder %s22, 1
      %p87 = por %p85, %p86
      %p89 = scmp.ne.s32.totalorder %s72, %s88
      %p90 = scmp.eq.s32.totalorder %s22, 0
      %p91 = por %p89, %p90
      %s92 = ssub.s32 %s23, %s35
      %p93 = scmp.eq.s32.totalorder %s92, 0
      %s95 = sadd.s32 %s94, 1
      %s96 = scalar_select %p93, %s94, %s95
      %p99 = pneg %p93
      %p100 = scmp.eq.s32.totalorder %s16, 1
      %p101 = por %p99, %p100
      %p102 = scmp.ne.s32.totalorder %s94, %s97
      %p103 = scmp.eq.s32.totalorder %s16, 0
      %p104 = por %p102, %p103
      %p105 = scmp.ne.s32.totalorder %s94, %s97
      %p106 = scmp.eq.s32.totalorder %s21, 1
      %p107 = por %p105, %p106
      %p108 = scmp.ne.s32.totalorder %s97, %s98
      %p109 = scmp.eq.s32.totalorder %s21, 0
      %p110 = por %p108, %p109
      %p111 = scmp.ne.s32.totalorder %s97, %s98
      %p112 = scmp.eq.s32.totalorder %s22, 1
      %p113 = por %p111, %p112
      %p115 = scmp.ne.s32.totalorder %s98, %s114
      %p116 = scmp.eq.s32.totalorder %s22, 0
      %p117 = por %p115, %p116
      %s119 = sadd.s32 %s118, 1
      %p122 = scmp.eq.s32.totalorder %s16, 1
      %p123 = scmp.ne.s32.totalorder %s118, %s120
      %p124 = scmp.eq.s32.totalorder %s16, 0
      %p125 = por %p123, %p124
      %p126 = scmp.ne.s32.totalorder %s118, %s120
      %p127 = scmp.eq.s32.totalorder %s21, 1
      %p128 = por %p126, %p127
      %p129 = scmp.ne.s32.totalorder %s120, %s121
      %p130 = scmp.eq.s32.totalorder %s21, 0
      %p131 = por %p129, %p130
      %p132 = scmp.ne.s32.totalorder %s120, %s121
      %p133 = scmp.eq.s32.totalorder %s22, 1
      %p134 = por %p132, %p133
      %p136 = scmp.ne.s32.totalorder %s121, %s135
      %p137 = scmp.eq.s32.totalorder %s22, 0
      %p138 = por %p136, %p137
      %s140 = sadd.s32 %s139, 1
      %p143 = scmp.eq.s32.totalorder %s16, 1
      %p144 = scmp.ne.s32.totalorder %s139, %s141
      %p145 = scmp.eq.s32.totalorder %s16, 0
      %p146 = por %p144, %p145
      %p147 = scmp.ne.s32.totalorder %s139, %s141
      %p148 = scmp.eq.s32.totalorder %s21, 1
      %p149 = por %p147, %p148
      %p150 = scmp.ne.s32.totalorder %s141, %s142
      %p151 = scmp.eq.s32.totalorder %s21, 0
      %p152 = por %p150, %p151
      %p153 = scmp.ne.s32.totalorder %s141, %s142
      %p154 = scmp.eq.s32.totalorder %s22, 1
      %p155 = por %p153, %p154
      %p157 = scmp.ne.s32.totalorder %s142, %s156
      %p158 = scmp.eq.s32.totalorder %s22, 0
      %p159 = por %p157, %p158
      %s160 = ssub.s32 %s23, %s35
      %s161 = ssub.s32 %s24, %s31
      %s162 = sor.u32 %s160, %s161
      %p163 = scmp.eq.s32.totalorder %s162, 0
      %s165 = sadd.s32 %s164, 1
      %s166 = scalar_select %p163, %s164, %s165
      %p169 = pneg %p163
      %p170 = scmp.eq.s32.totalorder %s16, 1
      %p171 = por %p169, %p170
      %p172 = scmp.ne.s32.totalorder %s164, %s167
      %p173 = scmp.eq.s32.totalorder %s16, 0
      %p174 = por %p172, %p173
      %p175 = scmp.ne.s32.totalorder %s164, %s167
      %p176 = scmp.eq.s32.totalorder %s21, 1
      %p177 = por %p175, %p176
      %p178 = scmp.ne.s32.totalorder %s167, %s168
      %p179 = scmp.eq.s32.totalorder %s21, 0
      %p180 = por %p178, %p179
      %p181 = scmp.ne.s32.totalorder %s167, %s168
      %p182 = scmp.eq.s32.totalorder %s22, 1
      %p183 = por %p181, %p182
      %p185 = scmp.ne.s32.totalorder %s168, %s184
      %p186 = scmp.eq.s32.totalorder %s22, 0
      %p187 = por %p185, %p186
      %s188 = sadd.s32 %s23, %s24
      %s189 = sadd.s32 %s35, %s31
      %s190 = ssub.s32 %s188, %s189
      %p191 = scmp.eq.s32.totalorder %s190, 0
      %s193 = sadd.s32 %s192, 1
      %s194 = scalar_select %p191, %s192, %s193
      %p197 = pneg %p191
      %p198 = scmp.eq.s32.totalorder %s16, 1
      %p199 = por %p197, %p198
      %p200 = scmp.ne.s32.totalorder %s192, %s195
      %p201 = scmp.eq.s32.totalorder %s16, 0
      %p202 = por %p200, %p201
      %p203 = scmp.ne.s32.totalorder %s192, %s195
      %p204 = scmp.eq.s32.totalorder %s21, 1
      %p205 = por %p203, %p204
      %p206 = scmp.ne.s32.totalorder %s195, %s196
      %p207 = scmp.eq.s32.totalorder %s21, 0
      %p208 = por %p206, %p207
      %p209 = scmp.ne.s32.totalorder %s195, %s196
      %p210 = scmp.eq.s32.totalorder %s22, 1
      %p211 = por %p209, %p210
      %p213 = scmp.ne.s32.totalorder %s196, %s212
      %p214 = scmp.eq.s32.totalorder %s22, 0
      %p215 = por %p213, %p214
      %p216 = scmp.le.s32.totalorder 1, %s16
      %p217 = scmp.lt.s32.totalorder %s16, 3
      %p218 = pnand %p216, %p217
      %p219 = pneg %p218
      // Predicated region
      $region9: #{decoder_block_forward.7} parent=5 // pred_check
        _
      $region10: #{decoder_block_forward.7} parent=5 // pred_check_branch
        %221 = sbr.rel (%p218) target = $region12
      $region11: #{decoder_block_forward.7} parent=5 // pred_region
        %s222 = ssub.s32 %s16, 1
        // Predicated region
        $region13: #{decoder_block_forward.7} parent=11 // pred_check
          %p223 = pneg %p131
        $region14: #{decoder_block_forward.7} parent=11 // pred_check_branch
          %225 = sbr.rel (%p223) target = $region16
        $region15: #{decoder_block_forward.7} parent=11 // pred_region
          _
        $region16: #{decoder_block_forward.7} parent=11 // pred_fallthru
          _
        // Predicated region
        $region17: #{decoder_block_forward.7} parent=11 // pred_check
          %p226 = pneg %p152
        $region18: #{decoder_block_forward.7} parent=11 // pred_check_branch
          %228 = sbr.rel (%p226) target = $region20
        $region19: #{decoder_block_forward.7} parent=11 // pred_region
          _
        $region20: #{decoder_block_forward.7} parent=11 // pred_fallthru
          _
      $region12: #{decoder_block_forward.7} parent=5 // pred_fallthru
        _
      %p229 = scmp.lt.s32.totalorder %s16, 2
      // Predicated region
      $region21: #{decoder_block_forward.7} parent=5 // pred_check
        %p230 = pneg %p229
      $region22: #{decoder_block_forward.7} parent=5 // pred_check_branch
        %232 = sbr.rel (%p230) target = $region24
      $region23: #{decoder_block_forward.7} parent=5 // pred_region
        // Predicated region
        $region25: #{decoder_block_forward.7} parent=23 // pred_check
          %p233 = pneg %p50
        $region26: #{decoder_block_forward.7} parent=23 // pred_check_branch
          %235 = sbr.rel (%p233) target = $region28
        $region27: #{decoder_block_forward.7} parent=23 // pred_region
          %s236 = smul.u32 4, %s23
          %s237 = smul.u32 8, %s24
          %p238 = scmp.lt.s32.totalorder %s236, 7
          %s239 = scalar_select %p238, %s236, 7
          %p240 = scmp.lt.s32.totalorder %s237, 7
          %s241 = scalar_select %p240, %s237, 7
          %s242 = smul.addr %s239, 8
          %s243 = sadd.s32 %s241, %s242
          %s244 = smul.addr %s243, 4
          %s245 = scalar_lea.vmem %s0, %s244
          %s246 = smul.u32 4, %s23
          %s247 = smul.u32 8, %s24
        $region28: #{decoder_block_forward.7} parent=23 // pred_fallthru
          _
        // Predicated region
        $region29: #{decoder_block_forward.7} parent=23 // pred_check
          %p248 = pneg %p78
        $region30: #{decoder_block_forward.7} parent=23 // pred_check_branch
          %250 = sbr.rel (%p248) target = $region32
        $region31: #{decoder_block_forward.7} parent=23 // pred_region
          %s251 = smul.u32 4, %s23
          %s252 = smul.u32 8, %s24
          %p253 = scmp.lt.s32.totalorder %s251, 7
          %s254 = scalar_select %p253, %s251, 7
          %p255 = scmp.lt.s32.totalorder %s252, 7
          %s256 = scalar_select %p255, %s252, 7
          %s257 = smul.addr %s254, 8
          %s258 = sadd.s32 %s256, %s257
          %s259 = smul.addr %s258, 4
          %s260 = scalar_lea.vmem %s1, %s259
          %s261 = smul.u32 4, %s23
          %s262 = smul.u32 8, %s24
        $region32: #{decoder_block_forward.7} parent=23 // pred_fallthru
          _
        // Predicated region
        $region33: #{decoder_block_forward.7} parent=23 // pred_check
          %p263 = pneg %p104
        $region34: #{decoder_block_forward.7} parent=23 // pred_check_branch
          %265 = sbr.rel (%p263) target = $region36
        $region35: #{decoder_block_forward.7} parent=23 // pred_region
          %p266 = scmp.lt.s32.totalorder %s23, 1
          %s267 = scalar_select %p266, %s23, 1
          %s268 = scalar_lea.vmem %s2, %s267
        $region36: #{decoder_block_forward.7} parent=23 // pred_fallthru
          _
      $region24: #{decoder_block_forward.7} parent=5 // pred_fallthru
        _
      %p269 = scmp.le.s32.totalorder 1, %s16
      %p270 = scmp.lt.s32.totalorder %s16, 3
      %p271 = pnand %p269, %p270
      %p272 = pneg %p271
      // Predicated region
      $region37: #{decoder_block_forward.7} parent=5 // pred_check
        _
      $region38: #{decoder_block_forward.7} parent=5 // pred_check_branch
        %274 = sbr.rel (%p271) target = $region40
      $region39: #{decoder_block_forward.7} parent=5 // pred_region
        %s275 = ssub.s32 %s16, 1
        %s276 = smul.u32 4, %s25
        %s277 = smul.u32 8, %s26
        %p278 = scmp.lt.s32.totalorder %s276, 7
        %s279 = scalar_select %p278, %s276, 7
        %p280 = scmp.lt.s32.totalorder %s277, 7
        %s281 = scalar_select %p280, %s277, 7
        %s282 = smul.addr %s279, 8
        %s283 = sadd.s32 %s281, %s282
        %s284 = smul.addr %s283, 4
        %s285 = scalar_lea.vmem %s0, %s284
        %p286 = pneg %p56
        %p287 = pneg %p53
        %s288 = smul.u32 4, %s25
        %s289 = smul.u32 8, %s26
        %p290 = scmp.lt.s32.totalorder %s288, 7
        %s291 = scalar_select %p290, %s288, 7
        %p292 = scmp.lt.s32.totalorder %s289, 7
        %s293 = scalar_select %p292, %s289, 7
        %s294 = smul.addr %s291, 8
        %s295 = sadd.s32 %s293, %s294
        %s296 = smul.addr %s295, 4
        %s297 = scalar_lea.vmem %s1, %s296
        %p298 = pneg %p84
        %p299 = pneg %p81
        %p300 = scmp.lt.s32.totalorder %s25, 1
        %s301 = scalar_select %p300, %s25, 1
        %s302 = scalar_lea.vmem %s2, %s301
        %p303 = pneg %p110
        %p304 = pneg %p107
        %p305 = pneg %p131
        %p306 = pneg %p128
        %p307 = pneg %p152
        %p308 = pneg %p149
        %p309 = pneg %p180
        %p310 = pneg %p177
        %s311 = smul.u32 4, %s25
        %s312 = smul.u32 8, %s26
        %p313 = scmp.lt.s32.totalorder %s311, 7
        %s314 = scalar_select %p313, %s311, 7
        %p315 = scmp.lt.s32.totalorder %s312, 7
        %s316 = scalar_select %p315, %s312, 7
        %s317 = smul.addr %s314, 8
        %s318 = sadd.s32 %s316, %s317
        %s319 = smul.addr %s318, 8
        %s320 = scalar_lea.vmem %s5, %s319
        %p321 = pneg %p208
        %p322 = pneg %p205
        %s323 = sand.u32 %s195, 1
        %s324 = scalar_lea.sflag [#allocation3], %s323
        %s325 = sand.u32 %s195, 1
        %s326 = scalar_lea.vmem [#allocation2], %s325
        %s327 = smul.u32 4, %s25
        %s328 = smul.u32 8, %s26
        %p329 = scmp.lt.s32.totalorder %s327, 7
        %s330 = scalar_select %p329, %s327, 7
        %p331 = scmp.lt.s32.totalorder %s328, 7
        %s332 = scalar_select %p331, %s328, 7
        %s333 = smul.addr %s330, 8
        %s334 = sadd.s32 %s332, %s333
        %s335 = smul.addr %s334, 4
        %s336 = scalar_lea.vmem %s0, %s335
        %s337 = smul.u32 4, %s25
        %s338 = smul.u32 8, %s26
        %s339 = smul.u32 4, %s25
        %s340 = smul.u32 8, %s26
        %p341 = scmp.lt.s32.totalorder %s339, 7
        %s342 = scalar_select %p341, %s339, 7
        %p343 = scmp.lt.s32.totalorder %s340, 7
        %s344 = scalar_select %p343, %s340, 7
        %s345 = smul.addr %s342, 8
        %s346 = sadd.s32 %s344, %s345
        %s347 = smul.addr %s346, 4
        %s348 = scalar_lea.vmem %s1, %s347
        %s349 = smul.u32 4, %s25
        %s350 = smul.u32 8, %s26
        %p351 = scmp.lt.s32.totalorder %s25, 1
        %s352 = scalar_select %p351, %s25, 1
        %s353 = scalar_lea.vmem %s2, %s352
        %s354 = smul.u32 4, %s25
        %s355 = smul.u32 8, %s26
        %p356 = scmp.lt.s32.totalorder %s354, 7
        %s357 = scalar_select %p356, %s354, 7
        %p358 = scmp.lt.s32.totalorder %s355, 7
        %s359 = scalar_select %p358, %s355, 7
        %s360 = smul.addr %s357, 8
        %s361 = sadd.s32 %s359, %s360
        %s362 = smul.addr %s361, 8
        %s363 = scalar_lea.vmem %s5, %s362
        %s364 = smul.u32 4, %s25
        %s365 = smul.u32 8, %s26
        %s366 = sadd.s32 %s25, %s26
        %v368 = vld [vmem:[%s336] sm:$0xf]
        %v369 = vld [vmem:[%s336 + $0x4] sm:$0xf]
        %v370 = vld [vmem:[%s336 + $0x8] sm:$0xf]
        %v371 = vld [vmem:[%s336 + $0xc] sm:$0xf]
        %v372 = vld [vmem:[%s336 + $0x10] sm:$0xf]
        %v373 = vld [vmem:[%s336 + $0x14] sm:$0xf]
        %v374 = vld [vmem:[%s336 + $0x18] sm:$0xf]
        %v375 = vld [vmem:[%s336 + $0x1c] sm:$0xf]
        %v376 = vld [vmem:[%s336 + $0x20] sm:$0xf]
        %v377 = vld [vmem:[%s336 + $0x24] sm:$0xf]
        %v378 = vld [vmem:[%s336 + $0x28] sm:$0xf]
        %v379 = vld [vmem:[%s336 + $0x2c] sm:$0xf]
        %v380 = vld [vmem:[%s336 + $0x30] sm:$0xf]
        %v381 = vld [vmem:[%s336 + $0x34] sm:$0xf]
        %v382 = vld [vmem:[%s336 + $0x38] sm:$0xf]
        %v383 = vld [vmem:[%s336 + $0x3c] sm:$0xf]
        %v384 = vld [vmem:[%s336 + $0x40] sm:$0xf]
        %v385 = vld [vmem:[%s336 + $0x44] sm:$0xf]
        %v386 = vld [vmem:[%s336 + $0x48] sm:$0xf]
        %v387 = vld [vmem:[%s336 + $0x4c] sm:$0xf]
        %v388 = vld [vmem:[%s336 + $0x50] sm:$0xf]
        %v389 = vld [vmem:[%s336 + $0x54] sm:$0xf]
        %v390 = vld [vmem:[%s336 + $0x58] sm:$0xf]
        %v391 = vld [vmem:[%s336 + $0x5c] sm:$0xf]
        %v392 = vld [vmem:[%s336 + $0x60] sm:$0xf]
        %v393 = vld [vmem:[%s336 + $0x64] sm:$0xf]
        %v394 = vld [vmem:[%s336 + $0x68] sm:$0xf]
        %v395 = vld [vmem:[%s336 + $0x6c] sm:$0xf]
        %v396 = vld [vmem:[%s336 + $0x70] sm:$0xf]
        %v397 = vld [vmem:[%s336 + $0x74] sm:$0xf]
        %v398 = vld [vmem:[%s336 + $0x78] sm:$0xf]
        %v399 = vld [vmem:[%s336 + $0x7c] sm:$0xf]
        %v400 = vunpack.c.l.bf16 %v368
        %v401 = vunpack.c.l.bf16 %v369
        %v402 = vunpack.c.l.bf16 %v370
        %v403 = vunpack.c.l.bf16 %v371
        %v404 = vunpack.c.l.bf16 %v372
        %v405 = vunpack.c.l.bf16 %v373
        %v406 = vunpack.c.l.bf16 %v374
        %v407 = vunpack.c.l.bf16 %v375
        %v408 = vunpack.c.l.bf16 %v376
        %v409 = vunpack.c.l.bf16 %v377
        %v410 = vunpack.c.l.bf16 %v378
        %v411 = vunpack.c.l.bf16 %v379
        %v412 = vunpack.c.l.bf16 %v380
        %v413 = vunpack.c.l.bf16 %v381
        %v414 = vunpack.c.l.bf16 %v382
        %v415 = vunpack.c.l.bf16 %v383
        %v416 = vunpack.c.l.bf16 %v384
        %v417 = vunpack.c.l.bf16 %v385
        %v418 = vunpack.c.l.bf16 %v386
        %v419 = vunpack.c.l.bf16 %v387
        %v420 = vunpack.c.l.bf16 %v388
        %v421 = vunpack.c.l.bf16 %v389
        %v422 = vunpack.c.l.bf16 %v390
        %v423 = vunpack.c.l.bf16 %v391
        %v424 = vunpack.c.l.bf16 %v392
        %v425 = vunpack.c.l.bf16 %v393
        %v426 = vunpack.c.l.bf16 %v394
        %v427 = vunpack.c.l.bf16 %v395
        %v428 = vunpack.c.l.bf16 %v396
        %v429 = vunpack.c.l.bf16 %v397
        %v430 = vunpack.c.l.bf16 %v398
        %v431 = vunpack.c.l.bf16 %v399
        %v432 = vld [vmem:[%s348] sm:$0xf]
        %v433 = vld [vmem:[%s348 + $0x4] sm:$0xf]
        %v434 = vld [vmem:[%s348 + $0x8] sm:$0xf]
        %v435 = vld [vmem:[%s348 + $0xc] sm:$0xf]
        %v436 = vld [vmem:[%s348 + $0x10] sm:$0xf]
        %v437 = vld [vmem:[%s348 + $0x14] sm:$0xf]
        %v438 = vld [vmem:[%s348 + $0x18] sm:$0xf]
        %v439 = vld [vmem:[%s348 + $0x1c] sm:$0xf]
        %v440 = vld [vmem:[%s348 + $0x20] sm:$0xf]
        %v441 = vld [vmem:[%s348 + $0x24] sm:$0xf]
        %v442 = vld [vmem:[%s348 + $0x28] sm:$0xf]
        %v443 = vld [vmem:[%s348 + $0x2c] sm:$0xf]
        %v444 = vld [vmem:[%s348 + $0x30] sm:$0xf]
        %v445 = vld [vmem:[%s348 + $0x34] sm:$0xf]
        %v446 = vld [vmem:[%s348 + $0x38] sm:$0xf]
        %v447 = vld [vmem:[%s348 + $0x3c] sm:$0xf]
        %v448 = vld [vmem:[%s348 + $0x40] sm:$0xf]
        %v449 = vld [vmem:[%s348 + $0x44] sm:$0xf]
        %v450 = vld [vmem:[%s348 + $0x48] sm:$0xf]
        %v451 = vld [vmem:[%s348 + $0x4c] sm:$0xf]
        %v452 = vld [vmem:[%s348 + $0x50] sm:$0xf]
        %v453 = vld [vmem:[%s348 + $0x54] sm:$0xf]
        %v454 = vld [vmem:[%s348 + $0x58] sm:$0xf]
        %v455 = vld [vmem:[%s348 + $0x5c] sm:$0xf]
        %v456 = vld [vmem:[%s348 + $0x60] sm:$0xf]
        %v457 = vld [vmem:[%s348 + $0x64] sm:$0xf]
        %v458 = vld [vmem:[%s348 + $0x68] sm:$0xf]
        %v459 = vld [vmem:[%s348 + $0x6c] sm:$0xf]
        %v460 = vld [vmem:[%s348 + $0x70] sm:$0xf]
        %v461 = vld [vmem:[%s348 + $0x74] sm:$0xf]
        %v462 = vld [vmem:[%s348 + $0x78] sm:$0xf]
        %v463 = vld [vmem:[%s348 + $0x7c] sm:$0xf]
        %v464 = vunpack.c.l.bf16 %v432
        %v465 = vunpack.c.l.bf16 %v433
        %v466 = vunpack.c.l.bf16 %v434
        %v467 = vunpack.c.l.bf16 %v435
        %v468 = vunpack.c.l.bf16 %v436
        %v469 = vunpack.c.l.bf16 %v437
        %v470 = vunpack.c.l.bf16 %v438
        %v471 = vunpack.c.l.bf16 %v439
        %v472 = vunpack.c.l.bf16 %v440
        %v473 = vunpack.c.l.bf16 %v441
        %v474 = vunpack.c.l.bf16 %v442
        %v475 = vunpack.c.l.bf16 %v443
        %v476 = vunpack.c.l.bf16 %v444
        %v477 = vunpack.c.l.bf16 %v445
        %v478 = vunpack.c.l.bf16 %v446
        %v479 = vunpack.c.l.bf16 %v447
        %v480 = vunpack.c.l.bf16 %v448
        %v481 = vunpack.c.l.bf16 %v449
        %v482 = vunpack.c.l.bf16 %v450
        %v483 = vunpack.c.l.bf16 %v451
        %v484 = vunpack.c.l.bf16 %v452
        %v485 = vunpack.c.l.bf16 %v453
        %v486 = vunpack.c.l.bf16 %v454
        %v487 = vunpack.c.l.bf16 %v455
        %v488 = vunpack.c.l.bf16 %v456
        %v489 = vunpack.c.l.bf16 %v457
        %v490 = vunpack.c.l.bf16 %v458
        %v491 = vunpack.c.l.bf16 %v459
        %v492 = vunpack.c.l.bf16 %v460
        %v493 = vunpack.c.l.bf16 %v461
        %v494 = vunpack.c.l.bf16 %v462
        %v495 = vunpack.c.l.bf16 %v463
        %v496 = vadd.f32 %v400, %v464
        %v497 = vadd.f32 %v401, %v465
        %v498 = vadd.f32 %v402, %v466
        %v499 = vadd.f32 %v403, %v467
        %v500 = vadd.f32 %v404, %v468
        %v501 = vadd.f32 %v405, %v469
        %v502 = vadd.f32 %v406, %v470
        %v503 = vadd.f32 %v407, %v471
        %v504 = vadd.f32 %v408, %v472
        %v505 = vadd.f32 %v409, %v473
        %v506 = vadd.f32 %v410, %v474
        %v507 = vadd.f32 %v411, %v475
        %v508 = vadd.f32 %v412, %v476
        %v509 = vadd.f32 %v413, %v477
        %v510 = vadd.f32 %v414, %v478
        %v511 = vadd.f32 %v415, %v479
        %v512 = vadd.f32 %v416, %v480
        %v513 = vadd.f32 %v417, %v481
        %v514 = vadd.f32 %v418, %v482
        %v515 = vadd.f32 %v419, %v483
        %v516 = vadd.f32 %v420, %v484
        %v517 = vadd.f32 %v421, %v485
        %v518 = vadd.f32 %v422, %v486
        %v519 = vadd.f32 %v423, %v487
        %v520 = vadd.f32 %v424, %v488
        %v521 = vadd.f32 %v425, %v489
        %v522 = vadd.f32 %v426, %v490
        %v523 = vadd.f32 %v427, %v491
        %v524 = vadd.f32 %v428, %v492
        %v525 = vadd.f32 %v429, %v493
        %v526 = vadd.f32 %v430, %v494
        %v527 = vadd.f32 %v431, %v495
        %v528 = vpack.c.bf16 %v497, %v496
        %v529 = vpack.c.bf16 %v499, %v498
        %v530 = vpack.c.bf16 %v501, %v500
        %v531 = vpack.c.bf16 %v503, %v502
        %v532 = vpack.c.bf16 %v505, %v504
        %v533 = vpack.c.bf16 %v507, %v506
        %v534 = vpack.c.bf16 %v509, %v508
        %v535 = vpack.c.bf16 %v511, %v510
        %v536 = vpack.c.bf16 %v513, %v512
        %v537 = vpack.c.bf16 %v515, %v514
        %v538 = vpack.c.bf16 %v517, %v516
        %v539 = vpack.c.bf16 %v519, %v518
        %v540 = vpack.c.bf16 %v521, %v520
        %v541 = vpack.c.bf16 %v523, %v522
        %v542 = vpack.c.bf16 %v525, %v524
        %v543 = vpack.c.bf16 %v527, %v526
        %v544 = vld [vmem:[%s3] sm:$0xf]
        %v545 = vld [vmem:[%s3 + $0x4] sm:$0xf]
        %v546 = vld [vmem:[%s3 + $0x8] sm:$0xf]
        %v547 = vld [vmem:[%s3 + $0xc] sm:$0xf]
        %v548 = vld [vmem:[%s3 + $0x10] sm:$0xf]
        %v549 = vld [vmem:[%s3 + $0x14] sm:$0xf]
        %v550 = vld [vmem:[%s3 + $0x18] sm:$0xf]
        %v551 = vld [vmem:[%s3 + $0x1c] sm:$0xf]
        %v552 = vld [vmem:[%s3 + $0x20] sm:$0xf]
        %v553 = vld [vmem:[%s3 + $0x24] sm:$0xf]
        %v554 = vld [vmem:[%s3 + $0x28] sm:$0xf]
        %v555 = vld [vmem:[%s3 + $0x2c] sm:$0xf]
        %v556 = vld [vmem:[%s3 + $0x30] sm:$0xf]
        %v557 = vld [vmem:[%s3 + $0x34] sm:$0xf]
        %v558 = vld [vmem:[%s3 + $0x38] sm:$0xf]
        %v559 = vld [vmem:[%s3 + $0x3c] sm:$0xf]
        %v560 = vld [vmem:[%s4] sm:$0x1]
        %v562 = vlaneseq
        %v563 = vshrl.u32 %v562, 7
        %v564 = vsub.s32 0, %v563
        %v565 = vrot.slane %v560, %v564
        %v583 = vunpack.c.l.b16 %v544
        %v584 = vunpack.c.l.b16 %v545
        %v585 = vunpack.c.l.b16 %v546
        %v586 = vunpack.c.l.b16 %v547
        %v587 = vunpack.c.l.b16 %v548
        %v588 = vunpack.c.l.b16 %v549
        %v589 = vunpack.c.l.b16 %v550
        %v590 = vunpack.c.l.b16 %v551
        %v591 = vunpack.c.l.b16 %v552
        %v592 = vunpack.c.l.b16 %v553
        %v593 = vunpack.c.l.b16 %v554
        %v594 = vunpack.c.l.b16 %v555
        %v595 = vunpack.c.l.b16 %v556
        %v596 = vunpack.c.l.b16 %v557
        %v597 = vunpack.c.l.b16 %v558
        %v598 = vunpack.c.l.b16 %v559
        %v599 = vpack.c.b16 %v584, %v583
        %v600 = vpack.c.b16 %v586, %v585
        %v601 = vpack.c.b16 %v588, %v587
        %v602 = vpack.c.b16 %v590, %v589
        %v603 = vpack.c.b16 %v592, %v591
        %v604 = vpack.c.b16 %v594, %v593
        %v605 = vpack.c.b16 %v596, %v595
        %v606 = vpack.c.b16 %v598, %v597
        %615 = vmatprep.subr.bf16.mxu0 0
        %616 = vmatpush1.bf16.msra.mxu0 %v599
        %617 = vmatprep.subr.bf16.mxu0 0
        %618 = vmatpush1.bf16.msra.mxu0 %v600
        %619 = vmatprep.subr.bf16.mxu0 0
        %620 = vmatpush1.bf16.msra.mxu0 %v601
        %621 = vmatprep.subr.bf16.mxu0 0
        %622 = vmatpush1.bf16.msra.mxu0 %v602
        %623 = vmatprep.subr.bf16.mxu0 0
        %624 = vmatpush1.bf16.msra.mxu0 %v603
        %625 = vmatprep.subr.bf16.mxu0 0
        %626 = vmatpush1.bf16.msra.mxu0 %v604
        %627 = vmatprep.subr.bf16.mxu0 0
        %628 = vmatpush1.bf16.msra.mxu0 %v605
        %629 = vmatprep.subr.bf16.mxu0 0
        %630 = vmatpush1.bf16.msra.mxu0 %v606
        %631 = vmatprep.subr.bf16.mxu0 0
        %632 = vmatpush1.bf16.msra.mxu0 0
        %633 = vmatprep.subr.bf16.mxu0 0
        %634 = vmatpush1.bf16.msra.mxu0 0
        %635 = vmatprep.subr.bf16.mxu0 0
        %636 = vmatpush1.bf16.msra.mxu0 0
        %637 = vmatprep.subr.bf16.mxu0 0
        %638 = vmatpush1.bf16.msra.mxu0 0
        %639 = vmatprep.subr.bf16.mxu0 0
        %640 = vmatpush1.bf16.msra.mxu0 0
        %641 = vmatprep.subr.bf16.mxu0 0
        %642 = vmatpush1.bf16.msra.mxu0 0
        %643 = vmatprep.subr.bf16.mxu0 0
        %644 = vmatpush1.bf16.msra.mxu0 0
        %645 = vmatprep.subr.bf16.mxu0 0
        %646 = vmatpush1.bf16.msra.mxu0 0
        %647 = vmatprep.mubr.bf16.mxu0 0
        %648 = vmatmul.mubr.bf16.gmra.mrb[0].mxu0 %v528
        %v649 = vpop.f32.mrb[0].mxu0
        %v650 = vadd.f32 %v565, %v649
        %v651 = vpop.f32.mrb[0].mxu0
        %v652 = vpop.f32.mrb[0].mxu0
        %v653 = vadd.f32 %v565, %v652
        %v654 = vpop.f32.mrb[0].mxu0
        %655 = vmatprep.mubr.bf16.mxu0 0
        %656 = vmatmul.mubr.bf16.gmra.mrb[0].mxu0 %v529
        %v657 = vpop.f32.mrb[0].mxu0
        %v658 = vadd.f32 %v565, %v657
        %v659 = vpop.f32.mrb[0].mxu0
        %v660 = vpop.f32.mrb[0].mxu0
        %v661 = vadd.f32 %v565, %v660
        %v662 = vpop.f32.mrb[0].mxu0
        %663 = vmatprep.mubr.bf16.mxu0 0
        %664 = vmatmul.mubr.bf16.gmra.mrb[0].mxu0 %v530
        %v665 = vpop.f32.mrb[0].mxu0
        %v666 = vadd.f32 %v565, %v665
        %v667 = vpop.f32.mrb[0].mxu0
        %v668 = vpop.f32.mrb[0].mxu0
        %v669 = vadd.f32 %v565, %v668
        %v670 = vpop.f32.mrb[0].mxu0
        %671 = vmatprep.mubr.bf16.mxu0 0
        %672 = vmatmul.mubr.bf16.gmra.mrb[0].mxu0 %v531
        %v673 = vpop.f32.mrb[0].mxu0
        %v674 = vadd.f32 %v565, %v673
        %v675 = vpop.f32.mrb[0].mxu0
        %v676 = vpop.f32.mrb[0].mxu0
        %v677 = vadd.f32 %v565, %v676
        %v678 = vpop.f32.mrb[0].mxu0
        %679 = vmatprep.mubr.bf16.mxu0 0
        %680 = vmatmul.mubr.bf16.gmra.mrb[0].mxu0 %v532
        %v681 = vpop.f32.mrb[0].mxu0
        %v682 = vadd.f32 %v565, %v681
        %v683 = vpop.f32.mrb[0].mxu0
        %v684 = vpop.f32.mrb[0].mxu0
        %v685 = vadd.f32 %v565, %v684
        %v686 = vpop.f32.mrb[0].mxu0
        %687 = vmatprep.mubr.bf16.mxu0 0
        %688 = vmatmul.mubr.bf16.gmra.mrb[0].mxu0 %v533
        %v689 = vpop.f32.mrb[0].mxu0
        %v690 = vadd.f32 %v565, %v689
        %v691 = vpop.f32.mrb[0].mxu0
        %v692 = vpop.f32.mrb[0].mxu0
        %v693 = vadd.f32 %v565, %v692
        %v694 = vpop.f32.mrb[0].mxu0
        %695 = vmatprep.mubr.bf16.mxu0 0
        %696 = vmatmul.mubr.bf16.gmra.mrb[0].mxu0 %v534
        %v697 = vpop.f32.mrb[0].mxu0
        %v698 = vadd.f32 %v565, %v697
        %v699 = vpop.f32.mrb[0].mxu0
        %v700 = vpop.f32.mrb[0].mxu0
        %v701 = vadd.f32 %v565, %v700
        %v702 = vpop.f32.mrb[0].mxu0
        %703 = vmatprep.mubr.bf16.mxu0 0
        %704 = vmatmul.mubr.bf16.gmra.mrb[0].mxu0 %v535
        %v705 = vpop.f32.mrb[0].mxu0
        %v706 = vadd.f32 %v565, %v705
        %v707 = vpop.f32.mrb[0].mxu0
        %v708 = vpop.f32.mrb[0].mxu0
        %v709 = vadd.f32 %v565, %v708
        %v710 = vpop.f32.mrb[0].mxu0
        %711 = vmatprep.mubr.bf16.mxu0 0
        %712 = vmatmul.mubr.bf16.gmra.mrb[0].mxu0 %v536
        %v713 = vpop.f32.mrb[0].mxu0
        %v714 = vadd.f32 %v565, %v713
        %v715 = vpop.f32.mrb[0].mxu0
        %v716 = vpop.f32.mrb[0].mxu0
        %v717 = vadd.f32 %v565, %v716
        %v718 = vpop.f32.mrb[0].mxu0
        %719 = vmatprep.mubr.bf16.mxu0 0
        %720 = vmatmul.mubr.bf16.gmra.mrb[0].mxu0 %v537
        %v721 = vpop.f32.mrb[0].mxu0
        %v722 = vadd.f32 %v565, %v721
        %v723 = vpop.f32.mrb[0].mxu0
        %v724 = vpop.f32.mrb[0].mxu0
        %v725 = vadd.f32 %v565, %v724
        %v726 = vpop.f32.mrb[0].mxu0
        %727 = vmatprep.mubr.bf16.mxu0 0
        %728 = vmatmul.mubr.bf16.gmra.mrb[0].mxu0 %v538
        %v729 = vpop.f32.mrb[0].mxu0
        %v730 = vadd.f32 %v565, %v729
        %v731 = vpop.f32.mrb[0].mxu0
        %v732 = vpop.f32.mrb[0].mxu0
        %v733 = vadd.f32 %v565, %v732
        %v734 = vpop.f32.mrb[0].mxu0
        %735 = vmatprep.mubr.bf16.mxu0 0
        %736 = vmatmul.mubr.bf16.gmra.mrb[0].mxu0 %v539
        %v737 = vpop.f32.mrb[0].mxu0
        %v738 = vadd.f32 %v565, %v737
        %v739 = vpop.f32.mrb[0].mxu0
        %v740 = vpop.f32.mrb[0].mxu0
        %v741 = vadd.f32 %v565, %v740
        %v742 = vpop.f32.mrb[0].mxu0
        %743 = vmatprep.mubr.bf16.mxu0 0
        %744 = vmatmul.mubr.bf16.gmra.mrb[0].mxu0 %v540
        %v745 = vpop.f32.mrb[0].mxu0
        %v746 = vadd.f32 %v565, %v745
        %v747 = vpop.f32.mrb[0].mxu0
        %v748 = vpop.f32.mrb[0].mxu0
        %v749 = vadd.f32 %v565, %v748
        %v750 = vpop.f32.mrb[0].mxu0
        %751 = vmatprep.mubr.bf16.mxu0 0
        %752 = vmatmul.mubr.bf16.gmra.mrb[0].mxu0 %v541
        %v753 = vpop.f32.mrb[0].mxu0
        %v754 = vadd.f32 %v565, %v753
        %v755 = vpop.f32.mrb[0].mxu0
        %v756 = vpop.f32.mrb[0].mxu0
        %v757 = vadd.f32 %v565, %v756
        %v758 = vpop.f32.mrb[0].mxu0
        %759 = vmatprep.mubr.bf16.mxu0 0
        %760 = vmatmul.mubr.bf16.gmra.mrb[0].mxu0 %v542
        %v761 = vpop.f32.mrb[0].mxu0
        %v762 = vadd.f32 %v565, %v761
        %v763 = vpop.f32.mrb[0].mxu0
        %v764 = vpop.f32.mrb[0].mxu0
        %v765 = vadd.f32 %v565, %v764
        %v766 = vpop.f32.mrb[0].mxu0
        %767 = vmatprep.mubr.bf16.mxu0 0
        %768 = vmatmul.mubr.bf16.gmra.mrb[0].mxu0 %v543
        %v769 = vpop.f32.mrb[0].mxu0
        %v770 = vadd.f32 %v565, %v769
        %v771 = vpop.f32.mrb[0].mxu0
        %v772 = vpop.f32.mrb[0].mxu0
        %v773 = vadd.f32 %v565, %v772
        %v774 = vpop.f32.mrb[0].mxu0
        %775 = vdwg.mxu0
        %v776 = vsub.f32 0.0, %v650
        %v777 = vsub.f32 0.0, %v653
        %v778 = vsub.f32 0.0, %v658
        %v779 = vsub.f32 0.0, %v661
        %v780 = vsub.f32 0.0, %v666
        %v781 = vsub.f32 0.0, %v669
        %v782 = vsub.f32 0.0, %v674
        %v783 = vsub.f32 0.0, %v677
        %v784 = vsub.f32 0.0, %v682
        %v785 = vsub.f32 0.0, %v685
        %v786 = vsub.f32 0.0, %v690
        %v787 = vsub.f32 0.0, %v693
        %v788 = vsub.f32 0.0, %v698
        %v789 = vsub.f32 0.0, %v701
        %v790 = vsub.f32 0.0, %v706
        %v791 = vsub.f32 0.0, %v709
        %v792 = vsub.f32 0.0, %v714
        %v793 = vsub.f32 0.0, %v717
        %v794 = vsub.f32 0.0, %v722
        %v795 = vsub.f32 0.0, %v725
        %v796 = vsub.f32 0.0, %v730
        %v797 = vsub.f32 0.0, %v733
        %v798 = vsub.f32 0.0, %v738
        %v799 = vsub.f32 0.0, %v741
        %v800 = vsub.f32 0.0, %v746
        %v801 = vsub.f32 0.0, %v749
        %v802 = vsub.f32 0.0, %v754
        %v803 = vsub.f32 0.0, %v757
        %v804 = vsub.f32 0.0, %v762
        %v805 = vsub.f32 0.0, %v765
        %v806 = vsub.f32 0.0, %v770
        %v807 = vsub.f32 0.0, %v773
        %v808 = vmul.f32 %v776, 1.442695
        %v809 = vpow.pop %v808
        %v810 = vmul.f32 %v777, 1.442695
        %v811 = vpow.pop %v810
        %v812 = vmul.f32 %v778, 1.442695
        %v813 = vpow.pop %v812
        %v814 = vmul.f32 %v779, 1.442695
        %v815 = vpow.pop %v814
        %v816 = vmul.f32 %v780, 1.442695
        %v817 = vpow.pop %v816
        %v818 = vmul.f32 %v781, 1.442695
        %v819 = vpow.pop %v818
        %v820 = vmul.f32 %v782, 1.442695
        %v821 = vpow.pop %v820
        %v822 = vmul.f32 %v783, 1.442695
        %v823 = vpow.pop %v822
        %v824 = vmul.f32 %v784, 1.442695
        %v825 = vpow.pop %v824
        %v826 = vmul.f32 %v785, 1.442695
        %v827 = vpow.pop %v826
        %v828 = vmul.f32 %v786, 1.442695
        %v829 = vpow.pop %v828
        %v830 = vmul.f32 %v787, 1.442695
        %v831 = vpow.pop %v830
        %v832 = vmul.f32 %v788, 1.442695
        %v833 = vpow.pop %v832
        %v834 = vmul.f32 %v789, 1.442695
        %v835 = vpow.pop %v834
        %v836 = vmul.f32 %v790, 1.442695
        %v837 = vpow.pop %v836
        %v838 = vmul.f32 %v791, 1.442695
        %v839 = vpow.pop %v838
        %v840 = vmul.f32 %v792, 1.442695
        %v841 = vpow.pop %v840
        %v842 = vmul.f32 %v793, 1.442695
        %v843 = vpow.pop %v842
        %v844 = vmul.f32 %v794, 1.442695
        %v845 = vpow.pop %v844
        %v846 = vmul.f32 %v795, 1.442695
        %v847 = vpow.pop %v846
        %v848 = vmul.f32 %v796, 1.442695
        %v849 = vpow.pop %v848
        %v850 = vmul.f32 %v797, 1.442695
        %v851 = vpow.pop %v850
        %v852 = vmul.f32 %v798, 1.442695
        %v853 = vpow.pop %v852
        %v854 = vmul.f32 %v799, 1.442695
        %v855 = vpow.pop %v854
        %v856 = vmul.f32 %v800, 1.442695
        %v857 = vpow.pop %v856
        %v858 = vmul.f32 %v801, 1.442695
        %v859 = vpow.pop %v858
        %v860 = vmul.f32 %v802, 1.442695
        %v861 = vpow.pop %v860
        %v862 = vmul.f32 %v803, 1.442695
        %v863 = vpow.pop %v862
        %v864 = vmul.f32 %v804, 1.442695
        %v865 = vpow.pop %v864
        %v866 = vmul.f32 %v805, 1.442695
        %v867 = vpow.pop %v866
        %v868 = vmul.f32 %v806, 1.442695
        %v869 = vpow.pop %v868
        %v870 = vmul.f32 %v807, 1.442695
        %v871 = vpow.pop %v870
        %v872 = vadd.f32 %v809, 1.0
        %v873 = vadd.f32 %v811, 1.0
        %v874 = vadd.f32 %v813, 1.0
        %v875 = vadd.f32 %v815, 1.0
        %v876 = vadd.f32 %v817, 1.0
        %v877 = vadd.f32 %v819, 1.0
        %v878 = vadd.f32 %v821, 1.0
        %v879 = vadd.f32 %v823, 1.0
        %v880 = vadd.f32 %v825, 1.0
        %v881 = vadd.f32 %v827, 1.0
        %v882 = vadd.f32 %v829, 1.0
        %v883 = vadd.f32 %v831, 1.0
        %v884 = vadd.f32 %v833, 1.0
        %v885 = vadd.f32 %v835, 1.0
        %v886 = vadd.f32 %v837, 1.0
        %v887 = vadd.f32 %v839, 1.0
        %v888 = vadd.f32 %v841, 1.0
        %v889 = vadd.f32 %v843, 1.0
        %v890 = vadd.f32 %v845, 1.0
        %v891 = vadd.f32 %v847, 1.0
        %v892 = vadd.f32 %v849, 1.0
        %v893 = vadd.f32 %v851, 1.0
        %v894 = vadd.f32 %v853, 1.0
        %v895 = vadd.f32 %v855, 1.0
        %v896 = vadd.f32 %v857, 1.0
        %v897 = vadd.f32 %v859, 1.0
        %v898 = vadd.f32 %v861, 1.0
        %v899 = vadd.f32 %v863, 1.0
        %v900 = vadd.f32 %v865, 1.0
        %v901 = vadd.f32 %v867, 1.0
        %v902 = vadd.f32 %v869, 1.0
        %v903 = vadd.f32 %v871, 1.0
        %v904 = vrcp.pop %v872
        %v905 = vrcp.pop %v873
        %v906 = vrcp.pop %v874
        %v907 = vrcp.pop %v875
        %v908 = vrcp.pop %v876
        %v909 = vrcp.pop %v877
        %v910 = vrcp.pop %v878
        %v911 = vrcp.pop %v879
        %v912 = vrcp.pop %v880
        %v913 = vrcp.pop %v881
        %v914 = vrcp.pop %v882
        %v915 = vrcp.pop %v883
        %v916 = vrcp.pop %v884
        %v917 = vrcp.pop %v885
        %v918 = vrcp.pop %v886
        %v919 = vrcp.pop %v887
        %v920 = vrcp.pop %v888
        %v921 = vrcp.pop %v889
        %v922 = vrcp.pop %v890
        %v923 = vrcp.pop %v891
        %v924 = vrcp.pop %v892
        %v925 = vrcp.pop %v893
        %v926 = vrcp.pop %v894
        %v927 = vrcp.pop %v895
        %v928 = vrcp.pop %v896
        %v929 = vrcp.pop %v897
        %v930 = vrcp.pop %v898
        %v931 = vrcp.pop %v899
        %v932 = vrcp.pop %v900
        %v933 = vrcp.pop %v901
        %v934 = vrcp.pop %v902
        %v935 = vrcp.pop %v903
        %v936 = vld [vmem:[%s353] sm:$0x1]
        %v938 = vlaneseq
        %v939 = vshrl.u32 %v938, 7
        %v940 = vsub.s32 0, %v939
        %v941 = vrot.slane %v936, %v940
        %v943 = vadd.f32 %v941, %v904
        %v944 = vadd.f32 %v941, %v905
        %v945 = vadd.f32 %v941, %v906
        %v946 = vadd.f32 %v941, %v907
        %v947 = vadd.f32 %v941, %v908
        %v948 = vadd.f32 %v941, %v909
        %v949 = vadd.f32 %v941, %v910
        %v950 = vadd.f32 %v941, %v911
        %v951 = vadd.f32 %v941, %v912
        %v952 = vadd.f32 %v941, %v913
        %v953 = vadd.f32 %v941, %v914
        %v954 = vadd.f32 %v941, %v915
        %v955 = vadd.f32 %v941, %v916
        %v956 = vadd.f32 %v941, %v917
        %v957 = vadd.f32 %v941, %v918
        %v958 = vadd.f32 %v941, %v919
        %v959 = vadd.f32 %v941, %v920
        %v960 = vadd.f32 %v941, %v921
        %v961 = vadd.f32 %v941, %v922
        %v962 = vadd.f32 %v941, %v923
        %v963 = vadd.f32 %v941, %v924
        %v964 = vadd.f32 %v941, %v925
        %v965 = vadd.f32 %v941, %v926
        %v966 = vadd.f32 %v941, %v927
        %v967 = vadd.f32 %v941, %v928
        %v968 = vadd.f32 %v941, %v929
        %v969 = vadd.f32 %v941, %v930
        %v970 = vadd.f32 %v941, %v931
        %v971 = vadd.f32 %v941, %v932
        %v972 = vadd.f32 %v941, %v933
        %v973 = vadd.f32 %v941, %v934
        %v974 = vadd.f32 %v941, %v935
        %v975 = vmul.f32 %v496, %v943
        %v976 = vmul.f32 %v497, %v944
        %v977 = vmul.f32 %v498, %v945
        %v978 = vmul.f32 %v499, %v946
        %v979 = vmul.f32 %v500, %v947
        %v980 = vmul.f32 %v501, %v948
        %v981 = vmul.f32 %v502, %v949
        %v982 = vmul.f32 %v503, %v950
        %v983 = vmul.f32 %v504, %v951
        %v984 = vmul.f32 %v505, %v952
        %v985 = vmul.f32 %v506, %v953
        %v986 = vmul.f32 %v507, %v954
        %v987 = vmul.f32 %v508, %v955
        %v988 = vmul.f32 %v509, %v956
        %v989 = vmul.f32 %v510, %v957
        %v990 = vmul.f32 %v511, %v958
        %v991 = vmul.f32 %v512, %v959
        %v992 = vmul.f32 %v513, %v960
        %v993 = vmul.f32 %v514, %v961
        %v994 = vmul.f32 %v515, %v962
        %v995 = vmul.f32 %v516, %v963
        %v996 = vmul.f32 %v517, %v964
        %v997 = vmul.f32 %v518, %v965
        %v998 = vmul.f32 %v519, %v966
        %v999 = vmul.f32 %v520, %v967
        %v1000 = vmul.f32 %v521, %v968
        %v1001 = vmul.f32 %v522, %v969
        %v1002 = vmul.f32 %v523, %v970
        %v1003 = vmul.f32 %v524, %v971
        %v1004 = vmul.f32 %v525, %v972
        %v1005 = vmul.f32 %v526, %v973
        %v1006 = vmul.f32 %v527, %v974
        %1007 = vst [vmem:[%s363] sm:$0xff] %v975
        %1008 = vst [vmem:[%s363 + $0x8] sm:$0xff] %v976
        %1009 = vst [vmem:[%s363 + $0x10] sm:$0xff] %v977
        %1010 = vst [vmem:[%s363 + $0x18] sm:$0xff] %v978
        %1011 = vst [vmem:[%s363 + $0x20] sm:$0xff] %v979
        %1012 = vst [vmem:[%s363 + $0x28] sm:$0xff] %v980
        %1013 = vst [vmem:[%s363 + $0x30] sm:$0xff] %v981
        %1014 = vst [vmem:[%s363 + $0x38] sm:$0xff] %v982
        %1015 = vst [vmem:[%s363 + $0x40] sm:$0xff] %v983
        %1016 = vst [vmem:[%s363 + $0x48] sm:$0xff] %v984
        %1017 = vst [vmem:[%s363 + $0x50] sm:$0xff] %v985
        %1018 = vst [vmem:[%s363 + $0x58] sm:$0xff] %v986
        %1019 = vst [vmem:[%s363 + $0x60] sm:$0xff] %v987
        %1020 = vst [vmem:[%s363 + $0x68] sm:$0xff] %v988
        %1021 = vst [vmem:[%s363 + $0x70] sm:$0xff] %v989
        %1022 = vst [vmem:[%s363 + $0x78] sm:$0xff] %v990
        %1023 = vst [vmem:[%s363 + $0x80] sm:$0xff] %v991
        %1024 = vst [vmem:[%s363 + $0x88] sm:$0xff] %v992
        %1025 = vst [vmem:[%s363 + $0x90] sm:$0xff] %v993
        %1026 = vst [vmem:[%s363 + $0x98] sm:$0xff] %v994
        %1027 = vst [vmem:[%s363 + $0xa0] sm:$0xff] %v995
        %1028 = vst [vmem:[%s363 + $0xa8] sm:$0xff] %v996
        %1029 = vst [vmem:[%s363 + $0xb0] sm:$0xff] %v997
        %1030 = vst [vmem:[%s363 + $0xb8] sm:$0xff] %v998
        %1031 = vst [vmem:[%s363 + $0xc0] sm:$0xff] %v999
        %1032 = vst [vmem:[%s363 + $0xc8] sm:$0xff] %v1000
        %1033 = vst [vmem:[%s363 + $0xd0] sm:$0xff] %v1001
        %1034 = vst [vmem:[%s363 + $0xd8] sm:$0xff] %v1002
        %1035 = vst [vmem:[%s363 + $0xe0] sm:$0xff] %v1003
        %1036 = vst [vmem:[%s363 + $0xe8] sm:$0xff] %v1004
        %1037 = vst [vmem:[%s363 + $0xf0] sm:$0xff] %v1005
        %1038 = vst [vmem:[%s363 + $0xf8] sm:$0xff] %v1006
        %v1039 = vadd.f32 %v975, %v976
        %v1040 = vadd.f32 %v1039, %v977
        %v1041 = vadd.f32 %v1040, %v978
        %v1042 = vadd.f32 %v1041, %v979
        %v1043 = vadd.f32 %v1042, %v980
        %v1044 = vadd.f32 %v1043, %v981
        %v1045 = vadd.f32 %v1044, %v982
        %v1046 = vadd.f32 %v1045, %v983
        %v1047 = vadd.f32 %v1046, %v984
        %v1048 = vadd.f32 %v1047, %v985
        %v1049 = vadd.f32 %v1048, %v986
        %v1050 = vadd.f32 %v1049, %v987
        %v1051 = vadd.f32 %v1050, %v988
        %v1052 = vadd.f32 %v1051, %v989
        %v1053 = vadd.f32 %v1052, %v990
        %v1054 = vadd.f32 %v1053, %v991
        %v1055 = vadd.f32 %v1054, %v992
        %v1056 = vadd.f32 %v1055, %v993
        %v1057 = vadd.f32 %v1056, %v994
        %v1058 = vadd.f32 %v1057, %v995
        %v1059 = vadd.f32 %v1058, %v996
        %v1060 = vadd.f32 %v1059, %v997
        %v1061 = vadd.f32 %v1060, %v998
        %v1062 = vadd.f32 %v1061, %v999
        %v1063 = vadd.f32 %v1062, %v1000
        %v1064 = vadd.f32 %v1063, %v1001
        %v1065 = vadd.f32 %v1064, %v1002
        %v1066 = vadd.f32 %v1065, %v1003
        %v1067 = vadd.f32 %v1066, %v1004
        %v1068 = vadd.f32 %v1067, %v1005
        %v1069 = vadd.f32 %v1068, %v1006
        %v1070 = vrot.slane %v1069, 4
        %v1071 = vadd.f32 %v1069, %v1070
        %v1072 = vrot.slane %v1071, 2
        %v1073 = vadd.f32 %v1071, %v1072
        %v1074 = vrot.slane %v1073, 1
        %v1075 = vadd.f32 %v1073, %v1074
        %1076 = vst [vmem:[%s326] sm:$0x1] %v1075
        %s1077 = smul.u32 4, %s25
        %s1078 = smul.u32 8, %s26
        %p1079 = scmp.lt.s32.totalorder %s1077, 7
        %s1080 = scalar_select %p1079, %s1077, 7
        %p1081 = scmp.lt.s32.totalorder %s1078, 7
        %s1082 = scalar_select %p1081, %s1078, 7
        %s1083 = smul.addr %s1080, 8
        %s1084 = sadd.s32 %s1082, %s1083
        %s1085 = smul.addr %s1084, 8
        %s1086 = scalar_lea.vmem %s5, %s1085
        %s1087 = sand.u32 %s195, 1
        %s1088 = scalar_lea.sflag [#allocation3], %s1087
        %s1089 = sand.u32 %s195, 1
        %s1090 = scalar_lea.vmem [#allocation2], %s1089
        // Predicated region
        $region41: #{decoder_block_forward.7} parent=39 // pred_check
          %p1091 = pneg %p177
        $region42: #{decoder_block_forward.7} parent=39 // pred_check_branch
          %1093 = sbr.rel (%p1091) target = $region44
        $region43: #{decoder_block_forward.7} parent=39 // pred_region
          %s1094 = smul.u32 4, %s25
          %s1095 = smul.u32 8, %s26
        $region44: #{decoder_block_forward.7} parent=39 // pred_fallthru
          _
        // Predicated region
        $region45: #{decoder_block_forward.7} parent=39 // pred_check
          %p1096 = pneg %p205
        $region46: #{decoder_block_forward.7} parent=39 // pred_check_branch
          %1098 = sbr.rel (%p1096) target = $region48
        $region47: #{decoder_block_forward.7} parent=39 // pred_region
          %s1099 = sadd.s32 %s25, %s26
          %s1101 = ssub.s32 16, 16
          %1102 = vsyncadd %s1088, %s1101
          %s1103 = smul.addr %s1099, 16
          %s1104 = scalar_lea.hbm %s6, %s1103
          %s1106 = sshll.u32 %s1090, 4
          %s1107 = int_to_ptr.vmem [resolvable:$true] %s1106
          %1109 = dma.vmem_to_hbm [thread:$0]  %s1107, 16, %s1104, %s1088
        $region48: #{decoder_block_forward.7} parent=39 // pred_fallthru
          _
      $region40: #{decoder_block_forward.7} parent=5 // pred_fallthru
        _
      %p1110 = scmp.le.s32.totalorder 2, %s16
      // Predicated region
      $region49: #{decoder_block_forward.7} parent=5 // pred_check
        %p1111 = pneg %p1110
      $region50: #{decoder_block_forward.7} parent=5 // pred_check_branch
        %1113 = sbr.rel (%p1111) target = $region52
      $region51: #{decoder_block_forward.7} parent=5 // pred_region
        %s1114 = ssub.s32 %s16, 2
        // Predicated region
        $region53: #{decoder_block_forward.7} parent=51 // pred_check
          %p1115 = pneg %p183
        $region54: #{decoder_block_forward.7} parent=51 // pred_check_branch
          %1117 = sbr.rel (%p1115) target = $region56
        $region55: #{decoder_block_forward.7} parent=51 // pred_region
          %s1118 = smul.u32 4, %s27
          %s1119 = smul.u32 8, %s28
          %p1120 = scmp.lt.s32.totalorder %s1118, 7
          %s1121 = scalar_select %p1120, %s1118, 7
          %p1122 = scmp.lt.s32.totalorder %s1119, 7
          %s1123 = scalar_select %p1122, %s1119, 7
          %s1124 = smul.addr %s1121, 8
          %s1125 = sadd.s32 %s1123, %s1124
          %s1126 = smul.addr %s1125, 8
          %s1127 = scalar_lea.vmem %s5, %s1126
        $region56: #{decoder_block_forward.7} parent=51 // pred_fallthru
          _
        // Predicated region
        $region57: #{decoder_block_forward.7} parent=51 // pred_check
          %p1128 = pneg %p211
        $region58: #{decoder_block_forward.7} parent=51 // pred_check_branch
          %1130 = sbr.rel (%p1128) target = $region60
        $region59: #{decoder_block_forward.7} parent=51 // pred_region
          %s1131 = sand.u32 %s196, 1
          %s1132 = scalar_lea.sflag [#allocation3], %s1131
          %s1133 = sand.u32 %s196, 1
          %s1134 = scalar_lea.vmem [#allocation2], %s1133
          %1135 = dma.done %s1132, 16
        $region60: #{decoder_block_forward.7} parent=51 // pred_fallthru
          _
      $region52: #{decoder_block_forward.7} parent=5 // pred_fallthru
        _
    $region6: #{decoder_block_forward.7} parent=1 // loop_footer
      %s20 = sadd.s32 1, %s16
    $region7: #{decoder_block_forward.7} parent=1 // loop_footer_branch
      %15 = sbr.rel target = $region3
    $region8: #{decoder_block_forward.7} parent=1 // loop_exit
      _
    %1136 = vsyncpa [#allocation3], 1
    %s1137 = scalar_lea.sflag [#allocation3], 1
    %1138 = vsyncpa %s1137, 1

// kernel: decoder_block_forward.5
$region0: #{decoder_block_forward.5}
  #allocation0 [shape = 'u32[]', space=smem, size = 0x4, offset = 0x4, fixed_abs, tag = 'smem constant byte address 0x4 - core index']
  #allocation1 [shape = 'u32[144,128]{1,0:T(1,128)}', space=vmem, size = 0x12000, scoped, tag = 'internal scratch']
  %s0 = inlined_call_operand.vmem [shape: bf16[2,10,10,128], index: 0, kind: input, shape index: {}]
  %s1 = inlined_call_operand.vmem [shape: bf16[4,512,128], index: 1, kind: input, shape index: {}]
  %s2 = inlined_call_operand.vmem [shape: f32[1,128], index: 2, kind: input, shape index: {}]
  %s3 = inlined_call_operand.vmem [shape: f32[1,128], index: 3, kind: input, shape index: {}]
  %s4 = inlined_call_operand.vmem [shape: bf16[128,128], index: 4, kind: input, shape index: {}]
  %s5 = inlined_call_operand.vmem [shape: f32[1,128], index: 5, kind: input, shape index: {}]
  %s6 = inlined_call_operand.vmem [shape: f32[1,128], index: 6, kind: input, shape index: {}]
  %s7 = inlined_call_operand.vmem [shape: bf16[8,8,8,128], index: 7, kind: output, shape index: {0}]
  %s8 = inlined_call_operand.vmem [shape: f32[2,1,128], index: 8, kind: output, shape index: {1}]
  %9 = xla_tuple %s7, %s8
  %s10 = sld [smem:[#allocation0]]
  $region69: #{decoder_block_forward.5} parent=0
    _
  %s12 = ssub.s32 1, %s10
  %s13 = scalar_select 0, %s12, %s10
  loop: start=0, step=1, limit=4
  $region2: #{decoder_block_forward.5} parent=0 // loop_pre_header
    _
  $region3: #{decoder_block_forward.5} parent=0 // loop_header
    %s15 = sphi 0, %s19
    %p16 = scmp.ge.s32.totalorder %s15, 4
    %s22 = sphi 0, %s34
    %s23 = sphi 0, %s30
    %s24 = sphi 0, %s22
    %s25 = sphi 0, %s23
    %s26 = sphi 0, %s24
    %s27 = sphi 0, %s25
    %s39 = sphi 0, %s41
    %s42 = sphi 0, %s39
    %s43 = sphi 0, %s42
    %s59 = sphi 0, %s43
    %s63 = sphi 0, %s63
    %s65 = sphi 0, %s63
    %s66 = sphi 0, %s65
    %s80 = sphi 0, %s66
    %s84 = sphi 0, %s84
    %s86 = sphi 0, %s84
    %s87 = sphi 0, %s86
    %s101 = sphi 0, %s87
    %s105 = sphi 0, %s105
    %s107 = sphi 0, %s105
    %s108 = sphi 0, %s107
    %s122 = sphi 0, %s108
    %s126 = sphi 0, %s126
    %s128 = sphi 0, %s126
    %s129 = sphi 0, %s128
    %s143 = sphi 0, %s129
    %s147 = sphi 0, %s147
    %s149 = sphi 0, %s147
    %s150 = sphi 0, %s149
    %s164 = sphi 0, %s150
    %s168 = sphi 0, %s168
    %s170 = sphi 0, %s168
    %s171 = sphi 0, %s170
    %s185 = sphi 0, %s171
    %s193 = sphi 0, %s195
    %s196 = sphi 0, %s193
    %s197 = sphi 0, %s196
    %s213 = sphi 0, %s197
    %s221 = sphi 0, %s223
    %s224 = sphi 0, %s221
    %s225 = sphi 0, %s224
    %s241 = sphi 0, %s225
  $region4: #{decoder_block_forward.5} parent=0 // loop_header_branch
    %18 = sbr.rel (%p16) target = $region8
  $region5: #{decoder_block_forward.5} parent=0 // loop_body
    %s20 = ssub.s32 %s15, 1
    %s21 = ssub.s32 %s15, 2
    %s28 = sadd.s32 1, %s23
    %p29 = scmp.ge.s32.totalorder %s28, 1
    %s30 = scalar_select %p29, 0, %s28
    %s31 = sadd.s32 1, %s22
    %s32 = scalar_select %p29, %s31, %s22
    %p33 = scmp.ge.s32.totalorder %s32, 2
    %s34 = scalar_select %p33, 0, %s32
    %s35 = sadd.s32 %s22, %s23
    %s36 = sadd.s32 %s34, %s30
    %s37 = ssub.s32 %s35, %s36
    %p38 = scmp.eq.s32.totalorder %s37, 0
    %s40 = sadd.s32 %s39, 1
    %s41 = scalar_select %p38, %s39, %s40
    %p44 = pneg %p38
    %p45 = scmp.eq.s32.totalorder %s15, 1
    %p46 = por %p44, %p45
    %p47 = scmp.ne.s32.totalorder %s39, %s42
    %p48 = scmp.eq.s32.totalorder %s15, 0
    %p49 = por %p47, %p48
    %p50 = scmp.ne.s32.totalorder %s39, %s42
    %p51 = scmp.eq.s32.totalorder %s20, 1
    %p52 = por %p50, %p51
    %p53 = scmp.ne.s32.totalorder %s42, %s43
    %p54 = scmp.eq.s32.totalorder %s20, 0
    %p55 = por %p53, %p54
    %p56 = scmp.ne.s32.totalorder %s42, %s43
    %p57 = scmp.eq.s32.totalorder %s21, 1
    %p58 = por %p56, %p57
    %p60 = scmp.ne.s32.totalorder %s43, %s59
    %p61 = scmp.eq.s32.totalorder %s21, 0
    %p62 = por %p60, %p61
    %s64 = sadd.s32 %s63, 1
    %p67 = scmp.eq.s32.totalorder %s15, 1
    %p68 = scmp.ne.s32.totalorder %s63, %s65
    %p69 = scmp.eq.s32.totalorder %s15, 0
    %p70 = por %p68, %p69
    %p71 = scmp.ne.s32.totalorder %s63, %s65
    %p72 = scmp.eq.s32.totalorder %s20, 1
    %p73 = por %p71, %p72
    %p74 = scmp.ne.s32.totalorder %s65, %s66
    %p75 = scmp.eq.s32.totalorder %s20, 0
    %p76 = por %p74, %p75
    %p77 = scmp.ne.s32.totalorder %s65, %s66
    %p78 = scmp.eq.s32.totalorder %s21, 1
    %p79 = por %p77, %p78
    %p81 = scmp.ne.s32.totalorder %s66, %s80
    %p82 = scmp.eq.s32.totalorder %s21, 0
    %p83 = por %p81, %p82
    %s85 = sadd.s32 %s84, 1
    %p88 = scmp.eq.s32.totalorder %s15, 1
    %p89 = scmp.ne.s32.totalorder %s84, %s86
    %p90 = scmp.eq.s32.totalorder %s15, 0
    %p91 = por %p89, %p90
    %p92 = scmp.ne.s32.totalorder %s84, %s86
    %p93 = scmp.eq.s32.totalorder %s20, 1
    %p94 = por %p92, %p93
    %p95 = scmp.ne.s32.totalorder %s86, %s87
    %p96 = scmp.eq.s32.totalorder %s20, 0
    %p97 = por %p95, %p96
    %p98 = scmp.ne.s32.totalorder %s86, %s87
    %p99 = scmp.eq.s32.totalorder %s21, 1
    %p100 = por %p98, %p99
    %p102 = scmp.ne.s32.totalorder %s87, %s101
    %p103 = scmp.eq.s32.totalorder %s21, 0
    %p104 = por %p102, %p103
    %s106 = sadd.s32 %s105, 1
    %p109 = scmp.eq.s32.totalorder %s15, 1
    %p110 = scmp.ne.s32.totalorder %s105, %s107
    %p111 = scmp.eq.s32.totalorder %s15, 0
    %p112 = por %p110, %p111
    %p113 = scmp.ne.s32.totalorder %s105, %s107
    %p114 = scmp.eq.s32.totalorder %s20, 1
    %p115 = por %p113, %p114
    %p116 = scmp.ne.s32.totalorder %s107, %s108
    %p117 = scmp.eq.s32.totalorder %s20, 0
    %p118 = por %p116, %p117
    %p119 = scmp.ne.s32.totalorder %s107, %s108
    %p120 = scmp.eq.s32.totalorder %s21, 1
    %p121 = por %p119, %p120
    %p123 = scmp.ne.s32.totalorder %s108, %s122
    %p124 = scmp.eq.s32.totalorder %s21, 0
    %p125 = por %p123, %p124
    %s127 = sadd.s32 %s126, 1
    %p130 = scmp.eq.s32.totalorder %s15, 1
    %p131 = scmp.ne.s32.totalorder %s126, %s128
    %p132 = scmp.eq.s32.totalorder %s15, 0
    %p133 = por %p131, %p132
    %p134 = scmp.ne.s32.totalorder %s126, %s128
    %p135 = scmp.eq.s32.totalorder %s20, 1
    %p136 = por %p134, %p135
    %p137 = scmp.ne.s32.totalorder %s128, %s129
    %p138 = scmp.eq.s32.totalorder %s20, 0
    %p139 = por %p137, %p138
    %p140 = scmp.ne.s32.totalorder %s128, %s129
    %p141 = scmp.eq.s32.totalorder %s21, 1
    %p142 = por %p140, %p141
    %p144 = scmp.ne.s32.totalorder %s129, %s143
    %p145 = scmp.eq.s32.totalorder %s21, 0
    %p146 = por %p144, %p145
    %s148 = sadd.s32 %s147, 1
    %p151 = scmp.eq.s32.totalorder %s15, 1
    %p152 = scmp.ne.s32.totalorder %s147, %s149
    %p153 = scmp.eq.s32.totalorder %s15, 0
    %p154 = por %p152, %p153
    %p155 = scmp.ne.s32.totalorder %s147, %s149
    %p156 = scmp.eq.s32.totalorder %s20, 1
    %p157 = por %p155, %p156
    %p158 = scmp.ne.s32.totalorder %s149, %s150
    %p159 = scmp.eq.s32.totalorder %s20, 0
    %p160 = por %p158, %p159
    %p161 = scmp.ne.s32.totalorder %s149, %s150
    %p162 = scmp.eq.s32.totalorder %s21, 1
    %p163 = por %p161, %p162
    %p165 = scmp.ne.s32.totalorder %s150, %s164
    %p166 = scmp.eq.s32.totalorder %s21, 0
    %p167 = por %p165, %p166
    %s169 = sadd.s32 %s168, 1
    %p172 = scmp.eq.s32.totalorder %s15, 1
    %p173 = scmp.ne.s32.totalorder %s168, %s170
    %p174 = scmp.eq.s32.totalorder %s15, 0
    %p175 = por %p173, %p174
    %p176 = scmp.ne.s32.totalorder %s168, %s170
    %p177 = scmp.eq.s32.totalorder %s20, 1
    %p178 = por %p176, %p177
    %p179 = scmp.ne.s32.totalorder %s170, %s171
    %p180 = scmp.eq.s32.totalorder %s20, 0
    %p181 = por %p179, %p180
    %p182 = scmp.ne.s32.totalorder %s170, %s171
    %p183 = scmp.eq.s32.totalorder %s21, 1
    %p184 = por %p182, %p183
    %p186 = scmp.ne.s32.totalorder %s171, %s185
    %p187 = scmp.eq.s32.totalorder %s21, 0
    %p188 = por %p186, %p187
    %s189 = ssub.s32 %s22, %s34
    %s190 = ssub.s32 %s23, %s30
    %s191 = sor.u32 %s189, %s190
    %p192 = scmp.eq.s32.totalorder %s191, 0
    %s194 = sadd.s32 %s193, 1
    %s195 = scalar_select %p192, %s193, %s194
    %p198 = pneg %p192
    %p199 = scmp.eq.s32.totalorder %s15, 1
    %p200 = por %p198, %p199
    %p201 = scmp.ne.s32.totalorder %s193, %s196
    %p202 = scmp.eq.s32.totalorder %s15, 0
    %p203 = por %p201, %p202
    %p204 = scmp.ne.s32.totalorder %s193, %s196
    %p205 = scmp.eq.s32.totalorder %s20, 1
    %p206 = por %p204, %p205
    %p207 = scmp.ne.s32.totalorder %s196, %s197
    %p208 = scmp.eq.s32.totalorder %s20, 0
    %p209 = por %p207, %p208
    %p210 = scmp.ne.s32.totalorder %s196, %s197
    %p211 = scmp.eq.s32.totalorder %s21, 1
    %p212 = por %p210, %p211
    %p214 = scmp.ne.s32.totalorder %s197, %s213
    %p215 = scmp.eq.s32.totalorder %s21, 0
    %p216 = por %p214, %p215
    %s217 = sadd.s32 %s22, %s23
    %s218 = sadd.s32 %s34, %s30
    %s219 = ssub.s32 %s217, %s218
    %p220 = scmp.eq.s32.totalorder %s219, 0
    %s222 = sadd.s32 %s221, 1
    %s223 = scalar_select %p220, %s221, %s222
    %p226 = pneg %p220
    %p227 = scmp.eq.s32.totalorder %s15, 1
    %p228 = por %p226, %p227
    %p229 = scmp.ne.s32.totalorder %s221, %s224
    %p230 = scmp.eq.s32.totalorder %s15, 0
    %p231 = por %p229, %p230
    %p232 = scmp.ne.s32.totalorder %s221, %s224
    %p233 = scmp.eq.s32.totalorder %s20, 1
    %p234 = por %p232, %p233
    %p235 = scmp.ne.s32.totalorder %s224, %s225
    %p236 = scmp.eq.s32.totalorder %s20, 0
    %p237 = por %p235, %p236
    %p238 = scmp.ne.s32.totalorder %s224, %s225
    %p239 = scmp.eq.s32.totalorder %s21, 1
    %p240 = por %p238, %p239
    %p242 = scmp.ne.s32.totalorder %s225, %s241
    %p243 = scmp.eq.s32.totalorder %s21, 0
    %p244 = por %p242, %p243
    %p245 = scmp.le.s32.totalorder 1, %s15
    %p246 = scmp.lt.s32.totalorder %s15, 3
    %p247 = pnand %p245, %p246
    %p248 = pneg %p247
    // Predicated region
    $region9: #{decoder_block_forward.5} parent=5 // pred_check
      _
    $region10: #{decoder_block_forward.5} parent=5 // pred_check_branch
      %250 = sbr.rel (%p247) target = $region12
    $region11: #{decoder_block_forward.5} parent=5 // pred_region
      %s251 = ssub.s32 %s15, 1
      // Predicated region
      $region13: #{decoder_block_forward.5} parent=11 // pred_check
        %p252 = pneg %p76
      $region14: #{decoder_block_forward.5} parent=11 // pred_check_branch
        %254 = sbr.rel (%p252) target = $region16
      $region15: #{decoder_block_forward.5} parent=11 // pred_region
        _
      $region16: #{decoder_block_forward.5} parent=11 // pred_fallthru
        _
      // Predicated region
      $region17: #{decoder_block_forward.5} parent=11 // pred_check
        %p255 = pneg %p97
      $region18: #{decoder_block_forward.5} parent=11 // pred_check_branch
        %257 = sbr.rel (%p255) target = $region20
      $region19: #{decoder_block_forward.5} parent=11 // pred_region
        _
      $region20: #{decoder_block_forward.5} parent=11 // pred_fallthru
        _
      // Predicated region
      $region21: #{decoder_block_forward.5} parent=11 // pred_check
        %p258 = pneg %p118
      $region22: #{decoder_block_forward.5} parent=11 // pred_check_branch
        %260 = sbr.rel (%p258) target = $region24
      $region23: #{decoder_block_forward.5} parent=11 // pred_region
        _
      $region24: #{decoder_block_forward.5} parent=11 // pred_fallthru
        _
      // Predicated region
      $region25: #{decoder_block_forward.5} parent=11 // pred_check
        %p261 = pneg %p139
      $region26: #{decoder_block_forward.5} parent=11 // pred_check_branch
        %263 = sbr.rel (%p261) target = $region28
      $region27: #{decoder_block_forward.5} parent=11 // pred_region
        _
      $region28: #{decoder_block_forward.5} parent=11 // pred_fallthru
        _
      // Predicated region
      $region29: #{decoder_block_forward.5} parent=11 // pred_check
        %p264 = pneg %p160
      $region30: #{decoder_block_forward.5} parent=11 // pred_check_branch
        %266 = sbr.rel (%p264) target = $region32
      $region31: #{decoder_block_forward.5} parent=11 // pred_region
        _
      $region32: #{decoder_block_forward.5} parent=11 // pred_fallthru
        _
      // Predicated region
      $region33: #{decoder_block_forward.5} parent=11 // pred_check
        %p267 = pneg %p181
      $region34: #{decoder_block_forward.5} parent=11 // pred_check_branch
        %269 = sbr.rel (%p267) target = $region36
      $region35: #{decoder_block_forward.5} parent=11 // pred_region
        _
      $region36: #{decoder_block_forward.5} parent=11 // pred_fallthru
        _
    $region12: #{decoder_block_forward.5} parent=5 // pred_fallthru
      _
    %p270 = scmp.lt.s32.totalorder %s15, 2
    // Predicated region
    $region37: #{decoder_block_forward.5} parent=5 // pred_check
      %p271 = pneg %p270
    $region38: #{decoder_block_forward.5} parent=5 // pred_check_branch
      %273 = sbr.rel (%p271) target = $region40
    $region39: #{decoder_block_forward.5} parent=5 // pred_region
      // Predicated region
      $region41: #{decoder_block_forward.5} parent=39 // pred_check
        %p274 = pneg %p49
      $region42: #{decoder_block_forward.5} parent=39 // pred_check_branch
        %276 = sbr.rel (%p274) target = $region44
      $region43: #{decoder_block_forward.5} parent=39 // pred_region
        %s277 = sadd.s32 %s22, %s23
        %p278 = scmp.lt.s32.totalorder %s277, 1
        %s279 = scalar_select %p278, %s277, 1
        %s280 = smul.addr %s279, 20
        %s281 = smul.addr %s280, 4
        %s282 = scalar_lea.vmem %s0, %s281
        %s283 = sadd.s32 %s22, %s23
      $region44: #{decoder_block_forward.5} parent=39 // pred_fallthru
        _
    $region40: #{decoder_block_forward.5} parent=5 // pred_fallthru
      _
    %p284 = scmp.le.s32.totalorder 1, %s15
    %p285 = scmp.lt.s32.totalorder %s15, 3
    %p286 = pnand %p284, %p285
    %p287 = pneg %p286
    // Predicated region
    $region45: #{decoder_block_forward.5} parent=5 // pred_check
      _
    $region46: #{decoder_block_forward.5} parent=5 // pred_check_branch
      %289 = sbr.rel (%p286) target = $region48
    $region47: #{decoder_block_forward.5} parent=5 // pred_region
      %s290 = ssub.s32 %s15, 1
      %s291 = sadd.s32 %s24, %s25
      %p292 = scmp.lt.s32.totalorder %s291, 1
      %s293 = scalar_select %p292, %s291, 1
      %s294 = smul.addr %s293, 20
      %s295 = smul.addr %s294, 4
      %s296 = scalar_lea.vmem %s0, %s295
      %p297 = pneg %p55
      %p298 = pneg %p52
      %p299 = pneg %p76
      %p300 = pneg %p73
      %p301 = pneg %p97
      %p302 = pneg %p94
      %p303 = pneg %p118
      %p304 = pneg %p115
      %p305 = pneg %p139
      %p306 = pneg %p136
      %p307 = pneg %p160
      %p308 = pneg %p157
      %p309 = pneg %p181
      %p310 = pneg %p178
      %p311 = pneg %p209
      %p312 = pneg %p206
      %s313 = smul.u32 4, %s24
      %s314 = smul.u32 8, %s25
      %p315 = scmp.lt.s32.totalorder %s313, 7
      %s316 = scalar_select %p315, %s313, 7
      %p317 = scmp.lt.s32.totalorder %s314, 7
      %s318 = scalar_select %p317, %s314, 7
      %s319 = smul.addr %s316, 8
      %s320 = sadd.s32 %s318, %s319
      %s321 = smul.addr %s320, 4
      %s322 = scalar_lea.vmem %s7, %s321
      %p323 = pneg %p237
      %p324 = pneg %p234
      %s325 = sadd.s32 %s24, %s25
      %p326 = scmp.lt.s32.totalorder %s325, 1
      %s327 = scalar_select %p326, %s325, 1
      %s328 = scalar_lea.vmem %s8, %s327
      %s329 = sadd.s32 %s24, %s25
      %p330 = scmp.lt.s32.totalorder %s329, 1
      %s331 = scalar_select %p330, %s329, 1
      %s332 = smul.addr %s331, 20
      %s333 = smul.addr %s332, 4
      %s334 = scalar_lea.vmem %s0, %s333
      %s335 = sadd.s32 %s24, %s25
      %s336 = smul.u32 4, %s24
      %s337 = smul.u32 8, %s25
      %p338 = scmp.lt.s32.totalorder %s336, 7
      %s339 = scalar_select %p338, %s336, 7
      %p340 = scmp.lt.s32.totalorder %s337, 7
      %s341 = scalar_select %p340, %s337, 7
      %s342 = smul.addr %s339, 8
      %s343 = sadd.s32 %s341, %s342
      %s344 = smul.addr %s343, 4
      %s345 = scalar_lea.vmem %s7, %s344
      %s346 = smul.u32 4, %s24
      %s347 = smul.u32 8, %s25
      %s348 = sadd.s32 %s24, %s25
      %p349 = scmp.lt.s32.totalorder %s348, 1
      %s350 = scalar_select %p349, %s348, 1
      %s351 = scalar_lea.vmem %s8, %s350
      %s352 = sadd.s32 %s24, %s25
      %v354 = vld [vmem:[%s334] sm:$0xf]
      %v355 = vld [vmem:[%s334 + $0x8] sm:$0xf]
      %v356 = vld [vmem:[%s334 + $0x10] sm:$0xf]
      %v357 = vld [vmem:[%s334 + $0x18] sm:$0xf]
      %v358 = vld [vmem:[%s334 + $0x20] sm:$0xf]
      %v359 = vld [vmem:[%s334 + $0x28] sm:$0xf]
      %v360 = vld [vmem:[%s334 + $0x30] sm:$0xf]
      %v361 = vld [vmem:[%s334 + $0x38] sm:$0xf]
      %v362 = vld [vmem:[%s334 + $0x4] sm:$0x1]
      %v363 = vld [vmem:[%s334 + $0xc] sm:$0x1]
      %v364 = vld [vmem:[%s334 + $0x14] sm:$0x1]
      %v365 = vld [vmem:[%s334 + $0x1c] sm:$0x1]
      %v366 = vld [vmem:[%s334 + $0x24] sm:$0x1]
      %v367 = vld [vmem:[%s334 + $0x2c] sm:$0x1]
      %v368 = vld [vmem:[%s334 + $0x34] sm:$0x1]
      %v369 = vld [vmem:[%s334 + $0x3c] sm:$0x1]
      %s370 = scalar_lea.vmem %s334, 8
      %v371 = vld [vmem:[%s370] sm:$0xf]
      %v372 = vld [vmem:[%s370 + $0x8] sm:$0xf]
      %v373 = vld [vmem:[%s370 + $0x10] sm:$0xf]
      %v374 = vld [vmem:[%s370 + $0x18] sm:$0xf]
      %v375 = vld [vmem:[%s370 + $0x20] sm:$0xf]
      %v376 = vld [vmem:[%s370 + $0x28] sm:$0xf]
      %v377 = vld [vmem:[%s370 + $0x30] sm:$0xf]
      %v378 = vld [vmem:[%s370 + $0x38] sm:$0xf]
      %v379 = vld [vmem:[%s370 + $0x4] sm:$0x1]
      %v380 = vld [vmem:[%s370 + $0xc] sm:$0x1]
      %v381 = vld [vmem:[%s370 + $0x14] sm:$0x1]
      %v382 = vld [vmem:[%s370 + $0x1c] sm:$0x1]
      %v383 = vld [vmem:[%s370 + $0x24] sm:$0x1]
      %v384 = vld [vmem:[%s370 + $0x2c] sm:$0x1]
      %v385 = vld [vmem:[%s370 + $0x34] sm:$0x1]
      %v386 = vld [vmem:[%s370 + $0x3c] sm:$0x1]
      %v403 = vunpack.c.l.b16 %v354
      %v404 = vunpack.c.l.b16 %v362
      %v405 = vunpack.c.l.b16 %v355
      %v406 = vunpack.c.l.b16 %v363
      %v407 = vunpack.c.l.b16 %v356
      %v408 = vunpack.c.l.b16 %v364
      %v409 = vunpack.c.l.b16 %v357
      %v410 = vunpack.c.l.b16 %v365
      %v411 = vunpack.c.l.b16 %v358
      %v412 = vunpack.c.l.b16 %v366
      %v413 = vunpack.c.l.b16 %v359
      %v414 = vunpack.c.l.b16 %v367
      %v415 = vunpack.c.l.b16 %v360
      %v416 = vunpack.c.l.b16 %v368
      %v417 = vunpack.c.l.b16 %v361
      %v418 = vunpack.c.l.b16 %v369
      %v419 = vpack.c.b16 %v404, %v403
      %v420 = vpack.c.b16 %v406, %v405
      %v421 = vpack.c.b16 %v408, %v407
      %v422 = vpack.c.b16 %v410, %v409
      %v423 = vpack.c.b16 %v412, %v411
      %v424 = vpack.c.b16 %v414, %v413
      %v425 = vpack.c.b16 %v416, %v415
      %v426 = vpack.c.b16 %v418, %v417
      %v428 = vshrl.u32 %v419, 16
      %v430 = vshll.u32 %v419, 16
      %v432 = vrot.slane %v430, 1
      %v433 = vor.u32 %v428, %v432
      %v435 = vshrl.u32 %v420, 16
      %v437 = vshll.u32 %v420, 16
      %v439 = vrot.slane %v437, 1
      %v440 = vor.u32 %v435, %v439
      %v442 = vshrl.u32 %v421, 16
      %v444 = vshll.u32 %v421, 16
      %v446 = vrot.slane %v444, 1
      %v447 = vor.u32 %v442, %v446
      %v449 = vshrl.u32 %v422, 16
      %v451 = vshll.u32 %v422, 16
      %v453 = vrot.slane %v451, 1
      %v454 = vor.u32 %v449, %v453
      %v456 = vshrl.u32 %v423, 16
      %v458 = vshll.u32 %v423, 16
      %v460 = vrot.slane %v458, 1
      %v461 = vor.u32 %v456, %v460
      %v463 = vshrl.u32 %v424, 16
      %v465 = vshll.u32 %v424, 16
      %v467 = vrot.slane %v465, 1
      %v468 = vor.u32 %v463, %v467
      %v470 = vshrl.u32 %v425, 16
      %v472 = vshll.u32 %v425, 16
      %v474 = vrot.slane %v472, 1
      %v475 = vor.u32 %v470, %v474
      %v477 = vshrl.u32 %v426, 16
      %v479 = vshll.u32 %v426, 16
      %v481 = vrot.slane %v479, 1
      %v482 = vor.u32 %v477, %v481
      %v499 = vunpack.c.l.b16 %v371
      %v500 = vunpack.c.l.b16 %v379
      %v501 = vunpack.c.l.b16 %v372
      %v502 = vunpack.c.l.b16 %v380
      %v503 = vunpack.c.l.b16 %v373
      %v504 = vunpack.c.l.b16 %v381
      %v505 = vunpack.c.l.b16 %v374
      %v506 = vunpack.c.l.b16 %v382
      %v507 = vunpack.c.l.b16 %v375
      %v508 = vunpack.c.l.b16 %v383
      %v509 = vunpack.c.l.b16 %v376
      %v510 = vunpack.c.l.b16 %v384
      %v511 = vunpack.c.l.b16 %v377
      %v512 = vunpack.c.l.b16 %v385
      %v513 = vunpack.c.l.b16 %v378
      %v514 = vunpack.c.l.b16 %v386
      %v515 = vpack.c.b16 %v500, %v499
      %v516 = vpack.c.b16 %v502, %v501
      %v517 = vpack.c.b16 %v504, %v503
      %v518 = vpack.c.b16 %v506, %v505
      %v519 = vpack.c.b16 %v508, %v507
      %v520 = vpack.c.b16 %v510, %v509
      %v521 = vpack.c.b16 %v512, %v511
      %v522 = vpack.c.b16 %v514, %v513
      %v524 = vshrl.u32 %v515, 16
      %v526 = vshll.u32 %v515, 16
      %v528 = vrot.slane %v526, 1
      %v529 = vor.u32 %v524, %v528
      %v531 = vshrl.u32 %v516, 16
      %v533 = vshll.u32 %v516, 16
      %v535 = vrot.slane %v533, 1
      %v536 = vor.u32 %v531, %v535
      %v538 = vshrl.u32 %v517, 16
      %v540 = vshll.u32 %v517, 16
      %v542 = vrot.slane %v540, 1
      %v543 = vor.u32 %v538, %v542
      %v545 = vshrl.u32 %v518, 16
      %v547 = vshll.u32 %v518, 16
      %v549 = vrot.slane %v547, 1
      %v550 = vor.u32 %v545, %v549
      %v552 = vshrl.u32 %v519, 16
      %v554 = vshll.u32 %v519, 16
      %v556 = vrot.slane %v554, 1
      %v557 = vor.u32 %v552, %v556
      %v559 = vshrl.u32 %v520, 16
      %v561 = vshll.u32 %v520, 16
      %v563 = vrot.slane %v561, 1
      %v564 = vor.u32 %v559, %v563
      %v566 = vshrl.u32 %v521, 16
      %v568 = vshll.u32 %v521, 16
      %v570 = vrot.slane %v568, 1
      %v571 = vor.u32 %v566, %v570
      %v573 = vshrl.u32 %v522, 16
      %v575 = vshll.u32 %v522, 16
      %v577 = vrot.slane %v575, 1
      %v578 = vor.u32 %v573, %v577
      %v579 = vunpack.c.l.b16 %v433
      %v580 = vunpack.c.l.b16 %v529
      %v581 = vunpack.c.l.b16 %v440
      %v582 = vunpack.c.l.b16 %v536
      %v583 = vunpack.c.l.b16 %v447
      %v584 = vunpack.c.l.b16 %v543
      %v585 = vunpack.c.l.b16 %v454
      %v586 = vunpack.c.l.b16 %v550
      %v587 = vunpack.c.l.b16 %v461
      %v588 = vunpack.c.l.b16 %v557
      %v589 = vunpack.c.l.b16 %v468
      %v590 = vunpack.c.l.b16 %v564
      %v591 = vunpack.c.l.b16 %v475
      %v592 = vunpack.c.l.b16 %v571
      %v593 = vunpack.c.l.b16 %v482
      %v594 = vunpack.c.l.b16 %v578
      %v595 = vld [vmem:[%s1] sm:$0xf]
      %v596 = vld [vmem:[%s1 + $0x4] sm:$0xf]
      %v597 = vld [vmem:[%s1 + $0x8] sm:$0xf]
      %v598 = vld [vmem:[%s1 + $0xc] sm:$0xf]
      %v599 = vld [vmem:[%s1 + $0x10] sm:$0xf]
      %v600 = vld [vmem:[%s1 + $0x14] sm:$0xf]
      %v601 = vld [vmem:[%s1 + $0x18] sm:$0xf]
      %v602 = vld [vmem:[%s1 + $0x1c] sm:$0xf]
      %v603 = vld [vmem:[%s1 + $0x20] sm:$0xf]
      %v604 = vld [vmem:[%s1 + $0x24] sm:$0xf]
      %v605 = vld [vmem:[%s1 + $0x28] sm:$0xf]
      %v606 = vld [vmem:[%s1 + $0x2c] sm:$0xf]
      %v607 = vld [vmem:[%s1 + $0x30] sm:$0xf]
      %v608 = vld [vmem:[%s1 + $0x34] sm:$0xf]
      %v609 = vld [vmem:[%s1 + $0x38] sm:$0xf]
      %v610 = vld [vmem:[%s1 + $0x3c] sm:$0xf]
      %v611 = vld [vmem:[%s1 + $0x40] sm:$0xf]
      %v612 = vld [vmem:[%s1 + $0x44] sm:$0xf]
      %v613 = vld [vmem:[%s1 + $0x48] sm:$0xf]
      %v614 = vld [vmem:[%s1 + $0x4c] sm:$0xf]
      %v615 = vld [vmem:[%s1 + $0x50] sm:$0xf]
      %v616 = vld [vmem:[%s1 + $0x54] sm:$0xf]
      %v617 = vld [vmem:[%s1 + $0x58] sm:$0xf]
      %v618 = vld [vmem:[%s1 + $0x5c] sm:$0xf]
      %v619 = vld [vmem:[%s1 + $0x60] sm:$0xf]
      %v620 = vld [vmem:[%s1 + $0x64] sm:$0xf]
      %v621 = vld [vmem:[%s1 + $0x68] sm:$0xf]
      %v622 = vld [vmem:[%s1 + $0x6c] sm:$0xf]
      %v623 = vld [vmem:[%s1 + $0x70] sm:$0xf]
      %v624 = vld [vmem:[%s1 + $0x74] sm:$0xf]
      %v625 = vld [vmem:[%s1 + $0x78] sm:$0xf]
      %v626 = vld [vmem:[%s1 + $0x7c] sm:$0xf]
      %v627 = vld [vmem:[%s1 + $0x80] sm:$0xf]
      %v628 = vld [vmem:[%s1 + $0x84] sm:$0xf]
      %v629 = vld [vmem:[%s1 + $0x88] sm:$0xf]
      %v630 = vld [vmem:[%s1 + $0x8c] sm:$0xf]
      %v631 = vld [vmem:[%s1 + $0x90] sm:$0xf]
      %v632 = vld [vmem:[%s1 + $0x94] sm:$0xf]
      %v633 = vld [vmem:[%s1 + $0x98] sm:$0xf]
      %v634 = vld [vmem:[%s1 + $0x9c] sm:$0xf]
      %v635 = vld [vmem:[%s1 + $0xa0] sm:$0xf]
      %v636 = vld [vmem:[%s1 + $0xa4] sm:$0xf]
      %v637 = vld [vmem:[%s1 + $0xa8] sm:$0xf]
      %v638 = vld [vmem:[%s1 + $0xac] sm:$0xf]
      %v639 = vld [vmem:[%s1 + $0xb0] sm:$0xf]
      %v640 = vld [vmem:[%s1 + $0xb4] sm:$0xf]
      %v641 = vld [vmem:[%s1 + $0xb8] sm:$0xf]
      %v642 = vld [vmem:[%s1 + $0xbc] sm:$0xf]
      %v643 = vld [vmem:[%s1 + $0xc0] sm:$0xf]
      %v644 = vld [vmem:[%s1 + $0xc4] sm:$0xf]
      %v645 = vld [vmem:[%s1 + $0xc8] sm:$0xf]
      %v646 = vld [vmem:[%s1 + $0xcc] sm:$0xf]
      %v647 = vld [vmem:[%s1 + $0xd0] sm:$0xf]
      %v648 = vld [vmem:[%s1 + $0xd4] sm:$0xf]
      %v649 = vld [vmem:[%s1 + $0xd8] sm:$0xf]
      %v650 = vld [vmem:[%s1 + $0xdc] sm:$0xf]
      %v651 = vld [vmem:[%s1 + $0xe0] sm:$0xf]
      %v652 = vld [vmem:[%s1 + $0xe4] sm:$0xf]
      %v653 = vld [vmem:[%s1 + $0xe8] sm:$0xf]
      %v654 = vld [vmem:[%s1 + $0xec] sm:$0xf]
      %v655 = vld [vmem:[%s1 + $0xf0] sm:$0xf]
      %v656 = vld [vmem:[%s1 + $0xf4] sm:$0xf]
      %v657 = vld [vmem:[%s1 + $0xf8] sm:$0xf]
      %v658 = vld [vmem:[%s1 + $0xfc] sm:$0xf]
      %v659 = vpack.c.b16 %v405, %v403
      %v660 = vpack.c.b16 %v581, %v579
      %v661 = vpack.c.b16 %v501, %v499
      %v662 = vpack.c.b16 %v582, %v580
      %v663 = vpack.c.b16 %v409, %v407
      %v664 = vpack.c.b16 %v585, %v583
      %v665 = vpack.c.b16 %v505, %v503
      %v666 = vpack.c.b16 %v586, %v584
      %v667 = vpack.c.b16 %v413, %v411
      %v668 = vpack.c.b16 %v589, %v587
      %v669 = vpack.c.b16 %v509, %v507
      %v670 = vpack.c.b16 %v590, %v588
      %v671 = vpack.c.b16 %v417, %v415
      %v672 = vpack.c.b16 %v593, %v591
      %v673 = vpack.c.b16 %v513, %v511
      %v674 = vpack.c.b16 %v594, %v592
      %v755 = vunpack.c.l.b16 %v595
      %v756 = vunpack.c.l.b16 %v596
      %v757 = vunpack.c.l.b16 %v597
      %v758 = vunpack.c.l.b16 %v598
      %v759 = vunpack.c.l.b16 %v599
      %v760 = vunpack.c.l.b16 %v600
      %v761 = vunpack.c.l.b16 %v601
      %v762 = vunpack.c.l.b16 %v602
      %v763 = vunpack.c.l.b16 %v603
      %v764 = vunpack.c.l.b16 %v604
      %v765 = vunpack.c.l.b16 %v605
      %v766 = vunpack.c.l.b16 %v606
      %v767 = vunpack.c.l.b16 %v607
      %v768 = vunpack.c.l.b16 %v608
      %v769 = vunpack.c.l.b16 %v609
      %v770 = vunpack.c.l.b16 %v610
      %v771 = vunpack.c.l.b16 %v611
      %v772 = vunpack.c.l.b16 %v612
      %v773 = vunpack.c.l.b16 %v613
      %v774 = vunpack.c.l.b16 %v614
      %v775 = vunpack.c.l.b16 %v615
      %v776 = vunpack.c.l.b16 %v616
      %v777 = vunpack.c.l.b16 %v617
      %v778 = vunpack.c.l.b16 %v618
      %v779 = vunpack.c.l.b16 %v619
      %v780 = vunpack.c.l.b16 %v620
      %v781 = vunpack.c.l.b16 %v621
      %v782 = vunpack.c.l.b16 %v622
      %v783 = vunpack.c.l.b16 %v623
      %v784 = vunpack.c.l.b16 %v624
      %v785 = vunpack.c.l.b16 %v625
      %v786 = vunpack.c.l.b16 %v626
      %v787 = vunpack.c.l.b16 %v627
      %v788 = vunpack.c.l.b16 %v628
      %v789 = vunpack.c.l.b16 %v629
      %v790 = vunpack.c.l.b16 %v630
      %v791 = vunpack.c.l.b16 %v631
      %v792 = vunpack.c.l.b16 %v632
      %v793 = vunpack.c.l.b16 %v633
      %v794 = vunpack.c.l.b16 %v634
      %v795 = vunpack.c.l.b16 %v635
      %v796 = vunpack.c.l.b16 %v636
      %v797 = vunpack.c.l.b16 %v637
      %v798 = vunpack.c.l.b16 %v638
      %v799 = vunpack.c.l.b16 %v639
      %v800 = vunpack.c.l.b16 %v640
      %v801 = vunpack.c.l.b16 %v641
      %v802 = vunpack.c.l.b16 %v642
      %v803 = vunpack.c.l.b16 %v643
      %v804 = vunpack.c.l.b16 %v644
      %v805 = vunpack.c.l.b16 %v645
      %v806 = vunpack.c.l.b16 %v646
      %v807 = vunpack.c.l.b16 %v647
      %v808 = vunpack.c.l.b16 %v648
      %v809 = vunpack.c.l.b16 %v649
      %v810 = vunpack.c.l.b16 %v650
      %v811 = vunpack.c.l.b16 %v651
      %v812 = vunpack.c.l.b16 %v652
      %v813 = vunpack.c.l.b16 %v653
      %v814 = vunpack.c.l.b16 %v654
      %v815 = vunpack.c.l.b16 %v655
      %v816 = vunpack.c.l.b16 %v656
      %v817 = vunpack.c.l.b16 %v657
      %v818 = vunpack.c.l.b16 %v658
      %v819 = vpack.c.b16 %v756, %v755
      %v820 = vpack.c.b16 %v758, %v757
      %v821 = vpack.c.b16 %v760, %v759
      %v822 = vpack.c.b16 %v762, %v761
      %v823 = vpack.c.b16 %v764, %v763
      %v824 = vpack.c.b16 %v766, %v765
      %v825 = vpack.c.b16 %v768, %v767
      %v826 = vpack.c.b16 %v770, %v769
      %v827 = vpack.c.b16 %v772, %v771
      %v828 = vpack.c.b16 %v774, %v773
      %v829 = vpack.c.b16 %v776, %v775
      %v830 = vpack.c.b16 %v778, %v777
      %v831 = vpack.c.b16 %v780, %v779
      %v832 = vpack.c.b16 %v782, %v781
      %v833 = vpack.c.b16 %v784, %v783
      %v834 = vpack.c.b16 %v786, %v785
      %v835 = vpack.c.b16 %v788, %v787
      %v836 = vpack.c.b16 %v790, %v789
      %v837 = vpack.c.b16 %v792, %v791
      %v838 = vpack.c.b16 %v794, %v793
      %v839 = vpack.c.b16 %v796, %v795
      %v840 = vpack.c.b16 %v798, %v797
      %v841 = vpack.c.b16 %v800, %v799
      %v842 = vpack.c.b16 %v802, %v801
      %v843 = vpack.c.b16 %v804, %v803
      %v844 = vpack.c.b16 %v806, %v805
      %v845 = vpack.c.b16 %v808, %v807
      %v846 = vpack.c.b16 %v810, %v809
      %v847 = vpack.c.b16 %v812, %v811
      %v848 = vpack.c.b16 %v814, %v813
      %v849 = vpack.c.b16 %v816, %v815
      %v850 = vpack.c.b16 %v818, %v817
      %883 = vmatprep.subr.bf16.mxu0 0
      %884 = vmatpush1.bf16.msra.mxu0 %v819
      %885 = vmatprep.subr.bf16.mxu0 0
      %886 = vmatpush1.bf16.msra.mxu0 %v820
      %887 = vmatprep.subr.bf16.mxu0 0
      %888 = vmatpush1.bf16.msra.mxu0 %v821
      %889 = vmatprep.subr.bf16.mxu0 0
      %890 = vmatpush1.bf16.msra.mxu0 %v822
      %891 = vmatprep.subr.bf16.mxu0 0
      %892 = vmatpush1.bf16.msra.mxu0 %v823
      %893 = vmatprep.subr.bf16.mxu0 0
      %894 = vmatpush1.bf16.msra.mxu0 %v824
      %895 = vmatprep.subr.bf16.mxu0 0
      %896 = vmatpush1.bf16.msra.mxu0 %v825
      %897 = vmatprep.subr.bf16.mxu0 0
      %898 = vmatpush1.bf16.msra.mxu0 %v826
      %899 = vmatprep.subr.bf16.mxu0 0
      %900 = vmatpush1.bf16.msra.mxu0 %v827
      %901 = vmatprep.subr.bf16.mxu0 0
      %902 = vmatpush1.bf16.msra.mxu0 %v828
      %903 = vmatprep.subr.bf16.mxu0 0
      %904 = vmatpush1.bf16.msra.mxu0 %v829
      %905 = vmatprep.subr.bf16.mxu0 0
      %906 = vmatpush1.bf16.msra.mxu0 %v830
      %907 = vmatprep.subr.bf16.mxu0 0
      %908 = vmatpush1.bf16.msra.mxu0 %v831
      %909 = vmatprep.subr.bf16.mxu0 0
      %910 = vmatpush1.bf16.msra.mxu0 %v832
      %911 = vmatprep.subr.bf16.mxu0 0
      %912 = vmatpush1.bf16.msra.mxu0 %v833
      %913 = vmatprep.subr.bf16.mxu0 0
      %914 = vmatpush1.bf16.msra.mxu0 %v834
      %915 = vmatprep.mubr.bf16.mxu0 %v660
      %916 = vmatmul.mubr.bf16.gmra.mrb[0].mxu0 %v659
      %v917 = vpop.f32.mrb[0].mxu0
      %v918 = vadd.f32 0.0, %v917
      %v919 = vpop.f32.mrb[0].mxu0
      %v920 = vpop.f32.mrb[0].mxu0
      %v921 = vadd.f32 0.0, %v920
      %v922 = vpop.f32.mrb[0].mxu0
      %923 = vmatprep.mubr.bf16.mxu0 %v664
      %924 = vmatmul.mubr.bf16.gmra.mrb[0].mxu0 %v663
      %v925 = vpop.f32.mrb[0].mxu0
      %v926 = vadd.f32 0.0, %v925
      %v927 = vpop.f32.mrb[0].mxu0
      %v928 = vpop.f32.mrb[0].mxu0
      %v929 = vadd.f32 0.0, %v928
      %v930 = vpop.f32.mrb[0].mxu0
      %931 = vmatprep.mubr.bf16.mxu0 %v668
      %932 = vmatmul.mubr.bf16.gmra.mrb[0].mxu0 %v667
      %v933 = vpop.f32.mrb[0].mxu0
      %v934 = vadd.f32 0.0, %v933
      %v935 = vpop.f32.mrb[0].mxu0
      %v936 = vpop.f32.mrb[0].mxu0
      %v937 = vadd.f32 0.0, %v936
      %v938 = vpop.f32.mrb[0].mxu0
      %939 = vmatprep.mubr.bf16.mxu0 %v672
      %940 = vmatmul.mubr.bf16.gmra.mrb[0].mxu0 %v671
      %v941 = vpop.f32.mrb[0].mxu0
      %v942 = vadd.f32 0.0, %v941
      %v943 = vpop.f32.mrb[0].mxu0
      %v944 = vpop.f32.mrb[0].mxu0
      %v945 = vadd.f32 0.0, %v944
      %v946 = vpop.f32.mrb[0].mxu0
      %947 = vdwg.mxu0
      %948 = vmatprep.subr.bf16.mxu0 0
      %949 = vmatpush1.bf16.msra.mxu0 %v835
      %950 = vmatprep.subr.bf16.mxu0 0
      %951 = vmatpush1.bf16.msra.mxu0 %v836
      %952 = vmatprep.subr.bf16.mxu0 0
      %953 = vmatpush1.bf16.msra.mxu0 %v837
      %954 = vmatprep.subr.bf16.mxu0 0
      %955 = vmatpush1.bf16.msra.mxu0 %v838
      %956 = vmatprep.subr.bf16.mxu0 0
      %957 = vmatpush1.bf16.msra.mxu0 %v839
      %958 = vmatprep.subr.bf16.mxu0 0
      %959 = vmatpush1.bf16.msra.mxu0 %v840
      %960 = vmatprep.subr.bf16.mxu0 0
      %961 = vmatpush1.bf16.msra.mxu0 %v841
      %962 = vmatprep.subr.bf16.mxu0 0
      %963 = vmatpush1.bf16.msra.mxu0 %v842
      %964 = vmatprep.subr.bf16.mxu0 0
      %965 = vmatpush1.bf16.msra.mxu0 %v843
      %966 = vmatprep.subr.bf16.mxu0 0
      %967 = vmatpush1.bf16.msra.mxu0 %v844
      %968 = vmatprep.subr.bf16.mxu0 0
      %969 = vmatpush1.bf16.msra.mxu0 %v845
      %970 = vmatprep.subr.bf16.mxu0 0
      %971 = vmatpush1.bf16.msra.mxu0 %v846
      %972 = vmatprep.subr.bf16.mxu0 0
      %973 = vmatpush1.bf16.msra.mxu0 %v847
      %974 = vmatprep.subr.bf16.mxu0 0
      %975 = vmatpush1.bf16.msra.mxu0 %v848
      %976 = vmatprep.subr.bf16.mxu0 0
      %977 = vmatpush1.bf16.msra.mxu0 %v849
      %978 = vmatprep.subr.bf16.mxu0 0
      %979 = vmatpush1.bf16.msra.mxu0 %v850
      %980 = vmatprep.mubr.bf16.mxu0 %v662
      %981 = vmatmul.mubr.bf16.gmra.mrb[0].mxu0 %v661
      %v982 = vpop.f32.mrb[0].mxu0
      %v983 = vadd.f32 %v918, %v982
      %v984 = vpop.f32.mrb[0].mxu0
      %v985 = vpop.f32.mrb[0].mxu0
      %v986 = vadd.f32 %v921, %v985
      %v987 = vpop.f32.mrb[0].mxu0
      %988 = vmatprep.mubr.bf16.mxu0 %v666
      %989 = vmatmul.mubr.bf16.gmra.mrb[0].mxu0 %v665
      %v990 = vpop.f32.mrb[0].mxu0
      %v991 = vadd.f32 %v926, %v990
      %v992 = vpop.f32.mrb[0].mxu0
      %v993 = vpop.f32.mrb[0].mxu0
      %v994 = vadd.f32 %v929, %v993
      %v995 = vpop.f32.mrb[0].mxu0
      %996 = vmatprep.mubr.bf16.mxu0 %v670
      %997 = vmatmul.mubr.bf16.gmra.mrb[0].mxu0 %v669
      %v998 = vpop.f32.mrb[0].mxu0
      %v999 = vadd.f32 %v934, %v998
      %v1000 = vpop.f32.mrb[0].mxu0
      %v1001 = vpop.f32.mrb[0].mxu0
      %v1002 = vadd.f32 %v937, %v1001
      %v1003 = vpop.f32.mrb[0].mxu0
      %1004 = vmatprep.mubr.bf16.mxu0 %v674
      %1005 = vmatmul.mubr.bf16.gmra.mrb[0].mxu0 %v673
      %v1006 = vpop.f32.mrb[0].mxu0
      %v1007 = vadd.f32 %v942, %v1006
      %v1008 = vpop.f32.mrb[0].mxu0
      %v1009 = vpop.f32.mrb[0].mxu0
      %v1010 = vadd.f32 %v945, %v1009
      %v1011 = vpop.f32.mrb[0].mxu0
      %1012 = vdwg.mxu0
      %v1013 = vld [vmem:[%s2] sm:$0x1]
      %v1015 = vlaneseq
      %v1016 = vshrl.u32 %v1015, 7
      %v1017 = vsub.s32 0, %v1016
      %v1018 = vrot.slane %v1013, %v1017
      %v1020 = vmul.f32 %v983, %v1018
      %v1021 = vmul.f32 %v986, %v1018
      %v1022 = vmul.f32 %v991, %v1018
      %v1023 = vmul.f32 %v994, %v1018
      %v1024 = vmul.f32 %v999, %v1018
      %v1025 = vmul.f32 %v1002, %v1018
      %v1026 = vmul.f32 %v1007, %v1018
      %v1027 = vmul.f32 %v1010, %v1018
      %v1028 = vld [vmem:[%s3] sm:$0x1]
      %v1030 = vlaneseq
      %v1031 = vshrl.u32 %v1030, 7
      %v1032 = vsub.s32 0, %v1031
      %v1033 = vrot.slane %v1028, %v1032
      %v1035 = vadd.f32 %v1020, %v1033
      %v1036 = vadd.f32 %v1021, %v1033
      %v1037 = vadd.f32 %v1022, %v1033
      %v1038 = vadd.f32 %v1023, %v1033
      %v1039 = vadd.f32 %v1024, %v1033
      %v1040 = vadd.f32 %v1025, %v1033
      %v1041 = vadd.f32 %v1026, %v1033
      %v1042 = vadd.f32 %v1027, %v1033
      %v1043 = vmax.f32 %v1035, 0.0
      %v1044 = vmax.f32 %v1036, 0.0
      %v1045 = vmax.f32 %v1037, 0.0
      %v1046 = vmax.f32 %v1038, 0.0
      %v1047 = vmax.f32 %v1039, 0.0
      %v1048 = vmax.f32 %v1040, 0.0
      %v1049 = vmax.f32 %v1041, 0.0
      %v1050 = vmax.f32 %v1042, 0.0
      %v1051 = vpack.c.bf16 %v1044, %v1043
      %v1052 = vpack.c.bf16 %v1046, %v1045
      %v1053 = vpack.c.bf16 %v1048, %v1047
      %v1054 = vpack.c.bf16 %v1050, %v1049
      %v1055 = vld [vmem:[%s4] sm:$0xf]
      %v1056 = vld [vmem:[%s4 + $0x4] sm:$0xf]
      %v1057 = vld [vmem:[%s4 + $0x8] sm:$0xf]
      %v1058 = vld [vmem:[%s4 + $0xc] sm:$0xf]
      %v1059 = vld [vmem:[%s4 + $0x10] sm:$0xf]
      %v1060 = vld [vmem:[%s4 + $0x14] sm:$0xf]
      %v1061 = vld [vmem:[%s4 + $0x18] sm:$0xf]
      %v1062 = vld [vmem:[%s4 + $0x1c] sm:$0xf]
      %v1063 = vld [vmem:[%s4 + $0x20] sm:$0xf]
      %v1064 = vld [vmem:[%s4 + $0x24] sm:$0xf]
      %v1065 = vld [vmem:[%s4 + $0x28] sm:$0xf]
      %v1066 = vld [vmem:[%s4 + $0x2c] sm:$0xf]
      %v1067 = vld [vmem:[%s4 + $0x30] sm:$0xf]
      %v1068 = vld [vmem:[%s4 + $0x34] sm:$0xf]
      %v1069 = vld [vmem:[%s4 + $0x38] sm:$0xf]
      %v1070 = vld [vmem:[%s4 + $0x3c] sm:$0xf]
      %v1087 = vunpack.c.l.b16 %v1055
      %v1088 = vunpack.c.l.b16 %v1056
      %v1089 = vunpack.c.l.b16 %v1057
      %v1090 = vunpack.c.l.b16 %v1058
      %v1091 = vunpack.c.l.b16 %v1059
      %v1092 = vunpack.c.l.b16 %v1060
      %v1093 = vunpack.c.l.b16 %v1061
      %v1094 = vunpack.c.l.b16 %v1062
      %v1095 = vunpack.c.l.b16 %v1063
      %v1096 = vunpack.c.l.b16 %v1064
      %v1097 = vunpack.c.l.b16 %v1065
      %v1098 = vunpack.c.l.b16 %v1066
      %v1099 = vunpack.c.l.b16 %v1067
      %v1100 = vunpack.c.l.b16 %v1068
      %v1101 = vunpack.c.l.b16 %v1069
      %v1102 = vunpack.c.l.b16 %v1070
      %v1103 = vpack.c.b16 %v1088, %v1087
      %v1104 = vpack.c.b16 %v1090, %v1089
      %v1105 = vpack.c.b16 %v1092, %v1091
      %v1106 = vpack.c.b16 %v1094, %v1093
      %v1107 = vpack.c.b16 %v1096, %v1095
      %v1108 = vpack.c.b16 %v1098, %v1097
      %v1109 = vpack.c.b16 %v1100, %v1099
      %v1110 = vpack.c.b16 %v1102, %v1101
      %1119 = vmatprep.subr.bf16.mxu0 0
      %1120 = vmatpush1.bf16.msra.mxu0 %v1103
      %1121 = vmatprep.subr.bf16.mxu0 0
      %1122 = vmatpush1.bf16.msra.mxu0 %v1104
      %1123 = vmatprep.subr.bf16.mxu0 0
      %1124 = vmatpush1.bf16.msra.mxu0 %v1105
      %1125 = vmatprep.subr.bf16.mxu0 0
      %1126 = vmatpush1.bf16.msra.mxu0 %v1106
      %1127 = vmatprep.subr.bf16.mxu0 0
      %1128 = vmatpush1.bf16.msra.mxu0 %v1107
      %1129 = vmatprep.subr.bf16.mxu0 0
      %1130 = vmatpush1.bf16.msra.mxu0 %v1108
      %1131 = vmatprep.subr.bf16.mxu0 0
      %1132 = vmatpush1.bf16.msra.mxu0 %v1109
      %1133 = vmatprep.subr.bf16.mxu0 0
      %1134 = vmatpush1.bf16.msra.mxu0 %v1110
      %1135 = vmatprep.subr.bf16.mxu0 0
      %1136 = vmatpush1.bf16.msra.mxu0 0
      %1137 = vmatprep.subr.bf16.mxu0 0
      %1138 = vmatpush1.bf16.msra.mxu0 0
      %1139 = vmatprep.subr.bf16.mxu0 0
      %1140 = vmatpush1.bf16.msra.mxu0 0
      %1141 = vmatprep.subr.bf16.mxu0 0
      %1142 = vmatpush1.bf16.msra.mxu0 0
      %1143 = vmatprep.subr.bf16.mxu0 0
      %1144 = vmatpush1.bf16.msra.mxu0 0
      %1145 = vmatprep.subr.bf16.mxu0 0
      %1146 = vmatpush1.bf16.msra.mxu0 0
      %1147 = vmatprep.subr.bf16.mxu0 0
      %1148 = vmatpush1.bf16.msra.mxu0 0
      %1149 = vmatprep.subr.bf16.mxu0 0
      %1150 = vmatpush1.bf16.msra.mxu0 0
      %1151 = vmatprep.mubr.bf16.mxu0 0
      %1152 = vmatmul.mubr.bf16.gmra.mrb[0].mxu0 %v1051
      %v1153 = vpop.f32.mrb[0].mxu0
      %v1154 = vadd.f32 0.0, %v1153
      %v1155 = vpop.f32.mrb[0].mxu0
      %v1156 = vpop.f32.mrb[0].mxu0
      %v1157 = vadd.f32 0.0, %v1156
      %v1158 = vpop.f32.mrb[0].mxu0
      %1159 = vmatprep.mubr.bf16.mxu0 0
      %1160 = vmatmul.mubr.bf16.gmra.mrb[0].mxu0 %v1052
      %v1161 = vpop.f32.mrb[0].mxu0
      %v1162 = vadd.f32 0.0, %v1161
      %v1163 = vpop.f32.mrb[0].mxu0
      %v1164 = vpop.f32.mrb[0].mxu0
      %v1165 = vadd.f32 0.0, %v1164
      %v1166 = vpop.f32.mrb[0].mxu0
      %1167 = vmatprep.mubr.bf16.mxu0 0
      %1168 = vmatmul.mubr.bf16.gmra.mrb[0].mxu0 %v1053
      %v1169 = vpop.f32.mrb[0].mxu0
      %v1170 = vadd.f32 0.0, %v1169
      %v1171 = vpop.f32.mrb[0].mxu0
      %v1172 = vpop.f32.mrb[0].mxu0
      %v1173 = vadd.f32 0.0, %v1172
      %v1174 = vpop.f32.mrb[0].mxu0
      %1175 = vmatprep.mubr.bf16.mxu0 0
      %1176 = vmatmul.mubr.bf16.gmra.mrb[0].mxu0 %v1054
      %v1177 = vpop.f32.mrb[0].mxu0
      %v1178 = vadd.f32 0.0, %v1177
      %v1179 = vpop.f32.mrb[0].mxu0
      %v1180 = vpop.f32.mrb[0].mxu0
      %v1181 = vadd.f32 0.0, %v1180
      %v1182 = vpop.f32.mrb[0].mxu0
      %1183 = vdwg.mxu0
      %v1184 = vld [vmem:[%s5] sm:$0x1]
      %v1186 = vlaneseq
      %v1187 = vshrl.u32 %v1186, 7
      %v1188 = vsub.s32 0, %v1187
      %v1189 = vrot.slane %v1184, %v1188
      %v1191 = vmul.f32 %v1154, %v1189
      %v1192 = vmul.f32 %v1157, %v1189
      %v1193 = vmul.f32 %v1162, %v1189
      %v1194 = vmul.f32 %v1165, %v1189
      %v1195 = vmul.f32 %v1170, %v1189
      %v1196 = vmul.f32 %v1173, %v1189
      %v1197 = vmul.f32 %v1178, %v1189
      %v1198 = vmul.f32 %v1181, %v1189
      %v1199 = vld [vmem:[%s6] sm:$0x1]
      %v1201 = vlaneseq
      %v1202 = vshrl.u32 %v1201, 7
      %v1203 = vsub.s32 0, %v1202
      %v1204 = vrot.slane %v1199, %v1203
      %v1206 = vadd.f32 %v1191, %v1204
      %v1207 = vadd.f32 %v1192, %v1204
      %v1208 = vadd.f32 %v1193, %v1204
      %v1209 = vadd.f32 %v1194, %v1204
      %v1210 = vadd.f32 %v1195, %v1204
      %v1211 = vadd.f32 %v1196, %v1204
      %v1212 = vadd.f32 %v1197, %v1204
      %v1213 = vadd.f32 %v1198, %v1204
      %v1214 = vmax.f32 %v1206, 0.0
      %v1215 = vmax.f32 %v1207, 0.0
      %v1216 = vmax.f32 %v1208, 0.0
      %v1217 = vmax.f32 %v1209, 0.0
      %v1218 = vmax.f32 %v1210, 0.0
      %v1219 = vmax.f32 %v1211, 0.0
      %v1220 = vmax.f32 %v1212, 0.0
      %v1221 = vmax.f32 %v1213, 0.0
      %v1222 = vpack.c.bf16 %v1215, %v1214
      %v1223 = vpack.c.bf16 %v1217, %v1216
      %v1224 = vpack.c.bf16 %v1219, %v1218
      %v1225 = vpack.c.bf16 %v1221, %v1220
      %v1230 = vunpack.c.l.b16 %v1222
      %v1231 = vunpack.c.h.b16 %v1222
      %v1232 = vunpack.c.l.b16 %v1223
      %v1233 = vunpack.c.h.b16 %v1223
      %v1234 = vunpack.c.l.b16 %v1224
      %v1235 = vunpack.c.h.b16 %v1224
      %v1236 = vunpack.c.l.b16 %v1225
      %v1237 = vunpack.c.h.b16 %v1225
      %v1238 = vpack.c.b16 %v1230, %v1230
      %v1239 = vpack.c.b16 %v1231, %v1231
      %v1240 = vpack.c.b16 %v1232, %v1232
      %v1241 = vpack.c.b16 %v1233, %v1233
      %v1242 = vpack.c.b16 %v1234, %v1234
      %v1243 = vpack.c.b16 %v1235, %v1235
      %v1244 = vpack.c.b16 %v1236, %v1236
      %v1245 = vpack.c.b16 %v1237, %v1237
      %1254 = vst [vmem:[%s345] sm:$0xf] %v1238
      %1255 = vst [vmem:[%s345 + $0x4] sm:$0xf] %v1239
      %1256 = vst [vmem:[%s345 + $0x8] sm:$0xf] %v1240
      %1257 = vst [vmem:[%s345 + $0xc] sm:$0xf] %v1241
      %1258 = vst [vmem:[%s345 + $0x10] sm:$0xf] %v1242
      %1259 = vst [vmem:[%s345 + $0x14] sm:$0xf] %v1243
      %1260 = vst [vmem:[%s345 + $0x18] sm:$0xf] %v1244
      %1261 = vst [vmem:[%s345 + $0x1c] sm:$0xf] %v1245
      %v1262 = vunpack.c.l.bf16 %v1222
      %v1263 = vunpack.c.h.bf16 %v1222
      %v1264 = vunpack.c.l.bf16 %v1223
      %v1265 = vunpack.c.h.bf16 %v1223
      %v1266 = vunpack.c.l.bf16 %v1224
      %v1267 = vunpack.c.h.bf16 %v1224
      %v1268 = vunpack.c.l.bf16 %v1225
      %v1269 = vunpack.c.h.bf16 %v1225
      %v1270 = vadd.f32 %v1262, %v1263
      %v1271 = vadd.f32 %v1270, %v1264
      %v1272 = vadd.f32 %v1271, %v1265
      %v1273 = vadd.f32 %v1272, %v1266
      %v1274 = vadd.f32 %v1273, %v1267
      %v1275 = vadd.f32 %v1274, %v1268
      %v1276 = vadd.f32 %v1275, %v1269
      %v1277 = vrot.slane %v1276, 4
      %v1278 = vadd.f32 %v1276, %v1277
      %v1279 = vrot.slane %v1278, 2
      %v1280 = vadd.f32 %v1278, %v1279
      %v1281 = vrot.slane %v1280, 1
      %v1282 = vadd.f32 %v1280, %v1281
      %v1283 = vadd.f32 %v1282, 0.0
      %v1284 = vld [vmem:[%s334] sm:$0xf]
      %v1285 = vld [vmem:[%s334 + $0x4] sm:$0x1]
      %v1286 = vld [vmem:[%s334 + $0x8] sm:$0xf]
      %v1287 = vld [vmem:[%s334 + $0xc] sm:$0x1]
      %v1288 = vld [vmem:[%s334 + $0x10] sm:$0xf]
      %v1289 = vld [vmem:[%s334 + $0x14] sm:$0x1]
      %v1290 = vld [vmem:[%s334 + $0x18] sm:$0xf]
      %v1291 = vld [vmem:[%s334 + $0x1c] sm:$0x1]
      %v1292 = vld [vmem:[%s334 + $0x20] sm:$0xf]
      %v1293 = vld [vmem:[%s334 + $0x24] sm:$0x1]
      %v1294 = vld [vmem:[%s334 + $0x28] sm:$0xf]
      %v1295 = vld [vmem:[%s334 + $0x2c] sm:$0x1]
      %v1296 = vld [vmem:[%s334 + $0x30] sm:$0xf]
      %v1297 = vld [vmem:[%s334 + $0x34] sm:$0x1]
      %v1298 = vld [vmem:[%s334 + $0x38] sm:$0xf]
      %v1299 = vld [vmem:[%s334 + $0x3c] sm:$0x1]
      %v1300 = vld [vmem:[%s334] sm:$0xe]
      %v1301 = vld [vmem:[%s334 + $0x8] sm:$0xe]
      %v1302 = vld [vmem:[%s334 + $0x10] sm:$0xe]
      %v1303 = vld [vmem:[%s334 + $0x18] sm:$0xe]
      %v1304 = vld [vmem:[%s334 + $0x20] sm:$0xe]
      %v1305 = vld [vmem:[%s334 + $0x28] sm:$0xe]
      %v1306 = vld [vmem:[%s334 + $0x30] sm:$0xe]
      %v1307 = vld [vmem:[%s334 + $0x38] sm:$0xe]
      %v1308 = vld [vmem:[%s370] sm:$0xf]
      %v1309 = vld [vmem:[%s370 + $0x4] sm:$0x1]
      %v1310 = vld [vmem:[%s370 + $0x8] sm:$0xf]
      %v1311 = vld [vmem:[%s370 + $0xc] sm:$0x1]
      %v1312 = vld [vmem:[%s370 + $0x10] sm:$0xf]
      %v1313 = vld [vmem:[%s370 + $0x14] sm:$0x1]
      %v1314 = vld [vmem:[%s370 + $0x18] sm:$0xf]
      %v1315 = vld [vmem:[%s370 + $0x1c] sm:$0x1]
      %v1316 = vld [vmem:[%s370 + $0x20] sm:$0xf]
      %v1317 = vld [vmem:[%s370 + $0x24] sm:$0x1]
      %v1318 = vld [vmem:[%s370 + $0x28] sm:$0xf]
      %v1319 = vld [vmem:[%s370 + $0x2c] sm:$0x1]
      %v1320 = vld [vmem:[%s370 + $0x30] sm:$0xf]
      %v1321 = vld [vmem:[%s370 + $0x34] sm:$0x1]
      %v1322 = vld [vmem:[%s370 + $0x38] sm:$0xf]
      %v1323 = vld [vmem:[%s370 + $0x3c] sm:$0x1]
      %v1324 = vld [vmem:[%s370] sm:$0xe]
      %v1325 = vld [vmem:[%s370 + $0x8] sm:$0xe]
      %v1326 = vld [vmem:[%s370 + $0x10] sm:$0xe]
      %v1327 = vld [vmem:[%s370 + $0x18] sm:$0xe]
      %v1328 = vld [vmem:[%s370 + $0x20] sm:$0xe]
      %v1329 = vld [vmem:[%s370 + $0x28] sm:$0xe]
      %v1330 = vld [vmem:[%s370 + $0x30] sm:$0xe]
      %v1331 = vld [vmem:[%s370 + $0x38] sm:$0xe]
      %v1348 = vunpack.c.l.b16 %v1284
      %v1349 = vunpack.c.l.b16 %v1285
      %v1350 = vunpack.c.l.b16 %v1286
      %v1351 = vunpack.c.l.b16 %v1287
      %v1352 = vunpack.c.l.b16 %v1288
      %v1353 = vunpack.c.l.b16 %v1289
      %v1354 = vunpack.c.l.b16 %v1290
      %v1355 = vunpack.c.l.b16 %v1291
      %v1356 = vunpack.c.l.b16 %v1292
      %v1357 = vunpack.c.l.b16 %v1293
      %v1358 = vunpack.c.l.b16 %v1294
      %v1359 = vunpack.c.l.b16 %v1295
      %v1360 = vunpack.c.l.b16 %v1296
      %v1361 = vunpack.c.l.b16 %v1297
      %v1362 = vunpack.c.l.b16 %v1298
      %v1363 = vunpack.c.l.b16 %v1299
      %v1372 = vunpack.c.l.b16 %v1300
      %v1373 = vunpack.c.l.b16 %v1301
      %v1374 = vunpack.c.l.b16 %v1302
      %v1375 = vunpack.c.l.b16 %v1303
      %v1376 = vunpack.c.l.b16 %v1304
      %v1377 = vunpack.c.l.b16 %v1305
      %v1378 = vunpack.c.l.b16 %v1306
      %v1379 = vunpack.c.l.b16 %v1307
      %v1380 = vpack.c.b16 %v1349, %v1372
      %v1381 = vpack.c.b16 %v1351, %v1373
      %v1382 = vpack.c.b16 %v1353, %v1374
      %v1383 = vpack.c.b16 %v1355, %v1375
      %v1384 = vpack.c.b16 %v1357, %v1376
      %v1385 = vpack.c.b16 %v1359, %v1377
      %v1386 = vpack.c.b16 %v1361, %v1378
      %v1387 = vpack.c.b16 %v1363, %v1379
      %v1389 = vshrl.u32 %v1380, 16
      %v1391 = vshll.u32 %v1380, 16
      %v1393 = vrot.slane %v1391, 1
      %v1394 = vor.u32 %v1389, %v1393
      %v1396 = vshrl.u32 %v1381, 16
      %v1398 = vshll.u32 %v1381, 16
      %v1400 = vrot.slane %v1398, 1
      %v1401 = vor.u32 %v1396, %v1400
      %v1403 = vshrl.u32 %v1382, 16
      %v1405 = vshll.u32 %v1382, 16
      %v1407 = vrot.slane %v1405, 1
      %v1408 = vor.u32 %v1403, %v1407
      %v1410 = vshrl.u32 %v1383, 16
      %v1412 = vshll.u32 %v1383, 16
      %v1414 = vrot.slane %v1412, 1
      %v1415 = vor.u32 %v1410, %v1414
      %v1417 = vshrl.u32 %v1384, 16
      %v1419 = vshll.u32 %v1384, 16
      %v1421 = vrot.slane %v1419, 1
      %v1422 = vor.u32 %v1417, %v1421
      %v1424 = vshrl.u32 %v1385, 16
      %v1426 = vshll.u32 %v1385, 16
      %v1428 = vrot.slane %v1426, 1
      %v1429 = vor.u32 %v1424, %v1428
      %v1431 = vshrl.u32 %v1386, 16
      %v1433 = vshll.u32 %v1386, 16
      %v1435 = vrot.slane %v1433, 1
      %v1436 = vor.u32 %v1431, %v1435
      %v1438 = vshrl.u32 %v1387, 16
      %v1440 = vshll.u32 %v1387, 16
      %v1442 = vrot.slane %v1440, 1
      %v1443 = vor.u32 %v1438, %v1442
      %v1460 = vunpack.c.l.b16 %v1308
      %v1461 = vunpack.c.l.b16 %v1309
      %v1462 = vunpack.c.l.b16 %v1310
      %v1463 = vunpack.c.l.b16 %v1311
      %v1464 = vunpack.c.l.b16 %v1312
      %v1465 = vunpack.c.l.b16 %v1313
      %v1466 = vunpack.c.l.b16 %v1314
      %v1467 = vunpack.c.l.b16 %v1315
      %v1468 = vunpack.c.l.b16 %v1316
      %v1469 = vunpack.c.l.b16 %v1317
      %v1470 = vunpack.c.l.b16 %v1318
      %v1471 = vunpack.c.l.b16 %v1319
      %v1472 = vunpack.c.l.b16 %v1320
      %v1473 = vunpack.c.l.b16 %v1321
      %v1474 = vunpack.c.l.b16 %v1322
      %v1475 = vunpack.c.l.b16 %v1323
      %v1484 = vunpack.c.l.b16 %v1324
      %v1485 = vunpack.c.l.b16 %v1325
      %v1486 = vunpack.c.l.b16 %v1326
      %v1487 = vunpack.c.l.b16 %v1327
      %v1488 = vunpack.c.l.b16 %v1328
      %v1489 = vunpack.c.l.b16 %v1329
      %v1490 = vunpack.c.l.b16 %v1330
      %v1491 = vunpack.c.l.b16 %v1331
      %v1492 = vpack.c.b16 %v1461, %v1484
      %v1493 = vpack.c.b16 %v1463, %v1485
      %v1494 = vpack.c.b16 %v1465, %v1486
      %v1495 = vpack.c.b16 %v1467, %v1487
      %v1496 = vpack.c.b16 %v1469, %v1488
      %v1497 = vpack.c.b16 %v1471, %v1489
      %v1498 = vpack.c.b16 %v1473, %v1490
      %v1499 = vpack.c.b16 %v1475, %v1491
      %v1501 = vshrl.u32 %v1492, 16
      %v1503 = vshll.u32 %v1492, 16
      %v1505 = vrot.slane %v1503, 1
      %v1506 = vor.u32 %v1501, %v1505
      %v1508 = vshrl.u32 %v1493, 16
      %v1510 = vshll.u32 %v1493, 16
      %v1512 = vrot.slane %v1510, 1
      %v1513 = vor.u32 %v1508, %v1512
      %v1515 = vshrl.u32 %v1494, 16
      %v1517 = vshll.u32 %v1494, 16
      %v1519 = vrot.slane %v1517, 1
      %v1520 = vor.u32 %v1515, %v1519
      %v1522 = vshrl.u32 %v1495, 16
      %v1524 = vshll.u32 %v1495, 16
      %v1526 = vrot.slane %v1524, 1
      %v1527 = vor.u32 %v1522, %v1526
      %v1529 = vshrl.u32 %v1496, 16
      %v1531 = vshll.u32 %v1496, 16
      %v1533 = vrot.slane %v1531, 1
      %v1534 = vor.u32 %v1529, %v1533
      %v1536 = vshrl.u32 %v1497, 16
      %v1538 = vshll.u32 %v1497, 16
      %v1540 = vrot.slane %v1538, 1
      %v1541 = vor.u32 %v1536, %v1540
      %v1543 = vshrl.u32 %v1498, 16
      %v1545 = vshll.u32 %v1498, 16
      %v1547 = vrot.slane %v1545, 1
      %v1548 = vor.u32 %v1543, %v1547
      %v1550 = vshrl.u32 %v1499, 16
      %v1552 = vshll.u32 %v1499, 16
      %v1554 = vrot.slane %v1552, 1
      %v1555 = vor.u32 %v1550, %v1554
      %v1556 = vunpack.c.l.b16 %v1394
      %v1557 = vunpack.c.l.b16 %v1506
      %v1558 = vunpack.c.h.b16 %v1394
      %v1559 = vunpack.c.h.b16 %v1506
      %v1560 = vunpack.c.l.b16 %v1401
      %v1561 = vunpack.c.l.b16 %v1513
      %v1562 = vunpack.c.h.b16 %v1401
      %v1563 = vunpack.c.h.b16 %v1513
      %v1564 = vunpack.c.l.b16 %v1408
      %v1565 = vunpack.c.l.b16 %v1520
      %v1566 = vunpack.c.h.b16 %v1408
      %v1567 = vunpack.c.h.b16 %v1520
      %v1568 = vunpack.c.l.b16 %v1415
      %v1569 = vunpack.c.l.b16 %v1527
      %v1570 = vunpack.c.h.b16 %v1415
      %v1571 = vunpack.c.h.b16 %v1527
      %v1572 = vunpack.c.l.b16 %v1422
      %v1573 = vunpack.c.l.b16 %v1534
      %v1574 = vunpack.c.h.b16 %v1422
      %v1575 = vunpack.c.h.b16 %v1534
      %v1576 = vunpack.c.l.b16 %v1429
      %v1577 = vunpack.c.l.b16 %v1541
      %v1578 = vunpack.c.h.b16 %v1429
      %v1579 = vunpack.c.h.b16 %v1541
      %v1580 = vunpack.c.l.b16 %v1436
      %v1581 = vunpack.c.l.b16 %v1548
      %v1582 = vunpack.c.h.b16 %v1436
      %v1583 = vunpack.c.h.b16 %v1548
      %v1584 = vunpack.c.l.b16 %v1443
      %v1585 = vunpack.c.l.b16 %v1555
      %v1586 = vunpack.c.h.b16 %v1443
      %v1587 = vunpack.c.h.b16 %v1555
      %v1588 = vpack.c.b16 %v1556, %v1348
      %v1589 = vpack.c.b16 %v1557, %v1460
      %v1590 = vpack.c.b16 %v1558, %v1349
      %v1591 = vpack.c.b16 %v1559, %v1461
      %v1592 = vpack.c.b16 %v1560, %v1350
      %v1593 = vpack.c.b16 %v1561, %v1462
      %v1594 = vpack.c.b16 %v1562, %v1351
      %v1595 = vpack.c.b16 %v1563, %v1463
      %v1596 = vpack.c.b16 %v1564, %v1352
      %v1597 = vpack.c.b16 %v1565, %v1464
      %v1598 = vpack.c.b16 %v1566, %v1353
      %v1599 = vpack.c.b16 %v1567, %v1465
      %v1600 = vpack.c.b16 %v1568, %v1354
      %v1601 = vpack.c.b16 %v1569, %v1466
      %v1602 = vpack.c.b16 %v1570, %v1355
      %v1603 = vpack.c.b16 %v1571, %v1467
      %v1604 = vpack.c.b16 %v1572, %v1356
      %v1605 = vpack.c.b16 %v1573, %v1468
      %v1606 = vpack.c.b16 %v1574, %v1357
      %v1607 = vpack.c.b16 %v1575, %v1469
      %v1608 = vpack.c.b16 %v1576, %v1358
      %v1609 = vpack.c.b16 %v1577, %v1470
      %v1610 = vpack.c.b16 %v1578, %v1359
      %v1611 = vpack.c.b16 %v1579, %v1471
      %v1612 = vpack.c.b16 %v1580, %v1360
      %v1613 = vpack.c.b16 %v1581, %v1472
      %v1614 = vpack.c.b16 %v1582, %v1361
      %v1615 = vpack.c.b16 %v1583, %v1473
      %v1616 = vpack.c.b16 %v1584, %v1362
      %v1617 = vpack.c.b16 %v1585, %v1474
      %v1618 = vpack.c.b16 %v1586, %v1363
      %v1619 = vpack.c.b16 %v1587, %v1475
      %vm1620 = vsmask.f32 3328
      %vm1621 = vsmask.f32 7440
      %vm1622 = vmor %vm1620, %vm1621
      %v1624 = vshrl.u32 %v1588, 16
      %v1626 = vrot.slane %v1624, 4
      %v1627 = vshll.u32 %v1588, 16
      %v1629 = vrot.slane %v1627, 5
      %v1630 = vor.u32 %v1626, %v1629
      %v1631 = vrot.slane %v1630, 4
      %v1633 = vshll.u32 %v1590, 16
      %v1635 = vrot.slane %v1633, 5
      %v1636 = vsel %vm1622, %v1631, %v1635
      %v1638 = vshrl.u32 %v1589, 16
      %v1640 = vrot.slane %v1638, 4
      %v1641 = vshll.u32 %v1589, 16
      %v1643 = vrot.slane %v1641, 5
      %v1644 = vor.u32 %v1640, %v1643
      %v1645 = vrot.slane %v1644, 4
      %v1647 = vshll.u32 %v1591, 16
      %v1649 = vrot.slane %v1647, 5
      %v1650 = vsel %vm1622, %v1645, %v1649
      %v1652 = vshrl.u32 %v1592, 16
      %v1654 = vrot.slane %v1652, 4
      %v1655 = vshll.u32 %v1592, 16
      %v1657 = vrot.slane %v1655, 5
      %v1658 = vor.u32 %v1654, %v1657
      %v1659 = vrot.slane %v1658, 4
      %v1661 = vshll.u32 %v1594, 16
      %v1663 = vrot.slane %v1661, 5
      %v1664 = vsel %vm1622, %v1659, %v1663
      %v1666 = vshrl.u32 %v1593, 16
      %v1668 = vrot.slane %v1666, 4
      %v1669 = vshll.u32 %v1593, 16
      %v1671 = vrot.slane %v1669, 5
      %v1672 = vor.u32 %v1668, %v1671
      %v1673 = vrot.slane %v1672, 4
      %v1675 = vshll.u32 %v1595, 16
      %v1677 = vrot.slane %v1675, 5
      %v1678 = vsel %vm1622, %v1673, %v1677
      %v1680 = vshrl.u32 %v1596, 16
      %v1682 = vrot.slane %v1680, 4
      %v1683 = vshll.u32 %v1596, 16
      %v1685 = vrot.slane %v1683, 5
      %v1686 = vor.u32 %v1682, %v1685
      %v1687 = vrot.slane %v1686, 4
      %v1689 = vshll.u32 %v1598, 16
      %v1691 = vrot.slane %v1689, 5
      %v1692 = vsel %vm1622, %v1687, %v1691
      %v1694 = vshrl.u32 %v1597, 16
      %v1696 = vrot.slane %v1694, 4
      %v1697 = vshll.u32 %v1597, 16
      %v1699 = vrot.slane %v1697, 5
      %v1700 = vor.u32 %v1696, %v1699
      %v1701 = vrot.slane %v1700, 4
      %v1703 = vshll.u32 %v1599, 16
      %v1705 = vrot.slane %v1703, 5
      %v1706 = vsel %vm1622, %v1701, %v1705
      %v1708 = vshrl.u32 %v1600, 16
      %v1710 = vrot.slane %v1708, 4
      %v1711 = vshll.u32 %v1600, 16
      %v1713 = vrot.slane %v1711, 5
      %v1714 = vor.u32 %v1710, %v1713
      %v1715 = vrot.slane %v1714, 4
      %v1717 = vshll.u32 %v1602, 16
      %v1719 = vrot.slane %v1717, 5
      %v1720 = vsel %vm1622, %v1715, %v1719
      %v1722 = vshrl.u32 %v1601, 16
      %v1724 = vrot.slane %v1722, 4
      %v1725 = vshll.u32 %v1601, 16
      %v1727 = vrot.slane %v1725, 5
      %v1728 = vor.u32 %v1724, %v1727
      %v1729 = vrot.slane %v1728, 4
      %v1731 = vshll.u32 %v1603, 16
      %v1733 = vrot.slane %v1731, 5
      %v1734 = vsel %vm1622, %v1729, %v1733
      %v1736 = vshrl.u32 %v1604, 16
      %v1738 = vrot.slane %v1736, 4
      %v1739 = vshll.u32 %v1604, 16
      %v1741 = vrot.slane %v1739, 5
      %v1742 = vor.u32 %v1738, %v1741
      %v1743 = vrot.slane %v1742, 4
      %v1745 = vshll.u32 %v1606, 16
      %v1747 = vrot.slane %v1745, 5
      %v1748 = vsel %vm1622, %v1743, %v1747
      %v1750 = vshrl.u32 %v1605, 16
      %v1752 = vrot.slane %v1750, 4
      %v1753 = vshll.u32 %v1605, 16
      %v1755 = vrot.slane %v1753, 5
      %v1756 = vor.u32 %v1752, %v1755
      %v1757 = vrot.slane %v1756, 4
      %v1759 = vshll.u32 %v1607, 16
      %v1761 = vrot.slane %v1759, 5
      %v1762 = vsel %vm1622, %v1757, %v1761
      %v1764 = vshrl.u32 %v1608, 16
      %v1766 = vrot.slane %v1764, 4
      %v1767 = vshll.u32 %v1608, 16
      %v1769 = vrot.slane %v1767, 5
      %v1770 = vor.u32 %v1766, %v1769
      %v1771 = vrot.slane %v1770, 4
      %v1773 = vshll.u32 %v1610, 16
      %v1775 = vrot.slane %v1773, 5
      %v1776 = vsel %vm1622, %v1771, %v1775
      %v1778 = vshrl.u32 %v1609, 16
      %v1780 = vrot.slane %v1778, 4
      %v1781 = vshll.u32 %v1609, 16
      %v1783 = vrot.slane %v1781, 5
      %v1784 = vor.u32 %v1780, %v1783
      %v1785 = vrot.slane %v1784, 4
      %v1787 = vshll.u32 %v1611, 16
      %v1789 = vrot.slane %v1787, 5
      %v1790 = vsel %vm1622, %v1785, %v1789
      %v1792 = vshrl.u32 %v1612, 16
      %v1794 = vrot.slane %v1792, 4
      %v1795 = vshll.u32 %v1612, 16
      %v1797 = vrot.slane %v1795, 5
      %v1798 = vor.u32 %v1794, %v1797
      %v1799 = vrot.slane %v1798, 4
      %v1801 = vshll.u32 %v1614, 16
      %v1803 = vrot.slane %v1801, 5
      %v1804 = vsel %vm1622, %v1799, %v1803
      %v1806 = vshrl.u32 %v1613, 16
      %v1808 = vrot.slane %v1806, 4
      %v1809 = vshll.u32 %v1613, 16
      %v1811 = vrot.slane %v1809, 5
      %v1812 = vor.u32 %v1808, %v1811
      %v1813 = vrot.slane %v1812, 4
      %v1815 = vshll.u32 %v1615, 16
      %v1817 = vrot.slane %v1815, 5
      %v1818 = vsel %vm1622, %v1813, %v1817
      %v1820 = vshrl.u32 %v1616, 16
      %v1822 = vrot.slane %v1820, 4
      %v1823 = vshll.u32 %v1616, 16
      %v1825 = vrot.slane %v1823, 5
      %v1826 = vor.u32 %v1822, %v1825
      %v1827 = vrot.slane %v1826, 4
      %v1829 = vshll.u32 %v1618, 16
      %v1831 = vrot.slane %v1829, 5
      %v1832 = vsel %vm1622, %v1827, %v1831
      %v1834 = vshrl.u32 %v1617, 16
      %v1836 = vrot.slane %v1834, 4
      %v1837 = vshll.u32 %v1617, 16
      %v1839 = vrot.slane %v1837, 5
      %v1840 = vor.u32 %v1836, %v1839
      %v1841 = vrot.slane %v1840, 4
      %v1843 = vshll.u32 %v1619, 16
      %v1845 = vrot.slane %v1843, 5
      %v1846 = vsel %vm1622, %v1841, %v1845
      %s1847 = scalar_lea.vmem %s1, 256
      %v1848 = vld [vmem:[%s1847] sm:$0xf]
      %v1849 = vld [vmem:[%s1847 + $0x4] sm:$0xf]
      %v1850 = vld [vmem:[%s1847 + $0x8] sm:$0xf]
      %v1851 = vld [vmem:[%s1847 + $0xc] sm:$0xf]
      %v1852 = vld [vmem:[%s1847 + $0x10] sm:$0xf]
      %v1853 = vld [vmem:[%s1847 + $0x14] sm:$0xf]
      %v1854 = vld [vmem:[%s1847 + $0x18] sm:$0xf]
      %v1855 = vld [vmem:[%s1847 + $0x1c] sm:$0xf]
      %v1856 = vld [vmem:[%s1847 + $0x20] sm:$0xf]
      %v1857 = vld [vmem:[%s1847 + $0x24] sm:$0xf]
      %v1858 = vld [vmem:[%s1847 + $0x28] sm:$0xf]
      %v1859 = vld [vmem:[%s1847 + $0x2c] sm:$0xf]
      %v1860 = vld [vmem:[%s1847 + $0x30] sm:$0xf]
      %v1861 = vld [vmem:[%s1847 + $0x34] sm:$0xf]
      %v1862 = vld [vmem:[%s1847 + $0x38] sm:$0xf]
      %v1863 = vld [vmem:[%s1847 + $0x3c] sm:$0xf]
      %v1864 = vld [vmem:[%s1847 + $0x40] sm:$0xf]
      %v1865 = vld [vmem:[%s1847 + $0x44] sm:$0xf]
      %v1866 = vld [vmem:[%s1847 + $0x48] sm:$0xf]
      %v1867 = vld [vmem:[%s1847 + $0x4c] sm:$0xf]
      %v1868 = vld [vmem:[%s1847 + $0x50] sm:$0xf]
      %v1869 = vld [vmem:[%s1847 + $0x54] sm:$0xf]
      %v1870 = vld [vmem:[%s1847 + $0x58] sm:$0xf]
      %v1871 = vld [vmem:[%s1847 + $0x5c] sm:$0xf]
      %v1872 = vld [vmem:[%s1847 + $0x60] sm:$0xf]
      %v1873 = vld [vmem:[%s1847 + $0x64] sm:$0xf]
      %v1874 = vld [vmem:[%s1847 + $0x68] sm:$0xf]
      %v1875 = vld [vmem:[%s1847 + $0x6c] sm:$0xf]
      %v1876 = vld [vmem:[%s1847 + $0x70] sm:$0xf]
      %v1877 = vld [vmem:[%s1847 + $0x74] sm:$0xf]
      %v1878 = vld [vmem:[%s1847 + $0x78] sm:$0xf]
      %v1879 = vld [vmem:[%s1847 + $0x7c] sm:$0xf]
      %v1880 = vld [vmem:[%s1847 + $0x80] sm:$0xf]
      %v1881 = vld [vmem:[%s1847 + $0x84] sm:$0xf]
      %v1882 = vld [vmem:[%s1847 + $0x88] sm:$0xf]
      %v1883 = vld [vmem:[%s1847 + $0x8c] sm:$0xf]
      %v1884 = vld [vmem:[%s1847 + $0x90] sm:$0xf]
      %v1885 = vld [vmem:[%s1847 + $0x94] sm:$0xf]
      %v1886 = vld [vmem:[%s1847 + $0x98] sm:$0xf]
      %v1887 = vld [vmem:[%s1847 + $0x9c] sm:$0xf]
      %v1888 = vld [vmem:[%s1847 + $0xa0] sm:$0xf]
      %v1889 = vld [vmem:[%s1847 + $0xa4] sm:$0xf]
      %v1890 = vld [vmem:[%s1847 + $0xa8] sm:$0xf]
      %v1891 = vld [vmem:[%s1847 + $0xac] sm:$0xf]
      %v1892 = vld [vmem:[%s1847 + $0xb0] sm:$0xf]
      %v1893 = vld [vmem:[%s1847 + $0xb4] sm:$0xf]
      %v1894 = vld [vmem:[%s1847 + $0xb8] sm:$0xf]
      %v1895 = vld [vmem:[%s1847 + $0xbc] sm:$0xf]
      %v1896 = vld [vmem:[%s1847 + $0xc0] sm:$0xf]
      %v1897 = vld [vmem:[%s1847 + $0xc4] sm:$0xf]
      %v1898 = vld [vmem:[%s1847 + $0xc8] sm:$0xf]
      %v1899 = vld [vmem:[%s1847 + $0xcc] sm:$0xf]
      %v1900 = vld [vmem:[%s1847 + $0xd0] sm:$0xf]
      %v1901 = vld [vmem:[%s1847 + $0xd4] sm:$0xf]
      %v1902 = vld [vmem:[%s1847 + $0xd8] sm:$0xf]
      %v1903 = vld [vmem:[%s1847 + $0xdc] sm:$0xf]
      %v1904 = vld [vmem:[%s1847 + $0xe0] sm:$0xf]
      %v1905 = vld [vmem:[%s1847 + $0xe4] sm:$0xf]
      %v1906 = vld [vmem:[%s1847 + $0xe8] sm:$0xf]
      %v1907 = vld [vmem:[%s1847 + $0xec] sm:$0xf]
      %v1908 = vld [vmem:[%s1847 + $0xf0] sm:$0xf]
      %v1909 = vld [vmem:[%s1847 + $0xf4] sm:$0xf]
      %v1910 = vld [vmem:[%s1847 + $0xf8] sm:$0xf]
      %v1911 = vld [vmem:[%s1847 + $0xfc] sm:$0xf]
      %v1912 = vunpack.c.l.b16 %v1636
      %v1913 = vunpack.c.h.b16 %v1636
      %v1914 = vunpack.c.l.b16 %v1650
      %v1915 = vunpack.c.h.b16 %v1650
      %v1916 = vunpack.c.l.b16 %v1664
      %v1917 = vunpack.c.h.b16 %v1664
      %v1918 = vunpack.c.l.b16 %v1678
      %v1919 = vunpack.c.h.b16 %v1678
      %v1920 = vunpack.c.l.b16 %v1692
      %v1921 = vunpack.c.h.b16 %v1692
      %v1922 = vunpack.c.l.b16 %v1706
      %v1923 = vunpack.c.h.b16 %v1706
      %v1924 = vunpack.c.l.b16 %v1720
      %v1925 = vunpack.c.h.b16 %v1720
      %v1926 = vunpack.c.l.b16 %v1734
      %v1927 = vunpack.c.h.b16 %v1734
      %v1928 = vunpack.c.l.b16 %v1748
      %v1929 = vunpack.c.h.b16 %v1748
      %v1930 = vunpack.c.l.b16 %v1762
      %v1931 = vunpack.c.h.b16 %v1762
      %v1932 = vunpack.c.l.b16 %v1776
      %v1933 = vunpack.c.h.b16 %v1776
      %v1934 = vunpack.c.l.b16 %v1790
      %v1935 = vunpack.c.h.b16 %v1790
      %v1936 = vunpack.c.l.b16 %v1804
      %v1937 = vunpack.c.h.b16 %v1804
      %v1938 = vunpack.c.l.b16 %v1818
      %v1939 = vunpack.c.h.b16 %v1818
      %v1940 = vunpack.c.l.b16 %v1832
      %v1941 = vunpack.c.h.b16 %v1832
      %v1942 = vunpack.c.l.b16 %v1846
      %v1943 = vunpack.c.h.b16 %v1846
      %v1944 = vpack.c.b16 %v1916, %v1912
      %v1945 = vpack.c.b16 %v1917, %v1913
      %v1946 = vpack.c.b16 %v1918, %v1914
      %v1947 = vpack.c.b16 %v1919, %v1915
      %v1948 = vpack.c.b16 %v1924, %v1920
      %v1949 = vpack.c.b16 %v1925, %v1921
      %v1950 = vpack.c.b16 %v1926, %v1922
      %v1951 = vpack.c.b16 %v1927, %v1923
      %v1952 = vpack.c.b16 %v1932, %v1928
      %v1953 = vpack.c.b16 %v1933, %v1929
      %v1954 = vpack.c.b16 %v1934, %v1930
      %v1955 = vpack.c.b16 %v1935, %v1931
      %v1956 = vpack.c.b16 %v1940, %v1936
      %v1957 = vpack.c.b16 %v1941, %v1937
      %v1958 = vpack.c.b16 %v1942, %v1938
      %v1959 = vpack.c.b16 %v1943, %v1939
      %v2040 = vunpack.c.l.b16 %v1848
      %v2041 = vunpack.c.l.b16 %v1849
      %v2042 = vunpack.c.l.b16 %v1850
      %v2043 = vunpack.c.l.b16 %v1851
      %v2044 = vunpack.c.l.b16 %v1852
      %v2045 = vunpack.c.l.b16 %v1853
      %v2046 = vunpack.c.l.b16 %v1854
      %v2047 = vunpack.c.l.b16 %v1855
      %v2048 = vunpack.c.l.b16 %v1856
      %v2049 = vunpack.c.l.b16 %v1857
      %v2050 = vunpack.c.l.b16 %v1858
      %v2051 = vunpack.c.l.b16 %v1859
      %v2052 = vunpack.c.l.b16 %v1860
      %v2053 = vunpack.c.l.b16 %v1861
      %v2054 = vunpack.c.l.b16 %v1862
      %v2055 = vunpack.c.l.b16 %v1863
      %v2056 = vunpack.c.l.b16 %v1864
      %v2057 = vunpack.c.l.b16 %v1865
      %v2058 = vunpack.c.l.b16 %v1866
      %v2059 = vunpack.c.l.b16 %v1867
      %v2060 = vunpack.c.l.b16 %v1868
      %v2061 = vunpack.c.l.b16 %v1869
      %v2062 = vunpack.c.l.b16 %v1870
      %v2063 = vunpack.c.l.b16 %v1871
      %v2064 = vunpack.c.l.b16 %v1872
      %v2065 = vunpack.c.l.b16 %v1873
      %v2066 = vunpack.c.l.b16 %v1874
      %v2067 = vunpack.c.l.b16 %v1875
      %v2068 = vunpack.c.l.b16 %v1876
      %v2069 = vunpack.c.l.b16 %v1877
      %v2070 = vunpack.c.l.b16 %v1878
      %v2071 = vunpack.c.l.b16 %v1879
      %v2072 = vunpack.c.l.b16 %v1880
      %v2073 = vunpack.c.l.b16 %v1881
      %v2074 = vunpack.c.l.b16 %v1882
      %v2075 = vunpack.c.l.b16 %v1883
      %v2076 = vunpack.c.l.b16 %v1884
      %v2077 = vunpack.c.l.b16 %v1885
      %v2078 = vunpack.c.l.b16 %v1886
      %v2079 = vunpack.c.l.b16 %v1887
      %v2080 = vunpack.c.l.b16 %v1888
      %v2081 = vunpack.c.l.b16 %v1889
      %v2082 = vunpack.c.l.b16 %v1890
      %v2083 = vunpack.c.l.b16 %v1891
      %v2084 = vunpack.c.l.b16 %v1892
      %v2085 = vunpack.c.l.b16 %v1893
      %v2086 = vunpack.c.l.b16 %v1894
      %v2087 = vunpack.c.l.b16 %v1895
      %v2088 = vunpack.c.l.b16 %v1896
      %v2089 = vunpack.c.l.b16 %v1897
      %v2090 = vunpack.c.l.b16 %v1898
      %v2091 = vunpack.c.l.b16 %v1899
      %v2092 = vunpack.c.l.b16 %v1900
      %v2093 = vunpack.c.l.b16 %v1901
      %v2094 = vunpack.c.l.b16 %v1902
      %v2095 = vunpack.c.l.b16 %v1903
      %v2096 = vunpack.c.l.b16 %v1904
      %v2097 = vunpack.c.l.b16 %v1905
      %v2098 = vunpack.c.l.b16 %v1906
      %v2099 = vunpack.c.l.b16 %v1907
      %v2100 = vunpack.c.l.b16 %v1908
      %v2101 = vunpack.c.l.b16 %v1909
      %v2102 = vunpack.c.l.b16 %v1910
      %v2103 = vunpack.c.l.b16 %v1911
      %v2104 = vpack.c.b16 %v2041, %v2040
      %v2105 = vpack.c.b16 %v2043, %v2042
      %v2106 = vpack.c.b16 %v2045, %v2044
      %v2107 = vpack.c.b16 %v2047, %v2046
      %v2108 = vpack.c.b16 %v2049, %v2048
      %v2109 = vpack.c.b16 %v2051, %v2050
      %v2110 = vpack.c.b16 %v2053, %v2052
      %v2111 = vpack.c.b16 %v2055, %v2054
      %v2112 = vpack.c.b16 %v2057, %v2056
      %v2113 = vpack.c.b16 %v2059, %v2058
      %v2114 = vpack.c.b16 %v2061, %v2060
      %v2115 = vpack.c.b16 %v2063, %v2062
      %v2116 = vpack.c.b16 %v2065, %v2064
      %v2117 = vpack.c.b16 %v2067, %v2066
      %v2118 = vpack.c.b16 %v2069, %v2068
      %v2119 = vpack.c.b16 %v2071, %v2070
      %v2120 = vpack.c.b16 %v2073, %v2072
      %v2121 = vpack.c.b16 %v2075, %v2074
      %v2122 = vpack.c.b16 %v2077, %v2076
      %v2123 = vpack.c.b16 %v2079, %v2078
      %v2124 = vpack.c.b16 %v2081, %v2080
      %v2125 = vpack.c.b16 %v2083, %v2082
      %v2126 = vpack.c.b16 %v2085, %v2084
      %v2127 = vpack.c.b16 %v2087, %v2086
      %v2128 = vpack.c.b16 %v2089, %v2088
      %v2129 = vpack.c.b16 %v2091, %v2090
      %v2130 = vpack.c.b16 %v2093, %v2092
      %v2131 = vpack.c.b16 %v2095, %v2094
      %v2132 = vpack.c.b16 %v2097, %v2096
      %v2133 = vpack.c.b16 %v2099, %v2098
      %v2134 = vpack.c.b16 %v2101, %v2100
      %v2135 = vpack.c.b16 %v2103, %v2102
      %2168 = vmatprep.subr.bf16.mxu0 0
      %2169 = vmatpush1.bf16.msra.mxu0 %v2104
      %2170 = vmatprep.subr.bf16.mxu0 0
      %2171 = vmatpush1.bf16.msra.mxu0 %v2105
      %2172 = vmatprep.subr.bf16.mxu0 0
      %2173 = vmatpush1.bf16.msra.mxu0 %v2106
      %2174 = vmatprep.subr.bf16.mxu0 0
      %2175 = vmatpush1.bf16.msra.mxu0 %v2107
      %2176 = vmatprep.subr.bf16.mxu0 0
      %2177 = vmatpush1.bf16.msra.mxu0 %v2108
      %2178 = vmatprep.subr.bf16.mxu0 0
      %2179 = vmatpush1.bf16.msra.mxu0 %v2109
      %2180 = vmatprep.subr.bf16.mxu0 0
      %2181 = vmatpush1.bf16.msra.mxu0 %v2110
      %2182 = vmatprep.subr.bf16.mxu0 0
      %2183 = vmatpush1.bf16.msra.mxu0 %v2111
      %2184 = vmatprep.subr.bf16.mxu0 0
      %2185 = vmatpush1.bf16.msra.mxu0 %v2112
      %2186 = vmatprep.subr.bf16.mxu0 0
      %2187 = vmatpush1.bf16.msra.mxu0 %v2113
      %2188 = vmatprep.subr.bf16.mxu0 0
      %2189 = vmatpush1.bf16.msra.mxu0 %v2114
      %2190 = vmatprep.subr.bf16.mxu0 0
      %2191 = vmatpush1.bf16.msra.mxu0 %v2115
      %2192 = vmatprep.subr.bf16.mxu0 0
      %2193 = vmatpush1.bf16.msra.mxu0 %v2116
      %2194 = vmatprep.subr.bf16.mxu0 0
      %2195 = vmatpush1.bf16.msra.mxu0 %v2117
      %2196 = vmatprep.subr.bf16.mxu0 0
      %2197 = vmatpush1.bf16.msra.mxu0 %v2118
      %2198 = vmatprep.subr.bf16.mxu0 0
      %2199 = vmatpush1.bf16.msra.mxu0 %v2119
      %2200 = vmatprep.mubr.bf16.mxu0 %v1945
      %2201 = vmatmul.mubr.bf16.gmra.mrb[0].mxu0 %v1944
      %v2202 = vpop.f32.mrb[0].mxu0
      %v2203 = vadd.f32 0.0, %v2202
      %v2204 = vpop.f32.mrb[0].mxu0
      %v2205 = vpop.f32.mrb[0].mxu0
      %v2206 = vadd.f32 0.0, %v2205
      %v2207 = vpop.f32.mrb[0].mxu0
      %2208 = vmatprep.mubr.bf16.mxu0 %v1949
      %2209 = vmatmul.mubr.bf16.gmra.mrb[0].mxu0 %v1948
      %v2210 = vpop.f32.mrb[0].mxu0
      %v2211 = vadd.f32 0.0, %v2210
      %v2212 = vpop.f32.mrb[0].mxu0
      %v2213 = vpop.f32.mrb[0].mxu0
      %v2214 = vadd.f32 0.0, %v2213
      %v2215 = vpop.f32.mrb[0].mxu0
      %2216 = vmatprep.mubr.bf16.mxu0 %v1953
      %2217 = vmatmul.mubr.bf16.gmra.mrb[0].mxu0 %v1952
      %v2218 = vpop.f32.mrb[0].mxu0
      %v2219 = vadd.f32 0.0, %v2218
      %v2220 = vpop.f32.mrb[0].mxu0
      %v2221 = vpop.f32.mrb[0].mxu0
      %v2222 = vadd.f32 0.0, %v2221
      %v2223 = vpop.f32.mrb[0].mxu0
      %2224 = vmatprep.mubr.bf16.mxu0 %v1957
      %2225 = vmatmul.mubr.bf16.gmra.mrb[0].mxu0 %v1956
      %v2226 = vpop.f32.mrb[0].mxu0
      %v2227 = vadd.f32 0.0, %v2226
      %v2228 = vpop.f32.mrb[0].mxu0
      %v2229 = vpop.f32.mrb[0].mxu0
      %v2230 = vadd.f32 0.0, %v2229
      %v2231 = vpop.f32.mrb[0].mxu0
      %2232 = vdwg.mxu0
      %2233 = vmatprep.subr.bf16.mxu0 0
      %2234 = vmatpush1.bf16.msra.mxu0 %v2120
      %2235 = vmatprep.subr.bf16.mxu0 0
      %2236 = vmatpush1.bf16.msra.mxu0 %v2121
      %2237 = vmatprep.subr.bf16.mxu0 0
      %2238 = vmatpush1.bf16.msra.mxu0 %v2122
      %2239 = vmatprep.subr.bf16.mxu0 0
      %2240 = vmatpush1.bf16.msra.mxu0 %v2123
      %2241 = vmatprep.subr.bf16.mxu0 0
      %2242 = vmatpush1.bf16.msra.mxu0 %v2124
      %2243 = vmatprep.subr.bf16.mxu0 0
      %2244 = vmatpush1.bf16.msra.mxu0 %v2125
      %2245 = vmatprep.subr.bf16.mxu0 0
      %2246 = vmatpush1.bf16.msra.mxu0 %v2126
      %2247 = vmatprep.subr.bf16.mxu0 0
      %2248 = vmatpush1.bf16.msra.mxu0 %v2127
      %2249 = vmatprep.subr.bf16.mxu0 0
      %2250 = vmatpush1.bf16.msra.mxu0 %v2128
      %2251 = vmatprep.subr.bf16.mxu0 0
      %2252 = vmatpush1.bf16.msra.mxu0 %v2129
      %2253 = vmatprep.subr.bf16.mxu0 0
      %2254 = vmatpush1.bf16.msra.mxu0 %v2130
      %2255 = vmatprep.subr.bf16.mxu0 0
      %2256 = vmatpush1.bf16.msra.mxu0 %v2131
      %2257 = vmatprep.subr.bf16.mxu0 0
      %2258 = vmatpush1.bf16.msra.mxu0 %v2132
      %2259 = vmatprep.subr.bf16.mxu0 0
      %2260 = vmatpush1.bf16.msra.mxu0 %v2133
      %2261 = vmatprep.subr.bf16.mxu0 0
      %2262 = vmatpush1.bf16.msra.mxu0 %v2134
      %2263 = vmatprep.subr.bf16.mxu0 0
      %2264 = vmatpush1.bf16.msra.mxu0 %v2135
      %2265 = vmatprep.mubr.bf16.mxu0 %v1947
      %2266 = vmatmul.mubr.bf16.gmra.mrb[0].mxu0 %v1946
      %v2267 = vpop.f32.mrb[0].mxu0
      %v2268 = vadd.f32 %v2203, %v2267
      %v2269 = vpop.f32.mrb[0].mxu0
      %v2270 = vpop.f32.mrb[0].mxu0
      %v2271 = vadd.f32 %v2206, %v2270
      %v2272 = vpop.f32.mrb[0].mxu0
      %2273 = vmatprep.mubr.bf16.mxu0 %v1951
      %2274 = vmatmul.mubr.bf16.gmra.mrb[0].mxu0 %v1950
      %v2275 = vpop.f32.mrb[0].mxu0
      %v2276 = vadd.f32 %v2211, %v2275
      %v2277 = vpop.f32.mrb[0].mxu0
      %v2278 = vpop.f32.mrb[0].mxu0
      %v2279 = vadd.f32 %v2214, %v2278
      %v2280 = vpop.f32.mrb[0].mxu0
      %2281 = vmatprep.mubr.bf16.mxu0 %v1955
      %2282 = vmatmul.mubr.bf16.gmra.mrb[0].mxu0 %v1954
      %v2283 = vpop.f32.mrb[0].mxu0
      %v2284 = vadd.f32 %v2219, %v2283
      %v2285 = vpop.f32.mrb[0].mxu0
      %v2286 = vpop.f32.mrb[0].mxu0
      %v2287 = vadd.f32 %v2222, %v2286
      %v2288 = vpop.f32.mrb[0].mxu0
      %2289 = vmatprep.mubr.bf16.mxu0 %v1959
      %2290 = vmatmul.mubr.bf16.gmra.mrb[0].mxu0 %v1958
      %v2291 = vpop.f32.mrb[0].mxu0
      %v2292 = vadd.f32 %v2227, %v2291
      %v2293 = vpop.f32.mrb[0].mxu0
      %v2294 = vpop.f32.mrb[0].mxu0
      %v2295 = vadd.f32 %v2230, %v2294
      %v2296 = vpop.f32.mrb[0].mxu0
      %2297 = vdwg.mxu0
      %v2298 = vld [vmem:[%s2] sm:$0x1]
      %v2300 = vlaneseq
      %v2301 = vshrl.u32 %v2300, 7
      %v2302 = vsub.s32 0, %v2301
      %v2303 = vrot.slane %v2298, %v2302
      %v2305 = vmul.f32 %v2268, %v2303
      %v2306 = vmul.f32 %v2271, %v2303
      %v2307 = vmul.f32 %v2276, %v2303
      %v2308 = vmul.f32 %v2279, %v2303
      %v2309 = vmul.f32 %v2284, %v2303
      %v2310 = vmul.f32 %v2287, %v2303
      %v2311 = vmul.f32 %v2292, %v2303
      %v2312 = vmul.f32 %v2295, %v2303
      %v2313 = vld [vmem:[%s3] sm:$0x1]
      %v2315 = vlaneseq
      %v2316 = vshrl.u32 %v2315, 7
      %v2317 = vsub.s32 0, %v2316
      %v2318 = vrot.slane %v2313, %v2317
      %v2320 = vadd.f32 %v2305, %v2318
      %v2321 = vadd.f32 %v2306, %v2318
      %v2322 = vadd.f32 %v2307, %v2318
      %v2323 = vadd.f32 %v2308, %v2318
      %v2324 = vadd.f32 %v2309, %v2318
      %v2325 = vadd.f32 %v2310, %v2318
      %v2326 = vadd.f32 %v2311, %v2318
      %v2327 = vadd.f32 %v2312, %v2318
      %v2328 = vmax.f32 %v2320, 0.0
      %v2329 = vmax.f32 %v2321, 0.0
      %v2330 = vmax.f32 %v2322, 0.0
      %v2331 = vmax.f32 %v2323, 0.0
      %v2332 = vmax.f32 %v2324, 0.0
      %v2333 = vmax.f32 %v2325, 0.0
      %v2334 = vmax.f32 %v2326, 0.0
      %v2335 = vmax.f32 %v2327, 0.0
      %v2336 = vpack.c.bf16 %v2329, %v2328
      %v2337 = vpack.c.bf16 %v2331, %v2330
      %v2338 = vpack.c.bf16 %v2333, %v2332
      %v2339 = vpack.c.bf16 %v2335, %v2334
      %v2340 = vld [vmem:[%s4] sm:$0xf]
      %v2341 = vld [vmem:[%s4 + $0x4] sm:$0xf]
      %v2342 = vld [vmem:[%s4 + $0x8] sm:$0xf]
      %v2343 = vld [vmem:[%s4 + $0xc] sm:$0xf]
      %v2344 = vld [vmem:[%s4 + $0x10] sm:$0xf]
      %v2345 = vld [vmem:[%s4 + $0x14] sm:$0xf]
      %v2346 = vld [vmem:[%s4 + $0x18] sm:$0xf]
      %v2347 = vld [vmem:[%s4 + $0x1c] sm:$0xf]
      %v2348 = vld [vmem:[%s4 + $0x20] sm:$0xf]
      %v2349 = vld [vmem:[%s4 + $0x24] sm:$0xf]
      %v2350 = vld [vmem:[%s4 + $0x28] sm:$0xf]
      %v2351 = vld [vmem:[%s4 + $0x2c] sm:$0xf]
      %v2352 = vld [vmem:[%s4 + $0x30] sm:$0xf]
      %v2353 = vld [vmem:[%s4 + $0x34] sm:$0xf]
      %v2354 = vld [vmem:[%s4 + $0x38] sm:$0xf]
      %v2355 = vld [vmem:[%s4 + $0x3c] sm:$0xf]
      %v2372 = vunpack.c.l.b16 %v2340
      %v2373 = vunpack.c.l.b16 %v2341
      %v2374 = vunpack.c.l.b16 %v2342
      %v2375 = vunpack.c.l.b16 %v2343
      %v2376 = vunpack.c.l.b16 %v2344
      %v2377 = vunpack.c.l.b16 %v2345
      %v2378 = vunpack.c.l.b16 %v2346
      %v2379 = vunpack.c.l.b16 %v2347
      %v2380 = vunpack.c.l.b16 %v2348
      %v2381 = vunpack.c.l.b16 %v2349
      %v2382 = vunpack.c.l.b16 %v2350
      %v2383 = vunpack.c.l.b16 %v2351
      %v2384 = vunpack.c.l.b16 %v2352
      %v2385 = vunpack.c.l.b16 %v2353
      %v2386 = vunpack.c.l.b16 %v2354
      %v2387 = vunpack.c.l.b16 %v2355
      %v2388 = vpack.c.b16 %v2373, %v2372
      %v2389 = vpack.c.b16 %v2375, %v2374
      %v2390 = vpack.c.b16 %v2377, %v2376
      %v2391 = vpack.c.b16 %v2379, %v2378
      %v2392 = vpack.c.b16 %v2381, %v2380
      %v2393 = vpack.c.b16 %v2383, %v2382
      %v2394 = vpack.c.b16 %v2385, %v2384
      %v2395 = vpack.c.b16 %v2387, %v2386
      %2404 = vmatprep.subr.bf16.mxu0 0
      %2405 = vmatpush1.bf16.msra.mxu0 %v2388
      %2406 = vmatprep.subr.bf16.mxu0 0
      %2407 = vmatpush1.bf16.msra.mxu0 %v2389
      %2408 = vmatprep.subr.bf16.mxu0 0
      %2409 = vmatpush1.bf16.msra.mxu0 %v2390
      %2410 = vmatprep.subr.bf16.mxu0 0
      %2411 = vmatpush1.bf16.msra.mxu0 %v2391
      %2412 = vmatprep.subr.bf16.mxu0 0
      %2413 = vmatpush1.bf16.msra.mxu0 %v2392
      %2414 = vmatprep.subr.bf16.mxu0 0
      %2415 = vmatpush1.bf16.msra.mxu0 %v2393
      %2416 = vmatprep.subr.bf16.mxu0 0
      %2417 = vmatpush1.bf16.msra.mxu0 %v2394
      %2418 = vmatprep.subr.bf16.mxu0 0
      %2419 = vmatpush1.bf16.msra.mxu0 %v2395
      %2420 = vmatprep.subr.bf16.mxu0 0
      %2421 = vmatpush1.bf16.msra.mxu0 0
      %2422 = vmatprep.subr.bf16.mxu0 0
      %2423 = vmatpush1.bf16.msra.mxu0 0
      %2424 = vmatprep.subr.bf16.mxu0 0
      %2425 = vmatpush1.bf16.msra.mxu0 0
      %2426 = vmatprep.subr.bf16.mxu0 0
      %2427 = vmatpush1.bf16.msra.mxu0 0
      %2428 = vmatprep.subr.bf16.mxu0 0
      %2429 = vmatpush1.bf16.msra.mxu0 0
      %2430 = vmatprep.subr.bf16.mxu0 0
      %2431 = vmatpush1.bf16.msra.mxu0 0
      %2432 = vmatprep.subr.bf16.mxu0 0
      %2433 = vmatpush1.bf16.msra.mxu0 0
      %2434 = vmatprep.subr.bf16.mxu0 0
      %2435 = vmatpush1.bf16.msra.mxu0 0
      %2436 = vmatprep.mubr.bf16.mxu0 0
      %2437 = vmatmul.mubr.bf16.gmra.mrb[0].mxu0 %v2336
      %v2438 = vpop.f32.mrb[0].mxu0
      %v2439 = vadd.f32 0.0, %v2438
      %v2440 = vpop.f32.mrb[0].mxu0
      %v2441 = vpop.f32.mrb[0].mxu0
      %v2442 = vadd.f32 0.0, %v2441
      %v2443 = vpop.f32.mrb[0].mxu0
      %2444 = vmatprep.mubr.bf16.mxu0 0
      %2445 = vmatmul.mubr.bf16.gmra.mrb[0].mxu0 %v2337
      %v2446 = vpop.f32.mrb[0].mxu0
      %v2447 = vadd.f32 0.0, %v2446
      %v2448 = vpop.f32.mrb[0].mxu0
      %v2449 = vpop.f32.mrb[0].mxu0
      %v2450 = vadd.f32 0.0, %v2449
      %v2451 = vpop.f32.mrb[0].mxu0
      %2452 = vmatprep.mubr.bf16.mxu0 0
      %2453 = vmatmul.mubr.bf16.gmra.mrb[0].mxu0 %v2338
      %v2454 = vpop.f32.mrb[0].mxu0
      %v2455 = vadd.f32 0.0, %v2454
      %v2456 = vpop.f32.mrb[0].mxu0
      %v2457 = vpop.f32.mrb[0].mxu0
      %v2458 = vadd.f32 0.0, %v2457
      %v2459 = vpop.f32.mrb[0].mxu0
      %2460 = vmatprep.mubr.bf16.mxu0 0
      %2461 = vmatmul.mubr.bf16.gmra.mrb[0].mxu0 %v2339
      %v2462 = vpop.f32.mrb[0].mxu0
      %v2463 = vadd.f32 0.0, %v2462
      %v2464 = vpop.f32.mrb[0].mxu0
      %v2465 = vpop.f32.mrb[0].mxu0
      %v2466 = vadd.f32 0.0, %v2465
      %v2467 = vpop.f32.mrb[0].mxu0
      %2468 = vdwg.mxu0
      %v2469 = vld [vmem:[%s5] sm:$0x1]
      %v2471 = vlaneseq
      %v2472 = vshrl.u32 %v2471, 7
      %v2473 = vsub.s32 0, %v2472
      %v2474 = vrot.slane %v2469, %v2473
      %v2476 = vmul.f32 %v2439, %v2474
      %v2477 = vmul.f32 %v2442, %v2474
      %v2478 = vmul.f32 %v2447, %v2474
      %v2479 = vmul.f32 %v2450, %v2474
      %v2480 = vmul.f32 %v2455, %v2474
      %v2481 = vmul.f32 %v2458, %v2474
      %v2482 = vmul.f32 %v2463, %v2474
      %v2483 = vmul.f32 %v2466, %v2474
      %v2484 = vld [vmem:[%s6] sm:$0x1]
      %v2486 = vlaneseq
      %v2487 = vshrl.u32 %v2486, 7
      %v2488 = vsub.s32 0, %v2487
      %v2489 = vrot.slane %v2484, %v2488
      %v2491 = vadd.f32 %v2476, %v2489
      %v2492 = vadd.f32 %v2477, %v2489
      %v2493 = vadd.f32 %v2478, %v2489
      %v2494 = vadd.f32 %v2479, %v2489
      %v2495 = vadd.f32 %v2480, %v2489
      %v2496 = vadd.f32 %v2481, %v2489
      %v2497 = vadd.f32 %v2482, %v2489
      %v2498 = vadd.f32 %v2483, %v2489
      %v2499 = vmax.f32 %v2491, 0.0
      %v2500 = vmax.f32 %v2492, 0.0
      %v2501 = vmax.f32 %v2493, 0.0
      %v2502 = vmax.f32 %v2494, 0.0
      %v2503 = vmax.f32 %v2495, 0.0
      %v2504 = vmax.f32 %v2496, 0.0
      %v2505 = vmax.f32 %v2497, 0.0
      %v2506 = vmax.f32 %v2498, 0.0
      %v2507 = vpack.c.bf16 %v2500, %v2499
      %v2508 = vpack.c.bf16 %v2502, %v2501
      %v2509 = vpack.c.bf16 %v2504, %v2503
      %v2510 = vpack.c.bf16 %v2506, %v2505
      %v2515 = vunpack.c.l.b16 %v2507
      %v2516 = vunpack.c.h.b16 %v2507
      %v2517 = vunpack.c.l.b16 %v2508
      %v2518 = vunpack.c.h.b16 %v2508
      %v2519 = vunpack.c.l.b16 %v2509
      %v2520 = vunpack.c.h.b16 %v2509
      %v2521 = vunpack.c.l.b16 %v2510
      %v2522 = vunpack.c.h.b16 %v2510
      %v2523 = vpack.c.b16 %v2515, %v2515
      %v2524 = vpack.c.b16 %v2516, %v2516
      %v2525 = vpack.c.b16 %v2517, %v2517
      %v2526 = vpack.c.b16 %v2518, %v2518
      %v2527 = vpack.c.b16 %v2519, %v2519
      %v2528 = vpack.c.b16 %v2520, %v2520
      %v2529 = vpack.c.b16 %v2521, %v2521
      %v2530 = vpack.c.b16 %v2522, %v2522
      %s2539 = scalar_lea.vmem %s345, 32
      %2540 = vst [vmem:[%s2539] sm:$0xf] %v2523
      %2541 = vst [vmem:[%s2539 + $0x4] sm:$0xf] %v2524
      %2542 = vst [vmem:[%s2539 + $0x8] sm:$0xf] %v2525
      %2543 = vst [vmem:[%s2539 + $0xc] sm:$0xf] %v2526
      %2544 = vst [vmem:[%s2539 + $0x10] sm:$0xf] %v2527
      %2545 = vst [vmem:[%s2539 + $0x14] sm:$0xf] %v2528
      %2546 = vst [vmem:[%s2539 + $0x18] sm:$0xf] %v2529
      %2547 = vst [vmem:[%s2539 + $0x1c] sm:$0xf] %v2530
      %v2548 = vunpack.c.l.bf16 %v2507
      %v2549 = vunpack.c.h.bf16 %v2507
      %v2550 = vunpack.c.l.bf16 %v2508
      %v2551 = vunpack.c.h.bf16 %v2508
      %v2552 = vunpack.c.l.bf16 %v2509
      %v2553 = vunpack.c.h.bf16 %v2509
      %v2554 = vunpack.c.l.bf16 %v2510
      %v2555 = vunpack.c.h.bf16 %v2510
      %v2556 = vadd.f32 %v2548, %v2549
      %v2557 = vadd.f32 %v2556, %v2550
      %v2558 = vadd.f32 %v2557, %v2551
      %v2559 = vadd.f32 %v2558, %v2552
      %v2560 = vadd.f32 %v2559, %v2553
      %v2561 = vadd.f32 %v2560, %v2554
      %v2562 = vadd.f32 %v2561, %v2555
      %v2563 = vrot.slane %v2562, 4
      %v2564 = vadd.f32 %v2562, %v2563
      %v2565 = vrot.slane %v2564, 2
      %v2566 = vadd.f32 %v2564, %v2565
      %v2567 = vrot.slane %v2566, 1
      %v2568 = vadd.f32 %v2566, %v2567
      %v2569 = vadd.f32 %v1283, %v2568
      %v2570 = vld [vmem:[%s370] sm:$0xf]
      %v2571 = vld [vmem:[%s370 + $0x8] sm:$0xf]
      %v2572 = vld [vmem:[%s370 + $0x10] sm:$0xf]
      %v2573 = vld [vmem:[%s370 + $0x18] sm:$0xf]
      %v2574 = vld [vmem:[%s370 + $0x20] sm:$0xf]
      %v2575 = vld [vmem:[%s370 + $0x28] sm:$0xf]
      %v2576 = vld [vmem:[%s370 + $0x30] sm:$0xf]
      %v2577 = vld [vmem:[%s370 + $0x38] sm:$0xf]
      %v2578 = vld [vmem:[%s370 + $0x4] sm:$0x1]
      %v2579 = vld [vmem:[%s370 + $0xc] sm:$0x1]
      %v2580 = vld [vmem:[%s370 + $0x14] sm:$0x1]
      %v2581 = vld [vmem:[%s370 + $0x1c] sm:$0x1]
      %v2582 = vld [vmem:[%s370 + $0x24] sm:$0x1]
      %v2583 = vld [vmem:[%s370 + $0x2c] sm:$0x1]
      %v2584 = vld [vmem:[%s370 + $0x34] sm:$0x1]
      %v2585 = vld [vmem:[%s370 + $0x3c] sm:$0x1]
      %s2586 = scalar_lea.vmem %s334, 16
      %v2587 = vld [vmem:[%s2586] sm:$0xf]
      %v2588 = vld [vmem:[%s2586 + $0x8] sm:$0xf]
      %v2589 = vld [vmem:[%s2586 + $0x10] sm:$0xf]
      %v2590 = vld [vmem:[%s2586 + $0x18] sm:$0xf]
      %v2591 = vld [vmem:[%s2586 + $0x20] sm:$0xf]
      %v2592 = vld [vmem:[%s2586 + $0x28] sm:$0xf]
      %v2593 = vld [vmem:[%s2586 + $0x30] sm:$0xf]
      %v2594 = vld [vmem:[%s2586 + $0x38] sm:$0xf]
      %v2595 = vld [vmem:[%s2586 + $0x4] sm:$0x1]
      %v2596 = vld [vmem:[%s2586 + $0xc] sm:$0x1]
      %v2597 = vld [vmem:[%s2586 + $0x14] sm:$0x1]
      %v2598 = vld [vmem:[%s2586 + $0x1c] sm:$0x1]
      %v2599 = vld [vmem:[%s2586 + $0x24] sm:$0x1]
      %v2600 = vld [vmem:[%s2586 + $0x2c] sm:$0x1]
      %v2601 = vld [vmem:[%s2586 + $0x34] sm:$0x1]
      %v2602 = vld [vmem:[%s2586 + $0x3c] sm:$0x1]
      %v2619 = vunpack.c.l.b16 %v2570
      %v2620 = vunpack.c.l.b16 %v2578
      %v2621 = vunpack.c.l.b16 %v2571
      %v2622 = vunpack.c.l.b16 %v2579
      %v2623 = vunpack.c.l.b16 %v2572
      %v2624 = vunpack.c.l.b16 %v2580
      %v2625 = vunpack.c.l.b16 %v2573
      %v2626 = vunpack.c.l.b16 %v2581
      %v2627 = vunpack.c.l.b16 %v2574
      %v2628 = vunpack.c.l.b16 %v2582
      %v2629 = vunpack.c.l.b16 %v2575
      %v2630 = vunpack.c.l.b16 %v2583
      %v2631 = vunpack.c.l.b16 %v2576
      %v2632 = vunpack.c.l.b16 %v2584
      %v2633 = vunpack.c.l.b16 %v2577
      %v2634 = vunpack.c.l.b16 %v2585
      %v2635 = vpack.c.b16 %v2620, %v2619
      %v2636 = vpack.c.b16 %v2622, %v2621
      %v2637 = vpack.c.b16 %v2624, %v2623
      %v2638 = vpack.c.b16 %v2626, %v2625
      %v2639 = vpack.c.b16 %v2628, %v2627
      %v2640 = vpack.c.b16 %v2630, %v2629
      %v2641 = vpack.c.b16 %v2632, %v2631
      %v2642 = vpack.c.b16 %v2634, %v2633
      %v2644 = vshrl.u32 %v2635, 16
      %v2646 = vshll.u32 %v2635, 16
      %v2648 = vrot.slane %v2646, 1
      %v2649 = vor.u32 %v2644, %v2648
      %v2651 = vshrl.u32 %v2636, 16
      %v2653 = vshll.u32 %v2636, 16
      %v2655 = vrot.slane %v2653, 1
      %v2656 = vor.u32 %v2651, %v2655
      %v2658 = vshrl.u32 %v2637, 16
      %v2660 = vshll.u32 %v2637, 16
      %v2662 = vrot.slane %v2660, 1
      %v2663 = vor.u32 %v2658, %v2662
      %v2665 = vshrl.u32 %v2638, 16
      %v2667 = vshll.u32 %v2638, 16
      %v2669 = vrot.slane %v2667, 1
      %v2670 = vor.u32 %v2665, %v2669
      %v2672 = vshrl.u32 %v2639, 16
      %v2674 = vshll.u32 %v2639, 16
      %v2676 = vrot.slane %v2674, 1
      %v2677 = vor.u32 %v2672, %v2676
      %v2679 = vshrl.u32 %v2640, 16
      %v2681 = vshll.u32 %v2640, 16
      %v2683 = vrot.slane %v2681, 1
      %v2684 = vor.u32 %v2679, %v2683
      %v2686 = vshrl.u32 %v2641, 16
      %v2688 = vshll.u32 %v2641, 16
      %v2690 = vrot.slane %v2688, 1
      %v2691 = vor.u32 %v2686, %v2690
      %v2693 = vshrl.u32 %v2642, 16
      %v2695 = vshll.u32 %v2642, 16
      %v2697 = vrot.slane %v2695, 1
      %v2698 = vor.u32 %v2693, %v2697
      %v2715 = vunpack.c.l.b16 %v2587
      %v2716 = vunpack.c.l.b16 %v2595
      %v2717 = vunpack.c.l.b16 %v2588
      %v2718 = vunpack.c.l.b16 %v2596
      %v2719 = vunpack.c.l.b16 %v2589
      %v2720 = vunpack.c.l.b16 %v2597
      %v2721 = vunpack.c.l.b16 %v2590
      %v2722 = vunpack.c.l.b16 %v2598
      %v2723 = vunpack.c.l.b16 %v2591
      %v2724 = vunpack.c.l.b16 %v2599
      %v2725 = vunpack.c.l.b16 %v2592
      %v2726 = vunpack.c.l.b16 %v2600
      %v2727 = vunpack.c.l.b16 %v2593
      %v2728 = vunpack.c.l.b16 %v2601
      %v2729 = vunpack.c.l.b16 %v2594
      %v2730 = vunpack.c.l.b16 %v2602
      %v2731 = vpack.c.b16 %v2716, %v2715
      %v2732 = vpack.c.b16 %v2718, %v2717
      %v2733 = vpack.c.b16 %v2720, %v2719
      %v2734 = vpack.c.b16 %v2722, %v2721
      %v2735 = vpack.c.b16 %v2724, %v2723
      %v2736 = vpack.c.b16 %v2726, %v2725
      %v2737 = vpack.c.b16 %v2728, %v2727
      %v2738 = vpack.c.b16 %v2730, %v2729
      %v2740 = vshrl.u32 %v2731, 16
      %v2742 = vshll.u32 %v2731, 16
      %v2744 = vrot.slane %v2742, 1
      %v2745 = vor.u32 %v2740, %v2744
      %v2747 = vshrl.u32 %v2732, 16
      %v2749 = vshll.u32 %v2732, 16
      %v2751 = vrot.slane %v2749, 1
      %v2752 = vor.u32 %v2747, %v2751
      %v2754 = vshrl.u32 %v2733, 16
      %v2756 = vshll.u32 %v2733, 16
      %v2758 = vrot.slane %v2756, 1
      %v2759 = vor.u32 %v2754, %v2758
      %v2761 = vshrl.u32 %v2734, 16
      %v2763 = vshll.u32 %v2734, 16
      %v2765 = vrot.slane %v2763, 1
      %v2766 = vor.u32 %v2761, %v2765
      %v2768 = vshrl.u32 %v2735, 16
      %v2770 = vshll.u32 %v2735, 16
      %v2772 = vrot.slane %v2770, 1
      %v2773 = vor.u32 %v2768, %v2772
      %v2775 = vshrl.u32 %v2736, 16
      %v2777 = vshll.u32 %v2736, 16
      %v2779 = vrot.slane %v2777, 1
      %v2780 = vor.u32 %v2775, %v2779
      %v2782 = vshrl.u32 %v2737, 16
      %v2784 = vshll.u32 %v2737, 16
      %v2786 = vrot.slane %v2784, 1
      %v2787 = vor.u32 %v2782, %v2786
      %v2789 = vshrl.u32 %v2738, 16
      %v2791 = vshll.u32 %v2738, 16
      %v2793 = vrot.slane %v2791, 1
      %v2794 = vor.u32 %v2789, %v2793
      %v2795 = vunpack.c.l.b16 %v2649
      %v2796 = vunpack.c.l.b16 %v2745
      %v2797 = vunpack.c.l.b16 %v2656
      %v2798 = vunpack.c.l.b16 %v2752
      %v2799 = vunpack.c.l.b16 %v2663
      %v2800 = vunpack.c.l.b16 %v2759
      %v2801 = vunpack.c.l.b16 %v2670
      %v2802 = vunpack.c.l.b16 %v2766
      %v2803 = vunpack.c.l.b16 %v2677
      %v2804 = vunpack.c.l.b16 %v2773
      %v2805 = vunpack.c.l.b16 %v2684
      %v2806 = vunpack.c.l.b16 %v2780
      %v2807 = vunpack.c.l.b16 %v2691
      %v2808 = vunpack.c.l.b16 %v2787
      %v2809 = vunpack.c.l.b16 %v2698
      %v2810 = vunpack.c.l.b16 %v2794
      %s2811 = scalar_lea.vmem %s1, 512
      %v2812 = vld [vmem:[%s2811] sm:$0xf]
      %v2813 = vld [vmem:[%s2811 + $0x4] sm:$0xf]
      %v2814 = vld [vmem:[%s2811 + $0x8] sm:$0xf]
      %v2815 = vld [vmem:[%s2811 + $0xc] sm:$0xf]
      %v2816 = vld [vmem:[%s2811 + $0x10] sm:$0xf]
      %v2817 = vld [vmem:[%s2811 + $0x14] sm:$0xf]
      %v2818 = vld [vmem:[%s2811 + $0x18] sm:$0xf]
      %v2819 = vld [vmem:[%s2811 + $0x1c] sm:$0xf]
      %v2820 = vld [vmem:[%s2811 + $0x20] sm:$0xf]
      %v2821 = vld [vmem:[%s2811 + $0x24] sm:$0xf]
      %v2822 = vld [vmem:[%s2811 + $0x28] sm:$0xf]
      %v2823 = vld [vmem:[%s2811 + $0x2c] sm:$0xf]
      %v2824 = vld [vmem:[%s2811 + $0x30] sm:$0xf]
      %v2825 = vld [vmem:[%s2811 + $0x34] sm:$0xf]
      %v2826 = vld [vmem:[%s2811 + $0x38] sm:$0xf]
      %v2827 = vld [vmem:[%s2811 + $0x3c] sm:$0xf]
      %v2828 = vld [vmem:[%s2811 + $0x40] sm:$0xf]
      %v2829 = vld [vmem:[%s2811 + $0x44] sm:$0xf]
      %v2830 = vld [vmem:[%s2811 + $0x48] sm:$0xf]
      %v2831 = vld [vmem:[%s2811 + $0x4c] sm:$0xf]
      %v2832 = vld [vmem:[%s2811 + $0x50] sm:$0xf]
      %v2833 = vld [vmem:[%s2811 + $0x54] sm:$0xf]
      %v2834 = vld [vmem:[%s2811 + $0x58] sm:$0xf]
      %v2835 = vld [vmem:[%s2811 + $0x5c] sm:$0xf]
      %v2836 = vld [vmem:[%s2811 + $0x60] sm:$0xf]
      %v2837 = vld [vmem:[%s2811 + $0x64] sm:$0xf]
      %v2838 = vld [vmem:[%s2811 + $0x68] sm:$0xf]
      %v2839 = vld [vmem:[%s2811 + $0x6c] sm:$0xf]
      %v2840 = vld [vmem:[%s2811 + $0x70] sm:$0xf]
      %v2841 = vld [vmem:[%s2811 + $0x74] sm:$0xf]
      %v2842 = vld [vmem:[%s2811 + $0x78] sm:$0xf]
      %v2843 = vld [vmem:[%s2811 + $0x7c] sm:$0xf]
      %v2844 = vld [vmem:[%s2811 + $0x80] sm:$0xf]
      %v2845 = vld [vmem:[%s2811 + $0x84] sm:$0xf]
      %v2846 = vld [vmem:[%s2811 + $0x88] sm:$0xf]
      %v2847 = vld [vmem:[%s2811 + $0x8c] sm:$0xf]
      %v2848 = vld [vmem:[%s2811 + $0x90] sm:$0xf]
      %v2849 = vld [vmem:[%s2811 + $0x94] sm:$0xf]
      %v2850 = vld [vmem:[%s2811 + $0x98] sm:$0xf]
      %v2851 = vld [vmem:[%s2811 + $0x9c] sm:$0xf]
      %v2852 = vld [vmem:[%s2811 + $0xa0] sm:$0xf]
      %v2853 = vld [vmem:[%s2811 + $0xa4] sm:$0xf]
      %v2854 = vld [vmem:[%s2811 + $0xa8] sm:$0xf]
      %v2855 = vld [vmem:[%s2811 + $0xac] sm:$0xf]
      %v2856 = vld [vmem:[%s2811 + $0xb0] sm:$0xf]
      %v2857 = vld [vmem:[%s2811 + $0xb4] sm:$0xf]
      %v2858 = vld [vmem:[%s2811 + $0xb8] sm:$0xf]
      %v2859 = vld [vmem:[%s2811 + $0xbc] sm:$0xf]
      %v2860 = vld [vmem:[%s2811 + $0xc0] sm:$0xf]
      %v2861 = vld [vmem:[%s2811 + $0xc4] sm:$0xf]
      %v2862 = vld [vmem:[%s2811 + $0xc8] sm:$0xf]
      %v2863 = vld [vmem:[%s2811 + $0xcc] sm:$0xf]
      %v2864 = vld [vmem:[%s2811 + $0xd0] sm:$0xf]
      %v2865 = vld [vmem:[%s2811 + $0xd4] sm:$0xf]
      %v2866 = vld [vmem:[%s2811 + $0xd8] sm:$0xf]
      %v2867 = vld [vmem:[%s2811 + $0xdc] sm:$0xf]
      %v2868 = vld [vmem:[%s2811 + $0xe0] sm:$0xf]
      %v2869 = vld [vmem:[%s2811 + $0xe4] sm:$0xf]
      %v2870 = vld [vmem:[%s2811 + $0xe8] sm:$0xf]
      %v2871 = vld [vmem:[%s2811 + $0xec] sm:$0xf]
      %v2872 = vld [vmem:[%s2811 + $0xf0] sm:$0xf]
      %v2873 = vld [vmem:[%s2811 + $0xf4] sm:$0xf]
      %v2874 = vld [vmem:[%s2811 + $0xf8] sm:$0xf]
      %v2875 = vld [vmem:[%s2811 + $0xfc] sm:$0xf]
      %v2876 = vpack.c.b16 %v2621, %v2619
      %v2877 = vpack.c.b16 %v2797, %v2795
      %v2878 = vpack.c.b16 %v2717, %v2715
      %v2879 = vpack.c.b16 %v2798, %v2796
      %v2880 = vpack.c.b16 %v2625, %v2623
      %v2881 = vpack.c.b16 %v2801, %v2799
      %v2882 = vpack.c.b16 %v2721, %v2719
      %v2883 = vpack.c.b16 %v2802, %v2800
      %v2884 = vpack.c.b16 %v2629, %v2627
      %v2885 = vpack.c.b16 %v2805, %v2803
      %v2886 = vpack.c.b16 %v2725, %v2723
      %v2887 = vpack.c.b16 %v2806, %v2804
      %v2888 = vpack.c.b16 %v2633, %v2631
      %v2889 = vpack.c.b16 %v2809, %v2807
      %v2890 = vpack.c.b16 %v2729, %v2727
      %v2891 = vpack.c.b16 %v2810, %v2808
      %v2972 = vunpack.c.l.b16 %v2812
      %v2973 = vunpack.c.l.b16 %v2813
      %v2974 = vunpack.c.l.b16 %v2814
      %v2975 = vunpack.c.l.b16 %v2815
      %v2976 = vunpack.c.l.b16 %v2816
      %v2977 = vunpack.c.l.b16 %v2817
      %v2978 = vunpack.c.l.b16 %v2818
      %v2979 = vunpack.c.l.b16 %v2819
      %v2980 = vunpack.c.l.b16 %v2820
      %v2981 = vunpack.c.l.b16 %v2821
      %v2982 = vunpack.c.l.b16 %v2822
      %v2983 = vunpack.c.l.b16 %v2823
      %v2984 = vunpack.c.l.b16 %v2824
      %v2985 = vunpack.c.l.b16 %v2825
      %v2986 = vunpack.c.l.b16 %v2826
      %v2987 = vunpack.c.l.b16 %v2827
      %v2988 = vunpack.c.l.b16 %v2828
      %v2989 = vunpack.c.l.b16 %v2829
      %v2990 = vunpack.c.l.b16 %v2830
      %v2991 = vunpack.c.l.b16 %v2831
      %v2992 = vunpack.c.l.b16 %v2832
      %v2993 = vunpack.c.l.b16 %v2833
      %v2994 = vunpack.c.l.b16 %v2834
      %v2995 = vunpack.c.l.b16 %v2835
      %v2996 = vunpack.c.l.b16 %v2836
      %v2997 = vunpack.c.l.b16 %v2837
      %v2998 = vunpack.c.l.b16 %v2838
      %v2999 = vunpack.c.l.b16 %v2839
      %v3000 = vunpack.c.l.b16 %v2840
      %v3001 = vunpack.c.l.b16 %v2841
      %v3002 = vunpack.c.l.b16 %v2842
      %v3003 = vunpack.c.l.b16 %v2843
      %v3004 = vunpack.c.l.b16 %v2844
      %v3005 = vunpack.c.l.b16 %v2845
      %v3006 = vunpack.c.l.b16 %v2846
      %v3007 = vunpack.c.l.b16 %v2847
      %v3008 = vunpack.c.l.b16 %v2848
      %v3009 = vunpack.c.l.b16 %v2849
      %v3010 = vunpack.c.l.b16 %v2850
      %v3011 = vunpack.c.l.b16 %v2851
      %v3012 = vunpack.c.l.b16 %v2852
      %v3013 = vunpack.c.l.b16 %v2853
      %v3014 = vunpack.c.l.b16 %v2854
      %v3015 = vunpack.c.l.b16 %v2855
      %v3016 = vunpack.c.l.b16 %v2856
      %v3017 = vunpack.c.l.b16 %v2857
      %v3018 = vunpack.c.l.b16 %v2858
      %v3019 = vunpack.c.l.b16 %v2859
      %v3020 = vunpack.c.l.b16 %v2860
      %v3021 = vunpack.c.l.b16 %v2861
      %v3022 = vunpack.c.l.b16 %v2862
      %v3023 = vunpack.c.l.b16 %v2863
      %v3024 = vunpack.c.l.b16 %v2864
      %v3025 = vunpack.c.l.b16 %v2865
      %v3026 = vunpack.c.l.b16 %v2866
      %v3027 = vunpack.c.l.b16 %v2867
      %v3028 = vunpack.c.l.b16 %v2868
      %v3029 = vunpack.c.l.b16 %v2869
      %v3030 = vunpack.c.l.b16 %v2870
      %v3031 = vunpack.c.l.b16 %v2871
      %v3032 = vunpack.c.l.b16 %v2872
      %v3033 = vunpack.c.l.b16 %v2873
      %v3034 = vunpack.c.l.b16 %v2874
      %v3035 = vunpack.c.l.b16 %v2875
      %v3036 = vpack.c.b16 %v2973, %v2972
      %v3037 = vpack.c.b16 %v2975, %v2974
      %v3038 = vpack.c.b16 %v2977, %v2976
      %v3039 = vpack.c.b16 %v2979, %v2978
      %v3040 = vpack.c.b16 %v2981, %v2980
      %v3041 = vpack.c.b16 %v2983, %v2982
      %v3042 = vpack.c.b16 %v2985, %v2984
      %v3043 = vpack.c.b16 %v2987, %v2986
      %v3044 = vpack.c.b16 %v2989, %v2988
      %v3045 = vpack.c.b16 %v2991, %v2990
      %v3046 = vpack.c.b16 %v2993, %v2992
      %v3047 = vpack.c.b16 %v2995, %v2994
      %v3048 = vpack.c.b16 %v2997, %v2996
      %v3049 = vpack.c.b16 %v2999, %v2998
      %v3050 = vpack.c.b16 %v3001, %v3000
      %v3051 = vpack.c.b16 %v3003, %v3002
      %v3052 = vpack.c.b16 %v3005, %v3004
      %v3053 = vpack.c.b16 %v3007, %v3006
      %v3054 = vpack.c.b16 %v3009, %v3008
      %v3055 = vpack.c.b16 %v3011, %v3010
      %v3056 = vpack.c.b16 %v3013, %v3012
      %v3057 = vpack.c.b16 %v3015, %v3014
      %v3058 = vpack.c.b16 %v3017, %v3016
      %v3059 = vpack.c.b16 %v3019, %v3018
      %v3060 = vpack.c.b16 %v3021, %v3020
      %v3061 = vpack.c.b16 %v3023, %v3022
      %v3062 = vpack.c.b16 %v3025, %v3024
      %v3063 = vpack.c.b16 %v3027, %v3026
      %v3064 = vpack.c.b16 %v3029, %v3028
      %v3065 = vpack.c.b16 %v3031, %v3030
      %v3066 = vpack.c.b16 %v3033, %v3032
      %v3067 = vpack.c.b16 %v3035, %v3034
      %3100 = vmatprep.subr.bf16.mxu0 0
      %3101 = vmatpush1.bf16.msra.mxu0 %v3036
      %3102 = vmatprep.subr.bf16.mxu0 0
      %3103 = vmatpush1.bf16.msra.mxu0 %v3037
      %3104 = vmatprep.subr.bf16.mxu0 0
      %3105 = vmatpush1.bf16.msra.mxu0 %v3038
      %3106 = vmatprep.subr.bf16.mxu0 0
      %3107 = vmatpush1.bf16.msra.mxu0 %v3039
      %3108 = vmatprep.subr.bf16.mxu0 0
      %3109 = vmatpush1.bf16.msra.mxu0 %v3040
      %3110 = vmatprep.subr.bf16.mxu0 0
      %3111 = vmatpush1.bf16.msra.mxu0 %v3041
      %3112 = vmatprep.subr.bf16.mxu0 0
      %3113 = vmatpush1.bf16.msra.mxu0 %v3042
      %3114 = vmatprep.subr.bf16.mxu0 0
      %3115 = vmatpush1.bf16.msra.mxu0 %v3043
      %3116 = vmatprep.subr.bf16.mxu0 0
      %3117 = vmatpush1.bf16.msra.mxu0 %v3044
      %3118 = vmatprep.subr.bf16.mxu0 0
      %3119 = vmatpush1.bf16.msra.mxu0 %v3045
      %3120 = vmatprep.subr.bf16.mxu0 0
      %3121 = vmatpush1.bf16.msra.mxu0 %v3046
      %3122 = vmatprep.subr.bf16.mxu0 0
      %3123 = vmatpush1.bf16.msra.mxu0 %v3047
      %3124 = vmatprep.subr.bf16.mxu0 0
      %3125 = vmatpush1.bf16.msra.mxu0 %v3048
      %3126 = vmatprep.subr.bf16.mxu0 0
      %3127 = vmatpush1.bf16.msra.mxu0 %v3049
      %3128 = vmatprep.subr.bf16.mxu0 0
      %3129 = vmatpush1.bf16.msra.mxu0 %v3050
      %3130 = vmatprep.subr.bf16.mxu0 0
      %3131 = vmatpush1.bf16.msra.mxu0 %v3051
      %3132 = vmatprep.mubr.bf16.mxu0 %v2877
      %3133 = vmatmul.mubr.bf16.gmra.mrb[0].mxu0 %v2876
      %v3134 = vpop.f32.mrb[0].mxu0
      %v3135 = vadd.f32 0.0, %v3134
      %v3136 = vpop.f32.mrb[0].mxu0
      %v3137 = vpop.f32.mrb[0].mxu0
      %v3138 = vadd.f32 0.0, %v3137
      %v3139 = vpop.f32.mrb[0].mxu0
      %3140 = vmatprep.mubr.bf16.mxu0 %v2881
      %3141 = vmatmul.mubr.bf16.gmra.mrb[0].mxu0 %v2880
      %v3142 = vpop.f32.mrb[0].mxu0
      %v3143 = vadd.f32 0.0, %v3142
      %v3144 = vpop.f32.mrb[0].mxu0
      %v3145 = vpop.f32.mrb[0].mxu0
      %v3146 = vadd.f32 0.0, %v3145
      %v3147 = vpop.f32.mrb[0].mxu0
      %3148 = vmatprep.mubr.bf16.mxu0 %v2885
      %3149 = vmatmul.mubr.bf16.gmra.mrb[0].mxu0 %v2884
      %v3150 = vpop.f32.mrb[0].mxu0
      %v3151 = vadd.f32 0.0, %v3150
      %v3152 = vpop.f32.mrb[0].mxu0
      %v3153 = vpop.f32.mrb[0].mxu0
      %v3154 = vadd.f32 0.0, %v3153
      %v3155 = vpop.f32.mrb[0].mxu0
      %3156 = vmatprep.mubr.bf16.mxu0 %v2889
      %3157 = vmatmul.mubr.bf16.gmra.mrb[0].mxu0 %v2888
      %v3158 = vpop.f32.mrb[0].mxu0
      %v3159 = vadd.f32 0.0, %v3158
      %v3160 = vpop.f32.mrb[0].mxu0
      %v3161 = vpop.f32.mrb[0].mxu0
      %v3162 = vadd.f32 0.0, %v3161
      %v3163 = vpop.f32.mrb[0].mxu0
      %3164 = vdwg.mxu0
      %3165 = vmatprep.subr.bf16.mxu0 0
      %3166 = vmatpush1.bf16.msra.mxu0 %v3052
      %3167 = vmatprep.subr.bf16.mxu0 0
      %3168 = vmatpush1.bf16.msra.mxu0 %v3053
      %3169 = vmatprep.subr.bf16.mxu0 0
      %3170 = vmatpush1.bf16.msra.mxu0 %v3054
      %3171 = vmatprep.subr.bf16.mxu0 0
      %3172 = vmatpush1.bf16.msra.mxu0 %v3055
      %3173 = vmatprep.subr.bf16.mxu0 0
      %3174 = vmatpush1.bf16.msra.mxu0 %v3056
      %3175 = vmatprep.subr.bf16.mxu0 0
      %3176 = vmatpush1.bf16.msra.mxu0 %v3057
      %3177 = vmatprep.subr.bf16.mxu0 0
      %3178 = vmatpush1.bf16.msra.mxu0 %v3058
      %3179 = vmatprep.subr.bf16.mxu0 0
      %3180 = vmatpush1.bf16.msra.mxu0 %v3059
      %3181 = vmatprep.subr.bf16.mxu0 0
      %3182 = vmatpush1.bf16.msra.mxu0 %v3060
      %3183 = vmatprep.subr.bf16.mxu0 0
      %3184 = vmatpush1.bf16.msra.mxu0 %v3061
      %3185 = vmatprep.subr.bf16.mxu0 0
      %3186 = vmatpush1.bf16.msra.mxu0 %v3062
      %3187 = vmatprep.subr.bf16.mxu0 0
      %3188 = vmatpush1.bf16.msra.mxu0 %v3063
      %3189 = vmatprep.subr.bf16.mxu0 0
      %3190 = vmatpush1.bf16.msra.mxu0 %v3064
      %3191 = vmatprep.subr.bf16.mxu0 0
      %3192 = vmatpush1.bf16.msra.mxu0 %v3065
      %3193 = vmatprep.subr.bf16.mxu0 0
      %3194 = vmatpush1.bf16.msra.mxu0 %v3066
      %3195 = vmatprep.subr.bf16.mxu0 0
      %3196 = vmatpush1.bf16.msra.mxu0 %v3067
      %3197 = vmatprep.mubr.bf16.mxu0 %v2879
      %3198 = vmatmul.mubr.bf16.gmra.mrb[0].mxu0 %v2878
      %v3199 = vpop.f32.mrb[0].mxu0
      %v3200 = vadd.f32 %v3135, %v3199
      %v3201 = vpop.f32.mrb[0].mxu0
      %v3202 = vpop.f32.mrb[0].mxu0
      %v3203 = vadd.f32 %v3138, %v3202
      %v3204 = vpop.f32.mrb[0].mxu0
      %3205 = vmatprep.mubr.bf16.mxu0 %v2883
      %3206 = vmatmul.mubr.bf16.gmra.mrb[0].mxu0 %v2882
      %v3207 = vpop.f32.mrb[0].mxu0
      %v3208 = vadd.f32 %v3143, %v3207
      %v3209 = vpop.f32.mrb[0].mxu0
      %v3210 = vpop.f32.mrb[0].mxu0
      %v3211 = vadd.f32 %v3146, %v3210
      %v3212 = vpop.f32.mrb[0].mxu0
      %3213 = vmatprep.mubr.bf16.mxu0 %v2887
      %3214 = vmatmul.mubr.bf16.gmra.mrb[0].mxu0 %v2886
      %v3215 = vpop.f32.mrb[0].mxu0
      %v3216 = vadd.f32 %v3151, %v3215
      %v3217 = vpop.f32.mrb[0].mxu0
      %v3218 = vpop.f32.mrb[0].mxu0
      %v3219 = vadd.f32 %v3154, %v3218
      %v3220 = vpop.f32.mrb[0].mxu0
      %3221 = vmatprep.mubr.bf16.mxu0 %v2891
      %3222 = vmatmul.mubr.bf16.gmra.mrb[0].mxu0 %v2890
      %v3223 = vpop.f32.mrb[0].mxu0
      %v3224 = vadd.f32 %v3159, %v3223
      %v3225 = vpop.f32.mrb[0].mxu0
      %v3226 = vpop.f32.mrb[0].mxu0
      %v3227 = vadd.f32 %v3162, %v3226
      %v3228 = vpop.f32.mrb[0].mxu0
      %3229 = vdwg.mxu0
      %v3230 = vld [vmem:[%s2] sm:$0x1]
      %v3232 = vlaneseq
      %v3233 = vshrl.u32 %v3232, 7
      %v3234 = vsub.s32 0, %v3233
      %v3235 = vrot.slane %v3230, %v3234
      %v3237 = vmul.f32 %v3200, %v3235
      %v3238 = vmul.f32 %v3203, %v3235
      %v3239 = vmul.f32 %v3208, %v3235
      %v3240 = vmul.f32 %v3211, %v3235
      %v3241 = vmul.f32 %v3216, %v3235
      %v3242 = vmul.f32 %v3219, %v3235
      %v3243 = vmul.f32 %v3224, %v3235
      %v3244 = vmul.f32 %v3227, %v3235
      %v3245 = vld [vmem:[%s3] sm:$0x1]
      %v3247 = vlaneseq
      %v3248 = vshrl.u32 %v3247, 7
      %v3249 = vsub.s32 0, %v3248
      %v3250 = vrot.slane %v3245, %v3249
      %v3252 = vadd.f32 %v3237, %v3250
      %v3253 = vadd.f32 %v3238, %v3250
      %v3254 = vadd.f32 %v3239, %v3250
      %v3255 = vadd.f32 %v3240, %v3250
      %v3256 = vadd.f32 %v3241, %v3250
      %v3257 = vadd.f32 %v3242, %v3250
      %v3258 = vadd.f32 %v3243, %v3250
      %v3259 = vadd.f32 %v3244, %v3250
      %v3260 = vmax.f32 %v3252, 0.0
      %v3261 = vmax.f32 %v3253, 0.0
      %v3262 = vmax.f32 %v3254, 0.0
      %v3263 = vmax.f32 %v3255, 0.0
      %v3264 = vmax.f32 %v3256, 0.0
      %v3265 = vmax.f32 %v3257, 0.0
      %v3266 = vmax.f32 %v3258, 0.0
      %v3267 = vmax.f32 %v3259, 0.0
      %v3268 = vpack.c.bf16 %v3261, %v3260
      %v3269 = vpack.c.bf16 %v3263, %v3262
      %v3270 = vpack.c.bf16 %v3265, %v3264
      %v3271 = vpack.c.bf16 %v3267, %v3266
      %v3272 = vld [vmem:[%s4] sm:$0xf]
      %v3273 = vld [vmem:[%s4 + $0x4] sm:$0xf]
      %v3274 = vld [vmem:[%s4 + $0x8] sm:$0xf]
      %v3275 = vld [vmem:[%s4 + $0xc] sm:$0xf]
      %v3276 = vld [vmem:[%s4 + $0x10] sm:$0xf]
      %v3277 = vld [vmem:[%s4 + $0x14] sm:$0xf]
      %v3278 = vld [vmem:[%s4 + $0x18] sm:$0xf]
      %v3279 = vld [vmem:[%s4 + $0x1c] sm:$0xf]
      %v3280 = vld [vmem:[%s4 + $0x20] sm:$0xf]
      %v3281 = vld [vmem:[%s4 + $0x24] sm:$0xf]
      %v3282 = vld [vmem:[%s4 + $0x28] sm:$0xf]
      %v3283 = vld [vmem:[%s4 + $0x2c] sm:$0xf]
      %v3284 = vld [vmem:[%s4 + $0x30] sm:$0xf]
      %v3285 = vld [vmem:[%s4 + $0x34] sm:$0xf]
      %v3286 = vld [vmem:[%s4 + $0x38] sm:$0xf]
      %v3287 = vld [vmem:[%s4 + $0x3c] sm:$0xf]
      %v3304 = vunpack.c.l.b16 %v3272
      %v3305 = vunpack.c.l.b16 %v3273
      %v3306 = vunpack.c.l.b16 %v3274
      %v3307 = vunpack.c.l.b16 %v3275
      %v3308 = vunpack.c.l.b16 %v3276
      %v3309 = vunpack.c.l.b16 %v3277
      %v3310 = vunpack.c.l.b16 %v3278
      %v3311 = vunpack.c.l.b16 %v3279
      %v3312 = vunpack.c.l.b16 %v3280
      %v3313 = vunpack.c.l.b16 %v3281
      %v3314 = vunpack.c.l.b16 %v3282
      %v3315 = vunpack.c.l.b16 %v3283
      %v3316 = vunpack.c.l.b16 %v3284
      %v3317 = vunpack.c.l.b16 %v3285
      %v3318 = vunpack.c.l.b16 %v3286
      %v3319 = vunpack.c.l.b16 %v3287
      %v3320 = vpack.c.b16 %v3305, %v3304
      %v3321 = vpack.c.b16 %v3307, %v3306
      %v3322 = vpack.c.b16 %v3309, %v3308
      %v3323 = vpack.c.b16 %v3311, %v3310
      %v3324 = vpack.c.b16 %v3313, %v3312
      %v3325 = vpack.c.b16 %v3315, %v3314
      %v3326 = vpack.c.b16 %v3317, %v3316
      %v3327 = vpack.c.b16 %v3319, %v3318
      %3336 = vmatprep.subr.bf16.mxu0 0
      %3337 = vmatpush1.bf16.msra.mxu0 %v3320
      %3338 = vmatprep.subr.bf16.mxu0 0
      %3339 = vmatpush1.bf16.msra.mxu0 %v3321
      %3340 = vmatprep.subr.bf16.mxu0 0
      %3341 = vmatpush1.bf16.msra.mxu0 %v3322
      %3342 = vmatprep.subr.bf16.mxu0 0
      %3343 = vmatpush1.bf16.msra.mxu0 %v3323
      %3344 = vmatprep.subr.bf16.mxu0 0
      %3345 = vmatpush1.bf16.msra.mxu0 %v3324
      %3346 = vmatprep.subr.bf16.mxu0 0
      %3347 = vmatpush1.bf16.msra.mxu0 %v3325
      %3348 = vmatprep.subr.bf16.mxu0 0
      %3349 = vmatpush1.bf16.msra.mxu0 %v3326
      %3350 = vmatprep.subr.bf16.mxu0 0
      %3351 = vmatpush1.bf16.msra.mxu0 %v3327
      %3352 = vmatprep.subr.bf16.mxu0 0
      %3353 = vmatpush1.bf16.msra.mxu0 0
      %3354 = vmatprep.subr.bf16.mxu0 0
      %3355 = vmatpush1.bf16.msra.mxu0 0
      %3356 = vmatprep.subr.bf16.mxu0 0
      %3357 = vmatpush1.bf16.msra.mxu0 0
      %3358 = vmatprep.subr.bf16.mxu0 0
      %3359 = vmatpush1.bf16.msra.mxu0 0
      %3360 = vmatprep.subr.bf16.mxu0 0
      %3361 = vmatpush1.bf16.msra.mxu0 0
      %3362 = vmatprep.subr.bf16.mxu0 0
      %3363 = vmatpush1.bf16.msra.mxu0 0
      %3364 = vmatprep.subr.bf16.mxu0 0
      %3365 = vmatpush1.bf16.msra.mxu0 0
      %3366 = vmatprep.subr.bf16.mxu0 0
      %3367 = vmatpush1.bf16.msra.mxu0 0
      %3368 = vmatprep.mubr.bf16.mxu0 0
      %3369 = vmatmul.mubr.bf16.gmra.mrb[0].mxu0 %v3268
      %v3370 = vpop.f32.mrb[0].mxu0
      %v3371 = vadd.f32 0.0, %v3370
      %v3372 = vpop.f32.mrb[0].mxu0
      %v3373 = vpop.f32.mrb[0].mxu0
      %v3374 = vadd.f32 0.0, %v3373
      %v3375 = vpop.f32.mrb[0].mxu0
      %3376 = vmatprep.mubr.bf16.mxu0 0
      %3377 = vmatmul.mubr.bf16.gmra.mrb[0].mxu0 %v3269
      %v3378 = vpop.f32.mrb[0].mxu0
      %v3379 = vadd.f32 0.0, %v3378
      %v3380 = vpop.f32.mrb[0].mxu0
      %v3381 = vpop.f32.mrb[0].mxu0
      %v3382 = vadd.f32 0.0, %v3381
      %v3383 = vpop.f32.mrb[0].mxu0
      %3384 = vmatprep.mubr.bf16.mxu0 0
      %3385 = vmatmul.mubr.bf16.gmra.mrb[0].mxu0 %v3270
      %v3386 = vpop.f32.mrb[0].mxu0
      %v3387 = vadd.f32 0.0, %v3386
      %v3388 = vpop.f32.mrb[0].mxu0
      %v3389 = vpop.f32.mrb[0].mxu0
      %v3390 = vadd.f32 0.0, %v3389
      %v3391 = vpop.f32.mrb[0].mxu0
      %3392 = vmatprep.mubr.bf16.mxu0 0
      %3393 = vmatmul.mubr.bf16.gmra.mrb[0].mxu0 %v3271
      %v3394 = vpop.f32.mrb[0].mxu0
      %v3395 = vadd.f32 0.0, %v3394
      %v3396 = vpop.f32.mrb[0].mxu0
      %v3397 = vpop.f32.mrb[0].mxu0
      %v3398 = vadd.f32 0.0, %v3397
      %v3399 = vpop.f32.mrb[0].mxu0
      %3400 = vdwg.mxu0
      %v3401 = vld [vmem:[%s5] sm:$0x1]
      %v3403 = vlaneseq
      %v3404 = vshrl.u32 %v3403, 7
      %v3405 = vsub.s32 0, %v3404
      %v3406 = vrot.slane %v3401, %v3405
      %v3408 = vmul.f32 %v3371, %v3406
      %v3409 = vmul.f32 %v3374, %v3406
      %v3410 = vmul.f32 %v3379, %v3406
      %v3411 = vmul.f32 %v3382, %v3406
      %v3412 = vmul.f32 %v3387, %v3406
      %v3413 = vmul.f32 %v3390, %v3406
      %v3414 = vmul.f32 %v3395, %v3406
      %v3415 = vmul.f32 %v3398, %v3406
      %v3416 = vld [vmem:[%s6] sm:$0x1]
      %v3418 = vlaneseq
      %v3419 = vshrl.u32 %v3418, 7
      %v3420 = vsub.s32 0, %v3419
      %v3421 = vrot.slane %v3416, %v3420
      %v3423 = vadd.f32 %v3408, %v3421
      %v3424 = vadd.f32 %v3409, %v3421
      %v3425 = vadd.f32 %v3410, %v3421
      %v3426 = vadd.f32 %v3411, %v3421
      %v3427 = vadd.f32 %v3412, %v3421
      %v3428 = vadd.f32 %v3413, %v3421
      %v3429 = vadd.f32 %v3414, %v3421
      %v3430 = vadd.f32 %v3415, %v3421
      %v3431 = vmax.f32 %v3423, 0.0
      %v3432 = vmax.f32 %v3424, 0.0
      %v3433 = vmax.f32 %v3425, 0.0
      %v3434 = vmax.f32 %v3426, 0.0
      %v3435 = vmax.f32 %v3427, 0.0
      %v3436 = vmax.f32 %v3428, 0.0
      %v3437 = vmax.f32 %v3429, 0.0
      %v3438 = vmax.f32 %v3430, 0.0
      %v3439 = vpack.c.bf16 %v3432, %v3431
      %v3440 = vpack.c.bf16 %v3434, %v3433
      %v3441 = vpack.c.bf16 %v3436, %v3435
      %v3442 = vpack.c.bf16 %v3438, %v3437
      %v3447 = vunpack.c.l.b16 %v3439
      %v3448 = vunpack.c.h.b16 %v3439
      %v3449 = vunpack.c.l.b16 %v3440
      %v3450 = vunpack.c.h.b16 %v3440
      %v3451 = vunpack.c.l.b16 %v3441
      %v3452 = vunpack.c.h.b16 %v3441
      %v3453 = vunpack.c.l.b16 %v3442
      %v3454 = vunpack.c.h.b16 %v3442
      %v3455 = vpack.c.b16 %v3447, %v3447
      %v3456 = vpack.c.b16 %v3448, %v3448
      %v3457 = vpack.c.b16 %v3449, %v3449
      %v3458 = vpack.c.b16 %v3450, %v3450
      %v3459 = vpack.c.b16 %v3451, %v3451
      %v3460 = vpack.c.b16 %v3452, %v3452
      %v3461 = vpack.c.b16 %v3453, %v3453
      %v3462 = vpack.c.b16 %v3454, %v3454
      %s3471 = scalar_lea.vmem %s345, 64
      %3472 = vst [vmem:[%s3471] sm:$0xf] %v3455
      %3473 = vst [vmem:[%s3471 + $0x4] sm:$0xf] %v3456
      %3474 = vst [vmem:[%s3471 + $0x8] sm:$0xf] %v3457
      %3475 = vst [vmem:[%s3471 + $0xc] sm:$0xf] %v3458
      %3476 = vst [vmem:[%s3471 + $0x10] sm:$0xf] %v3459
      %3477 = vst [vmem:[%s3471 + $0x14] sm:$0xf] %v3460
      %3478 = vst [vmem:[%s3471 + $0x18] sm:$0xf] %v3461
      %3479 = vst [vmem:[%s3471 + $0x1c] sm:$0xf] %v3462
      %v3480 = vunpack.c.l.bf16 %v3439
      %v3481 = vunpack.c.h.bf16 %v3439
      %v3482 = vunpack.c.l.bf16 %v3440
      %v3483 = vunpack.c.h.bf16 %v3440
      %v3484 = vunpack.c.l.bf16 %v3441
      %v3485 = vunpack.c.h.bf16 %v3441
      %v3486 = vunpack.c.l.bf16 %v3442
      %v3487 = vunpack.c.h.bf16 %v3442
      %v3488 = vadd.f32 %v3480, %v3481
      %v3489 = vadd.f32 %v3488, %v3482
      %v3490 = vadd.f32 %v3489, %v3483
      %v3491 = vadd.f32 %v3490, %v3484
      %v3492 = vadd.f32 %v3491, %v3485
      %v3493 = vadd.f32 %v3492, %v3486
      %v3494 = vadd.f32 %v3493, %v3487
      %v3495 = vrot.slane %v3494, 4
      %v3496 = vadd.f32 %v3494, %v3495
      %v3497 = vrot.slane %v3496, 2
      %v3498 = vadd.f32 %v3496, %v3497
      %v3499 = vrot.slane %v3498, 1
      %v3500 = vadd.f32 %v3498, %v3499
      %v3501 = vadd.f32 %v2569, %v3500
      %v3502 = vld [vmem:[%s370] sm:$0xf]
      %v3503 = vld [vmem:[%s370 + $0x4] sm:$0x1]
      %v3504 = vld [vmem:[%s370 + $0x8] sm:$0xf]
      %v3505 = vld [vmem:[%s370 + $0xc] sm:$0x1]
      %v3506 = vld [vmem:[%s370 + $0x10] sm:$0xf]
      %v3507 = vld [vmem:[%s370 + $0x14] sm:$0x1]
      %v3508 = vld [vmem:[%s370 + $0x18] sm:$0xf]
      %v3509 = vld [vmem:[%s370 + $0x1c] sm:$0x1]
      %v3510 = vld [vmem:[%s370 + $0x20] sm:$0xf]
      %v3511 = vld [vmem:[%s370 + $0x24] sm:$0x1]
      %v3512 = vld [vmem:[%s370 + $0x28] sm:$0xf]
      %v3513 = vld [vmem:[%s370 + $0x2c] sm:$0x1]
      %v3514 = vld [vmem:[%s370 + $0x30] sm:$0xf]
      %v3515 = vld [vmem:[%s370 + $0x34] sm:$0x1]
      %v3516 = vld [vmem:[%s370 + $0x38] sm:$0xf]
      %v3517 = vld [vmem:[%s370 + $0x3c] sm:$0x1]
      %v3518 = vld [vmem:[%s370] sm:$0xe]
      %v3519 = vld [vmem:[%s370 + $0x8] sm:$0xe]
      %v3520 = vld [vmem:[%s370 + $0x10] sm:$0xe]
      %v3521 = vld [vmem:[%s370 + $0x18] sm:$0xe]
      %v3522 = vld [vmem:[%s370 + $0x20] sm:$0xe]
      %v3523 = vld [vmem:[%s370 + $0x28] sm:$0xe]
      %v3524 = vld [vmem:[%s370 + $0x30] sm:$0xe]
      %v3525 = vld [vmem:[%s370 + $0x38] sm:$0xe]
      %v3526 = vld [vmem:[%s2586] sm:$0xf]
      %v3527 = vld [vmem:[%s2586 + $0x4] sm:$0x1]
      %v3528 = vld [vmem:[%s2586 + $0x8] sm:$0xf]
      %v3529 = vld [vmem:[%s2586 + $0xc] sm:$0x1]
      %v3530 = vld [vmem:[%s2586 + $0x10] sm:$0xf]
      %v3531 = vld [vmem:[%s2586 + $0x14] sm:$0x1]
      %v3532 = vld [vmem:[%s2586 + $0x18] sm:$0xf]
      %v3533 = vld [vmem:[%s2586 + $0x1c] sm:$0x1]
      %v3534 = vld [vmem:[%s2586 + $0x20] sm:$0xf]
      %v3535 = vld [vmem:[%s2586 + $0x24] sm:$0x1]
      %v3536 = vld [vmem:[%s2586 + $0x28] sm:$0xf]
      %v3537 = vld [vmem:[%s2586 + $0x2c] sm:$0x1]
      %v3538 = vld [vmem:[%s2586 + $0x30] sm:$0xf]
      %v3539 = vld [vmem:[%s2586 + $0x34] sm:$0x1]
      %v3540 = vld [vmem:[%s2586 + $0x38] sm:$0xf]
      %v3541 = vld [vmem:[%s2586 + $0x3c] sm:$0x1]
      %v3542 = vld [vmem:[%s2586] sm:$0xe]
      %v3543 = vld [vmem:[%s2586 + $0x8] sm:$0xe]
      %v3544 = vld [vmem:[%s2586 + $0x10] sm:$0xe]
      %v3545 = vld [vmem:[%s2586 + $0x18] sm:$0xe]
      %v3546 = vld [vmem:[%s2586 + $0x20] sm:$0xe]
      %v3547 = vld [vmem:[%s2586 + $0x28] sm:$0xe]
      %v3548 = vld [vmem:[%s2586 + $0x30] sm:$0xe]
      %v3549 = vld [vmem:[%s2586 + $0x38] sm:$0xe]
      %v3566 = vunpack.c.l.b16 %v3502
      %v3567 = vunpack.c.l.b16 %v3503
      %v3568 = vunpack.c.l.b16 %v3504
      %v3569 = vunpack.c.l.b16 %v3505
      %v3570 = vunpack.c.l.b16 %v3506
      %v3571 = vunpack.c.l.b16 %v3507
      %v3572 = vunpack.c.l.b16 %v3508
      %v3573 = vunpack.c.l.b16 %v3509
      %v3574 = vunpack.c.l.b16 %v3510
      %v3575 = vunpack.c.l.b16 %v3511
      %v3576 = vunpack.c.l.b16 %v3512
      %v3577 = vunpack.c.l.b16 %v3513
      %v3578 = vunpack.c.l.b16 %v3514
      %v3579 = vunpack.c.l.b16 %v3515
      %v3580 = vunpack.c.l.b16 %v3516
      %v3581 = vunpack.c.l.b16 %v3517
      %v3590 = vunpack.c.l.b16 %v3518
      %v3591 = vunpack.c.l.b16 %v3519
      %v3592 = vunpack.c.l.b16 %v3520
      %v3593 = vunpack.c.l.b16 %v3521
      %v3594 = vunpack.c.l.b16 %v3522
      %v3595 = vunpack.c.l.b16 %v3523
      %v3596 = vunpack.c.l.b16 %v3524
      %v3597 = vunpack.c.l.b16 %v3525
      %v3598 = vpack.c.b16 %v3567, %v3590
      %v3599 = vpack.c.b16 %v3569, %v3591
      %v3600 = vpack.c.b16 %v3571, %v3592
      %v3601 = vpack.c.b16 %v3573, %v3593
      %v3602 = vpack.c.b16 %v3575, %v3594
      %v3603 = vpack.c.b16 %v3577, %v3595
      %v3604 = vpack.c.b16 %v3579, %v3596
      %v3605 = vpack.c.b16 %v3581, %v3597
      %v3607 = vshrl.u32 %v3598, 16
      %v3609 = vshll.u32 %v3598, 16
      %v3611 = vrot.slane %v3609, 1
      %v3612 = vor.u32 %v3607, %v3611
      %v3614 = vshrl.u32 %v3599, 16
      %v3616 = vshll.u32 %v3599, 16
      %v3618 = vrot.slane %v3616, 1
      %v3619 = vor.u32 %v3614, %v3618
      %v3621 = vshrl.u32 %v3600, 16
      %v3623 = vshll.u32 %v3600, 16
      %v3625 = vrot.slane %v3623, 1
      %v3626 = vor.u32 %v3621, %v3625
      %v3628 = vshrl.u32 %v3601, 16
      %v3630 = vshll.u32 %v3601, 16
      %v3632 = vrot.slane %v3630, 1
      %v3633 = vor.u32 %v3628, %v3632
      %v3635 = vshrl.u32 %v3602, 16
      %v3637 = vshll.u32 %v3602, 16
      %v3639 = vrot.slane %v3637, 1
      %v3640 = vor.u32 %v3635, %v3639
      %v3642 = vshrl.u32 %v3603, 16
      %v3644 = vshll.u32 %v3603, 16
      %v3646 = vrot.slane %v3644, 1
      %v3647 = vor.u32 %v3642, %v3646
      %v3649 = vshrl.u32 %v3604, 16
      %v3651 = vshll.u32 %v3604, 16
      %v3653 = vrot.slane %v3651, 1
      %v3654 = vor.u32 %v3649, %v3653
      %v3656 = vshrl.u32 %v3605, 16
      %v3658 = vshll.u32 %v3605, 16
      %v3660 = vrot.slane %v3658, 1
      %v3661 = vor.u32 %v3656, %v3660
      %v3678 = vunpack.c.l.b16 %v3526
      %v3679 = vunpack.c.l.b16 %v3527
      %v3680 = vunpack.c.l.b16 %v3528
      %v3681 = vunpack.c.l.b16 %v3529
      %v3682 = vunpack.c.l.b16 %v3530
      %v3683 = vunpack.c.l.b16 %v3531
      %v3684 = vunpack.c.l.b16 %v3532
      %v3685 = vunpack.c.l.b16 %v3533
      %v3686 = vunpack.c.l.b16 %v3534
      %v3687 = vunpack.c.l.b16 %v3535
      %v3688 = vunpack.c.l.b16 %v3536
      %v3689 = vunpack.c.l.b16 %v3537
      %v3690 = vunpack.c.l.b16 %v3538
      %v3691 = vunpack.c.l.b16 %v3539
      %v3692 = vunpack.c.l.b16 %v3540
      %v3693 = vunpack.c.l.b16 %v3541
      %v3702 = vunpack.c.l.b16 %v3542
      %v3703 = vunpack.c.l.b16 %v3543
      %v3704 = vunpack.c.l.b16 %v3544
      %v3705 = vunpack.c.l.b16 %v3545
      %v3706 = vunpack.c.l.b16 %v3546
      %v3707 = vunpack.c.l.b16 %v3547
      %v3708 = vunpack.c.l.b16 %v3548
      %v3709 = vunpack.c.l.b16 %v3549
      %v3710 = vpack.c.b16 %v3679, %v3702
      %v3711 = vpack.c.b16 %v3681, %v3703
      %v3712 = vpack.c.b16 %v3683, %v3704
      %v3713 = vpack.c.b16 %v3685, %v3705
      %v3714 = vpack.c.b16 %v3687, %v3706
      %v3715 = vpack.c.b16 %v3689, %v3707
      %v3716 = vpack.c.b16 %v3691, %v3708
      %v3717 = vpack.c.b16 %v3693, %v3709
      %v3719 = vshrl.u32 %v3710, 16
      %v3721 = vshll.u32 %v3710, 16
      %v3723 = vrot.slane %v3721, 1
      %v3724 = vor.u32 %v3719, %v3723
      %v3726 = vshrl.u32 %v3711, 16
      %v3728 = vshll.u32 %v3711, 16
      %v3730 = vrot.slane %v3728, 1
      %v3731 = vor.u32 %v3726, %v3730
      %v3733 = vshrl.u32 %v3712, 16
      %v3735 = vshll.u32 %v3712, 16
      %v3737 = vrot.slane %v3735, 1
      %v3738 = vor.u32 %v3733, %v3737
      %v3740 = vshrl.u32 %v3713, 16
      %v3742 = vshll.u32 %v3713, 16
      %v3744 = vrot.slane %v3742, 1
      %v3745 = vor.u32 %v3740, %v3744
      %v3747 = vshrl.u32 %v3714, 16
      %v3749 = vshll.u32 %v3714, 16
      %v3751 = vrot.slane %v3749, 1
      %v3752 = vor.u32 %v3747, %v3751
      %v3754 = vshrl.u32 %v3715, 16
      %v3756 = vshll.u32 %v3715, 16
      %v3758 = vrot.slane %v3756, 1
      %v3759 = vor.u32 %v3754, %v3758
      %v3761 = vshrl.u32 %v3716, 16
      %v3763 = vshll.u32 %v3716, 16
      %v3765 = vrot.slane %v3763, 1
      %v3766 = vor.u32 %v3761, %v3765
      %v3768 = vshrl.u32 %v3717, 16
      %v3770 = vshll.u32 %v3717, 16
      %v3772 = vrot.slane %v3770, 1
      %v3773 = vor.u32 %v3768, %v3772
      %v3774 = vunpack.c.l.b16 %v3612
      %v3775 = vunpack.c.l.b16 %v3724
      %v3776 = vunpack.c.h.b16 %v3612
      %v3777 = vunpack.c.h.b16 %v3724
      %v3778 = vunpack.c.l.b16 %v3619
      %v3779 = vunpack.c.l.b16 %v3731
      %v3780 = vunpack.c.h.b16 %v3619
      %v3781 = vunpack.c.h.b16 %v3731
      %v3782 = vunpack.c.l.b16 %v3626
      %v3783 = vunpack.c.l.b16 %v3738
      %v3784 = vunpack.c.h.b16 %v3626
      %v3785 = vunpack.c.h.b16 %v3738
      %v3786 = vunpack.c.l.b16 %v3633
      %v3787 = vunpack.c.l.b16 %v3745
      %v3788 = vunpack.c.h.b16 %v3633
      %v3789 = vunpack.c.h.b16 %v3745
      %v3790 = vunpack.c.l.b16 %v3640
      %v3791 = vunpack.c.l.b16 %v3752
      %v3792 = vunpack.c.h.b16 %v3640
      %v3793 = vunpack.c.h.b16 %v3752
      %v3794 = vunpack.c.l.b16 %v3647
      %v3795 = vunpack.c.l.b16 %v3759
      %v3796 = vunpack.c.h.b16 %v3647
      %v3797 = vunpack.c.h.b16 %v3759
      %v3798 = vunpack.c.l.b16 %v3654
      %v3799 = vunpack.c.l.b16 %v3766
      %v3800 = vunpack.c.h.b16 %v3654
      %v3801 = vunpack.c.h.b16 %v3766
      %v3802 = vunpack.c.l.b16 %v3661
      %v3803 = vunpack.c.l.b16 %v3773
      %v3804 = vunpack.c.h.b16 %v3661
      %v3805 = vunpack.c.h.b16 %v3773
      %v3806 = vpack.c.b16 %v3774, %v3566
      %v3807 = vpack.c.b16 %v3775, %v3678
      %v3808 = vpack.c.b16 %v3776, %v3567
      %v3809 = vpack.c.b16 %v3777, %v3679
      %v3810 = vpack.c.b16 %v3778, %v3568
      %v3811 = vpack.c.b16 %v3779, %v3680
      %v3812 = vpack.c.b16 %v3780, %v3569
      %v3813 = vpack.c.b16 %v3781, %v3681
      %v3814 = vpack.c.b16 %v3782, %v3570
      %v3815 = vpack.c.b16 %v3783, %v3682
      %v3816 = vpack.c.b16 %v3784, %v3571
      %v3817 = vpack.c.b16 %v3785, %v3683
      %v3818 = vpack.c.b16 %v3786, %v3572
      %v3819 = vpack.c.b16 %v3787, %v3684
      %v3820 = vpack.c.b16 %v3788, %v3573
      %v3821 = vpack.c.b16 %v3789, %v3685
      %v3822 = vpack.c.b16 %v3790, %v3574
      %v3823 = vpack.c.b16 %v3791, %v3686
      %v3824 = vpack.c.b16 %v3792, %v3575
      %v3825 = vpack.c.b16 %v3793, %v3687
      %v3826 = vpack.c.b16 %v3794, %v3576
      %v3827 = vpack.c.b16 %v3795, %v3688
      %v3828 = vpack.c.b16 %v3796, %v3577
      %v3829 = vpack.c.b16 %v3797, %v3689
      %v3830 = vpack.c.b16 %v3798, %v3578
      %v3831 = vpack.c.b16 %v3799, %v3690
      %v3832 = vpack.c.b16 %v3800, %v3579
      %v3833 = vpack.c.b16 %v3801, %v3691
      %v3834 = vpack.c.b16 %v3802, %v3580
      %v3835 = vpack.c.b16 %v3803, %v3692
      %v3836 = vpack.c.b16 %v3804, %v3581
      %v3837 = vpack.c.b16 %v3805, %v3693
      %v3839 = vshrl.u32 %v3806, 16
      %v3841 = vrot.slane %v3839, 4
      %v3842 = vshll.u32 %v3806, 16
      %v3844 = vrot.slane %v3842, 5
      %v3845 = vor.u32 %v3841, %v3844
      %v3846 = vrot.slane %v3845, 4
      %v3848 = vshll.u32 %v3808, 16
      %v3850 = vrot.slane %v3848, 5
      %v3851 = vsel %vm1622, %v3846, %v3850
      %v3853 = vshrl.u32 %v3807, 16
      %v3855 = vrot.slane %v3853, 4
      %v3856 = vshll.u32 %v3807, 16
      %v3858 = vrot.slane %v3856, 5
      %v3859 = vor.u32 %v3855, %v3858
      %v3860 = vrot.slane %v3859, 4
      %v3862 = vshll.u32 %v3809, 16
      %v3864 = vrot.slane %v3862, 5
      %v3865 = vsel %vm1622, %v3860, %v3864
      %v3867 = vshrl.u32 %v3810, 16
      %v3869 = vrot.slane %v3867, 4
      %v3870 = vshll.u32 %v3810, 16
      %v3872 = vrot.slane %v3870, 5
      %v3873 = vor.u32 %v3869, %v3872
      %v3874 = vrot.slane %v3873, 4
      %v3876 = vshll.u32 %v3812, 16
      %v3878 = vrot.slane %v3876, 5
      %v3879 = vsel %vm1622, %v3874, %v3878
      %v3881 = vshrl.u32 %v3811, 16
      %v3883 = vrot.slane %v3881, 4
      %v3884 = vshll.u32 %v3811, 16
      %v3886 = vrot.slane %v3884, 5
      %v3887 = vor.u32 %v3883, %v3886
      %v3888 = vrot.slane %v3887, 4
      %v3890 = vshll.u32 %v3813, 16
      %v3892 = vrot.slane %v3890, 5
      %v3893 = vsel %vm1622, %v3888, %v3892
      %v3895 = vshrl.u32 %v3814, 16
      %v3897 = vrot.slane %v3895, 4
      %v3898 = vshll.u32 %v3814, 16
      %v3900 = vrot.slane %v3898, 5
      %v3901 = vor.u32 %v3897, %v3900
      %v3902 = vrot.slane %v3901, 4
      %v3904 = vshll.u32 %v3816, 16
      %v3906 = vrot.slane %v3904, 5
      %v3907 = vsel %vm1622, %v3902, %v3906
      %v3909 = vshrl.u32 %v3815, 16
      %v3911 = vrot.slane %v3909, 4
      %v3912 = vshll.u32 %v3815, 16
      %v3914 = vrot.slane %v3912, 5
      %v3915 = vor.u32 %v3911, %v3914
      %v3916 = vrot.slane %v3915, 4
      %v3918 = vshll.u32 %v3817, 16
      %v3920 = vrot.slane %v3918, 5
      %v3921 = vsel %vm1622, %v3916, %v3920
      %v3923 = vshrl.u32 %v3818, 16
      %v3925 = vrot.slane %v3923, 4
      %v3926 = vshll.u32 %v3818, 16
      %v3928 = vrot.slane %v3926, 5
      %v3929 = vor.u32 %v3925, %v3928
      %v3930 = vrot.slane %v3929, 4
      %v3932 = vshll.u32 %v3820, 16
      %v3934 = vrot.slane %v3932, 5
      %v3935 = vsel %vm1622, %v3930, %v3934
      %v3937 = vshrl.u32 %v3819, 16
      %v3939 = vrot.slane %v3937, 4
      %v3940 = vshll.u32 %v3819, 16
      %v3942 = vrot.slane %v3940, 5
      %v3943 = vor.u32 %v3939, %v3942
      %v3944 = vrot.slane %v3943, 4
      %v3946 = vshll.u32 %v3821, 16
      %v3948 = vrot.slane %v3946, 5
      %v3949 = vsel %vm1622, %v3944, %v3948
      %v3951 = vshrl.u32 %v3822, 16
      %v3953 = vrot.slane %v3951, 4
      %v3954 = vshll.u32 %v3822, 16
      %v3956 = vrot.slane %v3954, 5
      %v3957 = vor.u32 %v3953, %v3956
      %v3958 = vrot.slane %v3957, 4
      %v3960 = vshll.u32 %v3824, 16
      %v3962 = vrot.slane %v3960, 5
      %v3963 = vsel %vm1622, %v3958, %v3962
      %v3965 = vshrl.u32 %v3823, 16
      %v3967 = vrot.slane %v3965, 4
      %v3968 = vshll.u32 %v3823, 16
      %v3970 = vrot.slane %v3968, 5
      %v3971 = vor.u32 %v3967, %v3970
      %v3972 = vrot.slane %v3971, 4
      %v3974 = vshll.u32 %v3825, 16
      %v3976 = vrot.slane %v3974, 5
      %v3977 = vsel %vm1622, %v3972, %v3976
      %v3979 = vshrl.u32 %v3826, 16
      %v3981 = vrot.slane %v3979, 4
      %v3982 = vshll.u32 %v3826, 16
      %v3984 = vrot.slane %v3982, 5
      %v3985 = vor.u32 %v3981, %v3984
      %v3986 = vrot.slane %v3985, 4
      %v3988 = vshll.u32 %v3828, 16
      %v3990 = vrot.slane %v3988, 5
      %v3991 = vsel %vm1622, %v3986, %v3990
      %v3993 = vshrl.u32 %v3827, 16
      %v3995 = vrot.slane %v3993, 4
      %v3996 = vshll.u32 %v3827, 16
      %v3998 = vrot.slane %v3996, 5
      %v3999 = vor.u32 %v3995, %v3998
      %v4000 = vrot.slane %v3999, 4
      %v4002 = vshll.u32 %v3829, 16
      %v4004 = vrot.slane %v4002, 5
      %v4005 = vsel %vm1622, %v4000, %v4004
      %v4007 = vshrl.u32 %v3830, 16
      %v4009 = vrot.slane %v4007, 4
      %v4010 = vshll.u32 %v3830, 16
      %v4012 = vrot.slane %v4010, 5
      %v4013 = vor.u32 %v4009, %v4012
      %v4014 = vrot.slane %v4013, 4
      %v4016 = vshll.u32 %v3832, 16
      %v4018 = vrot.slane %v4016, 5
      %v4019 = vsel %vm1622, %v4014, %v4018
      %v4021 = vshrl.u32 %v3831, 16
      %v4023 = vrot.slane %v4021, 4
      %v4024 = vshll.u32 %v3831, 16
      %v4026 = vrot.slane %v4024, 5
      %v4027 = vor.u32 %v4023, %v4026
      %v4028 = vrot.slane %v4027, 4
      %v4030 = vshll.u32 %v3833, 16
      %v4032 = vrot.slane %v4030, 5
      %v4033 = vsel %vm1622, %v4028, %v4032
      %v4035 = vshrl.u32 %v3834, 16
      %v4037 = vrot.slane %v4035, 4
      %v4038 = vshll.u32 %v3834, 16
      %v4040 = vrot.slane %v4038, 5
      %v4041 = vor.u32 %v4037, %v4040
      %v4042 = vrot.slane %v4041, 4
      %v4044 = vshll.u32 %v3836, 16
      %v4046 = vrot.slane %v4044, 5
      %v4047 = vsel %vm1622, %v4042, %v4046
      %v4049 = vshrl.u32 %v3835, 16
      %v4051 = vrot.slane %v4049, 4
      %v4052 = vshll.u32 %v3835, 16
      %v4054 = vrot.slane %v4052, 5
      %v4055 = vor.u32 %v4051, %v4054
      %v4056 = vrot.slane %v4055, 4
      %v4058 = vshll.u32 %v3837, 16
      %v4060 = vrot.slane %v4058, 5
      %v4061 = vsel %vm1622, %v4056, %v4060
      %s4062 = scalar_lea.vmem %s1, 768
      %v4063 = vld [vmem:[%s4062] sm:$0xf]
      %v4064 = vld [vmem:[%s4062 + $0x4] sm:$0xf]
      %v4065 = vld [vmem:[%s4062 + $0x8] sm:$0xf]
      %v4066 = vld [vmem:[%s4062 + $0xc] sm:$0xf]
      %v4067 = vld [vmem:[%s4062 + $0x10] sm:$0xf]
      %v4068 = vld [vmem:[%s4062 + $0x14] sm:$0xf]
      %v4069 = vld [vmem:[%s4062 + $0x18] sm:$0xf]
      %v4070 = vld [vmem:[%s4062 + $0x1c] sm:$0xf]
      %v4071 = vld [vmem:[%s4062 + $0x20] sm:$0xf]
      %v4072 = vld [vmem:[%s4062 + $0x24] sm:$0xf]
      %v4073 = vld [vmem:[%s4062 + $0x28] sm:$0xf]
      %v4074 = vld [vmem:[%s4062 + $0x2c] sm:$0xf]
      %v4075 = vld [vmem:[%s4062 + $0x30] sm:$0xf]
      %v4076 = vld [vmem:[%s4062 + $0x34] sm:$0xf]
      %v4077 = vld [vmem:[%s4062 + $0x38] sm:$0xf]
      %v4078 = vld [vmem:[%s4062 + $0x3c] sm:$0xf]
      %v4079 = vld [vmem:[%s4062 + $0x40] sm:$0xf]
      %v4080 = vld [vmem:[%s4062 + $0x44] sm:$0xf]
      %v4081 = vld [vmem:[%s4062 + $0x48] sm:$0xf]
      %v4082 = vld [vmem:[%s4062 + $0x4c] sm:$0xf]
      %v4083 = vld [vmem:[%s4062 + $0x50] sm:$0xf]
      %v4084 = vld [vmem:[%s4062 + $0x54] sm:$0xf]
      %v4085 = vld [vmem:[%s4062 + $0x58] sm:$0xf]
      %v4086 = vld [vmem:[%s4062 + $0x5c] sm:$0xf]
      %v4087 = vld [vmem:[%s4062 + $0x60] sm:$0xf]
      %v4088 = vld [vmem:[%s4062 + $0x64] sm:$0xf]
      %v4089 = vld [vmem:[%s4062 + $0x68] sm:$0xf]
      %v4090 = vld [vmem:[%s4062 + $0x6c] sm:$0xf]
      %v4091 = vld [vmem:[%s4062 + $0x70] sm:$0xf]
      %v4092 = vld [vmem:[%s4062 + $0x74] sm:$0xf]
      %v4093 = vld [vmem:[%s4062 + $0x78] sm:$0xf]
      %v4094 = vld [vmem:[%s4062 + $0x7c] sm:$0xf]
      %v4095 = vld [vmem:[%s4062 + $0x80] sm:$0xf]
      %v4096 = vld [vmem:[%s4062 + $0x84] sm:$0xf]
      %v4097 = vld [vmem:[%s4062 + $0x88] sm:$0xf]
      %v4098 = vld [vmem:[%s4062 + $0x8c] sm:$0xf]
      %v4099 = vld [vmem:[%s4062 + $0x90] sm:$0xf]
      %v4100 = vld [vmem:[%s4062 + $0x94] sm:$0xf]
      %v4101 = vld [vmem:[%s4062 + $0x98] sm:$0xf]
      %v4102 = vld [vmem:[%s4062 + $0x9c] sm:$0xf]
      %v4103 = vld [vmem:[%s4062 + $0xa0] sm:$0xf]
      %v4104 = vld [vmem:[%s4062 + $0xa4] sm:$0xf]
      %v4105 = vld [vmem:[%s4062 + $0xa8] sm:$0xf]
      %v4106 = vld [vmem:[%s4062 + $0xac] sm:$0xf]
      %v4107 = vld [vmem:[%s4062 + $0xb0] sm:$0xf]
      %v4108 = vld [vmem:[%s4062 + $0xb4] sm:$0xf]
      %v4109 = vld [vmem:[%s4062 + $0xb8] sm:$0xf]
      %v4110 = vld [vmem:[%s4062 + $0xbc] sm:$0xf]
      %v4111 = vld [vmem:[%s4062 + $0xc0] sm:$0xf]
      %v4112 = vld [vmem:[%s4062 + $0xc4] sm:$0xf]
      %v4113 = vld [vmem:[%s4062 + $0xc8] sm:$0xf]
      %v4114 = vld [vmem:[%s4062 + $0xcc] sm:$0xf]
      %v4115 = vld [vmem:[%s4062 + $0xd0] sm:$0xf]
      %v4116 = vld [vmem:[%s4062 + $0xd4] sm:$0xf]
      %v4117 = vld [vmem:[%s4062 + $0xd8] sm:$0xf]
      %v4118 = vld [vmem:[%s4062 + $0xdc] sm:$0xf]
      %v4119 = vld [vmem:[%s4062 + $0xe0] sm:$0xf]
      %v4120 = vld [vmem:[%s4062 + $0xe4] sm:$0xf]
      %v4121 = vld [vmem:[%s4062 + $0xe8] sm:$0xf]
      %v4122 = vld [vmem:[%s4062 + $0xec] sm:$0xf]
      %v4123 = vld [vmem:[%s4062 + $0xf0] sm:$0xf]
      %v4124 = vld [vmem:[%s4062 + $0xf4] sm:$0xf]
      %v4125 = vld [vmem:[%s4062 + $0xf8] sm:$0xf]
      %v4126 = vld [vmem:[%s4062 + $0xfc] sm:$0xf]
      %v4127 = vunpack.c.l.b16 %v3851
      %v4128 = vunpack.c.h.b16 %v3851
      %v4129 = vunpack.c.l.b16 %v3865
      %v4130 = vunpack.c.h.b16 %v3865
      %v4131 = vunpack.c.l.b16 %v3879
      %v4132 = vunpack.c.h.b16 %v3879
      %v4133 = vunpack.c.l.b16 %v3893
      %v4134 = vunpack.c.h.b16 %v3893
      %v4135 = vunpack.c.l.b16 %v3907
      %v4136 = vunpack.c.h.b16 %v3907
      %v4137 = vunpack.c.l.b16 %v3921
      %v4138 = vunpack.c.h.b16 %v3921
      %v4139 = vunpack.c.l.b16 %v3935
      %v4140 = vunpack.c.h.b16 %v3935
      %v4141 = vunpack.c.l.b16 %v3949
      %v4142 = vunpack.c.h.b16 %v3949
      %v4143 = vunpack.c.l.b16 %v3963
      %v4144 = vunpack.c.h.b16 %v3963
      %v4145 = vunpack.c.l.b16 %v3977
      %v4146 = vunpack.c.h.b16 %v3977
      %v4147 = vunpack.c.l.b16 %v3991
      %v4148 = vunpack.c.h.b16 %v3991
      %v4149 = vunpack.c.l.b16 %v4005
      %v4150 = vunpack.c.h.b16 %v4005
      %v4151 = vunpack.c.l.b16 %v4019
      %v4152 = vunpack.c.h.b16 %v4019
      %v4153 = vunpack.c.l.b16 %v4033
      %v4154 = vunpack.c.h.b16 %v4033
      %v4155 = vunpack.c.l.b16 %v4047
      %v4156 = vunpack.c.h.b16 %v4047
      %v4157 = vunpack.c.l.b16 %v4061
      %v4158 = vunpack.c.h.b16 %v4061
      %v4159 = vpack.c.b16 %v4131, %v4127
      %v4160 = vpack.c.b16 %v4132, %v4128
      %v4161 = vpack.c.b16 %v4133, %v4129
      %v4162 = vpack.c.b16 %v4134, %v4130
      %v4163 = vpack.c.b16 %v4139, %v4135
      %v4164 = vpack.c.b16 %v4140, %v4136
      %v4165 = vpack.c.b16 %v4141, %v4137
      %v4166 = vpack.c.b16 %v4142, %v4138
      %v4167 = vpack.c.b16 %v4147, %v4143
      %v4168 = vpack.c.b16 %v4148, %v4144
      %v4169 = vpack.c.b16 %v4149, %v4145
      %v4170 = vpack.c.b16 %v4150, %v4146
      %v4171 = vpack.c.b16 %v4155, %v4151
      %v4172 = vpack.c.b16 %v4156, %v4152
      %v4173 = vpack.c.b16 %v4157, %v4153
      %v4174 = vpack.c.b16 %v4158, %v4154
      %v4255 = vunpack.c.l.b16 %v4063
      %v4256 = vunpack.c.l.b16 %v4064
      %v4257 = vunpack.c.l.b16 %v4065
      %v4258 = vunpack.c.l.b16 %v4066
      %v4259 = vunpack.c.l.b16 %v4067
      %v4260 = vunpack.c.l.b16 %v4068
      %v4261 = vunpack.c.l.b16 %v4069
      %v4262 = vunpack.c.l.b16 %v4070
      %v4263 = vunpack.c.l.b16 %v4071
      %v4264 = vunpack.c.l.b16 %v4072
      %v4265 = vunpack.c.l.b16 %v4073
      %v4266 = vunpack.c.l.b16 %v4074
      %v4267 = vunpack.c.l.b16 %v4075
      %v4268 = vunpack.c.l.b16 %v4076
      %v4269 = vunpack.c.l.b16 %v4077
      %v4270 = vunpack.c.l.b16 %v4078
      %v4271 = vunpack.c.l.b16 %v4079
      %v4272 = vunpack.c.l.b16 %v4080
      %v4273 = vunpack.c.l.b16 %v4081
      %v4274 = vunpack.c.l.b16 %v4082
      %v4275 = vunpack.c.l.b16 %v4083
      %v4276 = vunpack.c.l.b16 %v4084
      %v4277 = vunpack.c.l.b16 %v4085
      %v4278 = vunpack.c.l.b16 %v4086
      %v4279 = vunpack.c.l.b16 %v4087
      %v4280 = vunpack.c.l.b16 %v4088
      %v4281 = vunpack.c.l.b16 %v4089
      %v4282 = vunpack.c.l.b16 %v4090
      %v4283 = vunpack.c.l.b16 %v4091
      %v4284 = vunpack.c.l.b16 %v4092
      %v4285 = vunpack.c.l.b16 %v4093
      %v4286 = vunpack.c.l.b16 %v4094
      %v4287 = vunpack.c.l.b16 %v4095
      %v4288 = vunpack.c.l.b16 %v4096
      %v4289 = vunpack.c.l.b16 %v4097
      %v4290 = vunpack.c.l.b16 %v4098
      %v4291 = vunpack.c.l.b16 %v4099
      %v4292 = vunpack.c.l.b16 %v4100
      %v4293 = vunpack.c.l.b16 %v4101
      %v4294 = vunpack.c.l.b16 %v4102
      %v4295 = vunpack.c.l.b16 %v4103
      %v4296 = vunpack.c.l.b16 %v4104
      %v4297 = vunpack.c.l.b16 %v4105
      %v4298 = vunpack.c.l.b16 %v4106
      %v4299 = vunpack.c.l.b16 %v4107
      %v4300 = vunpack.c.l.b16 %v4108
      %v4301 = vunpack.c.l.b16 %v4109
      %v4302 = vunpack.c.l.b16 %v4110
      %v4303 = vunpack.c.l.b16 %v4111
      %v4304 = vunpack.c.l.b16 %v4112
      %v4305 = vunpack.c.l.b16 %v4113
      %v4306 = vunpack.c.l.b16 %v4114
      %v4307 = vunpack.c.l.b16 %v4115
      %v4308 = vunpack.c.l.b16 %v4116
      %v4309 = vunpack.c.l.b16 %v4117
      %v4310 = vunpack.c.l.b16 %v4118
      %v4311 = vunpack.c.l.b16 %v4119
      %v4312 = vunpack.c.l.b16 %v4120
      %v4313 = vunpack.c.l.b16 %v4121
      %v4314 = vunpack.c.l.b16 %v4122
      %v4315 = vunpack.c.l.b16 %v4123
      %v4316 = vunpack.c.l.b16 %v4124
      %v4317 = vunpack.c.l.b16 %v4125
      %v4318 = vunpack.c.l.b16 %v4126
      %v4319 = vpack.c.b16 %v4256, %v4255
      %v4320 = vpack.c.b16 %v4258, %v4257
      %v4321 = vpack.c.b16 %v4260, %v4259
      %v4322 = vpack.c.b16 %v4262, %v4261
      %v4323 = vpack.c.b16 %v4264, %v4263
      %v4324 = vpack.c.b16 %v4266, %v4265
      %v4325 = vpack.c.b16 %v4268, %v4267
      %v4326 = vpack.c.b16 %v4270, %v4269
      %v4327 = vpack.c.b16 %v4272, %v4271
      %v4328 = vpack.c.b16 %v4274, %v4273
      %v4329 = vpack.c.b16 %v4276, %v4275
      %v4330 = vpack.c.b16 %v4278, %v4277
      %v4331 = vpack.c.b16 %v4280, %v4279
      %v4332 = vpack.c.b16 %v4282, %v4281
      %v4333 = vpack.c.b16 %v4284, %v4283
      %v4334 = vpack.c.b16 %v4286, %v4285
      %v4335 = vpack.c.b16 %v4288, %v4287
      %v4336 = vpack.c.b16 %v4290, %v4289
      %v4337 = vpack.c.b16 %v4292, %v4291
      %v4338 = vpack.c.b16 %v4294, %v4293
      %v4339 = vpack.c.b16 %v4296, %v4295
      %v4340 = vpack.c.b16 %v4298, %v4297
      %v4341 = vpack.c.b16 %v4300, %v4299
      %v4342 = vpack.c.b16 %v4302, %v4301
      %v4343 = vpack.c.b16 %v4304, %v4303
      %v4344 = vpack.c.b16 %v4306, %v4305
      %v4345 = vpack.c.b16 %v4308, %v4307
      %v4346 = vpack.c.b16 %v4310, %v4309
      %v4347 = vpack.c.b16 %v4312, %v4311
      %v4348 = vpack.c.b16 %v4314, %v4313
      %v4349 = vpack.c.b16 %v4316, %v4315
      %v4350 = vpack.c.b16 %v4318, %v4317
      %4383 = vmatprep.subr.bf16.mxu0 0
      %4384 = vmatpush1.bf16.msra.mxu0 %v4319
      %4385 = vmatprep.subr.bf16.mxu0 0
      %4386 = vmatpush1.bf16.msra.mxu0 %v4320
      %4387 = vmatprep.subr.bf16.mxu0 0
      %4388 = vmatpush1.bf16.msra.mxu0 %v4321
      %4389 = vmatprep.subr.bf16.mxu0 0
      %4390 = vmatpush1.bf16.msra.mxu0 %v4322
      %4391 = vmatprep.subr.bf16.mxu0 0
      %4392 = vmatpush1.bf16.msra.mxu0 %v4323
      %4393 = vmatprep.subr.bf16.mxu0 0
      %4394 = vmatpush1.bf16.msra.mxu0 %v4324
      %4395 = vmatprep.subr.bf16.mxu0 0
      %4396 = vmatpush1.bf16.msra.mxu0 %v4325
      %4397 = vmatprep.subr.bf16.mxu0 0
      %4398 = vmatpush1.bf16.msra.mxu0 %v4326
      %4399 = vmatprep.subr.bf16.mxu0 0
      %4400 = vmatpush1.bf16.msra.mxu0 %v4327
      %4401 = vmatprep.subr.bf16.mxu0 0
      %4402 = vmatpush1.bf16.msra.mxu0 %v4328
      %4403 = vmatprep.subr.bf16.mxu0 0
      %4404 = vmatpush1.bf16.msra.mxu0 %v4329
      %4405 = vmatprep.subr.bf16.mxu0 0
      %4406 = vmatpush1.bf16.msra.mxu0 %v4330
      %4407 = vmatprep.subr.bf16.mxu0 0
      %4408 = vmatpush1.bf16.msra.mxu0 %v4331
      %4409 = vmatprep.subr.bf16.mxu0 0
      %4410 = vmatpush1.bf16.msra.mxu0 %v4332
      %4411 = vmatprep.subr.bf16.mxu0 0
      %4412 = vmatpush1.bf16.msra.mxu0 %v4333
      %4413 = vmatprep.subr.bf16.mxu0 0
      %4414 = vmatpush1.bf16.msra.mxu0 %v4334
      %4415 = vmatprep.mubr.bf16.mxu0 %v4160
      %4416 = vmatmul.mubr.bf16.gmra.mrb[0].mxu0 %v4159
      %v4417 = vpop.f32.mrb[0].mxu0
      %v4418 = vadd.f32 0.0, %v4417
      %v4419 = vpop.f32.mrb[0].mxu0
      %v4420 = vpop.f32.mrb[0].mxu0
      %v4421 = vadd.f32 0.0, %v4420
      %v4422 = vpop.f32.mrb[0].mxu0
      %4423 = vmatprep.mubr.bf16.mxu0 %v4164
      %4424 = vmatmul.mubr.bf16.gmra.mrb[0].mxu0 %v4163
      %v4425 = vpop.f32.mrb[0].mxu0
      %v4426 = vadd.f32 0.0, %v4425
      %v4427 = vpop.f32.mrb[0].mxu0
      %v4428 = vpop.f32.mrb[0].mxu0
      %v4429 = vadd.f32 0.0, %v4428
      %v4430 = vpop.f32.mrb[0].mxu0
      %4431 = vmatprep.mubr.bf16.mxu0 %v4168
      %4432 = vmatmul.mubr.bf16.gmra.mrb[0].mxu0 %v4167
      %v4433 = vpop.f32.mrb[0].mxu0
      %v4434 = vadd.f32 0.0, %v4433
      %v4435 = vpop.f32.mrb[0].mxu0
      %v4436 = vpop.f32.mrb[0].mxu0
      %v4437 = vadd.f32 0.0, %v4436
      %v4438 = vpop.f32.mrb[0].mxu0
      %4439 = vmatprep.mubr.bf16.mxu0 %v4172
      %4440 = vmatmul.mubr.bf16.gmra.mrb[0].mxu0 %v4171
      %v4441 = vpop.f32.mrb[0].mxu0
      %v4442 = vadd.f32 0.0, %v4441
      %v4443 = vpop.f32.mrb[0].mxu0
      %v4444 = vpop.f32.mrb[0].mxu0
      %v4445 = vadd.f32 0.0, %v4444
      %v4446 = vpop.f32.mrb[0].mxu0
      %4447 = vdwg.mxu0
      %4448 = vmatprep.subr.bf16.mxu0 0
      %4449 = vmatpush1.bf16.msra.mxu0 %v4335
      %4450 = vmatprep.subr.bf16.mxu0 0
      %4451 = vmatpush1.bf16.msra.mxu0 %v4336
      %4452 = vmatprep.subr.bf16.mxu0 0
      %4453 = vmatpush1.bf16.msra.mxu0 %v4337
      %4454 = vmatprep.subr.bf16.mxu0 0
      %4455 = vmatpush1.bf16.msra.mxu0 %v4338
      %4456 = vmatprep.subr.bf16.mxu0 0
      %4457 = vmatpush1.bf16.msra.mxu0 %v4339
      %4458 = vmatprep.subr.bf16.mxu0 0
      %4459 = vmatpush1.bf16.msra.mxu0 %v4340
      %4460 = vmatprep.subr.bf16.mxu0 0
      %4461 = vmatpush1.bf16.msra.mxu0 %v4341
      %4462 = vmatprep.subr.bf16.mxu0 0
      %4463 = vmatpush1.bf16.msra.mxu0 %v4342
      %4464 = vmatprep.subr.bf16.mxu0 0
      %4465 = vmatpush1.bf16.msra.mxu0 %v4343
      %4466 = vmatprep.subr.bf16.mxu0 0
      %4467 = vmatpush1.bf16.msra.mxu0 %v4344
      %4468 = vmatprep.subr.bf16.mxu0 0
      %4469 = vmatpush1.bf16.msra.mxu0 %v4345
      %4470 = vmatprep.subr.bf16.mxu0 0
      %4471 = vmatpush1.bf16.msra.mxu0 %v4346
      %4472 = vmatprep.subr.bf16.mxu0 0
      %4473 = vmatpush1.bf16.msra.mxu0 %v4347
      %4474 = vmatprep.subr.bf16.mxu0 0
      %4475 = vmatpush1.bf16.msra.mxu0 %v4348
      %4476 = vmatprep.subr.bf16.mxu0 0
      %4477 = vmatpush1.bf16.msra.mxu0 %v4349
      %4478 = vmatprep.subr.bf16.mxu0 0
      %4479 = vmatpush1.bf16.msra.mxu0 %v4350
      %4480 = vmatprep.mubr.bf16.mxu0 %v4162
      %4481 = vmatmul.mubr.bf16.gmra.mrb[0].mxu0 %v4161
      %v4482 = vpop.f32.mrb[0].mxu0
      %v4483 = vadd.f32 %v4418, %v4482
      %v4484 = vpop.f32.mrb[0].mxu0
      %v4485 = vpop.f32.mrb[0].mxu0
      %v4486 = vadd.f32 %v4421, %v4485
      %v4487 = vpop.f32.mrb[0].mxu0
      %4488 = vmatprep.mubr.bf16.mxu0 %v4166
      %4489 = vmatmul.mubr.bf16.gmra.mrb[0].mxu0 %v4165
      %v4490 = vpop.f32.mrb[0].mxu0
      %v4491 = vadd.f32 %v4426, %v4490
      %v4492 = vpop.f32.mrb[0].mxu0
      %v4493 = vpop.f32.mrb[0].mxu0
      %v4494 = vadd.f32 %v4429, %v4493
      %v4495 = vpop.f32.mrb[0].mxu0
      %4496 = vmatprep.mubr.bf16.mxu0 %v4170
      %4497 = vmatmul.mubr.bf16.gmra.mrb[0].mxu0 %v4169
      %v4498 = vpop.f32.mrb[0].mxu0
      %v4499 = vadd.f32 %v4434, %v4498
      %v4500 = vpop.f32.mrb[0].mxu0
      %v4501 = vpop.f32.mrb[0].mxu0
      %v4502 = vadd.f32 %v4437, %v4501
      %v4503 = vpop.f32.mrb[0].mxu0
      %4504 = vmatprep.mubr.bf16.mxu0 %v4174
      %4505 = vmatmul.mubr.bf16.gmra.mrb[0].mxu0 %v4173
      %v4506 = vpop.f32.mrb[0].mxu0
      %v4507 = vadd.f32 %v4442, %v4506
      %v4508 = vpop.f32.mrb[0].mxu0
      %v4509 = vpop.f32.mrb[0].mxu0
      %v4510 = vadd.f32 %v4445, %v4509
      %v4511 = vpop.f32.mrb[0].mxu0
      %4512 = vdwg.mxu0
      %v4513 = vld [vmem:[%s2] sm:$0x1]
      %v4515 = vlaneseq
      %v4516 = vshrl.u32 %v4515, 7
      %v4517 = vsub.s32 0, %v4516
      %v4518 = vrot.slane %v4513, %v4517
      %v4520 = vmul.f32 %v4483, %v4518
      %v4521 = vmul.f32 %v4486, %v4518
      %v4522 = vmul.f32 %v4491, %v4518
      %v4523 = vmul.f32 %v4494, %v4518
      %v4524 = vmul.f32 %v4499, %v4518
      %v4525 = vmul.f32 %v4502, %v4518
      %v4526 = vmul.f32 %v4507, %v4518
      %v4527 = vmul.f32 %v4510, %v4518
      %v4528 = vld [vmem:[%s3] sm:$0x1]
      %v4530 = vlaneseq
      %v4531 = vshrl.u32 %v4530, 7
      %v4532 = vsub.s32 0, %v4531
      %v4533 = vrot.slane %v4528, %v4532
      %v4535 = vadd.f32 %v4520, %v4533
      %v4536 = vadd.f32 %v4521, %v4533
      %v4537 = vadd.f32 %v4522, %v4533
      %v4538 = vadd.f32 %v4523, %v4533
      %v4539 = vadd.f32 %v4524, %v4533
      %v4540 = vadd.f32 %v4525, %v4533
      %v4541 = vadd.f32 %v4526, %v4533
      %v4542 = vadd.f32 %v4527, %v4533
      %v4543 = vmax.f32 %v4535, 0.0
      %v4544 = vmax.f32 %v4536, 0.0
      %v4545 = vmax.f32 %v4537, 0.0
      %v4546 = vmax.f32 %v4538, 0.0
      %v4547 = vmax.f32 %v4539, 0.0
      %v4548 = vmax.f32 %v4540, 0.0
      %v4549 = vmax.f32 %v4541, 0.0
      %v4550 = vmax.f32 %v4542, 0.0
      %v4551 = vpack.c.bf16 %v4544, %v4543
      %v4552 = vpack.c.bf16 %v4546, %v4545
      %v4553 = vpack.c.bf16 %v4548, %v4547
      %v4554 = vpack.c.bf16 %v4550, %v4549
      %v4555 = vld [vmem:[%s4] sm:$0xf]
      %v4556 = vld [vmem:[%s4 + $0x4] sm:$0xf]
      %v4557 = vld [vmem:[%s4 + $0x8] sm:$0xf]
      %v4558 = vld [vmem:[%s4 + $0xc] sm:$0xf]
      %v4559 = vld [vmem:[%s4 + $0x10] sm:$0xf]
      %v4560 = vld [vmem:[%s4 + $0x14] sm:$0xf]
      %v4561 = vld [vmem:[%s4 + $0x18] sm:$0xf]
      %v4562 = vld [vmem:[%s4 + $0x1c] sm:$0xf]
      %v4563 = vld [vmem:[%s4 + $0x20] sm:$0xf]
      %v4564 = vld [vmem:[%s4 + $0x24] sm:$0xf]
      %v4565 = vld [vmem:[%s4 + $0x28] sm:$0xf]
      %v4566 = vld [vmem:[%s4 + $0x2c] sm:$0xf]
      %v4567 = vld [vmem:[%s4 + $0x30] sm:$0xf]
      %v4568 = vld [vmem:[%s4 + $0x34] sm:$0xf]
      %v4569 = vld [vmem:[%s4 + $0x38] sm:$0xf]
      %v4570 = vld [vmem:[%s4 + $0x3c] sm:$0xf]
      %v4587 = vunpack.c.l.b16 %v4555
      %v4588 = vunpack.c.l.b16 %v4556
      %v4589 = vunpack.c.l.b16 %v4557
      %v4590 = vunpack.c.l.b16 %v4558
      %v4591 = vunpack.c.l.b16 %v4559
      %v4592 = vunpack.c.l.b16 %v4560
      %v4593 = vunpack.c.l.b16 %v4561
      %v4594 = vunpack.c.l.b16 %v4562
      %v4595 = vunpack.c.l.b16 %v4563
      %v4596 = vunpack.c.l.b16 %v4564
      %v4597 = vunpack.c.l.b16 %v4565
      %v4598 = vunpack.c.l.b16 %v4566
      %v4599 = vunpack.c.l.b16 %v4567
      %v4600 = vunpack.c.l.b16 %v4568
      %v4601 = vunpack.c.l.b16 %v4569
      %v4602 = vunpack.c.l.b16 %v4570
      %v4603 = vpack.c.b16 %v4588, %v4587
      %v4604 = vpack.c.b16 %v4590, %v4589
      %v4605 = vpack.c.b16 %v4592, %v4591
      %v4606 = vpack.c.b16 %v4594, %v4593
      %v4607 = vpack.c.b16 %v4596, %v4595
      %v4608 = vpack.c.b16 %v4598, %v4597
      %v4609 = vpack.c.b16 %v4600, %v4599
      %v4610 = vpack.c.b16 %v4602, %v4601
      %4619 = vmatprep.subr.bf16.mxu0 0
      %4620 = vmatpush1.bf16.msra.mxu0 %v4603
      %4621 = vmatprep.subr.bf16.mxu0 0
      %4622 = vmatpush1.bf16.msra.mxu0 %v4604
      %4623 = vmatprep.subr.bf16.mxu0 0
      %4624 = vmatpush1.bf16.msra.mxu0 %v4605
      %4625 = vmatprep.subr.bf16.mxu0 0
      %4626 = vmatpush1.bf16.msra.mxu0 %v4606
      %4627 = vmatprep.subr.bf16.mxu0 0
      %4628 = vmatpush1.bf16.msra.mxu0 %v4607
      %4629 = vmatprep.subr.bf16.mxu0 0
      %4630 = vmatpush1.bf16.msra.mxu0 %v4608
      %4631 = vmatprep.subr.bf16.mxu0 0
      %4632 = vmatpush1.bf16.msra.mxu0 %v4609
      %4633 = vmatprep.subr.bf16.mxu0 0
      %4634 = vmatpush1.bf16.msra.mxu0 %v4610
      %4635 = vmatprep.subr.bf16.mxu0 0
      %4636 = vmatpush1.bf16.msra.mxu0 0
      %4637 = vmatprep.subr.bf16.mxu0 0
      %4638 = vmatpush1.bf16.msra.mxu0 0
      %4639 = vmatprep.subr.bf16.mxu0 0
      %4640 = vmatpush1.bf16.msra.mxu0 0
      %4641 = vmatprep.subr.bf16.mxu0 0
      %4642 = vmatpush1.bf16.msra.mxu0 0
      %4643 = vmatprep.subr.bf16.mxu0 0
      %4644 = vmatpush1.bf16.msra.mxu0 0
      %4645 = vmatprep.subr.bf16.mxu0 0
      %4646 = vmatpush1.bf16.msra.mxu0 0
      %4647 = vmatprep.subr.bf16.mxu0 0
      %4648 = vmatpush1.bf16.msra.mxu0 0
      %4649 = vmatprep.subr.bf16.mxu0 0
      %4650 = vmatpush1.bf16.msra.mxu0 0
      %4651 = vmatprep.mubr.bf16.mxu0 0
      %4652 = vmatmul.mubr.bf16.gmra.mrb[0].mxu0 %v4551
      %v4653 = vpop.f32.mrb[0].mxu0
      %v4654 = vadd.f32 0.0, %v4653
      %v4655 = vpop.f32.mrb[0].mxu0
      %v4656 = vpop.f32.mrb[0].mxu0
      %v4657 = vadd.f32 0.0, %v4656
      %v4658 = vpop.f32.mrb[0].mxu0
      %4659 = vmatprep.mubr.bf16.mxu0 0
      %4660 = vmatmul.mubr.bf16.gmra.mrb[0].mxu0 %v4552
      %v4661 = vpop.f32.mrb[0].mxu0
      %v4662 = vadd.f32 0.0, %v4661
      %v4663 = vpop.f32.mrb[0].mxu0
      %v4664 = vpop.f32.mrb[0].mxu0
      %v4665 = vadd.f32 0.0, %v4664
      %v4666 = vpop.f32.mrb[0].mxu0
      %4667 = vmatprep.mubr.bf16.mxu0 0
      %4668 = vmatmul.mubr.bf16.gmra.mrb[0].mxu0 %v4553
      %v4669 = vpop.f32.mrb[0].mxu0
      %v4670 = vadd.f32 0.0, %v4669
      %v4671 = vpop.f32.mrb[0].mxu0
      %v4672 = vpop.f32.mrb[0].mxu0
      %v4673 = vadd.f32 0.0, %v4672
      %v4674 = vpop.f32.mrb[0].mxu0
      %4675 = vmatprep.mubr.bf16.mxu0 0
      %4676 = vmatmul.mubr.bf16.gmra.mrb[0].mxu0 %v4554
      %v4677 = vpop.f32.mrb[0].mxu0
      %v4678 = vadd.f32 0.0, %v4677
      %v4679 = vpop.f32.mrb[0].mxu0
      %v4680 = vpop.f32.mrb[0].mxu0
      %v4681 = vadd.f32 0.0, %v4680
      %v4682 = vpop.f32.mrb[0].mxu0
      %4683 = vdwg.mxu0
      %v4684 = vld [vmem:[%s5] sm:$0x1]
      %v4686 = vlaneseq
      %v4687 = vshrl.u32 %v4686, 7
      %v4688 = vsub.s32 0, %v4687
      %v4689 = vrot.slane %v4684, %v4688
      %v4691 = vmul.f32 %v4654, %v4689
      %v4692 = vmul.f32 %v4657, %v4689
      %v4693 = vmul.f32 %v4662, %v4689
      %v4694 = vmul.f32 %v4665, %v4689
      %v4695 = vmul.f32 %v4670, %v4689
      %v4696 = vmul.f32 %v4673, %v4689
      %v4697 = vmul.f32 %v4678, %v4689
      %v4698 = vmul.f32 %v4681, %v4689
      %v4699 = vld [vmem:[%s6] sm:$0x1]
      %v4701 = vlaneseq
      %v4702 = vshrl.u32 %v4701, 7
      %v4703 = vsub.s32 0, %v4702
      %v4704 = vrot.slane %v4699, %v4703
      %v4706 = vadd.f32 %v4691, %v4704
      %v4707 = vadd.f32 %v4692, %v4704
      %v4708 = vadd.f32 %v4693, %v4704
      %v4709 = vadd.f32 %v4694, %v4704
      %v4710 = vadd.f32 %v4695, %v4704
      %v4711 = vadd.f32 %v4696, %v4704
      %v4712 = vadd.f32 %v4697, %v4704
      %v4713 = vadd.f32 %v4698, %v4704
      %v4714 = vmax.f32 %v4706, 0.0
      %v4715 = vmax.f32 %v4707, 0.0
      %v4716 = vmax.f32 %v4708, 0.0
      %v4717 = vmax.f32 %v4709, 0.0
      %v4718 = vmax.f32 %v4710, 0.0
      %v4719 = vmax.f32 %v4711, 0.0
      %v4720 = vmax.f32 %v4712, 0.0
      %v4721 = vmax.f32 %v4713, 0.0
      %v4722 = vpack.c.bf16 %v4715, %v4714
      %v4723 = vpack.c.bf16 %v4717, %v4716
      %v4724 = vpack.c.bf16 %v4719, %v4718
      %v4725 = vpack.c.bf16 %v4721, %v4720
      %v4730 = vunpack.c.l.b16 %v4722
      %v4731 = vunpack.c.h.b16 %v4722
      %v4732 = vunpack.c.l.b16 %v4723
      %v4733 = vunpack.c.h.b16 %v4723
      %v4734 = vunpack.c.l.b16 %v4724
      %v4735 = vunpack.c.h.b16 %v4724
      %v4736 = vunpack.c.l.b16 %v4725
      %v4737 = vunpack.c.h.b16 %v4725
      %v4738 = vpack.c.b16 %v4730, %v4730
      %v4739 = vpack.c.b16 %v4731, %v4731
      %v4740 = vpack.c.b16 %v4732, %v4732
      %v4741 = vpack.c.b16 %v4733, %v4733
      %v4742 = vpack.c.b16 %v4734, %v4734
      %v4743 = vpack.c.b16 %v4735, %v4735
      %v4744 = vpack.c.b16 %v4736, %v4736
      %v4745 = vpack.c.b16 %v4737, %v4737
      %s4754 = scalar_lea.vmem %s345, 96
      %4755 = vst [vmem:[%s4754] sm:$0xf] %v4738
      %4756 = vst [vmem:[%s4754 + $0x4] sm:$0xf] %v4739
      %4757 = vst [vmem:[%s4754 + $0x8] sm:$0xf] %v4740
      %4758 = vst [vmem:[%s4754 + $0xc] sm:$0xf] %v4741
      %4759 = vst [vmem:[%s4754 + $0x10] sm:$0xf] %v4742
      %4760 = vst [vmem:[%s4754 + $0x14] sm:$0xf] %v4743
      %4761 = vst [vmem:[%s4754 + $0x18] sm:$0xf] %v4744
      %4762 = vst [vmem:[%s4754 + $0x1c] sm:$0xf] %v4745
      %v4763 = vunpack.c.l.bf16 %v4722
      %v4764 = vunpack.c.h.bf16 %v4722
      %v4765 = vunpack.c.l.bf16 %v4723
      %v4766 = vunpack.c.h.bf16 %v4723
      %v4767 = vunpack.c.l.bf16 %v4724
      %v4768 = vunpack.c.h.bf16 %v4724
      %v4769 = vunpack.c.l.bf16 %v4725
      %v4770 = vunpack.c.h.bf16 %v4725
      %v4771 = vadd.f32 %v4763, %v4764
      %v4772 = vadd.f32 %v4771, %v4765
      %v4773 = vadd.f32 %v4772, %v4766
      %v4774 = vadd.f32 %v4773, %v4767
      %v4775 = vadd.f32 %v4774, %v4768
      %v4776 = vadd.f32 %v4775, %v4769
      %v4777 = vadd.f32 %v4776, %v4770
      %v4778 = vrot.slane %v4777, 4
      %v4779 = vadd.f32 %v4777, %v4778
      %v4780 = vrot.slane %v4779, 2
      %v4781 = vadd.f32 %v4779, %v4780
      %v4782 = vrot.slane %v4781, 1
      %v4783 = vadd.f32 %v4781, %v4782
      %v4784 = vadd.f32 %v3501, %v4783
      %4785 = vst [vmem:[%s351] sm:$0x1] %v4784
      %s4786 = smul.u32 4, %s24
      %s4787 = smul.u32 8, %s25
      %p4788 = scmp.lt.s32.totalorder %s4786, 7
      %s4789 = scalar_select %p4788, %s4786, 7
      %p4790 = scmp.lt.s32.totalorder %s4787, 7
      %s4791 = scalar_select %p4790, %s4787, 7
      %s4792 = smul.addr %s4789, 8
      %s4793 = sadd.s32 %s4791, %s4792
      %s4794 = smul.addr %s4793, 4
      %s4795 = scalar_lea.vmem %s7, %s4794
      %s4796 = sadd.s32 %s24, %s25
      %p4797 = scmp.lt.s32.totalorder %s4796, 1
      %s4798 = scalar_select %p4797, %s4796, 1
      %s4799 = scalar_lea.vmem %s8, %s4798
      // Predicated region
      $region49: #{decoder_block_forward.5} parent=47 // pred_check
        %p4800 = pneg %p206
      $region50: #{decoder_block_forward.5} parent=47 // pred_check_branch
        %4802 = sbr.rel (%p4800) target = $region52
      $region51: #{decoder_block_forward.5} parent=47 // pred_region
        %s4803 = smul.u32 4, %s24
        %s4804 = smul.u32 8, %s25
      $region52: #{decoder_block_forward.5} parent=47 // pred_fallthru
        _
      // Predicated region
      $region53: #{decoder_block_forward.5} parent=47 // pred_check
        %p4805 = pneg %p234
      $region54: #{decoder_block_forward.5} parent=47 // pred_check_branch
        %4807 = sbr.rel (%p4805) target = $region56
      $region55: #{decoder_block_forward.5} parent=47 // pred_region
        %s4808 = sadd.s32 %s24, %s25
      $region56: #{decoder_block_forward.5} parent=47 // pred_fallthru
        _
    $region48: #{decoder_block_forward.5} parent=5 // pred_fallthru
      _
    %p4809 = scmp.le.s32.totalorder 2, %s15
    // Predicated region
    $region57: #{decoder_block_forward.5} parent=5 // pred_check
      %p4810 = pneg %p4809
    $region58: #{decoder_block_forward.5} parent=5 // pred_check_branch
      %4812 = sbr.rel (%p4810) target = $region60
    $region59: #{decoder_block_forward.5} parent=5 // pred_region
      %s4813 = ssub.s32 %s15, 2
      // Predicated region
      $region61: #{decoder_block_forward.5} parent=59 // pred_check
        %p4814 = pneg %p212
      $region62: #{decoder_block_forward.5} parent=59 // pred_check_branch
        %4816 = sbr.rel (%p4814) target = $region64
      $region63: #{decoder_block_forward.5} parent=59 // pred_region
        %s4817 = smul.u32 4, %s26
        %s4818 = smul.u32 8, %s27
        %p4819 = scmp.lt.s32.totalorder %s4817, 7
        %s4820 = scalar_select %p4819, %s4817, 7
        %p4821 = scmp.lt.s32.totalorder %s4818, 7
        %s4822 = scalar_select %p4821, %s4818, 7
        %s4823 = smul.addr %s4820, 8
        %s4824 = sadd.s32 %s4822, %s4823
        %s4825 = smul.addr %s4824, 4
        %s4826 = scalar_lea.vmem %s7, %s4825
      $region64: #{decoder_block_forward.5} parent=59 // pred_fallthru
        _
      // Predicated region
      $region65: #{decoder_block_forward.5} parent=59 // pred_check
        %p4827 = pneg %p240
      $region66: #{decoder_block_forward.5} parent=59 // pred_check_branch
        %4829 = sbr.rel (%p4827) target = $region68
      $region67: #{decoder_block_forward.5} parent=59 // pred_region
        %s4830 = sadd.s32 %s26, %s27
        %p4831 = scmp.lt.s32.totalorder %s4830, 1
        %s4832 = scalar_select %p4831, %s4830, 1
        %s4833 = scalar_lea.vmem %s8, %s4832
      $region68: #{decoder_block_forward.5} parent=59 // pred_fallthru
        _
    $region60: #{decoder_block_forward.5} parent=5 // pred_fallthru
      _
  $region6: #{decoder_block_forward.5} parent=0 // loop_footer
    %s19 = sadd.s32 1, %s15
  $region7: #{decoder_block_forward.5} parent=0 // loop_footer_branch
    %14 = sbr.rel target = $region3
  $region8: #{decoder_block_forward.5} parent=0 // loop_exit
    _

</llo_original>
